<compile_context>
chip_gen: v5e
topology: v5e:2x2
jax: 0.10.0
libtpu: 0.0.40
codegen_flags: <defaults>
</compile_context>

<pallas_src>
import functools

import jax
import jax.numpy as jnp
from jax.experimental import pallas as pl
from jax.experimental.pallas import tpu as pltpu


TB = 8  # batch tile per grid step (multiple of 8 -> all row blocks sublane-aligned)


# ------------------------------ fused kernel ------------------------------

def _net_kernel(x_ref, b1m_ref, b1c_ref, c2m_ref, b2c_ref, w1p_ref, b1f_ref,
                w2p_ref, b2f_ref, out_ref, p0_ref, p1_ref, *, tb):
    """Whole network for one batch tile, fully resident in VMEM.

    x_ref  : (8, 1, 6*tb, 28) f32   x_ref[s, 0, m*tb + n, :] == image[n, 4*m + s, :]
    b1m_ref: (2, 5, 28, 240) bf16   conv1 banded matrices  [x-parity, dy]
    c2m_ref: (2, 5, 240, 200) bf16  conv2 banded matrices  [x-parity, dy]
    w1p_ref: (4, 200, 500) bf16     fc1 weights split by pooled row ry
    w2p_ref: (500, 128) bf16        fc2 weights padded 10 -> 128 output lanes
    p0/p1  : (6*tb, 240) f32 VMEM   pooled conv1 activations split by row parity;
                                    rows=(pooled_row m, batch n), cols=(ic, px)
    """
    f32 = jnp.float32
    bf16 = jnp.bfloat16
    p_refs = (p0_ref, p1_ref)

    # ---- conv1(5x5, 1->20) + ReLU + 2x2 max-pool --------------------------
    for t in range(2):                       # parity of the pooled output row
        acc = None
        for j in range(2):                   # conv row inside the 2x2 pool window
            for xp in range(2):              # conv col parity inside the pool window
                g = None
                for dy in range(5):          # vertical tap of the 5x5 kernel
                    s = 2 * t + j + dy       # input row offset (0..7)
                    lhs = x_ref[s, 0, :, :].astype(bf16)              # (6*tb, 28)
                    r = jnp.dot(lhs, b1m_ref[xp, dy, :, :],
                                preferred_element_type=f32)           # (6*tb, 240)
                    g = r if g is None else g + r
                acc = g if acc is None else jnp.maximum(acc, g)
        p_refs[t][...] = jnp.maximum(acc + b1c_ref[...], 0.0)

    # ---- conv2(5x5, 20->50) + ReLU + 2x2 max-pool -------------------------
    acc2 = None
    for u in range(2):                       # conv row inside the 2x2 pool window
        for v in range(2):                   # conv col parity inside the pool window
            g = None
            for dy in range(5):
                e = u + dy                   # pooled1 row offset (0..5)
                lhs = p_refs[e % 2][(e // 2) * tb:(e // 2 + 4) * tb, :]
                r = jnp.dot(lhs.astype(bf16), c2m_ref[v, dy, :, :],
                            preferred_element_type=f32)               # (4*tb, 200)
                g = r if g is None else g + r
            acc2 = g if acc2 is None else jnp.maximum(acc2, g)
    pooled2 = jnp.maximum(acc2 + b2c_ref[...], 0.0)    # rows=(ry, n), cols=(oc, rx)

    # ---- fc1(800->500) + ReLU ---------------------------------------------
    h = None
    for ry in range(4):
        blk = pooled2[ry * tb:(ry + 1) * tb, :].astype(bf16)           # (tb, 200)
        r = jnp.dot(blk, w1p_ref[ry, :, :], preferred_element_type=f32)
        h = r if h is None else h + r
    h = jnp.maximum(h + b1f_ref[...], 0.0)                             # (tb, 500)

    # ---- fc2(500->10) + log_softmax on 128 padded lanes --------------------
    logits = jnp.dot(h.astype(bf16), w2p_ref[...],
                     preferred_element_type=f32) + b2f_ref[...]        # (tb, 128)
    col = jax.lax.broadcasted_iota(jnp.int32, logits.shape, 1)
    logits = jnp.where(col < 10, logits, -1e30)                        # mask padding
    m = jnp.max(logits, axis=-1, keepdims=True)
    sh = logits - m
    lse = jnp.log(jnp.sum(jnp.exp(sh), axis=-1, keepdims=True))
    out_ref[...] = (sh - lse).astype(out_ref.dtype)


# ------------------------- one-time weight packing -------------------------

def preprocess_params(params):
    """Pack PyTorch-style params into MXU-friendly, pre-transposed / pre-padded
    matrices once (hoisted out of the forward pass)."""
    f32, bf16 = jnp.float32, jnp.bfloat16
    w1 = params["conv1_w"].astype(f32)          # (20, 1, 5, 5)   OIHW
    w2 = params["conv2_w"].astype(f32)          # (50, 20, 5, 5)  OIHW

    # conv1 banded matrices: B1[xp, dy, w_in, oc*12+px] = w1[oc,0,dy, w_in-(2px+xp)]
    xp = jnp.arange(2).reshape(2, 1, 1, 1, 1)
    dy = jnp.arange(5).reshape(1, 5, 1, 1, 1)
    w_in = jnp.arange(28).reshape(1, 1, 28, 1, 1)
    oc1 = jnp.arange(20).reshape(1, 1, 1, 20, 1)
    px = jnp.arange(12).reshape(1, 1, 1, 1, 12)
    dx = w_in - (2 * px + xp)
    b1m = jnp.where((dx >= 0) & (dx <= 4),
                    w1[oc1, 0, dy, jnp.clip(dx, 0, 4)], 0.0)
    b1m = b1m.reshape(2, 5, 28, 240)

    # conv2 banded matrices: C2[v, dy, ic*12+pxc, oc*4+rx] = w2[oc,ic,dy, pxc-(2rx+v)]
    v = jnp.arange(2).reshape(2, 1, 1, 1, 1, 1)
    dy2 = jnp.arange(5).reshape(1, 5, 1, 1, 1, 1)
    ic = jnp.arange(20).reshape(1, 1, 20, 1, 1, 1)
    pxc = jnp.arange(12).reshape(1, 1, 1, 12, 1, 1)
    oc2 = jnp.arange(50).reshape(1, 1, 1, 1, 50, 1)
    rx = jnp.arange(4).reshape(1, 1, 1, 1, 1, 4)
    dx2 = pxc - (2 * rx + v)
    c2m = jnp.where((dx2 >= 0) & (dx2 <= 4),
                    w2[oc2, ic, dy2, jnp.clip(dx2, 0, 4)], 0.0)
    c2m = c2m.reshape(2, 5, 240, 200)

    # fc1 weights split by pooled row ry: W1p[ry, oc*4+rx, h] = fc1_w[h, oc*16+ry*4+rx]
    w1p = jnp.transpose(params["fc1_w"].reshape(500, 50, 4, 4), (2, 1, 3, 0))
    w1p = w1p.reshape(4, 200, 500)

    # fc2 weights / bias padded from 10 to 128 output lanes.
    w2p = jnp.zeros((500, 128), f32).at[:, :10].set(params["fc2_w"].T)
    b2f = jnp.zeros((1, 128), f32).at[0, :10].set(params["fc2_b"])

    return {
        "b1m": b1m.astype(bf16),
        "b1c": jnp.repeat(params["conv1_b"], 12).reshape(1, 240).astype(f32),
        "c2m": c2m.astype(bf16),
        "b2c": jnp.repeat(params["conv2_b"], 4).reshape(1, 200).astype(f32),
        "w1p": w1p.astype(bf16),
        "b1f": params["fc1_b"].reshape(1, 500).astype(f32),
        "w2p": w2p.astype(bf16),
        "b2f": b2f,
    }


# ------------------------------ forward pass -------------------------------

@jax.jit
def net_forward(prep, x):
    """x: (N, 1, 28, 28) NCHW -> (N, 10) log-probabilities."""
    n = x.shape[0]
    tb = TB
    npad = ((n + tb - 1) // tb) * tb
    nb = npad // tb

    # Gather the input rows once (tiny XLA op) so every in-kernel slice is a
    # contiguous, sublane-aligned block:
    #   xg[s, b, m*tb + k, :] = image[b*tb + k, 4*m + s, :]
    img = jnp.pad(x[:, 0].astype(jnp.float32), ((0, npad - n), (0, 0), (0, 0)))
    rows = 4 * jnp.arange(6)[None, :] + jnp.arange(8)[:, None]         # (8, 6)
    xg = img[:, rows, :]                                               # (npad, 8, 6, 28)
    xg = jnp.transpose(xg, (1, 0, 2, 3)).reshape(8, nb, tb, 6, 28)
    xg = jnp.transpose(xg, (0, 1, 3, 2, 4)).reshape(8, nb, 6 * tb, 28)

    out = pl.pallas_call(
        functools.partial(_net_kernel, tb=tb),
        out_shape=jax.ShapeDtypeStruct((npad, 128), jnp.float32),
        grid=(nb,),
        in_specs=[
            pl.BlockSpec((8, 1, 6 * tb, 28), lambda b: (0, b, 0, 0)),   # input rows
            pl.BlockSpec((2, 5, 28, 240), lambda b: (0, 0, 0, 0)),      # conv1 mats
            pl.BlockSpec((1, 240), lambda b: (0, 0)),                   # conv1 bias
            pl.BlockSpec((2, 5, 240, 200), lambda b: (0, 0, 0, 0)),     # conv2 mats
            pl.BlockSpec((1, 200), lambda b: (0, 0)),                   # conv2 bias
            pl.BlockSpec((4, 200, 500), lambda b: (0, 0, 0)),           # fc1 weights
            pl.BlockSpec((1, 500), lambda b: (0, 0)),                   # fc1 bias
            pl.BlockSpec((500, 128), lambda b: (0, 0)),                 # fc2 weights
            pl.BlockSpec((1, 128), lambda b: (0, 0)),                   # fc2 bias
        ],
        out_specs=pl.BlockSpec((tb, 128), lambda b: (b, 0)),
        scratch_shapes=[
            pltpu.VMEM((6 * tb, 240), jnp.float32),   # pooled conv1, even rows
            pltpu.VMEM((6 * tb, 240), jnp.float32),   # pooled conv1, odd rows
        ],
        compiler_params=pltpu.CompilerParams(
            dimension_semantics=("parallel",)),
    )(xg, prep["b1m"], prep["b1c"], prep["c2m"], prep["b2c"],
      prep["w1p"], prep["b1f"], prep["w2p"], prep["b2f"])
    return out[:n, :10]


# --------------------------- reference / params ----------------------------

def init_params(key):
    """Deterministic PyTorch-default-style uniform(+-1/sqrt(fan_in)) init."""
    def uni(k, shape, fan_in):
        bound = 1.0 / float(fan_in) ** 0.5
        return jax.random.uniform(k, shape, jnp.float32, -bound, bound)

    ks = jax.random.split(key, 8)
    return {
        "conv1_w": uni(ks[0], (20, 1, 5, 5), 1 * 5 * 5),
        "conv1_b": uni(ks[1], (20,), 1 * 5 * 5),
        "conv2_w": uni(ks[2], (50, 20, 5, 5), 20 * 5 * 5),
        "conv2_b": uni(ks[3], (50,), 20 * 5 * 5),
        "fc1_w":   uni(ks[4], (500, 800), 800),   # PyTorch Linear: (out, in)
        "fc1_b":   uni(ks[5], (500,), 800),
        "fc2_w":   uni(ks[6], (10, 500), 500),
        "fc2_b":   uni(ks[7], (10,), 500),
    }


def reference_forward(params, x):
    """Pure-XLA f32 reference matching the PyTorch module."""
    y = jax.lax.conv_general_dilated(
        x.astype(jnp.float32), params["conv1_w"], (1, 1), "VALID",
        dimension_numbers=("NCHW", "OIHW", "NCHW"))
    y = jax.nn.relu(y + params["conv1_b"][None, :, None, None])
    y = jax.lax.reduce_window(y, -jnp.inf, jax.lax.max, (1, 1, 2, 2), (1, 1, 2, 2), "VALID")
    y = jax.lax.conv_general_dilated(
        y, params["conv2_w"], (1, 1), "VALID",
        dimension_numbers=("NCHW", "OIHW", "NCHW"))
    y = jax.nn.relu(y + params["conv2_b"][None, :, None, None])
    y = jax.lax.reduce_window(y, -jnp.inf, jax.lax.max, (1, 1, 2, 2), (1, 1, 2, 2), "VALID")
    y = y.reshape(y.shape[0], -1)
    y = jax.nn.relu(y @ params["fc1_w"].T + params["fc1_b"])
    y = y @ params["fc2_w"].T + params["fc2_b"]
    return jax.nn.log_softmax(y, axis=-1)


if __name__ == "__main__":
    key = jax.random.PRNGKey(0)
    pkey, xkey = jax.random.split(key)
    params = init_params(pkey)
    prep = preprocess_params(params)   # one-time weight packing (out of the hot path)

    # Input must be 28x28 for the 4*4*50 flatten to hold (MNIST-style).
    x = jax.random.normal(xkey, (2, 1, 28, 28), dtype=jnp.float32)

    out = net_forward(prep, x)
    out = jax.block_until_ready(out)
    assert out.shape == (2, 10)

    # Rows of log_softmax must exponentiate-sum to ~1.
    assert bool(jnp.all(jnp.abs(jnp.sum(jnp.exp(out), axis=1) - 1.0) < 1e-3))

    # Cross-check against the pure-XLA f32 reference (bf16 MXU operands -> loose tol).
    ref = reference_forward(params, x)
    diff = float(jnp.max(jnp.abs(out - ref)))
    assert diff < 5e-2, diff

    print("KERNEL_OK")
</pallas_src>

<mosaic_0001>
module attributes {stable_mosaic.version = 11 : i64} {
  func.func @_net_kernel(%arg0: i32, %arg1: memref<8x1x48x28xf32, #tpu.memory_space<vmem>>, %arg2: memref<2x5x28x240xbf16, #tpu.memory_space<vmem>>, %arg3: memref<1x240xf32, #tpu.memory_space<vmem>>, %arg4: memref<2x5x240x200xbf16, #tpu.memory_space<vmem>>, %arg5: memref<1x200xf32, #tpu.memory_space<vmem>>, %arg6: memref<4x200x500xbf16, #tpu.memory_space<vmem>>, %arg7: memref<1x500xf32, #tpu.memory_space<vmem>>, %arg8: memref<500x128xbf16, #tpu.memory_space<vmem>>, %arg9: memref<1x128xf32, #tpu.memory_space<vmem>>, %arg10: memref<8x128xf32, #tpu.memory_space<vmem>>, %arg11: memref<48x240xf32, #tpu.memory_space<vmem>>, %arg12: memref<48x240xf32, #tpu.memory_space<vmem>>) attributes {dimension_semantics = [#tpu.dimension_semantics<parallel>], iteration_bounds = array<i64: 1>, scalar_prefetch = 0 : i64, scratch_operands = 2 : i64, tpu.core_type = #tpu.core_type<tc>, window_params = [{transform_indices = @transform_0, window_bounds = array<i64: 8, 1, 48, 28>}, {pipeline_mode = #tpu.pipeline_mode<synchronous>, transform_indices = @transform_1, window_bounds = array<i64: 2, 5, 28, 240>}, {pipeline_mode = #tpu.pipeline_mode<synchronous>, transform_indices = @transform_2, window_bounds = array<i64: 1, 240>}, {pipeline_mode = #tpu.pipeline_mode<synchronous>, transform_indices = @transform_3, window_bounds = array<i64: 2, 5, 240, 200>}, {pipeline_mode = #tpu.pipeline_mode<synchronous>, transform_indices = @transform_4, window_bounds = array<i64: 1, 200>}, {pipeline_mode = #tpu.pipeline_mode<synchronous>, transform_indices = @transform_5, window_bounds = array<i64: 4, 200, 500>}, {pipeline_mode = #tpu.pipeline_mode<synchronous>, transform_indices = @transform_6, window_bounds = array<i64: 1, 500>}, {pipeline_mode = #tpu.pipeline_mode<synchronous>, transform_indices = @transform_7, window_bounds = array<i64: 500, 128>}, {pipeline_mode = #tpu.pipeline_mode<synchronous>, transform_indices = @transform_8, window_bounds = array<i64: 1, 128>}, {transform_indices = @transform_9, window_bounds = array<i64: 8, 128>}]} {
    %c0 = arith.constant 0 : index
    %c0_0 = arith.constant 0 : index
    %c0_1 = arith.constant 0 : index
    %c0_2 = arith.constant 0 : index
    %0 = vector.load %arg1[%c0, %c0_0, %c0_1, %c0_2] : memref<8x1x48x28xf32, #tpu.memory_space<vmem>>, vector<1x1x48x28xf32>
    %1 = vector.shape_cast %0 : vector<1x1x48x28xf32> to vector<48x28xf32>
    %2 = arith.truncf %1 : vector<48x28xf32> to vector<48x28xbf16>
    %c0_3 = arith.constant 0 : index
    %c0_4 = arith.constant 0 : index
    %c0_5 = arith.constant 0 : index
    %c0_6 = arith.constant 0 : index
    %3 = vector.load %arg2[%c0_3, %c0_4, %c0_5, %c0_6] : memref<2x5x28x240xbf16, #tpu.memory_space<vmem>>, vector<1x1x28x240xbf16>
    %4 = vector.shape_cast %3 : vector<1x1x28x240xbf16> to vector<28x240xbf16>
    %cst = arith.constant dense<0.000000e+00> : vector<48x240xf32>
    %5 = tpu.matmul %2, %4, %cst {dimension_numbers = #tpu.dot_dimension_numbers<[1], [0], [0], [1], [0, 0, 1, 1], [], []>} : vector<48x28xbf16>, vector<28x240xbf16>, vector<48x240xf32> -> vector<48x240xf32>
    %c1 = arith.constant 1 : index
    %c0_7 = arith.constant 0 : index
    %c0_8 = arith.constant 0 : index
    %c0_9 = arith.constant 0 : index
    %6 = vector.load %arg1[%c1, %c0_7, %c0_8, %c0_9] : memref<8x1x48x28xf32, #tpu.memory_space<vmem>>, vector<1x1x48x28xf32>
    %7 = vector.shape_cast %6 : vector<1x1x48x28xf32> to vector<48x28xf32>
    %8 = arith.truncf %7 : vector<48x28xf32> to vector<48x28xbf16>
    %c0_10 = arith.constant 0 : index
    %c1_11 = arith.constant 1 : index
    %c0_12 = arith.constant 0 : index
    %c0_13 = arith.constant 0 : index
    %9 = vector.load %arg2[%c0_10, %c1_11, %c0_12, %c0_13] : memref<2x5x28x240xbf16, #tpu.memory_space<vmem>>, vector<1x1x28x240xbf16>
    %10 = vector.shape_cast %9 : vector<1x1x28x240xbf16> to vector<28x240xbf16>
    %cst_14 = arith.constant dense<0.000000e+00> : vector<48x240xf32>
    %11 = tpu.matmul %8, %10, %cst_14 {dimension_numbers = #tpu.dot_dimension_numbers<[1], [0], [0], [1], [0, 0, 1, 1], [], []>} : vector<48x28xbf16>, vector<28x240xbf16>, vector<48x240xf32> -> vector<48x240xf32>
    %12 = arith.addf %5, %11 : vector<48x240xf32>
    %c2 = arith.constant 2 : index
    %c0_15 = arith.constant 0 : index
    %c0_16 = arith.constant 0 : index
    %c0_17 = arith.constant 0 : index
    %13 = vector.load %arg1[%c2, %c0_15, %c0_16, %c0_17] : memref<8x1x48x28xf32, #tpu.memory_space<vmem>>, vector<1x1x48x28xf32>
    %14 = vector.shape_cast %13 : vector<1x1x48x28xf32> to vector<48x28xf32>
    %15 = arith.truncf %14 : vector<48x28xf32> to vector<48x28xbf16>
    %c0_18 = arith.constant 0 : index
    %c2_19 = arith.constant 2 : index
    %c0_20 = arith.constant 0 : index
    %c0_21 = arith.constant 0 : index
    %16 = vector.load %arg2[%c0_18, %c2_19, %c0_20, %c0_21] : memref<2x5x28x240xbf16, #tpu.memory_space<vmem>>, vector<1x1x28x240xbf16>
    %17 = vector.shape_cast %16 : vector<1x1x28x240xbf16> to vector<28x240xbf16>
    %cst_22 = arith.constant dense<0.000000e+00> : vector<48x240xf32>
    %18 = tpu.matmul %15, %17, %cst_22 {dimension_numbers = #tpu.dot_dimension_numbers<[1], [0], [0], [1], [0, 0, 1, 1], [], []>} : vector<48x28xbf16>, vector<28x240xbf16>, vector<48x240xf32> -> vector<48x240xf32>
    %19 = arith.addf %12, %18 : vector<48x240xf32>
    %c3 = arith.constant 3 : index
    %c0_23 = arith.constant 0 : index
    %c0_24 = arith.constant 0 : index
    %c0_25 = arith.constant 0 : index
    %20 = vector.load %arg1[%c3, %c0_23, %c0_24, %c0_25] : memref<8x1x48x28xf32, #tpu.memory_space<vmem>>, vector<1x1x48x28xf32>
    %21 = vector.shape_cast %20 : vector<1x1x48x28xf32> to vector<48x28xf32>
    %22 = arith.truncf %21 : vector<48x28xf32> to vector<48x28xbf16>
    %c0_26 = arith.constant 0 : index
    %c3_27 = arith.constant 3 : index
    %c0_28 = arith.constant 0 : index
    %c0_29 = arith.constant 0 : index
    %23 = vector.load %arg2[%c0_26, %c3_27, %c0_28, %c0_29] : memref<2x5x28x240xbf16, #tpu.memory_space<vmem>>, vector<1x1x28x240xbf16>
    %24 = vector.shape_cast %23 : vector<1x1x28x240xbf16> to vector<28x240xbf16>
    %cst_30 = arith.constant dense<0.000000e+00> : vector<48x240xf32>
    %25 = tpu.matmul %22, %24, %cst_30 {dimension_numbers = #tpu.dot_dimension_numbers<[1], [0], [0], [1], [0, 0, 1, 1], [], []>} : vector<48x28xbf16>, vector<28x240xbf16>, vector<48x240xf32> -> vector<48x240xf32>
    %26 = arith.addf %19, %25 : vector<48x240xf32>
    %c4 = arith.constant 4 : index
    %c0_31 = arith.constant 0 : index
    %c0_32 = arith.constant 0 : index
    %c0_33 = arith.constant 0 : index
    %27 = vector.load %arg1[%c4, %c0_31, %c0_32, %c0_33] : memref<8x1x48x28xf32, #tpu.memory_space<vmem>>, vector<1x1x48x28xf32>
    %28 = vector.shape_cast %27 : vector<1x1x48x28xf32> to vector<48x28xf32>
    %29 = arith.truncf %28 : vector<48x28xf32> to vector<48x28xbf16>
    %c0_34 = arith.constant 0 : index
    %c4_35 = arith.constant 4 : index
    %c0_36 = arith.constant 0 : index
    %c0_37 = arith.constant 0 : index
    %30 = vector.load %arg2[%c0_34, %c4_35, %c0_36, %c0_37] : memref<2x5x28x240xbf16, #tpu.memory_space<vmem>>, vector<1x1x28x240xbf16>
    %31 = vector.shape_cast %30 : vector<1x1x28x240xbf16> to vector<28x240xbf16>
    %cst_38 = arith.constant dense<0.000000e+00> : vector<48x240xf32>
    %32 = tpu.matmul %29, %31, %cst_38 {dimension_numbers = #tpu.dot_dimension_numbers<[1], [0], [0], [1], [0, 0, 1, 1], [], []>} : vector<48x28xbf16>, vector<28x240xbf16>, vector<48x240xf32> -> vector<48x240xf32>
    %33 = arith.addf %26, %32 : vector<48x240xf32>
    %c0_39 = arith.constant 0 : index
    %c0_40 = arith.constant 0 : index
    %c0_41 = arith.constant 0 : index
    %c0_42 = arith.constant 0 : index
    %34 = vector.load %arg1[%c0_39, %c0_40, %c0_41, %c0_42] : memref<8x1x48x28xf32, #tpu.memory_space<vmem>>, vector<1x1x48x28xf32>
    %35 = vector.shape_cast %34 : vector<1x1x48x28xf32> to vector<48x28xf32>
    %36 = arith.truncf %35 : vector<48x28xf32> to vector<48x28xbf16>
    %c1_43 = arith.constant 1 : index
    %c0_44 = arith.constant 0 : index
    %c0_45 = arith.constant 0 : index
    %c0_46 = arith.constant 0 : index
    %37 = vector.load %arg2[%c1_43, %c0_44, %c0_45, %c0_46] : memref<2x5x28x240xbf16, #tpu.memory_space<vmem>>, vector<1x1x28x240xbf16>
    %38 = vector.shape_cast %37 : vector<1x1x28x240xbf16> to vector<28x240xbf16>
    %cst_47 = arith.constant dense<0.000000e+00> : vector<48x240xf32>
    %39 = tpu.matmul %36, %38, %cst_47 {dimension_numbers = #tpu.dot_dimension_numbers<[1], [0], [0], [1], [0, 0, 1, 1], [], []>} : vector<48x28xbf16>, vector<28x240xbf16>, vector<48x240xf32> -> vector<48x240xf32>
    %c1_48 = arith.constant 1 : index
    %c0_49 = arith.constant 0 : index
    %c0_50 = arith.constant 0 : index
    %c0_51 = arith.constant 0 : index
    %40 = vector.load %arg1[%c1_48, %c0_49, %c0_50, %c0_51] : memref<8x1x48x28xf32, #tpu.memory_space<vmem>>, vector<1x1x48x28xf32>
    %41 = vector.shape_cast %40 : vector<1x1x48x28xf32> to vector<48x28xf32>
    %42 = arith.truncf %41 : vector<48x28xf32> to vector<48x28xbf16>
    %c1_52 = arith.constant 1 : index
    %c1_53 = arith.constant 1 : index
    %c0_54 = arith.constant 0 : index
    %c0_55 = arith.constant 0 : index
    %43 = vector.load %arg2[%c1_52, %c1_53, %c0_54, %c0_55] : memref<2x5x28x240xbf16, #tpu.memory_space<vmem>>, vector<1x1x28x240xbf16>
    %44 = vector.shape_cast %43 : vector<1x1x28x240xbf16> to vector<28x240xbf16>
    %cst_56 = arith.constant dense<0.000000e+00> : vector<48x240xf32>
    %45 = tpu.matmul %42, %44, %cst_56 {dimension_numbers = #tpu.dot_dimension_numbers<[1], [0], [0], [1], [0, 0, 1, 1], [], []>} : vector<48x28xbf16>, vector<28x240xbf16>, vector<48x240xf32> -> vector<48x240xf32>
    %46 = arith.addf %39, %45 : vector<48x240xf32>
    %c2_57 = arith.constant 2 : index
    %c0_58 = arith.constant 0 : index
    %c0_59 = arith.constant 0 : index
    %c0_60 = arith.constant 0 : index
    %47 = vector.load %arg1[%c2_57, %c0_58, %c0_59, %c0_60] : memref<8x1x48x28xf32, #tpu.memory_space<vmem>>, vector<1x1x48x28xf32>
    %48 = vector.shape_cast %47 : vector<1x1x48x28xf32> to vector<48x28xf32>
    %49 = arith.truncf %48 : vector<48x28xf32> to vector<48x28xbf16>
    %c1_61 = arith.constant 1 : index
    %c2_62 = arith.constant 2 : index
    %c0_63 = arith.constant 0 : index
    %c0_64 = arith.constant 0 : index
    %50 = vector.load %arg2[%c1_61, %c2_62, %c0_63, %c0_64] : memref<2x5x28x240xbf16, #tpu.memory_space<vmem>>, vector<1x1x28x240xbf16>
    %51 = vector.shape_cast %50 : vector<1x1x28x240xbf16> to vector<28x240xbf16>
    %cst_65 = arith.constant dense<0.000000e+00> : vector<48x240xf32>
    %52 = tpu.matmul %49, %51, %cst_65 {dimension_numbers = #tpu.dot_dimension_numbers<[1], [0], [0], [1], [0, 0, 1, 1], [], []>} : vector<48x28xbf16>, vector<28x240xbf16>, vector<48x240xf32> -> vector<48x240xf32>
    %53 = arith.addf %46, %52 : vector<48x240xf32>
    %c3_66 = arith.constant 3 : index
    %c0_67 = arith.constant 0 : index
    %c0_68 = arith.constant 0 : index
    %c0_69 = arith.constant 0 : index
    %54 = vector.load %arg1[%c3_66, %c0_67, %c0_68, %c0_69] : memref<8x1x48x28xf32, #tpu.memory_space<vmem>>, vector<1x1x48x28xf32>
    %55 = vector.shape_cast %54 : vector<1x1x48x28xf32> to vector<48x28xf32>
    %56 = arith.truncf %55 : vector<48x28xf32> to vector<48x28xbf16>
    %c1_70 = arith.constant 1 : index
    %c3_71 = arith.constant 3 : index
    %c0_72 = arith.constant 0 : index
    %c0_73 = arith.constant 0 : index
    %57 = vector.load %arg2[%c1_70, %c3_71, %c0_72, %c0_73] : memref<2x5x28x240xbf16, #tpu.memory_space<vmem>>, vector<1x1x28x240xbf16>
    %58 = vector.shape_cast %57 : vector<1x1x28x240xbf16> to vector<28x240xbf16>
    %cst_74 = arith.constant dense<0.000000e+00> : vector<48x240xf32>
    %59 = tpu.matmul %56, %58, %cst_74 {dimension_numbers = #tpu.dot_dimension_numbers<[1], [0], [0], [1], [0, 0, 1, 1], [], []>} : vector<48x28xbf16>, vector<28x240xbf16>, vector<48x240xf32> -> vector<48x240xf32>
    %60 = arith.addf %53, %59 : vector<48x240xf32>
    %c4_75 = arith.constant 4 : index
    %c0_76 = arith.constant 0 : index
    %c0_77 = arith.constant 0 : index
    %c0_78 = arith.constant 0 : index
    %61 = vector.load %arg1[%c4_75, %c0_76, %c0_77, %c0_78] : memref<8x1x48x28xf32, #tpu.memory_space<vmem>>, vector<1x1x48x28xf32>
    %62 = vector.shape_cast %61 : vector<1x1x48x28xf32> to vector<48x28xf32>
    %63 = arith.truncf %62 : vector<48x28xf32> to vector<48x28xbf16>
    %c1_79 = arith.constant 1 : index
    %c4_80 = arith.constant 4 : index
    %c0_81 = arith.constant 0 : index
    %c0_82 = arith.constant 0 : index
    %64 = vector.load %arg2[%c1_79, %c4_80, %c0_81, %c0_82] : memref<2x5x28x240xbf16, #tpu.memory_space<vmem>>, vector<1x1x28x240xbf16>
    %65 = vector.shape_cast %64 : vector<1x1x28x240xbf16> to vector<28x240xbf16>
    %cst_83 = arith.constant dense<0.000000e+00> : vector<48x240xf32>
    %66 = tpu.matmul %63, %65, %cst_83 {dimension_numbers = #tpu.dot_dimension_numbers<[1], [0], [0], [1], [0, 0, 1, 1], [], []>} : vector<48x28xbf16>, vector<28x240xbf16>, vector<48x240xf32> -> vector<48x240xf32>
    %67 = arith.addf %60, %66 : vector<48x240xf32>
    %68 = arith.maximumf %33, %67 : vector<48x240xf32>
    %c1_84 = arith.constant 1 : index
    %c0_85 = arith.constant 0 : index
    %c0_86 = arith.constant 0 : index
    %c0_87 = arith.constant 0 : index
    %69 = vector.load %arg1[%c1_84, %c0_85, %c0_86, %c0_87] : memref<8x1x48x28xf32, #tpu.memory_space<vmem>>, vector<1x1x48x28xf32>
    %70 = vector.shape_cast %69 : vector<1x1x48x28xf32> to vector<48x28xf32>
    %71 = arith.truncf %70 : vector<48x28xf32> to vector<48x28xbf16>
    %c0_88 = arith.constant 0 : index
    %c0_89 = arith.constant 0 : index
    %c0_90 = arith.constant 0 : index
    %c0_91 = arith.constant 0 : index
    %72 = vector.load %arg2[%c0_88, %c0_89, %c0_90, %c0_91] : memref<2x5x28x240xbf16, #tpu.memory_space<vmem>>, vector<1x1x28x240xbf16>
    %73 = vector.shape_cast %72 : vector<1x1x28x240xbf16> to vector<28x240xbf16>
    %cst_92 = arith.constant dense<0.000000e+00> : vector<48x240xf32>
    %74 = tpu.matmul %71, %73, %cst_92 {dimension_numbers = #tpu.dot_dimension_numbers<[1], [0], [0], [1], [0, 0, 1, 1], [], []>} : vector<48x28xbf16>, vector<28x240xbf16>, vector<48x240xf32> -> vector<48x240xf32>
    %c2_93 = arith.constant 2 : index
    %c0_94 = arith.constant 0 : index
    %c0_95 = arith.constant 0 : index
    %c0_96 = arith.constant 0 : index
    %75 = vector.load %arg1[%c2_93, %c0_94, %c0_95, %c0_96] : memref<8x1x48x28xf32, #tpu.memory_space<vmem>>, vector<1x1x48x28xf32>
    %76 = vector.shape_cast %75 : vector<1x1x48x28xf32> to vector<48x28xf32>
    %77 = arith.truncf %76 : vector<48x28xf32> to vector<48x28xbf16>
    %c0_97 = arith.constant 0 : index
    %c1_98 = arith.constant 1 : index
    %c0_99 = arith.constant 0 : index
    %c0_100 = arith.constant 0 : index
    %78 = vector.load %arg2[%c0_97, %c1_98, %c0_99, %c0_100] : memref<2x5x28x240xbf16, #tpu.memory_space<vmem>>, vector<1x1x28x240xbf16>
    %79 = vector.shape_cast %78 : vector<1x1x28x240xbf16> to vector<28x240xbf16>
    %cst_101 = arith.constant dense<0.000000e+00> : vector<48x240xf32>
    %80 = tpu.matmul %77, %79, %cst_101 {dimension_numbers = #tpu.dot_dimension_numbers<[1], [0], [0], [1], [0, 0, 1, 1], [], []>} : vector<48x28xbf16>, vector<28x240xbf16>, vector<48x240xf32> -> vector<48x240xf32>
    %81 = arith.addf %74, %80 : vector<48x240xf32>
    %c3_102 = arith.constant 3 : index
    %c0_103 = arith.constant 0 : index
    %c0_104 = arith.constant 0 : index
    %c0_105 = arith.constant 0 : index
    %82 = vector.load %arg1[%c3_102, %c0_103, %c0_104, %c0_105] : memref<8x1x48x28xf32, #tpu.memory_space<vmem>>, vector<1x1x48x28xf32>
    %83 = vector.shape_cast %82 : vector<1x1x48x28xf32> to vector<48x28xf32>
    %84 = arith.truncf %83 : vector<48x28xf32> to vector<48x28xbf16>
    %c0_106 = arith.constant 0 : index
    %c2_107 = arith.constant 2 : index
    %c0_108 = arith.constant 0 : index
    %c0_109 = arith.constant 0 : index
    %85 = vector.load %arg2[%c0_106, %c2_107, %c0_108, %c0_109] : memref<2x5x28x240xbf16, #tpu.memory_space<vmem>>, vector<1x1x28x240xbf16>
    %86 = vector.shape_cast %85 : vector<1x1x28x240xbf16> to vector<28x240xbf16>
    %cst_110 = arith.constant dense<0.000000e+00> : vector<48x240xf32>
    %87 = tpu.matmul %84, %86, %cst_110 {dimension_numbers = #tpu.dot_dimension_numbers<[1], [0], [0], [1], [0, 0, 1, 1], [], []>} : vector<48x28xbf16>, vector<28x240xbf16>, vector<48x240xf32> -> vector<48x240xf32>
    %88 = arith.addf %81, %87 : vector<48x240xf32>
    %c4_111 = arith.constant 4 : index
    %c0_112 = arith.constant 0 : index
    %c0_113 = arith.constant 0 : index
    %c0_114 = arith.constant 0 : index
    %89 = vector.load %arg1[%c4_111, %c0_112, %c0_113, %c0_114] : memref<8x1x48x28xf32, #tpu.memory_space<vmem>>, vector<1x1x48x28xf32>
    %90 = vector.shape_cast %89 : vector<1x1x48x28xf32> to vector<48x28xf32>
    %91 = arith.truncf %90 : vector<48x28xf32> to vector<48x28xbf16>
    %c0_115 = arith.constant 0 : index
    %c3_116 = arith.constant 3 : index
    %c0_117 = arith.constant 0 : index
    %c0_118 = arith.constant 0 : index
    %92 = vector.load %arg2[%c0_115, %c3_116, %c0_117, %c0_118] : memref<2x5x28x240xbf16, #tpu.memory_space<vmem>>, vector<1x1x28x240xbf16>
    %93 = vector.shape_cast %92 : vector<1x1x28x240xbf16> to vector<28x240xbf16>
    %cst_119 = arith.constant dense<0.000000e+00> : vector<48x240xf32>
    %94 = tpu.matmul %91, %93, %cst_119 {dimension_numbers = #tpu.dot_dimension_numbers<[1], [0], [0], [1], [0, 0, 1, 1], [], []>} : vector<48x28xbf16>, vector<28x240xbf16>, vector<48x240xf32> -> vector<48x240xf32>
    %95 = arith.addf %88, %94 : vector<48x240xf32>
    %c5 = arith.constant 5 : index
    %c0_120 = arith.constant 0 : index
    %c0_121 = arith.constant 0 : index
    %c0_122 = arith.constant 0 : index
    %96 = vector.load %arg1[%c5, %c0_120, %c0_121, %c0_122] : memref<8x1x48x28xf32, #tpu.memory_space<vmem>>, vector<1x1x48x28xf32>
    %97 = vector.shape_cast %96 : vector<1x1x48x28xf32> to vector<48x28xf32>
    %98 = arith.truncf %97 : vector<48x28xf32> to vector<48x28xbf16>
    %c0_123 = arith.constant 0 : index
    %c4_124 = arith.constant 4 : index
    %c0_125 = arith.constant 0 : index
    %c0_126 = arith.constant 0 : index
    %99 = vector.load %arg2[%c0_123, %c4_124, %c0_125, %c0_126] : memref<2x5x28x240xbf16, #tpu.memory_space<vmem>>, vector<1x1x28x240xbf16>
    %100 = vector.shape_cast %99 : vector<1x1x28x240xbf16> to vector<28x240xbf16>
    %cst_127 = arith.constant dense<0.000000e+00> : vector<48x240xf32>
    %101 = tpu.matmul %98, %100, %cst_127 {dimension_numbers = #tpu.dot_dimension_numbers<[1], [0], [0], [1], [0, 0, 1, 1], [], []>} : vector<48x28xbf16>, vector<28x240xbf16>, vector<48x240xf32> -> vector<48x240xf32>
    %102 = arith.addf %95, %101 : vector<48x240xf32>
    %103 = arith.maximumf %68, %102 : vector<48x240xf32>
    %c1_128 = arith.constant 1 : index
    %c0_129 = arith.constant 0 : index
    %c0_130 = arith.constant 0 : index
    %c0_131 = arith.constant 0 : index
    %104 = vector.load %arg1[%c1_128, %c0_129, %c0_130, %c0_131] : memref<8x1x48x28xf32, #tpu.memory_space<vmem>>, vector<1x1x48x28xf32>
    %105 = vector.shape_cast %104 : vector<1x1x48x28xf32> to vector<48x28xf32>
    %106 = arith.truncf %105 : vector<48x28xf32> to vector<48x28xbf16>
    %c1_132 = arith.constant 1 : index
    %c0_133 = arith.constant 0 : index
    %c0_134 = arith.constant 0 : index
    %c0_135 = arith.constant 0 : index
    %107 = vector.load %arg2[%c1_132, %c0_133, %c0_134, %c0_135] : memref<2x5x28x240xbf16, #tpu.memory_space<vmem>>, vector<1x1x28x240xbf16>
    %108 = vector.shape_cast %107 : vector<1x1x28x240xbf16> to vector<28x240xbf16>
    %cst_136 = arith.constant dense<0.000000e+00> : vector<48x240xf32>
    %109 = tpu.matmul %106, %108, %cst_136 {dimension_numbers = #tpu.dot_dimension_numbers<[1], [0], [0], [1], [0, 0, 1, 1], [], []>} : vector<48x28xbf16>, vector<28x240xbf16>, vector<48x240xf32> -> vector<48x240xf32>
    %c2_137 = arith.constant 2 : index
    %c0_138 = arith.constant 0 : index
    %c0_139 = arith.constant 0 : index
    %c0_140 = arith.constant 0 : index
    %110 = vector.load %arg1[%c2_137, %c0_138, %c0_139, %c0_140] : memref<8x1x48x28xf32, #tpu.memory_space<vmem>>, vector<1x1x48x28xf32>
    %111 = vector.shape_cast %110 : vector<1x1x48x28xf32> to vector<48x28xf32>
    %112 = arith.truncf %111 : vector<48x28xf32> to vector<48x28xbf16>
    %c1_141 = arith.constant 1 : index
    %c1_142 = arith.constant 1 : index
    %c0_143 = arith.constant 0 : index
    %c0_144 = arith.constant 0 : index
    %113 = vector.load %arg2[%c1_141, %c1_142, %c0_143, %c0_144] : memref<2x5x28x240xbf16, #tpu.memory_space<vmem>>, vector<1x1x28x240xbf16>
    %114 = vector.shape_cast %113 : vector<1x1x28x240xbf16> to vector<28x240xbf16>
    %cst_145 = arith.constant dense<0.000000e+00> : vector<48x240xf32>
    %115 = tpu.matmul %112, %114, %cst_145 {dimension_numbers = #tpu.dot_dimension_numbers<[1], [0], [0], [1], [0, 0, 1, 1], [], []>} : vector<48x28xbf16>, vector<28x240xbf16>, vector<48x240xf32> -> vector<48x240xf32>
    %116 = arith.addf %109, %115 : vector<48x240xf32>
    %c3_146 = arith.constant 3 : index
    %c0_147 = arith.constant 0 : index
    %c0_148 = arith.constant 0 : index
    %c0_149 = arith.constant 0 : index
    %117 = vector.load %arg1[%c3_146, %c0_147, %c0_148, %c0_149] : memref<8x1x48x28xf32, #tpu.memory_space<vmem>>, vector<1x1x48x28xf32>
    %118 = vector.shape_cast %117 : vector<1x1x48x28xf32> to vector<48x28xf32>
    %119 = arith.truncf %118 : vector<48x28xf32> to vector<48x28xbf16>
    %c1_150 = arith.constant 1 : index
    %c2_151 = arith.constant 2 : index
    %c0_152 = arith.constant 0 : index
    %c0_153 = arith.constant 0 : index
    %120 = vector.load %arg2[%c1_150, %c2_151, %c0_152, %c0_153] : memref<2x5x28x240xbf16, #tpu.memory_space<vmem>>, vector<1x1x28x240xbf16>
    %121 = vector.shape_cast %120 : vector<1x1x28x240xbf16> to vector<28x240xbf16>
    %cst_154 = arith.constant dense<0.000000e+00> : vector<48x240xf32>
    %122 = tpu.matmul %119, %121, %cst_154 {dimension_numbers = #tpu.dot_dimension_numbers<[1], [0], [0], [1], [0, 0, 1, 1], [], []>} : vector<48x28xbf16>, vector<28x240xbf16>, vector<48x240xf32> -> vector<48x240xf32>
    %123 = arith.addf %116, %122 : vector<48x240xf32>
    %c4_155 = arith.constant 4 : index
    %c0_156 = arith.constant 0 : index
    %c0_157 = arith.constant 0 : index
    %c0_158 = arith.constant 0 : index
    %124 = vector.load %arg1[%c4_155, %c0_156, %c0_157, %c0_158] : memref<8x1x48x28xf32, #tpu.memory_space<vmem>>, vector<1x1x48x28xf32>
    %125 = vector.shape_cast %124 : vector<1x1x48x28xf32> to vector<48x28xf32>
    %126 = arith.truncf %125 : vector<48x28xf32> to vector<48x28xbf16>
    %c1_159 = arith.constant 1 : index
    %c3_160 = arith.constant 3 : index
    %c0_161 = arith.constant 0 : index
    %c0_162 = arith.constant 0 : index
    %127 = vector.load %arg2[%c1_159, %c3_160, %c0_161, %c0_162] : memref<2x5x28x240xbf16, #tpu.memory_space<vmem>>, vector<1x1x28x240xbf16>
    %128 = vector.shape_cast %127 : vector<1x1x28x240xbf16> to vector<28x240xbf16>
    %cst_163 = arith.constant dense<0.000000e+00> : vector<48x240xf32>
    %129 = tpu.matmul %126, %128, %cst_163 {dimension_numbers = #tpu.dot_dimension_numbers<[1], [0], [0], [1], [0, 0, 1, 1], [], []>} : vector<48x28xbf16>, vector<28x240xbf16>, vector<48x240xf32> -> vector<48x240xf32>
    %130 = arith.addf %123, %129 : vector<48x240xf32>
    %c5_164 = arith.constant 5 : index
    %c0_165 = arith.constant 0 : index
    %c0_166 = arith.constant 0 : index
    %c0_167 = arith.constant 0 : index
    %131 = vector.load %arg1[%c5_164, %c0_165, %c0_166, %c0_167] : memref<8x1x48x28xf32, #tpu.memory_space<vmem>>, vector<1x1x48x28xf32>
    %132 = vector.shape_cast %131 : vector<1x1x48x28xf32> to vector<48x28xf32>
    %133 = arith.truncf %132 : vector<48x28xf32> to vector<48x28xbf16>
    %c1_168 = arith.constant 1 : index
    %c4_169 = arith.constant 4 : index
    %c0_170 = arith.constant 0 : index
    %c0_171 = arith.constant 0 : index
    %134 = vector.load %arg2[%c1_168, %c4_169, %c0_170, %c0_171] : memref<2x5x28x240xbf16, #tpu.memory_space<vmem>>, vector<1x1x28x240xbf16>
    %135 = vector.shape_cast %134 : vector<1x1x28x240xbf16> to vector<28x240xbf16>
    %cst_172 = arith.constant dense<0.000000e+00> : vector<48x240xf32>
    %136 = tpu.matmul %133, %135, %cst_172 {dimension_numbers = #tpu.dot_dimension_numbers<[1], [0], [0], [1], [0, 0, 1, 1], [], []>} : vector<48x28xbf16>, vector<28x240xbf16>, vector<48x240xf32> -> vector<48x240xf32>
    %137 = arith.addf %130, %136 : vector<48x240xf32>
    %138 = arith.maximumf %103, %137 : vector<48x240xf32>
    %c0_173 = arith.constant 0 : index
    %c0_174 = arith.constant 0 : index
    %139 = vector.load %arg3[%c0_173, %c0_174] : memref<1x240xf32, #tpu.memory_space<vmem>>, vector<1x240xf32>
    %140 = vector.broadcast %139 : vector<1x240xf32> to vector<48x240xf32>
    %141 = arith.addf %138, %140 : vector<48x240xf32>
    %cst_175 = arith.constant 0.000000e+00 : f32
    %142 = vector.broadcast %cst_175 : f32 to vector<48x240xf32>
    %143 = arith.maximumf %141, %142 : vector<48x240xf32>
    %c0_176 = arith.constant 0 : index
    %c0_177 = arith.constant 0 : index
    %144 = vector.load %arg11[%c0_176, %c0_177] : memref<48x240xf32, #tpu.memory_space<vmem>>, vector<48x240xf32>
    tpu.vector_store %arg11[%c0_176, %c0_177], %143 {strides = array<i32>} : memref<48x240xf32, #tpu.memory_space<vmem>>, vector<48x240xf32>,
    %c2_178 = arith.constant 2 : index
    %c0_179 = arith.constant 0 : index
    %c0_180 = arith.constant 0 : index
    %c0_181 = arith.constant 0 : index
    %145 = vector.load %arg1[%c2_178, %c0_179, %c0_180, %c0_181] : memref<8x1x48x28xf32, #tpu.memory_space<vmem>>, vector<1x1x48x28xf32>
    %146 = vector.shape_cast %145 : vector<1x1x48x28xf32> to vector<48x28xf32>
    %147 = arith.truncf %146 : vector<48x28xf32> to vector<48x28xbf16>
    %c0_182 = arith.constant 0 : index
    %c0_183 = arith.constant 0 : index
    %c0_184 = arith.constant 0 : index
    %c0_185 = arith.constant 0 : index
    %148 = vector.load %arg2[%c0_182, %c0_183, %c0_184, %c0_185] : memref<2x5x28x240xbf16, #tpu.memory_space<vmem>>, vector<1x1x28x240xbf16>
    %149 = vector.shape_cast %148 : vector<1x1x28x240xbf16> to vector<28x240xbf16>
    %cst_186 = arith.constant dense<0.000000e+00> : vector<48x240xf32>
    %150 = tpu.matmul %147, %149, %cst_186 {dimension_numbers = #tpu.dot_dimension_numbers<[1], [0], [0], [1], [0, 0, 1, 1], [], []>} : vector<48x28xbf16>, vector<28x240xbf16>, vector<48x240xf32> -> vector<48x240xf32>
    %c3_187 = arith.constant 3 : index
    %c0_188 = arith.constant 0 : index
    %c0_189 = arith.constant 0 : index
    %c0_190 = arith.constant 0 : index
    %151 = vector.load %arg1[%c3_187, %c0_188, %c0_189, %c0_190] : memref<8x1x48x28xf32, #tpu.memory_space<vmem>>, vector<1x1x48x28xf32>
    %152 = vector.shape_cast %151 : vector<1x1x48x28xf32> to vector<48x28xf32>
    %153 = arith.truncf %152 : vector<48x28xf32> to vector<48x28xbf16>
    %c0_191 = arith.constant 0 : index
    %c1_192 = arith.constant 1 : index
    %c0_193 = arith.constant 0 : index
    %c0_194 = arith.constant 0 : index
    %154 = vector.load %arg2[%c0_191, %c1_192, %c0_193, %c0_194] : memref<2x5x28x240xbf16, #tpu.memory_space<vmem>>, vector<1x1x28x240xbf16>
    %155 = vector.shape_cast %154 : vector<1x1x28x240xbf16> to vector<28x240xbf16>
    %cst_195 = arith.constant dense<0.000000e+00> : vector<48x240xf32>
    %156 = tpu.matmul %153, %155, %cst_195 {dimension_numbers = #tpu.dot_dimension_numbers<[1], [0], [0], [1], [0, 0, 1, 1], [], []>} : vector<48x28xbf16>, vector<28x240xbf16>, vector<48x240xf32> -> vector<48x240xf32>
    %157 = arith.addf %150, %156 : vector<48x240xf32>
    %c4_196 = arith.constant 4 : index
    %c0_197 = arith.constant 0 : index
    %c0_198 = arith.constant 0 : index
    %c0_199 = arith.constant 0 : index
    %158 = vector.load %arg1[%c4_196, %c0_197, %c0_198, %c0_199] : memref<8x1x48x28xf32, #tpu.memory_space<vmem>>, vector<1x1x48x28xf32>
    %159 = vector.shape_cast %158 : vector<1x1x48x28xf32> to vector<48x28xf32>
    %160 = arith.truncf %159 : vector<48x28xf32> to vector<48x28xbf16>
    %c0_200 = arith.constant 0 : index
    %c2_201 = arith.constant 2 : index
    %c0_202 = arith.constant 0 : index
    %c0_203 = arith.constant 0 : index
    %161 = vector.load %arg2[%c0_200, %c2_201, %c0_202, %c0_203] : memref<2x5x28x240xbf16, #tpu.memory_space<vmem>>, vector<1x1x28x240xbf16>
    %162 = vector.shape_cast %161 : vector<1x1x28x240xbf16> to vector<28x240xbf16>
    %cst_204 = arith.constant dense<0.000000e+00> : vector<48x240xf32>
    %163 = tpu.matmul %160, %162, %cst_204 {dimension_numbers = #tpu.dot_dimension_numbers<[1], [0], [0], [1], [0, 0, 1, 1], [], []>} : vector<48x28xbf16>, vector<28x240xbf16>, vector<48x240xf32> -> vector<48x240xf32>
    %164 = arith.addf %157, %163 : vector<48x240xf32>
    %c5_205 = arith.constant 5 : index
    %c0_206 = arith.constant 0 : index
    %c0_207 = arith.constant 0 : index
    %c0_208 = arith.constant 0 : index
    %165 = vector.load %arg1[%c5_205, %c0_206, %c0_207, %c0_208] : memref<8x1x48x28xf32, #tpu.memory_space<vmem>>, vector<1x1x48x28xf32>
    %166 = vector.shape_cast %165 : vector<1x1x48x28xf32> to vector<48x28xf32>
    %167 = arith.truncf %166 : vector<48x28xf32> to vector<48x28xbf16>
    %c0_209 = arith.constant 0 : index
    %c3_210 = arith.constant 3 : index
    %c0_211 = arith.constant 0 : index
    %c0_212 = arith.constant 0 : index
    %168 = vector.load %arg2[%c0_209, %c3_210, %c0_211, %c0_212] : memref<2x5x28x240xbf16, #tpu.memory_space<vmem>>, vector<1x1x28x240xbf16>
    %169 = vector.shape_cast %168 : vector<1x1x28x240xbf16> to vector<28x240xbf16>
    %cst_213 = arith.constant dense<0.000000e+00> : vector<48x240xf32>
    %170 = tpu.matmul %167, %169, %cst_213 {dimension_numbers = #tpu.dot_dimension_numbers<[1], [0], [0], [1], [0, 0, 1, 1], [], []>} : vector<48x28xbf16>, vector<28x240xbf16>, vector<48x240xf32> -> vector<48x240xf32>
    %171 = arith.addf %164, %170 : vector<48x240xf32>
    %c6 = arith.constant 6 : index
    %c0_214 = arith.constant 0 : index
    %c0_215 = arith.constant 0 : index
    %c0_216 = arith.constant 0 : index
    %172 = vector.load %arg1[%c6, %c0_214, %c0_215, %c0_216] : memref<8x1x48x28xf32, #tpu.memory_space<vmem>>, vector<1x1x48x28xf32>
    %173 = vector.shape_cast %172 : vector<1x1x48x28xf32> to vector<48x28xf32>
    %174 = arith.truncf %173 : vector<48x28xf32> to vector<48x28xbf16>
    %c0_217 = arith.constant 0 : index
    %c4_218 = arith.constant 4 : index
    %c0_219 = arith.constant 0 : index
    %c0_220 = arith.constant 0 : index
    %175 = vector.load %arg2[%c0_217, %c4_218, %c0_219, %c0_220] : memref<2x5x28x240xbf16, #tpu.memory_space<vmem>>, vector<1x1x28x240xbf16>
    %176 = vector.shape_cast %175 : vector<1x1x28x240xbf16> to vector<28x240xbf16>
    %cst_221 = arith.constant dense<0.000000e+00> : vector<48x240xf32>
    %177 = tpu.matmul %174, %176, %cst_221 {dimension_numbers = #tpu.dot_dimension_numbers<[1], [0], [0], [1], [0, 0, 1, 1], [], []>} : vector<48x28xbf16>, vector<28x240xbf16>, vector<48x240xf32> -> vector<48x240xf32>
    %178 = arith.addf %171, %177 : vector<48x240xf32>
    %c2_222 = arith.constant 2 : index
    %c0_223 = arith.constant 0 : index
    %c0_224 = arith.constant 0 : index
    %c0_225 = arith.constant 0 : index
    %179 = vector.load %arg1[%c2_222, %c0_223, %c0_224, %c0_225] : memref<8x1x48x28xf32, #tpu.memory_space<vmem>>, vector<1x1x48x28xf32>
    %180 = vector.shape_cast %179 : vector<1x1x48x28xf32> to vector<48x28xf32>
    %181 = arith.truncf %180 : vector<48x28xf32> to vector<48x28xbf16>
    %c1_226 = arith.constant 1 : index
    %c0_227 = arith.constant 0 : index
    %c0_228 = arith.constant 0 : index
    %c0_229 = arith.constant 0 : index
    %182 = vector.load %arg2[%c1_226, %c0_227, %c0_228, %c0_229] : memref<2x5x28x240xbf16, #tpu.memory_space<vmem>>, vector<1x1x28x240xbf16>
    %183 = vector.shape_cast %182 : vector<1x1x28x240xbf16> to vector<28x240xbf16>
    %cst_230 = arith.constant dense<0.000000e+00> : vector<48x240xf32>
    %184 = tpu.matmul %181, %183, %cst_230 {dimension_numbers = #tpu.dot_dimension_numbers<[1], [0], [0], [1], [0, 0, 1, 1], [], []>} : vector<48x28xbf16>, vector<28x240xbf16>, vector<48x240xf32> -> vector<48x240xf32>
    %c3_231 = arith.constant 3 : index
    %c0_232 = arith.constant 0 : index
    %c0_233 = arith.constant 0 : index
    %c0_234 = arith.constant 0 : index
    %185 = vector.load %arg1[%c3_231, %c0_232, %c0_233, %c0_234] : memref<8x1x48x28xf32, #tpu.memory_space<vmem>>, vector<1x1x48x28xf32>
    %186 = vector.shape_cast %185 : vector<1x1x48x28xf32> to vector<48x28xf32>
    %187 = arith.truncf %186 : vector<48x28xf32> to vector<48x28xbf16>
    %c1_235 = arith.constant 1 : index
    %c1_236 = arith.constant 1 : index
    %c0_237 = arith.constant 0 : index
    %c0_238 = arith.constant 0 : index
    %188 = vector.load %arg2[%c1_235, %c1_236, %c0_237, %c0_238] : memref<2x5x28x240xbf16, #tpu.memory_space<vmem>>, vector<1x1x28x240xbf16>
    %189 = vector.shape_cast %188 : vector<1x1x28x240xbf16> to vector<28x240xbf16>
    %cst_239 = arith.constant dense<0.000000e+00> : vector<48x240xf32>
    %190 = tpu.matmul %187, %189, %cst_239 {dimension_numbers = #tpu.dot_dimension_numbers<[1], [0], [0], [1], [0, 0, 1, 1], [], []>} : vector<48x28xbf16>, vector<28x240xbf16>, vector<48x240xf32> -> vector<48x240xf32>
    %191 = arith.addf %184, %190 : vector<48x240xf32>
    %c4_240 = arith.constant 4 : index
    %c0_241 = arith.constant 0 : index
    %c0_242 = arith.constant 0 : index
    %c0_243 = arith.constant 0 : index
    %192 = vector.load %arg1[%c4_240, %c0_241, %c0_242, %c0_243] : memref<8x1x48x28xf32, #tpu.memory_space<vmem>>, vector<1x1x48x28xf32>
    %193 = vector.shape_cast %192 : vector<1x1x48x28xf32> to vector<48x28xf32>
    %194 = arith.truncf %193 : vector<48x28xf32> to vector<48x28xbf16>
    %c1_244 = arith.constant 1 : index
    %c2_245 = arith.constant 2 : index
    %c0_246 = arith.constant 0 : index
    %c0_247 = arith.constant 0 : index
    %195 = vector.load %arg2[%c1_244, %c2_245, %c0_246, %c0_247] : memref<2x5x28x240xbf16, #tpu.memory_space<vmem>>, vector<1x1x28x240xbf16>
    %196 = vector.shape_cast %195 : vector<1x1x28x240xbf16> to vector<28x240xbf16>
    %cst_248 = arith.constant dense<0.000000e+00> : vector<48x240xf32>
    %197 = tpu.matmul %194, %196, %cst_248 {dimension_numbers = #tpu.dot_dimension_numbers<[1], [0], [0], [1], [0, 0, 1, 1], [], []>} : vector<48x28xbf16>, vector<28x240xbf16>, vector<48x240xf32> -> vector<48x240xf32>
    %198 = arith.addf %191, %197 : vector<48x240xf32>
    %c5_249 = arith.constant 5 : index
    %c0_250 = arith.constant 0 : index
    %c0_251 = arith.constant 0 : index
    %c0_252 = arith.constant 0 : index
    %199 = vector.load %arg1[%c5_249, %c0_250, %c0_251, %c0_252] : memref<8x1x48x28xf32, #tpu.memory_space<vmem>>, vector<1x1x48x28xf32>
    %200 = vector.shape_cast %199 : vector<1x1x48x28xf32> to vector<48x28xf32>
    %201 = arith.truncf %200 : vector<48x28xf32> to vector<48x28xbf16>
    %c1_253 = arith.constant 1 : index
    %c3_254 = arith.constant 3 : index
    %c0_255 = arith.constant 0 : index
    %c0_256 = arith.constant 0 : index
    %202 = vector.load %arg2[%c1_253, %c3_254, %c0_255, %c0_256] : memref<2x5x28x240xbf16, #tpu.memory_space<vmem>>, vector<1x1x28x240xbf16>
    %203 = vector.shape_cast %202 : vector<1x1x28x240xbf16> to vector<28x240xbf16>
    %cst_257 = arith.constant dense<0.000000e+00> : vector<48x240xf32>
    %204 = tpu.matmul %201, %203, %cst_257 {dimension_numbers = #tpu.dot_dimension_numbers<[1], [0], [0], [1], [0, 0, 1, 1], [], []>} : vector<48x28xbf16>, vector<28x240xbf16>, vector<48x240xf32> -> vector<48x240xf32>
    %205 = arith.addf %198, %204 : vector<48x240xf32>
    %c6_258 = arith.constant 6 : index
    %c0_259 = arith.constant 0 : index
    %c0_260 = arith.constant 0 : index
    %c0_261 = arith.constant 0 : index
    %206 = vector.load %arg1[%c6_258, %c0_259, %c0_260, %c0_261] : memref<8x1x48x28xf32, #tpu.memory_space<vmem>>, vector<1x1x48x28xf32>
    %207 = vector.shape_cast %206 : vector<1x1x48x28xf32> to vector<48x28xf32>
    %208 = arith.truncf %207 : vector<48x28xf32> to vector<48x28xbf16>
    %c1_262 = arith.constant 1 : index
    %c4_263 = arith.constant 4 : index
    %c0_264 = arith.constant 0 : index
    %c0_265 = arith.constant 0 : index
    %209 = vector.load %arg2[%c1_262, %c4_263, %c0_264, %c0_265] : memref<2x5x28x240xbf16, #tpu.memory_space<vmem>>, vector<1x1x28x240xbf16>
    %210 = vector.shape_cast %209 : vector<1x1x28x240xbf16> to vector<28x240xbf16>
    %cst_266 = arith.constant dense<0.000000e+00> : vector<48x240xf32>
    %211 = tpu.matmul %208, %210, %cst_266 {dimension_numbers = #tpu.dot_dimension_numbers<[1], [0], [0], [1], [0, 0, 1, 1], [], []>} : vector<48x28xbf16>, vector<28x240xbf16>, vector<48x240xf32> -> vector<48x240xf32>
    %212 = arith.addf %205, %211 : vector<48x240xf32>
    %213 = arith.maximumf %178, %212 : vector<48x240xf32>
    %c3_267 = arith.constant 3 : index
    %c0_268 = arith.constant 0 : index
    %c0_269 = arith.constant 0 : index
    %c0_270 = arith.constant 0 : index
    %214 = vector.load %arg1[%c3_267, %c0_268, %c0_269, %c0_270] : memref<8x1x48x28xf32, #tpu.memory_space<vmem>>, vector<1x1x48x28xf32>
    %215 = vector.shape_cast %214 : vector<1x1x48x28xf32> to vector<48x28xf32>
    %216 = arith.truncf %215 : vector<48x28xf32> to vector<48x28xbf16>
    %c0_271 = arith.constant 0 : index
    %c0_272 = arith.constant 0 : index
    %c0_273 = arith.constant 0 : index
    %c0_274 = arith.constant 0 : index
    %217 = vector.load %arg2[%c0_271, %c0_272, %c0_273, %c0_274] : memref<2x5x28x240xbf16, #tpu.memory_space<vmem>>, vector<1x1x28x240xbf16>
    %218 = vector.shape_cast %217 : vector<1x1x28x240xbf16> to vector<28x240xbf16>
    %cst_275 = arith.constant dense<0.000000e+00> : vector<48x240xf32>
    %219 = tpu.matmul %216, %218, %cst_275 {dimension_numbers = #tpu.dot_dimension_numbers<[1], [0], [0], [1], [0, 0, 1, 1], [], []>} : vector<48x28xbf16>, vector<28x240xbf16>, vector<48x240xf32> -> vector<48x240xf32>
    %c4_276 = arith.constant 4 : index
    %c0_277 = arith.constant 0 : index
    %c0_278 = arith.constant 0 : index
    %c0_279 = arith.constant 0 : index
    %220 = vector.load %arg1[%c4_276, %c0_277, %c0_278, %c0_279] : memref<8x1x48x28xf32, #tpu.memory_space<vmem>>, vector<1x1x48x28xf32>
    %221 = vector.shape_cast %220 : vector<1x1x48x28xf32> to vector<48x28xf32>
    %222 = arith.truncf %221 : vector<48x28xf32> to vector<48x28xbf16>
    %c0_280 = arith.constant 0 : index
    %c1_281 = arith.constant 1 : index
    %c0_282 = arith.constant 0 : index
    %c0_283 = arith.constant 0 : index
    %223 = vector.load %arg2[%c0_280, %c1_281, %c0_282, %c0_283] : memref<2x5x28x240xbf16, #tpu.memory_space<vmem>>, vector<1x1x28x240xbf16>
    %224 = vector.shape_cast %223 : vector<1x1x28x240xbf16> to vector<28x240xbf16>
    %cst_284 = arith.constant dense<0.000000e+00> : vector<48x240xf32>
    %225 = tpu.matmul %222, %224, %cst_284 {dimension_numbers = #tpu.dot_dimension_numbers<[1], [0], [0], [1], [0, 0, 1, 1], [], []>} : vector<48x28xbf16>, vector<28x240xbf16>, vector<48x240xf32> -> vector<48x240xf32>
    %226 = arith.addf %219, %225 : vector<48x240xf32>
    %c5_285 = arith.constant 5 : index
    %c0_286 = arith.constant 0 : index
    %c0_287 = arith.constant 0 : index
    %c0_288 = arith.constant 0 : index
    %227 = vector.load %arg1[%c5_285, %c0_286, %c0_287, %c0_288] : memref<8x1x48x28xf32, #tpu.memory_space<vmem>>, vector<1x1x48x28xf32>
    %228 = vector.shape_cast %227 : vector<1x1x48x28xf32> to vector<48x28xf32>
    %229 = arith.truncf %228 : vector<48x28xf32> to vector<48x28xbf16>
    %c0_289 = arith.constant 0 : index
    %c2_290 = arith.constant 2 : index
    %c0_291 = arith.constant 0 : index
    %c0_292 = arith.constant 0 : index
    %230 = vector.load %arg2[%c0_289, %c2_290, %c0_291, %c0_292] : memref<2x5x28x240xbf16, #tpu.memory_space<vmem>>, vector<1x1x28x240xbf16>
    %231 = vector.shape_cast %230 : vector<1x1x28x240xbf16> to vector<28x240xbf16>
    %cst_293 = arith.constant dense<0.000000e+00> : vector<48x240xf32>
    %232 = tpu.matmul %229, %231, %cst_293 {dimension_numbers = #tpu.dot_dimension_numbers<[1], [0], [0], [1], [0, 0, 1, 1], [], []>} : vector<48x28xbf16>, vector<28x240xbf16>, vector<48x240xf32> -> vector<48x240xf32>
    %233 = arith.addf %226, %232 : vector<48x240xf32>
    %c6_294 = arith.constant 6 : index
    %c0_295 = arith.constant 0 : index
    %c0_296 = arith.constant 0 : index
    %c0_297 = arith.constant 0 : index
    %234 = vector.load %arg1[%c6_294, %c0_295, %c0_296, %c0_297] : memref<8x1x48x28xf32, #tpu.memory_space<vmem>>, vector<1x1x48x28xf32>
    %235 = vector.shape_cast %234 : vector<1x1x48x28xf32> to vector<48x28xf32>
    %236 = arith.truncf %235 : vector<48x28xf32> to vector<48x28xbf16>
    %c0_298 = arith.constant 0 : index
    %c3_299 = arith.constant 3 : index
    %c0_300 = arith.constant 0 : index
    %c0_301 = arith.constant 0 : index
    %237 = vector.load %arg2[%c0_298, %c3_299, %c0_300, %c0_301] : memref<2x5x28x240xbf16, #tpu.memory_space<vmem>>, vector<1x1x28x240xbf16>
    %238 = vector.shape_cast %237 : vector<1x1x28x240xbf16> to vector<28x240xbf16>
    %cst_302 = arith.constant dense<0.000000e+00> : vector<48x240xf32>
    %239 = tpu.matmul %236, %238, %cst_302 {dimension_numbers = #tpu.dot_dimension_numbers<[1], [0], [0], [1], [0, 0, 1, 1], [], []>} : vector<48x28xbf16>, vector<28x240xbf16>, vector<48x240xf32> -> vector<48x240xf32>
    %240 = arith.addf %233, %239 : vector<48x240xf32>
    %c7 = arith.constant 7 : index
    %c0_303 = arith.constant 0 : index
    %c0_304 = arith.constant 0 : index
    %c0_305 = arith.constant 0 : index
    %241 = vector.load %arg1[%c7, %c0_303, %c0_304, %c0_305] : memref<8x1x48x28xf32, #tpu.memory_space<vmem>>, vector<1x1x48x28xf32>
    %242 = vector.shape_cast %241 : vector<1x1x48x28xf32> to vector<48x28xf32>
    %243 = arith.truncf %242 : vector<48x28xf32> to vector<48x28xbf16>
    %c0_306 = arith.constant 0 : index
    %c4_307 = arith.constant 4 : index
    %c0_308 = arith.constant 0 : index
    %c0_309 = arith.constant 0 : index
    %244 = vector.load %arg2[%c0_306, %c4_307, %c0_308, %c0_309] : memref<2x5x28x240xbf16, #tpu.memory_space<vmem>>, vector<1x1x28x240xbf16>
    %245 = vector.shape_cast %244 : vector<1x1x28x240xbf16> to vector<28x240xbf16>
    %cst_310 = arith.constant dense<0.000000e+00> : vector<48x240xf32>
    %246 = tpu.matmul %243, %245, %cst_310 {dimension_numbers = #tpu.dot_dimension_numbers<[1], [0], [0], [1], [0, 0, 1, 1], [], []>} : vector<48x28xbf16>, vector<28x240xbf16>, vector<48x240xf32> -> vector<48x240xf32>
    %247 = arith.addf %240, %246 : vector<48x240xf32>
    %248 = arith.maximumf %213, %247 : vector<48x240xf32>
    %c3_311 = arith.constant 3 : index
    %c0_312 = arith.constant 0 : index
    %c0_313 = arith.constant 0 : index
    %c0_314 = arith.constant 0 : index
    %249 = vector.load %arg1[%c3_311, %c0_312, %c0_313, %c0_314] : memref<8x1x48x28xf32, #tpu.memory_space<vmem>>, vector<1x1x48x28xf32>
    %250 = vector.shape_cast %249 : vector<1x1x48x28xf32> to vector<48x28xf32>
    %251 = arith.truncf %250 : vector<48x28xf32> to vector<48x28xbf16>
    %c1_315 = arith.constant 1 : index
    %c0_316 = arith.constant 0 : index
    %c0_317 = arith.constant 0 : index
    %c0_318 = arith.constant 0 : index
    %252 = vector.load %arg2[%c1_315, %c0_316, %c0_317, %c0_318] : memref<2x5x28x240xbf16, #tpu.memory_space<vmem>>, vector<1x1x28x240xbf16>
    %253 = vector.shape_cast %252 : vector<1x1x28x240xbf16> to vector<28x240xbf16>
    %cst_319 = arith.constant dense<0.000000e+00> : vector<48x240xf32>
    %254 = tpu.matmul %251, %253, %cst_319 {dimension_numbers = #tpu.dot_dimension_numbers<[1], [0], [0], [1], [0, 0, 1, 1], [], []>} : vector<48x28xbf16>, vector<28x240xbf16>, vector<48x240xf32> -> vector<48x240xf32>
    %c4_320 = arith.constant 4 : index
    %c0_321 = arith.constant 0 : index
    %c0_322 = arith.constant 0 : index
    %c0_323 = arith.constant 0 : index
    %255 = vector.load %arg1[%c4_320, %c0_321, %c0_322, %c0_323] : memref<8x1x48x28xf32, #tpu.memory_space<vmem>>, vector<1x1x48x28xf32>
    %256 = vector.shape_cast %255 : vector<1x1x48x28xf32> to vector<48x28xf32>
    %257 = arith.truncf %256 : vector<48x28xf32> to vector<48x28xbf16>
    %c1_324 = arith.constant 1 : index
    %c1_325 = arith.constant 1 : index
    %c0_326 = arith.constant 0 : index
    %c0_327 = arith.constant 0 : index
    %258 = vector.load %arg2[%c1_324, %c1_325, %c0_326, %c0_327] : memref<2x5x28x240xbf16, #tpu.memory_space<vmem>>, vector<1x1x28x240xbf16>
    %259 = vector.shape_cast %258 : vector<1x1x28x240xbf16> to vector<28x240xbf16>
    %cst_328 = arith.constant dense<0.000000e+00> : vector<48x240xf32>
    %260 = tpu.matmul %257, %259, %cst_328 {dimension_numbers = #tpu.dot_dimension_numbers<[1], [0], [0], [1], [0, 0, 1, 1], [], []>} : vector<48x28xbf16>, vector<28x240xbf16>, vector<48x240xf32> -> vector<48x240xf32>
    %261 = arith.addf %254, %260 : vector<48x240xf32>
    %c5_329 = arith.constant 5 : index
    %c0_330 = arith.constant 0 : index
    %c0_331 = arith.constant 0 : index
    %c0_332 = arith.constant 0 : index
    %262 = vector.load %arg1[%c5_329, %c0_330, %c0_331, %c0_332] : memref<8x1x48x28xf32, #tpu.memory_space<vmem>>, vector<1x1x48x28xf32>
    %263 = vector.shape_cast %262 : vector<1x1x48x28xf32> to vector<48x28xf32>
    %264 = arith.truncf %263 : vector<48x28xf32> to vector<48x28xbf16>
    %c1_333 = arith.constant 1 : index
    %c2_334 = arith.constant 2 : index
    %c0_335 = arith.constant 0 : index
    %c0_336 = arith.constant 0 : index
    %265 = vector.load %arg2[%c1_333, %c2_334, %c0_335, %c0_336] : memref<2x5x28x240xbf16, #tpu.memory_space<vmem>>, vector<1x1x28x240xbf16>
    %266 = vector.shape_cast %265 : vector<1x1x28x240xbf16> to vector<28x240xbf16>
    %cst_337 = arith.constant dense<0.000000e+00> : vector<48x240xf32>
    %267 = tpu.matmul %264, %266, %cst_337 {dimension_numbers = #tpu.dot_dimension_numbers<[1], [0], [0], [1], [0, 0, 1, 1], [], []>} : vector<48x28xbf16>, vector<28x240xbf16>, vector<48x240xf32> -> vector<48x240xf32>
    %268 = arith.addf %261, %267 : vector<48x240xf32>
    %c6_338 = arith.constant 6 : index
    %c0_339 = arith.constant 0 : index
    %c0_340 = arith.constant 0 : index
    %c0_341 = arith.constant 0 : index
    %269 = vector.load %arg1[%c6_338, %c0_339, %c0_340, %c0_341] : memref<8x1x48x28xf32, #tpu.memory_space<vmem>>, vector<1x1x48x28xf32>
    %270 = vector.shape_cast %269 : vector<1x1x48x28xf32> to vector<48x28xf32>
    %271 = arith.truncf %270 : vector<48x28xf32> to vector<48x28xbf16>
    %c1_342 = arith.constant 1 : index
    %c3_343 = arith.constant 3 : index
    %c0_344 = arith.constant 0 : index
    %c0_345 = arith.constant 0 : index
    %272 = vector.load %arg2[%c1_342, %c3_343, %c0_344, %c0_345] : memref<2x5x28x240xbf16, #tpu.memory_space<vmem>>, vector<1x1x28x240xbf16>
    %273 = vector.shape_cast %272 : vector<1x1x28x240xbf16> to vector<28x240xbf16>
    %cst_346 = arith.constant dense<0.000000e+00> : vector<48x240xf32>
    %274 = tpu.matmul %271, %273, %cst_346 {dimension_numbers = #tpu.dot_dimension_numbers<[1], [0], [0], [1], [0, 0, 1, 1], [], []>} : vector<48x28xbf16>, vector<28x240xbf16>, vector<48x240xf32> -> vector<48x240xf32>
    %275 = arith.addf %268, %274 : vector<48x240xf32>
    %c7_347 = arith.constant 7 : index
    %c0_348 = arith.constant 0 : index
    %c0_349 = arith.constant 0 : index
    %c0_350 = arith.constant 0 : index
    %276 = vector.load %arg1[%c7_347, %c0_348, %c0_349, %c0_350] : memref<8x1x48x28xf32, #tpu.memory_space<vmem>>, vector<1x1x48x28xf32>
    %277 = vector.shape_cast %276 : vector<1x1x48x28xf32> to vector<48x28xf32>
    %278 = arith.truncf %277 : vector<48x28xf32> to vector<48x28xbf16>
    %c1_351 = arith.constant 1 : index
    %c4_352 = arith.constant 4 : index
    %c0_353 = arith.constant 0 : index
    %c0_354 = arith.constant 0 : index
    %279 = vector.load %arg2[%c1_351, %c4_352, %c0_353, %c0_354] : memref<2x5x28x240xbf16, #tpu.memory_space<vmem>>, vector<1x1x28x240xbf16>
    %280 = vector.shape_cast %279 : vector<1x1x28x240xbf16> to vector<28x240xbf16>
    %cst_355 = arith.constant dense<0.000000e+00> : vector<48x240xf32>
    %281 = tpu.matmul %278, %280, %cst_355 {dimension_numbers = #tpu.dot_dimension_numbers<[1], [0], [0], [1], [0, 0, 1, 1], [], []>} : vector<48x28xbf16>, vector<28x240xbf16>, vector<48x240xf32> -> vector<48x240xf32>
    %282 = arith.addf %275, %281 : vector<48x240xf32>
    %283 = arith.maximumf %248, %282 : vector<48x240xf32>
    %c0_356 = arith.constant 0 : index
    %c0_357 = arith.constant 0 : index
    %284 = vector.load %arg3[%c0_356, %c0_357] : memref<1x240xf32, #tpu.memory_space<vmem>>, vector<1x240xf32>
    %285 = vector.broadcast %284 : vector<1x240xf32> to vector<48x240xf32>
    %286 = arith.addf %283, %285 : vector<48x240xf32>
    %cst_358 = arith.constant 0.000000e+00 : f32
    %287 = vector.broadcast %cst_358 : f32 to vector<48x240xf32>
    %288 = arith.maximumf %286, %287 : vector<48x240xf32>
    %c0_359 = arith.constant 0 : index
    %c0_360 = arith.constant 0 : index
    %289 = vector.load %arg12[%c0_359, %c0_360] : memref<48x240xf32, #tpu.memory_space<vmem>>, vector<48x240xf32>
    tpu.vector_store %arg12[%c0_359, %c0_360], %288 {strides = array<i32>} : memref<48x240xf32, #tpu.memory_space<vmem>>, vector<48x240xf32>,
    %c0_361 = arith.constant 0 : index
    %c0_362 = arith.constant 0 : index
    %290 = vector.load %arg11[%c0_361, %c0_362] : memref<48x240xf32, #tpu.memory_space<vmem>>, vector<32x240xf32>
    %291 = arith.truncf %290 : vector<32x240xf32> to vector<32x240xbf16>
    %c0_363 = arith.constant 0 : index
    %c0_364 = arith.constant 0 : index
    %c0_365 = arith.constant 0 : index
    %c0_366 = arith.constant 0 : index
    %292 = vector.load %arg4[%c0_363, %c0_364, %c0_365, %c0_366] : memref<2x5x240x200xbf16, #tpu.memory_space<vmem>>, vector<1x1x240x200xbf16>
    %293 = vector.shape_cast %292 : vector<1x1x240x200xbf16> to vector<240x200xbf16>
    %cst_367 = arith.constant dense<0.000000e+00> : vector<32x200xf32>
    %294 = tpu.matmul %291, %293, %cst_367 {dimension_numbers = #tpu.dot_dimension_numbers<[1], [0], [0], [1], [0, 0, 1, 1], [], []>} : vector<32x240xbf16>, vector<240x200xbf16>, vector<32x200xf32> -> vector<32x200xf32>
    %c0_368 = arith.constant 0 : index
    %c0_369 = arith.constant 0 : index
    %295 = vector.load %arg12[%c0_368, %c0_369] : memref<48x240xf32, #tpu.memory_space<vmem>>, vector<32x240xf32>
    %296 = arith.truncf %295 : vector<32x240xf32> to vector<32x240xbf16>
    %c0_370 = arith.constant 0 : index
    %c1_371 = arith.constant 1 : index
    %c0_372 = arith.constant 0 : index
    %c0_373 = arith.constant 0 : index
    %297 = vector.load %arg4[%c0_370, %c1_371, %c0_372, %c0_373] : memref<2x5x240x200xbf16, #tpu.memory_space<vmem>>, vector<1x1x240x200xbf16>
    %298 = vector.shape_cast %297 : vector<1x1x240x200xbf16> to vector<240x200xbf16>
    %cst_374 = arith.constant dense<0.000000e+00> : vector<32x200xf32>
    %299 = tpu.matmul %296, %298, %cst_374 {dimension_numbers = #tpu.dot_dimension_numbers<[1], [0], [0], [1], [0, 0, 1, 1], [], []>} : vector<32x240xbf16>, vector<240x200xbf16>, vector<32x200xf32> -> vector<32x200xf32>
    %300 = arith.addf %294, %299 : vector<32x200xf32>
    %c8 = arith.constant 8 : index
    %c0_375 = arith.constant 0 : index
    %301 = vector.load %arg11[%c8, %c0_375] : memref<48x240xf32, #tpu.memory_space<vmem>>, vector<32x240xf32>
    %302 = arith.truncf %301 : vector<32x240xf32> to vector<32x240xbf16>
    %c0_376 = arith.constant 0 : index
    %c2_377 = arith.constant 2 : index
    %c0_378 = arith.constant 0 : index
    %c0_379 = arith.constant 0 : index
    %303 = vector.load %arg4[%c0_376, %c2_377, %c0_378, %c0_379] : memref<2x5x240x200xbf16, #tpu.memory_space<vmem>>, vector<1x1x240x200xbf16>
    %304 = vector.shape_cast %303 : vector<1x1x240x200xbf16> to vector<240x200xbf16>
    %cst_380 = arith.constant dense<0.000000e+00> : vector<32x200xf32>
    %305 = tpu.matmul %302, %304, %cst_380 {dimension_numbers = #tpu.dot_dimension_numbers<[1], [0], [0], [1], [0, 0, 1, 1], [], []>} : vector<32x240xbf16>, vector<240x200xbf16>, vector<32x200xf32> -> vector<32x200xf32>
    %306 = arith.addf %300, %305 : vector<32x200xf32>
    %c8_381 = arith.constant 8 : index
    %c0_382 = arith.constant 0 : index
    %307 = vector.load %arg12[%c8_381, %c0_382] : memref<48x240xf32, #tpu.memory_space<vmem>>, vector<32x240xf32>
    %308 = arith.truncf %307 : vector<32x240xf32> to vector<32x240xbf16>
    %c0_383 = arith.constant 0 : index
    %c3_384 = arith.constant 3 : index
    %c0_385 = arith.constant 0 : index
    %c0_386 = arith.constant 0 : index
    %309 = vector.load %arg4[%c0_383, %c3_384, %c0_385, %c0_386] : memref<2x5x240x200xbf16, #tpu.memory_space<vmem>>, vector<1x1x240x200xbf16>
    %310 = vector.shape_cast %309 : vector<1x1x240x200xbf16> to vector<240x200xbf16>
    %cst_387 = arith.constant dense<0.000000e+00> : vector<32x200xf32>
    %311 = tpu.matmul %308, %310, %cst_387 {dimension_numbers = #tpu.dot_dimension_numbers<[1], [0], [0], [1], [0, 0, 1, 1], [], []>} : vector<32x240xbf16>, vector<240x200xbf16>, vector<32x200xf32> -> vector<32x200xf32>
    %312 = arith.addf %306, %311 : vector<32x200xf32>
    %c16 = arith.constant 16 : index
    %c0_388 = arith.constant 0 : index
    %313 = vector.load %arg11[%c16, %c0_388] : memref<48x240xf32, #tpu.memory_space<vmem>>, vector<32x240xf32>
    %314 = arith.truncf %313 : vector<32x240xf32> to vector<32x240xbf16>
    %c0_389 = arith.constant 0 : index
    %c4_390 = arith.constant 4 : index
    %c0_391 = arith.constant 0 : index
    %c0_392 = arith.constant 0 : index
    %315 = vector.load %arg4[%c0_389, %c4_390, %c0_391, %c0_392] : memref<2x5x240x200xbf16, #tpu.memory_space<vmem>>, vector<1x1x240x200xbf16>
    %316 = vector.shape_cast %315 : vector<1x1x240x200xbf16> to vector<240x200xbf16>
    %cst_393 = arith.constant dense<0.000000e+00> : vector<32x200xf32>
    %317 = tpu.matmul %314, %316, %cst_393 {dimension_numbers = #tpu.dot_dimension_numbers<[1], [0], [0], [1], [0, 0, 1, 1], [], []>} : vector<32x240xbf16>, vector<240x200xbf16>, vector<32x200xf32> -> vector<32x200xf32>
    %318 = arith.addf %312, %317 : vector<32x200xf32>
    %c0_394 = arith.constant 0 : index
    %c0_395 = arith.constant 0 : index
    %319 = vector.load %arg11[%c0_394, %c0_395] : memref<48x240xf32, #tpu.memory_space<vmem>>, vector<32x240xf32>
    %320 = arith.truncf %319 : vector<32x240xf32> to vector<32x240xbf16>
    %c1_396 = arith.constant 1 : index
    %c0_397 = arith.constant 0 : index
    %c0_398 = arith.constant 0 : index
    %c0_399 = arith.constant 0 : index
    %321 = vector.load %arg4[%c1_396, %c0_397, %c0_398, %c0_399] : memref<2x5x240x200xbf16, #tpu.memory_space<vmem>>, vector<1x1x240x200xbf16>
    %322 = vector.shape_cast %321 : vector<1x1x240x200xbf16> to vector<240x200xbf16>
    %cst_400 = arith.constant dense<0.000000e+00> : vector<32x200xf32>
    %323 = tpu.matmul %320, %322, %cst_400 {dimension_numbers = #tpu.dot_dimension_numbers<[1], [0], [0], [1], [0, 0, 1, 1], [], []>} : vector<32x240xbf16>, vector<240x200xbf16>, vector<32x200xf32> -> vector<32x200xf32>
    %c0_401 = arith.constant 0 : index
    %c0_402 = arith.constant 0 : index
    %324 = vector.load %arg12[%c0_401, %c0_402] : memref<48x240xf32, #tpu.memory_space<vmem>>, vector<32x240xf32>
    %325 = arith.truncf %324 : vector<32x240xf32> to vector<32x240xbf16>
    %c1_403 = arith.constant 1 : index
    %c1_404 = arith.constant 1 : index
    %c0_405 = arith.constant 0 : index
    %c0_406 = arith.constant 0 : index
    %326 = vector.load %arg4[%c1_403, %c1_404, %c0_405, %c0_406] : memref<2x5x240x200xbf16, #tpu.memory_space<vmem>>, vector<1x1x240x200xbf16>
    %327 = vector.shape_cast %326 : vector<1x1x240x200xbf16> to vector<240x200xbf16>
    %cst_407 = arith.constant dense<0.000000e+00> : vector<32x200xf32>
    %328 = tpu.matmul %325, %327, %cst_407 {dimension_numbers = #tpu.dot_dimension_numbers<[1], [0], [0], [1], [0, 0, 1, 1], [], []>} : vector<32x240xbf16>, vector<240x200xbf16>, vector<32x200xf32> -> vector<32x200xf32>
    %329 = arith.addf %323, %328 : vector<32x200xf32>
    %c8_408 = arith.constant 8 : index
    %c0_409 = arith.constant 0 : index
    %330 = vector.load %arg11[%c8_408, %c0_409] : memref<48x240xf32, #tpu.memory_space<vmem>>, vector<32x240xf32>
    %331 = arith.truncf %330 : vector<32x240xf32> to vector<32x240xbf16>
    %c1_410 = arith.constant 1 : index
    %c2_411 = arith.constant 2 : index
    %c0_412 = arith.constant 0 : index
    %c0_413 = arith.constant 0 : index
    %332 = vector.load %arg4[%c1_410, %c2_411, %c0_412, %c0_413] : memref<2x5x240x200xbf16, #tpu.memory_space<vmem>>, vector<1x1x240x200xbf16>
    %333 = vector.shape_cast %332 : vector<1x1x240x200xbf16> to vector<240x200xbf16>
    %cst_414 = arith.constant dense<0.000000e+00> : vector<32x200xf32>
    %334 = tpu.matmul %331, %333, %cst_414 {dimension_numbers = #tpu.dot_dimension_numbers<[1], [0], [0], [1], [0, 0, 1, 1], [], []>} : vector<32x240xbf16>, vector<240x200xbf16>, vector<32x200xf32> -> vector<32x200xf32>
    %335 = arith.addf %329, %334 : vector<32x200xf32>
    %c8_415 = arith.constant 8 : index
    %c0_416 = arith.constant 0 : index
    %336 = vector.load %arg12[%c8_415, %c0_416] : memref<48x240xf32, #tpu.memory_space<vmem>>, vector<32x240xf32>
    %337 = arith.truncf %336 : vector<32x240xf32> to vector<32x240xbf16>
    %c1_417 = arith.constant 1 : index
    %c3_418 = arith.constant 3 : index
    %c0_419 = arith.constant 0 : index
    %c0_420 = arith.constant 0 : index
    %338 = vector.load %arg4[%c1_417, %c3_418, %c0_419, %c0_420] : memref<2x5x240x200xbf16, #tpu.memory_space<vmem>>, vector<1x1x240x200xbf16>
    %339 = vector.shape_cast %338 : vector<1x1x240x200xbf16> to vector<240x200xbf16>
    %cst_421 = arith.constant dense<0.000000e+00> : vector<32x200xf32>
    %340 = tpu.matmul %337, %339, %cst_421 {dimension_numbers = #tpu.dot_dimension_numbers<[1], [0], [0], [1], [0, 0, 1, 1], [], []>} : vector<32x240xbf16>, vector<240x200xbf16>, vector<32x200xf32> -> vector<32x200xf32>
    %341 = arith.addf %335, %340 : vector<32x200xf32>
    %c16_422 = arith.constant 16 : index
    %c0_423 = arith.constant 0 : index
    %342 = vector.load %arg11[%c16_422, %c0_423] : memref<48x240xf32, #tpu.memory_space<vmem>>, vector<32x240xf32>
    %343 = arith.truncf %342 : vector<32x240xf32> to vector<32x240xbf16>
    %c1_424 = arith.constant 1 : index
    %c4_425 = arith.constant 4 : index
    %c0_426 = arith.constant 0 : index
    %c0_427 = arith.constant 0 : index
    %344 = vector.load %arg4[%c1_424, %c4_425, %c0_426, %c0_427] : memref<2x5x240x200xbf16, #tpu.memory_space<vmem>>, vector<1x1x240x200xbf16>
    %345 = vector.shape_cast %344 : vector<1x1x240x200xbf16> to vector<240x200xbf16>
    %cst_428 = arith.constant dense<0.000000e+00> : vector<32x200xf32>
    %346 = tpu.matmul %343, %345, %cst_428 {dimension_numbers = #tpu.dot_dimension_numbers<[1], [0], [0], [1], [0, 0, 1, 1], [], []>} : vector<32x240xbf16>, vector<240x200xbf16>, vector<32x200xf32> -> vector<32x200xf32>
    %347 = arith.addf %341, %346 : vector<32x200xf32>
    %348 = arith.maximumf %318, %347 : vector<32x200xf32>
    %c0_429 = arith.constant 0 : index
    %c0_430 = arith.constant 0 : index
    %349 = vector.load %arg12[%c0_429, %c0_430] : memref<48x240xf32, #tpu.memory_space<vmem>>, vector<32x240xf32>
    %350 = arith.truncf %349 : vector<32x240xf32> to vector<32x240xbf16>
    %c0_431 = arith.constant 0 : index
    %c0_432 = arith.constant 0 : index
    %c0_433 = arith.constant 0 : index
    %c0_434 = arith.constant 0 : index
    %351 = vector.load %arg4[%c0_431, %c0_432, %c0_433, %c0_434] : memref<2x5x240x200xbf16, #tpu.memory_space<vmem>>, vector<1x1x240x200xbf16>
    %352 = vector.shape_cast %351 : vector<1x1x240x200xbf16> to vector<240x200xbf16>
    %cst_435 = arith.constant dense<0.000000e+00> : vector<32x200xf32>
    %353 = tpu.matmul %350, %352, %cst_435 {dimension_numbers = #tpu.dot_dimension_numbers<[1], [0], [0], [1], [0, 0, 1, 1], [], []>} : vector<32x240xbf16>, vector<240x200xbf16>, vector<32x200xf32> -> vector<32x200xf32>
    %c8_436 = arith.constant 8 : index
    %c0_437 = arith.constant 0 : index
    %354 = vector.load %arg11[%c8_436, %c0_437] : memref<48x240xf32, #tpu.memory_space<vmem>>, vector<32x240xf32>
    %355 = arith.truncf %354 : vector<32x240xf32> to vector<32x240xbf16>
    %c0_438 = arith.constant 0 : index
    %c1_439 = arith.constant 1 : index
    %c0_440 = arith.constant 0 : index
    %c0_441 = arith.constant 0 : index
    %356 = vector.load %arg4[%c0_438, %c1_439, %c0_440, %c0_441] : memref<2x5x240x200xbf16, #tpu.memory_space<vmem>>, vector<1x1x240x200xbf16>
    %357 = vector.shape_cast %356 : vector<1x1x240x200xbf16> to vector<240x200xbf16>
    %cst_442 = arith.constant dense<0.000000e+00> : vector<32x200xf32>
    %358 = tpu.matmul %355, %357, %cst_442 {dimension_numbers = #tpu.dot_dimension_numbers<[1], [0], [0], [1], [0, 0, 1, 1], [], []>} : vector<32x240xbf16>, vector<240x200xbf16>, vector<32x200xf32> -> vector<32x200xf32>
    %359 = arith.addf %353, %358 : vector<32x200xf32>
    %c8_443 = arith.constant 8 : index
    %c0_444 = arith.constant 0 : index
    %360 = vector.load %arg12[%c8_443, %c0_444] : memref<48x240xf32, #tpu.memory_space<vmem>>, vector<32x240xf32>
    %361 = arith.truncf %360 : vector<32x240xf32> to vector<32x240xbf16>
    %c0_445 = arith.constant 0 : index
    %c2_446 = arith.constant 2 : index
    %c0_447 = arith.constant 0 : index
    %c0_448 = arith.constant 0 : index
    %362 = vector.load %arg4[%c0_445, %c2_446, %c0_447, %c0_448] : memref<2x5x240x200xbf16, #tpu.memory_space<vmem>>, vector<1x1x240x200xbf16>
    %363 = vector.shape_cast %362 : vector<1x1x240x200xbf16> to vector<240x200xbf16>
    %cst_449 = arith.constant dense<0.000000e+00> : vector<32x200xf32>
    %364 = tpu.matmul %361, %363, %cst_449 {dimension_numbers = #tpu.dot_dimension_numbers<[1], [0], [0], [1], [0, 0, 1, 1], [], []>} : vector<32x240xbf16>, vector<240x200xbf16>, vector<32x200xf32> -> vector<32x200xf32>
    %365 = arith.addf %359, %364 : vector<32x200xf32>
    %c16_450 = arith.constant 16 : index
    %c0_451 = arith.constant 0 : index
    %366 = vector.load %arg11[%c16_450, %c0_451] : memref<48x240xf32, #tpu.memory_space<vmem>>, vector<32x240xf32>
    %367 = arith.truncf %366 : vector<32x240xf32> to vector<32x240xbf16>
    %c0_452 = arith.constant 0 : index
    %c3_453 = arith.constant 3 : index
    %c0_454 = arith.constant 0 : index
    %c0_455 = arith.constant 0 : index
    %368 = vector.load %arg4[%c0_452, %c3_453, %c0_454, %c0_455] : memref<2x5x240x200xbf16, #tpu.memory_space<vmem>>, vector<1x1x240x200xbf16>
    %369 = vector.shape_cast %368 : vector<1x1x240x200xbf16> to vector<240x200xbf16>
    %cst_456 = arith.constant dense<0.000000e+00> : vector<32x200xf32>
    %370 = tpu.matmul %367, %369, %cst_456 {dimension_numbers = #tpu.dot_dimension_numbers<[1], [0], [0], [1], [0, 0, 1, 1], [], []>} : vector<32x240xbf16>, vector<240x200xbf16>, vector<32x200xf32> -> vector<32x200xf32>
    %371 = arith.addf %365, %370 : vector<32x200xf32>
    %c16_457 = arith.constant 16 : index
    %c0_458 = arith.constant 0 : index
    %372 = vector.load %arg12[%c16_457, %c0_458] : memref<48x240xf32, #tpu.memory_space<vmem>>, vector<32x240xf32>
    %373 = arith.truncf %372 : vector<32x240xf32> to vector<32x240xbf16>
    %c0_459 = arith.constant 0 : index
    %c4_460 = arith.constant 4 : index
    %c0_461 = arith.constant 0 : index
    %c0_462 = arith.constant 0 : index
    %374 = vector.load %arg4[%c0_459, %c4_460, %c0_461, %c0_462] : memref<2x5x240x200xbf16, #tpu.memory_space<vmem>>, vector<1x1x240x200xbf16>
    %375 = vector.shape_cast %374 : vector<1x1x240x200xbf16> to vector<240x200xbf16>
    %cst_463 = arith.constant dense<0.000000e+00> : vector<32x200xf32>
    %376 = tpu.matmul %373, %375, %cst_463 {dimension_numbers = #tpu.dot_dimension_numbers<[1], [0], [0], [1], [0, 0, 1, 1], [], []>} : vector<32x240xbf16>, vector<240x200xbf16>, vector<32x200xf32> -> vector<32x200xf32>
    %377 = arith.addf %371, %376 : vector<32x200xf32>
    %378 = arith.maximumf %348, %377 : vector<32x200xf32>
    %c0_464 = arith.constant 0 : index
    %c0_465 = arith.constant 0 : index
    %379 = vector.load %arg12[%c0_464, %c0_465] : memref<48x240xf32, #tpu.memory_space<vmem>>, vector<32x240xf32>
    %380 = arith.truncf %379 : vector<32x240xf32> to vector<32x240xbf16>
    %c1_466 = arith.constant 1 : index
    %c0_467 = arith.constant 0 : index
    %c0_468 = arith.constant 0 : index
    %c0_469 = arith.constant 0 : index
    %381 = vector.load %arg4[%c1_466, %c0_467, %c0_468, %c0_469] : memref<2x5x240x200xbf16, #tpu.memory_space<vmem>>, vector<1x1x240x200xbf16>
    %382 = vector.shape_cast %381 : vector<1x1x240x200xbf16> to vector<240x200xbf16>
    %cst_470 = arith.constant dense<0.000000e+00> : vector<32x200xf32>
    %383 = tpu.matmul %380, %382, %cst_470 {dimension_numbers = #tpu.dot_dimension_numbers<[1], [0], [0], [1], [0, 0, 1, 1], [], []>} : vector<32x240xbf16>, vector<240x200xbf16>, vector<32x200xf32> -> vector<32x200xf32>
    %c8_471 = arith.constant 8 : index
    %c0_472 = arith.constant 0 : index
    %384 = vector.load %arg11[%c8_471, %c0_472] : memref<48x240xf32, #tpu.memory_space<vmem>>, vector<32x240xf32>
    %385 = arith.truncf %384 : vector<32x240xf32> to vector<32x240xbf16>
    %c1_473 = arith.constant 1 : index
    %c1_474 = arith.constant 1 : index
    %c0_475 = arith.constant 0 : index
    %c0_476 = arith.constant 0 : index
    %386 = vector.load %arg4[%c1_473, %c1_474, %c0_475, %c0_476] : memref<2x5x240x200xbf16, #tpu.memory_space<vmem>>, vector<1x1x240x200xbf16>
    %387 = vector.shape_cast %386 : vector<1x1x240x200xbf16> to vector<240x200xbf16>
    %cst_477 = arith.constant dense<0.000000e+00> : vector<32x200xf32>
    %388 = tpu.matmul %385, %387, %cst_477 {dimension_numbers = #tpu.dot_dimension_numbers<[1], [0], [0], [1], [0, 0, 1, 1], [], []>} : vector<32x240xbf16>, vector<240x200xbf16>, vector<32x200xf32> -> vector<32x200xf32>
    %389 = arith.addf %383, %388 : vector<32x200xf32>
    %c8_478 = arith.constant 8 : index
    %c0_479 = arith.constant 0 : index
    %390 = vector.load %arg12[%c8_478, %c0_479] : memref<48x240xf32, #tpu.memory_space<vmem>>, vector<32x240xf32>
    %391 = arith.truncf %390 : vector<32x240xf32> to vector<32x240xbf16>
    %c1_480 = arith.constant 1 : index
    %c2_481 = arith.constant 2 : index
    %c0_482 = arith.constant 0 : index
    %c0_483 = arith.constant 0 : index
    %392 = vector.load %arg4[%c1_480, %c2_481, %c0_482, %c0_483] : memref<2x5x240x200xbf16, #tpu.memory_space<vmem>>, vector<1x1x240x200xbf16>
    %393 = vector.shape_cast %392 : vector<1x1x240x200xbf16> to vector<240x200xbf16>
    %cst_484 = arith.constant dense<0.000000e+00> : vector<32x200xf32>
    %394 = tpu.matmul %391, %393, %cst_484 {dimension_numbers = #tpu.dot_dimension_numbers<[1], [0], [0], [1], [0, 0, 1, 1], [], []>} : vector<32x240xbf16>, vector<240x200xbf16>, vector<32x200xf32> -> vector<32x200xf32>
    %395 = arith.addf %389, %394 : vector<32x200xf32>
    %c16_485 = arith.constant 16 : index
    %c0_486 = arith.constant 0 : index
    %396 = vector.load %arg11[%c16_485, %c0_486] : memref<48x240xf32, #tpu.memory_space<vmem>>, vector<32x240xf32>
    %397 = arith.truncf %396 : vector<32x240xf32> to vector<32x240xbf16>
    %c1_487 = arith.constant 1 : index
    %c3_488 = arith.constant 3 : index
    %c0_489 = arith.constant 0 : index
    %c0_490 = arith.constant 0 : index
    %398 = vector.load %arg4[%c1_487, %c3_488, %c0_489, %c0_490] : memref<2x5x240x200xbf16, #tpu.memory_space<vmem>>, vector<1x1x240x200xbf16>
    %399 = vector.shape_cast %398 : vector<1x1x240x200xbf16> to vector<240x200xbf16>
    %cst_491 = arith.constant dense<0.000000e+00> : vector<32x200xf32>
    %400 = tpu.matmul %397, %399, %cst_491 {dimension_numbers = #tpu.dot_dimension_numbers<[1], [0], [0], [1], [0, 0, 1, 1], [], []>} : vector<32x240xbf16>, vector<240x200xbf16>, vector<32x200xf32> -> vector<32x200xf32>
    %401 = arith.addf %395, %400 : vector<32x200xf32>
    %c16_492 = arith.constant 16 : index
    %c0_493 = arith.constant 0 : index
    %402 = vector.load %arg12[%c16_492, %c0_493] : memref<48x240xf32, #tpu.memory_space<vmem>>, vector<32x240xf32>
    %403 = arith.truncf %402 : vector<32x240xf32> to vector<32x240xbf16>
    %c1_494 = arith.constant 1 : index
    %c4_495 = arith.constant 4 : index
    %c0_496 = arith.constant 0 : index
    %c0_497 = arith.constant 0 : index
    %404 = vector.load %arg4[%c1_494, %c4_495, %c0_496, %c0_497] : memref<2x5x240x200xbf16, #tpu.memory_space<vmem>>, vector<1x1x240x200xbf16>
    %405 = vector.shape_cast %404 : vector<1x1x240x200xbf16> to vector<240x200xbf16>
    %cst_498 = arith.constant dense<0.000000e+00> : vector<32x200xf32>
    %406 = tpu.matmul %403, %405, %cst_498 {dimension_numbers = #tpu.dot_dimension_numbers<[1], [0], [0], [1], [0, 0, 1, 1], [], []>} : vector<32x240xbf16>, vector<240x200xbf16>, vector<32x200xf32> -> vector<32x200xf32>
    %407 = arith.addf %401, %406 : vector<32x200xf32>
    %408 = arith.maximumf %378, %407 : vector<32x200xf32>
    %c0_499 = arith.constant 0 : index
    %c0_500 = arith.constant 0 : index
    %409 = vector.load %arg5[%c0_499, %c0_500] : memref<1x200xf32, #tpu.memory_space<vmem>>, vector<1x200xf32>
    %410 = vector.broadcast %409 : vector<1x200xf32> to vector<32x200xf32>
    %411 = arith.addf %408, %410 : vector<32x200xf32>
    %cst_501 = arith.constant 0.000000e+00 : f32
    %412 = vector.broadcast %cst_501 : f32 to vector<32x200xf32>
    %413 = arith.maximumf %411, %412 : vector<32x200xf32>
    %414 = vector.extract_strided_slice %413 {offsets = [0, 0], sizes = [8, 200], strides = [1, 1]} : vector<32x200xf32> to vector<8x200xf32>
    %415 = arith.truncf %414 : vector<8x200xf32> to vector<8x200xbf16>
    %c0_502 = arith.constant 0 : index
    %c0_503 = arith.constant 0 : index
    %c0_504 = arith.constant 0 : index
    %416 = vector.load %arg6[%c0_502, %c0_503, %c0_504] : memref<4x200x500xbf16, #tpu.memory_space<vmem>>, vector<1x200x500xbf16>
    %417 = vector.shape_cast %416 : vector<1x200x500xbf16> to vector<200x500xbf16>
    %cst_505 = arith.constant dense<0.000000e+00> : vector<8x500xf32>
    %418 = tpu.matmul %415, %417, %cst_505 {dimension_numbers = #tpu.dot_dimension_numbers<[1], [0], [0], [1], [0, 0, 1, 1], [], []>} : vector<8x200xbf16>, vector<200x500xbf16>, vector<8x500xf32> -> vector<8x500xf32>
    %419 = vector.extract_strided_slice %413 {offsets = [8, 0], sizes = [8, 200], strides = [1, 1]} : vector<32x200xf32> to vector<8x200xf32>
    %420 = arith.truncf %419 : vector<8x200xf32> to vector<8x200xbf16>
    %c1_506 = arith.constant 1 : index
    %c0_507 = arith.constant 0 : index
    %c0_508 = arith.constant 0 : index
    %421 = vector.load %arg6[%c1_506, %c0_507, %c0_508] : memref<4x200x500xbf16, #tpu.memory_space<vmem>>, vector<1x200x500xbf16>
    %422 = vector.shape_cast %421 : vector<1x200x500xbf16> to vector<200x500xbf16>
    %cst_509 = arith.constant dense<0.000000e+00> : vector<8x500xf32>
    %423 = tpu.matmul %420, %422, %cst_509 {dimension_numbers = #tpu.dot_dimension_numbers<[1], [0], [0], [1], [0, 0, 1, 1], [], []>} : vector<8x200xbf16>, vector<200x500xbf16>, vector<8x500xf32> -> vector<8x500xf32>
    %424 = arith.addf %418, %423 : vector<8x500xf32>
    %425 = vector.extract_strided_slice %413 {offsets = [16, 0], sizes = [8, 200], strides = [1, 1]} : vector<32x200xf32> to vector<8x200xf32>
    %426 = arith.truncf %425 : vector<8x200xf32> to vector<8x200xbf16>
    %c2_510 = arith.constant 2 : index
    %c0_511 = arith.constant 0 : index
    %c0_512 = arith.constant 0 : index
    %427 = vector.load %arg6[%c2_510, %c0_511, %c0_512] : memref<4x200x500xbf16, #tpu.memory_space<vmem>>, vector<1x200x500xbf16>
    %428 = vector.shape_cast %427 : vector<1x200x500xbf16> to vector<200x500xbf16>
    %cst_513 = arith.constant dense<0.000000e+00> : vector<8x500xf32>
    %429 = tpu.matmul %426, %428, %cst_513 {dimension_numbers = #tpu.dot_dimension_numbers<[1], [0], [0], [1], [0, 0, 1, 1], [], []>} : vector<8x200xbf16>, vector<200x500xbf16>, vector<8x500xf32> -> vector<8x500xf32>
    %430 = arith.addf %424, %429 : vector<8x500xf32>
    %431 = vector.extract_strided_slice %413 {offsets = [24, 0], sizes = [8, 200], strides = [1, 1]} : vector<32x200xf32> to vector<8x200xf32>
    %432 = arith.truncf %431 : vector<8x200xf32> to vector<8x200xbf16>
    %c3_514 = arith.constant 3 : index
    %c0_515 = arith.constant 0 : index
    %c0_516 = arith.constant 0 : index
    %433 = vector.load %arg6[%c3_514, %c0_515, %c0_516] : memref<4x200x500xbf16, #tpu.memory_space<vmem>>, vector<1x200x500xbf16>
    %434 = vector.shape_cast %433 : vector<1x200x500xbf16> to vector<200x500xbf16>
    %cst_517 = arith.constant dense<0.000000e+00> : vector<8x500xf32>
    %435 = tpu.matmul %432, %434, %cst_517 {dimension_numbers = #tpu.dot_dimension_numbers<[1], [0], [0], [1], [0, 0, 1, 1], [], []>} : vector<8x200xbf16>, vector<200x500xbf16>, vector<8x500xf32> -> vector<8x500xf32>
    %436 = arith.addf %430, %435 : vector<8x500xf32>
    %c0_518 = arith.constant 0 : index
    %c0_519 = arith.constant 0 : index
    %437 = vector.load %arg7[%c0_518, %c0_519] : memref<1x500xf32, #tpu.memory_space<vmem>>, vector<1x500xf32>
    %438 = vector.broadcast %437 : vector<1x500xf32> to vector<8x500xf32>
    %439 = arith.addf %436, %438 : vector<8x500xf32>
    %cst_520 = arith.constant 0.000000e+00 : f32
    %440 = vector.broadcast %cst_520 : f32 to vector<8x500xf32>
    %441 = arith.maximumf %439, %440 : vector<8x500xf32>
    %442 = arith.truncf %441 : vector<8x500xf32> to vector<8x500xbf16>
    %c0_521 = arith.constant 0 : index
    %c0_522 = arith.constant 0 : index
    %443 = vector.load %arg8[%c0_521, %c0_522] : memref<500x128xbf16, #tpu.memory_space<vmem>>, vector<500x128xbf16>
    %cst_523 = arith.constant dense<0.000000e+00> : vector<8x128xf32>
    %444 = tpu.matmul %442, %443, %cst_523 {dimension_numbers = #tpu.dot_dimension_numbers<[1], [0], [0], [1], [0, 0, 1, 1], [], []>} : vector<8x500xbf16>, vector<500x128xbf16>, vector<8x128xf32> -> vector<8x128xf32>
    %c0_524 = arith.constant 0 : index
    %c0_525 = arith.constant 0 : index
    %445 = vector.load %arg9[%c0_524, %c0_525] : memref<1x128xf32, #tpu.memory_space<vmem>>, vector<1x128xf32>
    %446 = vector.broadcast %445 : vector<1x128xf32> to vector<8x128xf32>
    %447 = arith.addf %444, %446 : vector<8x128xf32>
    %448 = tpu.iota {dimensions = array<i32: 1>} : vector<8x128xi32>
    %c10_i32 = arith.constant 10 : i32
    %449 = vector.broadcast %c10_i32 : i32 to vector<8x128xi32>
    %450 = arith.cmpi slt, %448, %449 : vector<8x128xi32>
    %cst_526 = arith.constant -1.000000e+30 : f32
    %451 = vector.broadcast %cst_526 : f32 to vector<8x128xf32>
    %452 = arith.select %450, %447, %451 : vector<8x128xi1>, vector<8x128xf32>
    %cst_527 = arith.constant dense<0xFF800000> : vector<8xf32>
    %453 = vector.multi_reduction <maximumf>, %452, %cst_527 [1] : vector<8x128xf32> to vector<8xf32>
    %454 = vector.shape_cast %453 : vector<8xf32> to vector<8x1xf32>
    %455 = vector.broadcast %454 : vector<8x1xf32> to vector<8x128xf32>
    %456 = arith.subf %452, %455 : vector<8x128xf32>
    %457 = math.exp %456 : vector<8x128xf32>
    %cst_528 = arith.constant dense<0.000000e+00> : vector<8xf32>
    %458 = vector.multi_reduction <add>, %457, %cst_528 [1] : vector<8x128xf32> to vector<8xf32>
    %459 = vector.shape_cast %458 : vector<8xf32> to vector<8x1xf32>
    %460 = math.log %459 : vector<8x1xf32>
    %461 = vector.broadcast %460 : vector<8x1xf32> to vector<8x128xf32>
    %462 = arith.subf %456, %461 : vector<8x128xf32>
    %c0_529 = arith.constant 0 : index
    %c0_530 = arith.constant 0 : index
    %463 = vector.load %arg10[%c0_529, %c0_530] : memref<8x128xf32, #tpu.memory_space<vmem>>, vector<8x128xf32>
    tpu.vector_store %arg10[%c0_529, %c0_530], %462 {strides = array<i32>} : memref<8x128xf32, #tpu.memory_space<vmem>>, vector<8x128xf32>,
    return
  }
  func.func @transform_0(%arg0: i32) -> (i32, i32, i32, i32) {
    %c0_i32 = arith.constant 0 : i32
    %c0_i32_0 = arith.constant 0 : i32
    %c0_i32_1 = arith.constant 0 : i32
    %c0_i32_2 = arith.constant 0 : i32
    return %c0_i32, %arg0, %c0_i32_0, %c0_i32_1 : i32, i32, i32, i32
  }
  func.func @transform_1(%arg0: i32) -> (i32, i32, i32, i32) {
    %c0_i32 = arith.constant 0 : i32
    %c0_i32_0 = arith.constant 0 : i32
    %c0_i32_1 = arith.constant 0 : i32
    %c0_i32_2 = arith.constant 0 : i32
    %c0_i32_3 = arith.constant 0 : i32
    return %c0_i32, %c0_i32_0, %c0_i32_1, %c0_i32_2 : i32, i32, i32, i32
  }
  func.func @transform_2(%arg0: i32) -> (i32, i32) {
    %c0_i32 = arith.constant 0 : i32
    %c0_i32_0 = arith.constant 0 : i32
    %c0_i32_1 = arith.constant 0 : i32
    return %c0_i32, %c0_i32_0 : i32, i32
  }
  func.func @transform_3(%arg0: i32) -> (i32, i32, i32, i32) {
    %c0_i32 = arith.constant 0 : i32
    %c0_i32_0 = arith.constant 0 : i32
    %c0_i32_1 = arith.constant 0 : i32
    %c0_i32_2 = arith.constant 0 : i32
    %c0_i32_3 = arith.constant 0 : i32
    return %c0_i32, %c0_i32_0, %c0_i32_1, %c0_i32_2 : i32, i32, i32, i32
  }
  func.func @transform_4(%arg0: i32) -> (i32, i32) {
    %c0_i32 = arith.constant 0 : i32
    %c0_i32_0 = arith.constant 0 : i32
    %c0_i32_1 = arith.constant 0 : i32
    return %c0_i32, %c0_i32_0 : i32, i32
  }
  func.func @transform_5(%arg0: i32) -> (i32, i32, i32) {
    %c0_i32 = arith.constant 0 : i32
    %c0_i32_0 = arith.constant 0 : i32
    %c0_i32_1 = arith.constant 0 : i32
    %c0_i32_2 = arith.constant 0 : i32
    return %c0_i32, %c0_i32_0, %c0_i32_1 : i32, i32, i32
  }
  func.func @transform_6(%arg0: i32) -> (i32, i32) {
    %c0_i32 = arith.constant 0 : i32
    %c0_i32_0 = arith.constant 0 : i32
    %c0_i32_1 = arith.constant 0 : i32
    return %c0_i32, %c0_i32_0 : i32, i32
  }
  func.func @transform_7(%arg0: i32) -> (i32, i32) {
    %c0_i32 = arith.constant 0 : i32
    %c0_i32_0 = arith.constant 0 : i32
    %c0_i32_1 = arith.constant 0 : i32
    return %c0_i32, %c0_i32_0 : i32, i32
  }
  func.func @transform_8(%arg0: i32) -> (i32, i32) {
    %c0_i32 = arith.constant 0 : i32
    %c0_i32_0 = arith.constant 0 : i32
    %c0_i32_1 = arith.constant 0 : i32
    return %c0_i32, %c0_i32_0 : i32, i32
  }
  func.func @transform_9(%arg0: i32) -> (i32, i32) {
    %c0_i32 = arith.constant 0 : i32
    %c0_i32_0 = arith.constant 0 : i32
    return %arg0, %c0_i32 : i32, i32
  }
}

</mosaic_0001>

<llo_original>
// kernel: net_forward.1
$region0: #{net_forward.1}
  #allocation0 [shape = 'u32[]', space=smem, size = 0x4, offset = 0x4, fixed_abs, tag = 'smem constant byte address 0x4 - core index']
  #allocation1 [shape = 'u32[72,128]{1,0:T(1,128)}', space=vmem, size = 0x9000, scoped, tag = 'internal scratch']
  #allocation2 [shape = 'f32[48,240]{1,0:T(8,128)}', space=vmem, size = 0xc000, scoped, tag = 'scratch operand']
  #allocation3 [shape = 'f32[48,240]{1,0:T(8,128)}', space=vmem, size = 0xc000, scoped, tag = 'scratch operand']
  %s0 = inlined_call_operand.vmem [shape: f32[8,1,48,28], index: 0, kind: input, shape index: {}]
  %s1 = inlined_call_operand.vmem [shape: bf16[2,5,28,240], index: 1, kind: input, shape index: {}]
  %s2 = inlined_call_operand.vmem [shape: f32[1,240], index: 2, kind: input, shape index: {}]
  %s3 = inlined_call_operand.vmem [shape: bf16[2,5,240,200], index: 3, kind: input, shape index: {}]
  %s4 = inlined_call_operand.vmem [shape: f32[1,200], index: 4, kind: input, shape index: {}]
  %s5 = inlined_call_operand.vmem [shape: bf16[4,200,500], index: 5, kind: input, shape index: {}]
  %s6 = inlined_call_operand.vmem [shape: f32[1,500], index: 6, kind: input, shape index: {}]
  %s7 = inlined_call_operand.vmem [shape: bf16[500,128], index: 7, kind: input, shape index: {}]
  %s8 = inlined_call_operand.vmem [shape: f32[1,128], index: 8, kind: input, shape index: {}]
  %s9 = inlined_call_operand.vmem [shape: f32[8,128], index: 9, kind: output, shape index: {}]
  %s10 = sld [smem:[#allocation0]]
  $region46: #{net_forward.1} parent=0
    _
  %s12 = ssub.s32 1, %s10
  %s13 = scalar_select 0, %s12, %s10
  // Predicated region
  $region2: #{net_forward.1} parent=0 // pred_check
    _
  $region3: #{net_forward.1} parent=0 // pred_check_branch
    %15 = sbr.rel (0) target = $region5
  $region4: #{net_forward.1} parent=0 // pred_region
    _
  $region5: #{net_forward.1} parent=0 // pred_fallthru
    _
  // Predicated region
  $region6: #{net_forward.1} parent=0 // pred_check
    _
  $region7: #{net_forward.1} parent=0 // pred_check_branch
    %17 = sbr.rel (0) target = $region9
  $region8: #{net_forward.1} parent=0 // pred_region
    _
  $region9: #{net_forward.1} parent=0 // pred_fallthru
    _
  // Predicated region
  $region10: #{net_forward.1} parent=0 // pred_check
    _
  $region11: #{net_forward.1} parent=0 // pred_check_branch
    %19 = sbr.rel (0) target = $region13
  $region12: #{net_forward.1} parent=0 // pred_region
    _
  $region13: #{net_forward.1} parent=0 // pred_fallthru
    _
  // Predicated region
  $region14: #{net_forward.1} parent=0 // pred_check
    _
  $region15: #{net_forward.1} parent=0 // pred_check_branch
    %21 = sbr.rel (0) target = $region17
  $region16: #{net_forward.1} parent=0 // pred_region
    _
  $region17: #{net_forward.1} parent=0 // pred_fallthru
    _
  // Predicated region
  $region18: #{net_forward.1} parent=0 // pred_check
    _
  $region19: #{net_forward.1} parent=0 // pred_check_branch
    %23 = sbr.rel (0) target = $region21
  $region20: #{net_forward.1} parent=0 // pred_region
    _
  $region21: #{net_forward.1} parent=0 // pred_fallthru
    _
  // Predicated region
  $region22: #{net_forward.1} parent=0 // pred_check
    _
  $region23: #{net_forward.1} parent=0 // pred_check_branch
    %25 = sbr.rel (0) target = $region25
  $region24: #{net_forward.1} parent=0 // pred_region
    _
  $region25: #{net_forward.1} parent=0 // pred_fallthru
    _
  // Predicated region
  $region26: #{net_forward.1} parent=0 // pred_check
    _
  $region27: #{net_forward.1} parent=0 // pred_check_branch
    %27 = sbr.rel (0) target = $region29
  $region28: #{net_forward.1} parent=0 // pred_region
    _
  $region29: #{net_forward.1} parent=0 // pred_fallthru
    _
  // Predicated region
  $region30: #{net_forward.1} parent=0 // pred_check
    _
  $region31: #{net_forward.1} parent=0 // pred_check_branch
    %29 = sbr.rel (0) target = $region33
  $region32: #{net_forward.1} parent=0 // pred_region
    _
  $region33: #{net_forward.1} parent=0 // pred_fallthru
    _
  // Predicated region
  $region34: #{net_forward.1} parent=0 // pred_check
    _
  $region35: #{net_forward.1} parent=0 // pred_check_branch
    %31 = sbr.rel (0) target = $region37
  $region36: #{net_forward.1} parent=0 // pred_region
    _
  $region37: #{net_forward.1} parent=0 // pred_fallthru
    _
  %v33 = vld [vmem:[%s0] sm:$0xff]
  %v34 = vld [vmem:[%s0 + $0x8] sm:$0xff]
  %v35 = vld [vmem:[%s0 + $0x10] sm:$0xff]
  %v36 = vld [vmem:[%s0 + $0x18] sm:$0xff]
  %v37 = vld [vmem:[%s0 + $0x20] sm:$0xff]
  %v38 = vld [vmem:[%s0 + $0x28] sm:$0xff]
  %v39 = vpack.c.bf16 %v34, %v33
  %v40 = vpack.c.bf16 %v36, %v35
  %v41 = vpack.c.bf16 %v38, %v37
  %v42 = vld [vmem:[%s1] sm:$0xff]
  %v43 = vld [vmem:[%s1 + $0x8] sm:$0xff]
  %v44 = vld [vmem:[%s1 + $0x10] sm:$0xff]
  %v45 = vld [vmem:[%s1 + $0x18] sm:$0x33]
  %s46 = scalar_lea.vmem %s0, 48
  %v47 = vld [vmem:[%s46] sm:$0xff]
  %v48 = vld [vmem:[%s46 + $0x8] sm:$0xff]
  %v49 = vld [vmem:[%s46 + $0x10] sm:$0xff]
  %v50 = vld [vmem:[%s46 + $0x18] sm:$0xff]
  %v51 = vld [vmem:[%s46 + $0x20] sm:$0xff]
  %v52 = vld [vmem:[%s46 + $0x28] sm:$0xff]
  %v53 = vpack.c.bf16 %v48, %v47
  %v54 = vpack.c.bf16 %v50, %v49
  %v55 = vpack.c.bf16 %v52, %v51
  %s56 = scalar_lea.vmem %s1, 32
  %v57 = vld [vmem:[%s56] sm:$0xff]
  %v58 = vld [vmem:[%s56 + $0x8] sm:$0xff]
  %v59 = vld [vmem:[%s56 + $0x10] sm:$0xff]
  %v60 = vld [vmem:[%s56 + $0x18] sm:$0x33]
  %v65 = vunpack.c.l.b16 %v57
  %v66 = vunpack.c.h.b16 %v57
  %v67 = vunpack.c.l.b16 %v58
  %v68 = vunpack.c.h.b16 %v58
  %v69 = vunpack.c.l.b16 %v59
  %v70 = vunpack.c.h.b16 %v59
  %v71 = vunpack.c.l.b16 %v60
  %v72 = vunpack.c.h.b16 %v60
  %v73 = vpack.c.b16 %v67, %v65
  %v74 = vpack.c.b16 %v68, %v66
  %v75 = vpack.c.b16 %v71, %v69
  %v76 = vpack.c.b16 %v72, %v70
  %vm79 = vcmask 228352
  %v81 = vsel %vm79, %v53, 0
  %v84 = vsel %vm79, %v54, 0
  %v87 = vsel %vm79, %v55, 0
  %vm89 = vcmask 1045504
  %v91 = vsel %vm89, %v75, 0
  %v94 = vsel %vm89, %v76, 0
  %96 = vmatpush.bf16.msra.mxu0 0
  %97 = vmatpush.bf16.msra.mxu0 0
  %98 = vmatpush.bf16.msra.mxu0 0
  %99 = vmatpush.bf16.msra.mxu0 0
  %100 = vmatpush.bf16.msra.mxu0 0
  %101 = vmatpush.bf16.msra.mxu0 0
  %102 = vmatpush.bf16.msra.mxu0 %v91
  %103 = vmatpush.bf16.msra.mxu0 %v73
  %104 = vmatmul.bf16.gmra.mxu0 %v81
  %v105 = vpop.f32.mrf.mxu0
  %v106 = vadd.f32 0.0, %v105
  %v107 = vpop.f32.mrf.mxu0
  %v108 = vadd.f32 0.0, %v107
  %109 = vmatmul.bf16.gmra.mxu0 %v84
  %v110 = vpop.f32.mrf.mxu0
  %v111 = vadd.f32 0.0, %v110
  %v112 = vpop.f32.mrf.mxu0
  %v113 = vadd.f32 0.0, %v112
  %114 = vmatmul.bf16.gmra.mxu0 %v87
  %v115 = vpop.f32.mrf.mxu0
  %v116 = vadd.f32 0.0, %v115
  %v117 = vpop.f32.mrf.mxu0
  %v118 = vadd.f32 0.0, %v117
  %119 = vdwg.mxu0
  %120 = vmatpush.bf16.msra.mxu0 0
  %121 = vmatpush.bf16.msra.mxu0 0
  %122 = vmatpush.bf16.msra.mxu0 0
  %123 = vmatpush.bf16.msra.mxu0 0
  %124 = vmatpush.bf16.msra.mxu0 0
  %125 = vmatpush.bf16.msra.mxu0 0
  %126 = vmatpush.bf16.msra.mxu0 %v94
  %127 = vmatpush.bf16.msra.mxu0 %v74
  %128 = vmatmul.bf16.gmra.mxu0 %v81
  %v129 = vpop.f32.mrf.mxu0
  %v130 = vadd.f32 0.0, %v129
  %v131 = vpop.f32.mrf.mxu0
  %v132 = vadd.f32 0.0, %v131
  %133 = vmatmul.bf16.gmra.mxu0 %v84
  %v134 = vpop.f32.mrf.mxu0
  %v135 = vadd.f32 0.0, %v134
  %v136 = vpop.f32.mrf.mxu0
  %v137 = vadd.f32 0.0, %v136
  %138 = vmatmul.bf16.gmra.mxu0 %v87
  %v139 = vpop.f32.mrf.mxu0
  %v140 = vadd.f32 0.0, %v139
  %v141 = vpop.f32.mrf.mxu0
  %v142 = vadd.f32 0.0, %v141
  %143 = vdwg.mxu0
  %v148 = vunpack.c.l.b16 %v42
  %v149 = vunpack.c.h.b16 %v42
  %v150 = vunpack.c.l.b16 %v43
  %v151 = vunpack.c.h.b16 %v43
  %v152 = vunpack.c.l.b16 %v44
  %v153 = vunpack.c.h.b16 %v44
  %v154 = vunpack.c.l.b16 %v45
  %v155 = vunpack.c.h.b16 %v45
  %v156 = vpack.c.b16 %v150, %v148
  %v157 = vpack.c.b16 %v151, %v149
  %v158 = vpack.c.b16 %v154, %v152
  %v159 = vpack.c.b16 %v155, %v153
  %v163 = vsel %vm79, %v39, 0
  %v166 = vsel %vm79, %v40, 0
  %v169 = vsel %vm79, %v41, 0
  %v172 = vsel %vm89, %v158, 0
  %v175 = vsel %vm89, %v159, 0
  %177 = vmatpush.bf16.msra.mxu0 0
  %178 = vmatpush.bf16.msra.mxu0 0
  %179 = vmatpush.bf16.msra.mxu0 0
  %180 = vmatpush.bf16.msra.mxu0 0
  %181 = vmatpush.bf16.msra.mxu0 0
  %182 = vmatpush.bf16.msra.mxu0 0
  %183 = vmatpush.bf16.msra.mxu0 %v172
  %184 = vmatpush.bf16.msra.mxu0 %v156
  %185 = vmatmul.bf16.gmra.mxu0 %v163
  %v186 = vpop.f32.mrf.mxu0
  %v187 = vadd.f32 %v106, %v186
  %v188 = vpop.f32.mrf.mxu0
  %v189 = vadd.f32 %v108, %v188
  %190 = vmatmul.bf16.gmra.mxu0 %v166
  %v191 = vpop.f32.mrf.mxu0
  %v192 = vadd.f32 %v111, %v191
  %v193 = vpop.f32.mrf.mxu0
  %v194 = vadd.f32 %v113, %v193
  %195 = vmatmul.bf16.gmra.mxu0 %v169
  %v196 = vpop.f32.mrf.mxu0
  %v197 = vadd.f32 %v116, %v196
  %v198 = vpop.f32.mrf.mxu0
  %v199 = vadd.f32 %v118, %v198
  %200 = vdwg.mxu0
  %201 = vmatpush.bf16.msra.mxu0 0
  %202 = vmatpush.bf16.msra.mxu0 0
  %203 = vmatpush.bf16.msra.mxu0 0
  %204 = vmatpush.bf16.msra.mxu0 0
  %205 = vmatpush.bf16.msra.mxu0 0
  %206 = vmatpush.bf16.msra.mxu0 0
  %207 = vmatpush.bf16.msra.mxu0 %v175
  %208 = vmatpush.bf16.msra.mxu0 %v157
  %209 = vmatmul.bf16.gmra.mxu0 %v163
  %v210 = vpop.f32.mrf.mxu0
  %v211 = vadd.f32 %v130, %v210
  %v212 = vpop.f32.mrf.mxu0
  %v213 = vadd.f32 %v132, %v212
  %214 = vmatmul.bf16.gmra.mxu0 %v166
  %v215 = vpop.f32.mrf.mxu0
  %v216 = vadd.f32 %v135, %v215
  %v217 = vpop.f32.mrf.mxu0
  %v218 = vadd.f32 %v137, %v217
  %219 = vmatmul.bf16.gmra.mxu0 %v169
  %v220 = vpop.f32.mrf.mxu0
  %v221 = vadd.f32 %v140, %v220
  %v222 = vpop.f32.mrf.mxu0
  %v223 = vadd.f32 %v142, %v222
  %224 = vdwg.mxu0
  %s225 = scalar_lea.vmem %s0, 96
  %v226 = vld [vmem:[%s225] sm:$0xff]
  %v227 = vld [vmem:[%s225 + $0x8] sm:$0xff]
  %v228 = vld [vmem:[%s225 + $0x10] sm:$0xff]
  %v229 = vld [vmem:[%s225 + $0x18] sm:$0xff]
  %v230 = vld [vmem:[%s225 + $0x20] sm:$0xff]
  %v231 = vld [vmem:[%s225 + $0x28] sm:$0xff]
  %v232 = vpack.c.bf16 %v227, %v226
  %v233 = vpack.c.bf16 %v229, %v228
  %v234 = vpack.c.bf16 %v231, %v230
  %s235 = scalar_lea.vmem %s1, 64
  %v236 = vld [vmem:[%s235] sm:$0xff]
  %v237 = vld [vmem:[%s235 + $0x8] sm:$0xff]
  %v238 = vld [vmem:[%s235 + $0x10] sm:$0xff]
  %v239 = vld [vmem:[%s235 + $0x18] sm:$0x33]
  %v244 = vunpack.c.l.b16 %v236
  %v245 = vunpack.c.h.b16 %v236
  %v246 = vunpack.c.l.b16 %v237
  %v247 = vunpack.c.h.b16 %v237
  %v248 = vunpack.c.l.b16 %v238
  %v249 = vunpack.c.h.b16 %v238
  %v250 = vunpack.c.l.b16 %v239
  %v251 = vunpack.c.h.b16 %v239
  %v252 = vpack.c.b16 %v246, %v244
  %v253 = vpack.c.b16 %v247, %v245
  %v254 = vpack.c.b16 %v250, %v248
  %v255 = vpack.c.b16 %v251, %v249
  %v259 = vsel %vm79, %v232, 0
  %v262 = vsel %vm79, %v233, 0
  %v265 = vsel %vm79, %v234, 0
  %v268 = vsel %vm89, %v254, 0
  %v271 = vsel %vm89, %v255, 0
  %273 = vmatpush.bf16.msra.mxu0 0
  %274 = vmatpush.bf16.msra.mxu0 0
  %275 = vmatpush.bf16.msra.mxu0 0
  %276 = vmatpush.bf16.msra.mxu0 0
  %277 = vmatpush.bf16.msra.mxu0 0
  %278 = vmatpush.bf16.msra.mxu0 0
  %279 = vmatpush.bf16.msra.mxu0 %v268
  %280 = vmatpush.bf16.msra.mxu0 %v252
  %281 = vmatmul.bf16.gmra.mxu0 %v259
  %v282 = vpop.f32.mrf.mxu0
  %v283 = vadd.f32 0.0, %v282
  %v284 = vpop.f32.mrf.mxu0
  %v285 = vadd.f32 0.0, %v284
  %286 = vmatmul.bf16.gmra.mxu0 %v262
  %v287 = vpop.f32.mrf.mxu0
  %v288 = vadd.f32 0.0, %v287
  %v289 = vpop.f32.mrf.mxu0
  %v290 = vadd.f32 0.0, %v289
  %291 = vmatmul.bf16.gmra.mxu0 %v265
  %v292 = vpop.f32.mrf.mxu0
  %v293 = vadd.f32 0.0, %v292
  %v294 = vpop.f32.mrf.mxu0
  %v295 = vadd.f32 0.0, %v294
  %296 = vdwg.mxu0
  %297 = vmatpush.bf16.msra.mxu0 0
  %298 = vmatpush.bf16.msra.mxu0 0
  %299 = vmatpush.bf16.msra.mxu0 0
  %300 = vmatpush.bf16.msra.mxu0 0
  %301 = vmatpush.bf16.msra.mxu0 0
  %302 = vmatpush.bf16.msra.mxu0 0
  %303 = vmatpush.bf16.msra.mxu0 %v271
  %304 = vmatpush.bf16.msra.mxu0 %v253
  %305 = vmatmul.bf16.gmra.mxu0 %v259
  %v306 = vpop.f32.mrf.mxu0
  %v307 = vadd.f32 0.0, %v306
  %v308 = vpop.f32.mrf.mxu0
  %v309 = vadd.f32 0.0, %v308
  %310 = vmatmul.bf16.gmra.mxu0 %v262
  %v311 = vpop.f32.mrf.mxu0
  %v312 = vadd.f32 0.0, %v311
  %v313 = vpop.f32.mrf.mxu0
  %v314 = vadd.f32 0.0, %v313
  %315 = vmatmul.bf16.gmra.mxu0 %v265
  %v316 = vpop.f32.mrf.mxu0
  %v317 = vadd.f32 0.0, %v316
  %v318 = vpop.f32.mrf.mxu0
  %v319 = vadd.f32 0.0, %v318
  %320 = vdwg.mxu0
  %v321 = vadd.f32 %v187, %v283
  %v322 = vadd.f32 %v211, %v307
  %v323 = vadd.f32 %v189, %v285
  %v324 = vadd.f32 %v213, %v309
  %v325 = vadd.f32 %v192, %v288
  %v326 = vadd.f32 %v216, %v312
  %v327 = vadd.f32 %v194, %v290
  %v328 = vadd.f32 %v218, %v314
  %v329 = vadd.f32 %v197, %v293
  %v330 = vadd.f32 %v221, %v317
  %v331 = vadd.f32 %v199, %v295
  %v332 = vadd.f32 %v223, %v319
  %s333 = scalar_lea.vmem %s0, 144
  %v334 = vld [vmem:[%s333] sm:$0xff]
  %v335 = vld [vmem:[%s333 + $0x8] sm:$0xff]
  %v336 = vld [vmem:[%s333 + $0x10] sm:$0xff]
  %v337 = vld [vmem:[%s333 + $0x18] sm:$0xff]
  %v338 = vld [vmem:[%s333 + $0x20] sm:$0xff]
  %v339 = vld [vmem:[%s333 + $0x28] sm:$0xff]
  %v340 = vpack.c.bf16 %v335, %v334
  %v341 = vpack.c.bf16 %v337, %v336
  %v342 = vpack.c.bf16 %v339, %v338
  %s343 = scalar_lea.vmem %s1, 96
  %v344 = vld [vmem:[%s343] sm:$0xff]
  %v345 = vld [vmem:[%s343 + $0x8] sm:$0xff]
  %v346 = vld [vmem:[%s343 + $0x10] sm:$0xff]
  %v347 = vld [vmem:[%s343 + $0x18] sm:$0x33]
  %v352 = vunpack.c.l.b16 %v344
  %v353 = vunpack.c.h.b16 %v344
  %v354 = vunpack.c.l.b16 %v345
  %v355 = vunpack.c.h.b16 %v345
  %v356 = vunpack.c.l.b16 %v346
  %v357 = vunpack.c.h.b16 %v346
  %v358 = vunpack.c.l.b16 %v347
  %v359 = vunpack.c.h.b16 %v347
  %v360 = vpack.c.b16 %v354, %v352
  %v361 = vpack.c.b16 %v355, %v353
  %v362 = vpack.c.b16 %v358, %v356
  %v363 = vpack.c.b16 %v359, %v357
  %v367 = vsel %vm79, %v340, 0
  %v370 = vsel %vm79, %v341, 0
  %v373 = vsel %vm79, %v342, 0
  %v376 = vsel %vm89, %v362, 0
  %v379 = vsel %vm89, %v363, 0
  %381 = vmatpush.bf16.msra.mxu0 0
  %382 = vmatpush.bf16.msra.mxu0 0
  %383 = vmatpush.bf16.msra.mxu0 0
  %384 = vmatpush.bf16.msra.mxu0 0
  %385 = vmatpush.bf16.msra.mxu0 0
  %386 = vmatpush.bf16.msra.mxu0 0
  %387 = vmatpush.bf16.msra.mxu0 %v376
  %388 = vmatpush.bf16.msra.mxu0 %v360
  %389 = vmatmul.bf16.gmra.mxu0 %v367
  %v390 = vpop.f32.mrf.mxu0
  %v391 = vadd.f32 0.0, %v390
  %v392 = vpop.f32.mrf.mxu0
  %v393 = vadd.f32 0.0, %v392
  %394 = vmatmul.bf16.gmra.mxu0 %v370
  %v395 = vpop.f32.mrf.mxu0
  %v396 = vadd.f32 0.0, %v395
  %v397 = vpop.f32.mrf.mxu0
  %v398 = vadd.f32 0.0, %v397
  %399 = vmatmul.bf16.gmra.mxu0 %v373
  %v400 = vpop.f32.mrf.mxu0
  %v401 = vadd.f32 0.0, %v400
  %v402 = vpop.f32.mrf.mxu0
  %v403 = vadd.f32 0.0, %v402
  %404 = vdwg.mxu0
  %405 = vmatpush.bf16.msra.mxu0 0
  %406 = vmatpush.bf16.msra.mxu0 0
  %407 = vmatpush.bf16.msra.mxu0 0
  %408 = vmatpush.bf16.msra.mxu0 0
  %409 = vmatpush.bf16.msra.mxu0 0
  %410 = vmatpush.bf16.msra.mxu0 0
  %411 = vmatpush.bf16.msra.mxu0 %v379
  %412 = vmatpush.bf16.msra.mxu0 %v361
  %413 = vmatmul.bf16.gmra.mxu0 %v367
  %v414 = vpop.f32.mrf.mxu0
  %v415 = vadd.f32 0.0, %v414
  %v416 = vpop.f32.mrf.mxu0
  %v417 = vadd.f32 0.0, %v416
  %418 = vmatmul.bf16.gmra.mxu0 %v370
  %v419 = vpop.f32.mrf.mxu0
  %v420 = vadd.f32 0.0, %v419
  %v421 = vpop.f32.mrf.mxu0
  %v422 = vadd.f32 0.0, %v421
  %423 = vmatmul.bf16.gmra.mxu0 %v373
  %v424 = vpop.f32.mrf.mxu0
  %v425 = vadd.f32 0.0, %v424
  %v426 = vpop.f32.mrf.mxu0
  %v427 = vadd.f32 0.0, %v426
  %428 = vdwg.mxu0
  %v429 = vadd.f32 %v321, %v391
  %v430 = vadd.f32 %v322, %v415
  %v431 = vadd.f32 %v323, %v393
  %v432 = vadd.f32 %v324, %v417
  %v433 = vadd.f32 %v325, %v396
  %v434 = vadd.f32 %v326, %v420
  %v435 = vadd.f32 %v327, %v398
  %v436 = vadd.f32 %v328, %v422
  %v437 = vadd.f32 %v329, %v401
  %v438 = vadd.f32 %v330, %v425
  %v439 = vadd.f32 %v331, %v403
  %v440 = vadd.f32 %v332, %v427
  %s441 = scalar_lea.vmem %s0, 192
  %v442 = vld [vmem:[%s441] sm:$0xff]
  %v443 = vld [vmem:[%s441 + $0x8] sm:$0xff]
  %v444 = vld [vmem:[%s441 + $0x10] sm:$0xff]
  %v445 = vld [vmem:[%s441 + $0x18] sm:$0xff]
  %v446 = vld [vmem:[%s441 + $0x20] sm:$0xff]
  %v447 = vld [vmem:[%s441 + $0x28] sm:$0xff]
  %v448 = vpack.c.bf16 %v443, %v442
  %v449 = vpack.c.bf16 %v445, %v444
  %v450 = vpack.c.bf16 %v447, %v446
  %s451 = scalar_lea.vmem %s1, 128
  %v452 = vld [vmem:[%s451] sm:$0xff]
  %v453 = vld [vmem:[%s451 + $0x8] sm:$0xff]
  %v454 = vld [vmem:[%s451 + $0x10] sm:$0xff]
  %v455 = vld [vmem:[%s451 + $0x18] sm:$0x33]
  %v460 = vunpack.c.l.b16 %v452
  %v461 = vunpack.c.h.b16 %v452
  %v462 = vunpack.c.l.b16 %v453
  %v463 = vunpack.c.h.b16 %v453
  %v464 = vunpack.c.l.b16 %v454
  %v465 = vunpack.c.h.b16 %v454
  %v466 = vunpack.c.l.b16 %v455
  %v467 = vunpack.c.h.b16 %v455
  %v468 = vpack.c.b16 %v462, %v460
  %v469 = vpack.c.b16 %v463, %v461
  %v470 = vpack.c.b16 %v466, %v464
  %v471 = vpack.c.b16 %v467, %v465
  %v475 = vsel %vm79, %v448, 0
  %v478 = vsel %vm79, %v449, 0
  %v481 = vsel %vm79, %v450, 0
  %v484 = vsel %vm89, %v470, 0
  %v487 = vsel %vm89, %v471, 0
  %489 = vmatpush.bf16.msra.mxu0 0
  %490 = vmatpush.bf16.msra.mxu0 0
  %491 = vmatpush.bf16.msra.mxu0 0
  %492 = vmatpush.bf16.msra.mxu0 0
  %493 = vmatpush.bf16.msra.mxu0 0
  %494 = vmatpush.bf16.msra.mxu0 0
  %495 = vmatpush.bf16.msra.mxu0 %v484
  %496 = vmatpush.bf16.msra.mxu0 %v468
  %497 = vmatmul.bf16.gmra.mxu0 %v475
  %v498 = vpop.f32.mrf.mxu0
  %v499 = vadd.f32 0.0, %v498
  %v500 = vpop.f32.mrf.mxu0
  %v501 = vadd.f32 0.0, %v500
  %502 = vmatmul.bf16.gmra.mxu0 %v478
  %v503 = vpop.f32.mrf.mxu0
  %v504 = vadd.f32 0.0, %v503
  %v505 = vpop.f32.mrf.mxu0
  %v506 = vadd.f32 0.0, %v505
  %507 = vmatmul.bf16.gmra.mxu0 %v481
  %v508 = vpop.f32.mrf.mxu0
  %v509 = vadd.f32 0.0, %v508
  %v510 = vpop.f32.mrf.mxu0
  %v511 = vadd.f32 0.0, %v510
  %512 = vdwg.mxu0
  %513 = vmatpush.bf16.msra.mxu0 0
  %514 = vmatpush.bf16.msra.mxu0 0
  %515 = vmatpush.bf16.msra.mxu0 0
  %516 = vmatpush.bf16.msra.mxu0 0
  %517 = vmatpush.bf16.msra.mxu0 0
  %518 = vmatpush.bf16.msra.mxu0 0
  %519 = vmatpush.bf16.msra.mxu0 %v487
  %520 = vmatpush.bf16.msra.mxu0 %v469
  %521 = vmatmul.bf16.gmra.mxu0 %v475
  %v522 = vpop.f32.mrf.mxu0
  %v523 = vadd.f32 0.0, %v522
  %v524 = vpop.f32.mrf.mxu0
  %v525 = vadd.f32 0.0, %v524
  %526 = vmatmul.bf16.gmra.mxu0 %v478
  %v527 = vpop.f32.mrf.mxu0
  %v528 = vadd.f32 0.0, %v527
  %v529 = vpop.f32.mrf.mxu0
  %v530 = vadd.f32 0.0, %v529
  %531 = vmatmul.bf16.gmra.mxu0 %v481
  %v532 = vpop.f32.mrf.mxu0
  %v533 = vadd.f32 0.0, %v532
  %v534 = vpop.f32.mrf.mxu0
  %v535 = vadd.f32 0.0, %v534
  %536 = vdwg.mxu0
  %v537 = vadd.f32 %v429, %v499
  %v538 = vadd.f32 %v430, %v523
  %v539 = vadd.f32 %v431, %v501
  %v540 = vadd.f32 %v432, %v525
  %v541 = vadd.f32 %v433, %v504
  %v542 = vadd.f32 %v434, %v528
  %v543 = vadd.f32 %v435, %v506
  %v544 = vadd.f32 %v436, %v530
  %v545 = vadd.f32 %v437, %v509
  %v546 = vadd.f32 %v438, %v533
  %v547 = vadd.f32 %v439, %v511
  %v548 = vadd.f32 %v440, %v535
  %s549 = scalar_lea.vmem %s1, 160
  %v550 = vld [vmem:[%s549] sm:$0xff]
  %v551 = vld [vmem:[%s549 + $0x8] sm:$0xff]
  %v552 = vld [vmem:[%s549 + $0x10] sm:$0xff]
  %v553 = vld [vmem:[%s549 + $0x18] sm:$0x33]
  %s554 = scalar_lea.vmem %s1, 192
  %v555 = vld [vmem:[%s554] sm:$0xff]
  %v556 = vld [vmem:[%s554 + $0x8] sm:$0xff]
  %v557 = vld [vmem:[%s554 + $0x10] sm:$0xff]
  %v558 = vld [vmem:[%s554 + $0x18] sm:$0x33]
  %v563 = vunpack.c.l.b16 %v555
  %v564 = vunpack.c.h.b16 %v555
  %v565 = vunpack.c.l.b16 %v556
  %v566 = vunpack.c.h.b16 %v556
  %v567 = vunpack.c.l.b16 %v557
  %v568 = vunpack.c.h.b16 %v557
  %v569 = vunpack.c.l.b16 %v558
  %v570 = vunpack.c.h.b16 %v558
  %v571 = vpack.c.b16 %v565, %v563
  %v572 = vpack.c.b16 %v566, %v564
  %v573 = vpack.c.b16 %v569, %v567
  %v574 = vpack.c.b16 %v570, %v568
  %v578 = vsel %vm89, %v573, 0
  %v581 = vsel %vm89, %v574, 0
  %583 = vmatpush.bf16.msra.mxu0 0
  %584 = vmatpush.bf16.msra.mxu0 0
  %585 = vmatpush.bf16.msra.mxu0 0
  %586 = vmatpush.bf16.msra.mxu0 0
  %587 = vmatpush.bf16.msra.mxu0 0
  %588 = vmatpush.bf16.msra.mxu0 0
  %589 = vmatpush.bf16.msra.mxu0 %v578
  %590 = vmatpush.bf16.msra.mxu0 %v571
  %591 = vmatmul.bf16.gmra.mxu0 %v81
  %v592 = vpop.f32.mrf.mxu0
  %v593 = vadd.f32 0.0, %v592
  %v594 = vpop.f32.mrf.mxu0
  %v595 = vadd.f32 0.0, %v594
  %596 = vmatmul.bf16.gmra.mxu0 %v84
  %v597 = vpop.f32.mrf.mxu0
  %v598 = vadd.f32 0.0, %v597
  %v599 = vpop.f32.mrf.mxu0
  %v600 = vadd.f32 0.0, %v599
  %601 = vmatmul.bf16.gmra.mxu0 %v87
  %v602 = vpop.f32.mrf.mxu0
  %v603 = vadd.f32 0.0, %v602
  %v604 = vpop.f32.mrf.mxu0
  %v605 = vadd.f32 0.0, %v604
  %606 = vdwg.mxu0
  %607 = vmatpush.bf16.msra.mxu0 0
  %608 = vmatpush.bf16.msra.mxu0 0
  %609 = vmatpush.bf16.msra.mxu0 0
  %610 = vmatpush.bf16.msra.mxu0 0
  %611 = vmatpush.bf16.msra.mxu0 0
  %612 = vmatpush.bf16.msra.mxu0 0
  %613 = vmatpush.bf16.msra.mxu0 %v581
  %614 = vmatpush.bf16.msra.mxu0 %v572
  %615 = vmatmul.bf16.gmra.mxu0 %v81
  %v616 = vpop.f32.mrf.mxu0
  %v617 = vadd.f32 0.0, %v616
  %v618 = vpop.f32.mrf.mxu0
  %v619 = vadd.f32 0.0, %v618
  %620 = vmatmul.bf16.gmra.mxu0 %v84
  %v621 = vpop.f32.mrf.mxu0
  %v622 = vadd.f32 0.0, %v621
  %v623 = vpop.f32.mrf.mxu0
  %v624 = vadd.f32 0.0, %v623
  %625 = vmatmul.bf16.gmra.mxu0 %v87
  %v626 = vpop.f32.mrf.mxu0
  %v627 = vadd.f32 0.0, %v626
  %v628 = vpop.f32.mrf.mxu0
  %v629 = vadd.f32 0.0, %v628
  %630 = vdwg.mxu0
  %v635 = vunpack.c.l.b16 %v550
  %v636 = vunpack.c.h.b16 %v550
  %v637 = vunpack.c.l.b16 %v551
  %v638 = vunpack.c.h.b16 %v551
  %v639 = vunpack.c.l.b16 %v552
  %v640 = vunpack.c.h.b16 %v552
  %v641 = vunpack.c.l.b16 %v553
  %v642 = vunpack.c.h.b16 %v553
  %v643 = vpack.c.b16 %v637, %v635
  %v644 = vpack.c.b16 %v638, %v636
  %v645 = vpack.c.b16 %v641, %v639
  %v646 = vpack.c.b16 %v642, %v640
  %v650 = vsel %vm89, %v645, 0
  %v653 = vsel %vm89, %v646, 0
  %655 = vmatpush.bf16.msra.mxu0 0
  %656 = vmatpush.bf16.msra.mxu0 0
  %657 = vmatpush.bf16.msra.mxu0 0
  %658 = vmatpush.bf16.msra.mxu0 0
  %659 = vmatpush.bf16.msra.mxu0 0
  %660 = vmatpush.bf16.msra.mxu0 0
  %661 = vmatpush.bf16.msra.mxu0 %v650
  %662 = vmatpush.bf16.msra.mxu0 %v643
  %663 = vmatmul.bf16.gmra.mxu0 %v163
  %v664 = vpop.f32.mrf.mxu0
  %v665 = vadd.f32 %v593, %v664
  %v666 = vpop.f32.mrf.mxu0
  %v667 = vadd.f32 %v595, %v666
  %668 = vmatmul.bf16.gmra.mxu0 %v166
  %v669 = vpop.f32.mrf.mxu0
  %v670 = vadd.f32 %v598, %v669
  %v671 = vpop.f32.mrf.mxu0
  %v672 = vadd.f32 %v600, %v671
  %673 = vmatmul.bf16.gmra.mxu0 %v169
  %v674 = vpop.f32.mrf.mxu0
  %v675 = vadd.f32 %v603, %v674
  %v676 = vpop.f32.mrf.mxu0
  %v677 = vadd.f32 %v605, %v676
  %678 = vdwg.mxu0
  %679 = vmatpush.bf16.msra.mxu0 0
  %680 = vmatpush.bf16.msra.mxu0 0
  %681 = vmatpush.bf16.msra.mxu0 0
  %682 = vmatpush.bf16.msra.mxu0 0
  %683 = vmatpush.bf16.msra.mxu0 0
  %684 = vmatpush.bf16.msra.mxu0 0
  %685 = vmatpush.bf16.msra.mxu0 %v653
  %686 = vmatpush.bf16.msra.mxu0 %v644
  %687 = vmatmul.bf16.gmra.mxu0 %v163
  %v688 = vpop.f32.mrf.mxu0
  %v689 = vadd.f32 %v617, %v688
  %v690 = vpop.f32.mrf.mxu0
  %v691 = vadd.f32 %v619, %v690
  %692 = vmatmul.bf16.gmra.mxu0 %v166
  %v693 = vpop.f32.mrf.mxu0
  %v694 = vadd.f32 %v622, %v693
  %v695 = vpop.f32.mrf.mxu0
  %v696 = vadd.f32 %v624, %v695
  %697 = vmatmul.bf16.gmra.mxu0 %v169
  %v698 = vpop.f32.mrf.mxu0
  %v699 = vadd.f32 %v627, %v698
  %v700 = vpop.f32.mrf.mxu0
  %v701 = vadd.f32 %v629, %v700
  %702 = vdwg.mxu0
  %s703 = scalar_lea.vmem %s1, 224
  %v704 = vld [vmem:[%s703] sm:$0xff]
  %v705 = vld [vmem:[%s703 + $0x8] sm:$0xff]
  %v706 = vld [vmem:[%s703 + $0x10] sm:$0xff]
  %v707 = vld [vmem:[%s703 + $0x18] sm:$0x33]
  %v712 = vunpack.c.l.b16 %v704
  %v713 = vunpack.c.h.b16 %v704
  %v714 = vunpack.c.l.b16 %v705
  %v715 = vunpack.c.h.b16 %v705
  %v716 = vunpack.c.l.b16 %v706
  %v717 = vunpack.c.h.b16 %v706
  %v718 = vunpack.c.l.b16 %v707
  %v719 = vunpack.c.h.b16 %v707
  %v720 = vpack.c.b16 %v714, %v712
  %v721 = vpack.c.b16 %v715, %v713
  %v722 = vpack.c.b16 %v718, %v716
  %v723 = vpack.c.b16 %v719, %v717
  %v727 = vsel %vm89, %v722, 0
  %v730 = vsel %vm89, %v723, 0
  %732 = vmatpush.bf16.msra.mxu0 0
  %733 = vmatpush.bf16.msra.mxu0 0
  %734 = vmatpush.bf16.msra.mxu0 0
  %735 = vmatpush.bf16.msra.mxu0 0
  %736 = vmatpush.bf16.msra.mxu0 0
  %737 = vmatpush.bf16.msra.mxu0 0
  %738 = vmatpush.bf16.msra.mxu0 %v727
  %739 = vmatpush.bf16.msra.mxu0 %v720
  %740 = vmatmul.bf16.gmra.mxu0 %v259
  %v741 = vpop.f32.mrf.mxu0
  %v742 = vadd.f32 0.0, %v741
  %v743 = vpop.f32.mrf.mxu0
  %v744 = vadd.f32 0.0, %v743
  %745 = vmatmul.bf16.gmra.mxu0 %v262
  %v746 = vpop.f32.mrf.mxu0
  %v747 = vadd.f32 0.0, %v746
  %v748 = vpop.f32.mrf.mxu0
  %v749 = vadd.f32 0.0, %v748
  %750 = vmatmul.bf16.gmra.mxu0 %v265
  %v751 = vpop.f32.mrf.mxu0
  %v752 = vadd.f32 0.0, %v751
  %v753 = vpop.f32.mrf.mxu0
  %v754 = vadd.f32 0.0, %v753
  %755 = vdwg.mxu0
  %756 = vmatpush.bf16.msra.mxu0 0
  %757 = vmatpush.bf16.msra.mxu0 0
  %758 = vmatpush.bf16.msra.mxu0 0
  %759 = vmatpush.bf16.msra.mxu0 0
  %760 = vmatpush.bf16.msra.mxu0 0
  %761 = vmatpush.bf16.msra.mxu0 0
  %762 = vmatpush.bf16.msra.mxu0 %v730
  %763 = vmatpush.bf16.msra.mxu0 %v721
  %764 = vmatmul.bf16.gmra.mxu0 %v259
  %v765 = vpop.f32.mrf.mxu0
  %v766 = vadd.f32 0.0, %v765
  %v767 = vpop.f32.mrf.mxu0
  %v768 = vadd.f32 0.0, %v767
  %769 = vmatmul.bf16.gmra.mxu0 %v262
  %v770 = vpop.f32.mrf.mxu0
  %v771 = vadd.f32 0.0, %v770
  %v772 = vpop.f32.mrf.mxu0
  %v773 = vadd.f32 0.0, %v772
  %774 = vmatmul.bf16.gmra.mxu0 %v265
  %v775 = vpop.f32.mrf.mxu0
  %v776 = vadd.f32 0.0, %v775
  %v777 = vpop.f32.mrf.mxu0
  %v778 = vadd.f32 0.0, %v777
  %779 = vdwg.mxu0
  %v780 = vadd.f32 %v665, %v742
  %v781 = vadd.f32 %v689, %v766
  %v782 = vadd.f32 %v667, %v744
  %v783 = vadd.f32 %v691, %v768
  %v784 = vadd.f32 %v670, %v747
  %v785 = vadd.f32 %v694, %v771
  %v786 = vadd.f32 %v672, %v749
  %v787 = vadd.f32 %v696, %v773
  %v788 = vadd.f32 %v675, %v752
  %v789 = vadd.f32 %v699, %v776
  %v790 = vadd.f32 %v677, %v754
  %v791 = vadd.f32 %v701, %v778
  %s792 = scalar_lea.vmem %s1, 256
  %v793 = vld [vmem:[%s792] sm:$0xff]
  %v794 = vld [vmem:[%s792 + $0x8] sm:$0xff]
  %v795 = vld [vmem:[%s792 + $0x10] sm:$0xff]
  %v796 = vld [vmem:[%s792 + $0x18] sm:$0x33]
  %v801 = vunpack.c.l.b16 %v793
  %v802 = vunpack.c.h.b16 %v793
  %v803 = vunpack.c.l.b16 %v794
  %v804 = vunpack.c.h.b16 %v794
  %v805 = vunpack.c.l.b16 %v795
  %v806 = vunpack.c.h.b16 %v795
  %v807 = vunpack.c.l.b16 %v796
  %v808 = vunpack.c.h.b16 %v796
  %v809 = vpack.c.b16 %v803, %v801
  %v810 = vpack.c.b16 %v804, %v802
  %v811 = vpack.c.b16 %v807, %v805
  %v812 = vpack.c.b16 %v808, %v806
  %v816 = vsel %vm89, %v811, 0
  %v819 = vsel %vm89, %v812, 0
  %821 = vmatpush.bf16.msra.mxu0 0
  %822 = vmatpush.bf16.msra.mxu0 0
  %823 = vmatpush.bf16.msra.mxu0 0
  %824 = vmatpush.bf16.msra.mxu0 0
  %825 = vmatpush.bf16.msra.mxu0 0
  %826 = vmatpush.bf16.msra.mxu0 0
  %827 = vmatpush.bf16.msra.mxu0 %v816
  %828 = vmatpush.bf16.msra.mxu0 %v809
  %829 = vmatmul.bf16.gmra.mxu0 %v367
  %v830 = vpop.f32.mrf.mxu0
  %v831 = vadd.f32 0.0, %v830
  %v832 = vpop.f32.mrf.mxu0
  %v833 = vadd.f32 0.0, %v832
  %834 = vmatmul.bf16.gmra.mxu0 %v370
  %v835 = vpop.f32.mrf.mxu0
  %v836 = vadd.f32 0.0, %v835
  %v837 = vpop.f32.mrf.mxu0
  %v838 = vadd.f32 0.0, %v837
  %839 = vmatmul.bf16.gmra.mxu0 %v373
  %v840 = vpop.f32.mrf.mxu0
  %v841 = vadd.f32 0.0, %v840
  %v842 = vpop.f32.mrf.mxu0
  %v843 = vadd.f32 0.0, %v842
  %844 = vdwg.mxu0
  %845 = vmatpush.bf16.msra.mxu0 0
  %846 = vmatpush.bf16.msra.mxu0 0
  %847 = vmatpush.bf16.msra.mxu0 0
  %848 = vmatpush.bf16.msra.mxu0 0
  %849 = vmatpush.bf16.msra.mxu0 0
  %850 = vmatpush.bf16.msra.mxu0 0
  %851 = vmatpush.bf16.msra.mxu0 %v819
  %852 = vmatpush.bf16.msra.mxu0 %v810
  %853 = vmatmul.bf16.gmra.mxu0 %v367
  %v854 = vpop.f32.mrf.mxu0
  %v855 = vadd.f32 0.0, %v854
  %v856 = vpop.f32.mrf.mxu0
  %v857 = vadd.f32 0.0, %v856
  %858 = vmatmul.bf16.gmra.mxu0 %v370
  %v859 = vpop.f32.mrf.mxu0
  %v860 = vadd.f32 0.0, %v859
  %v861 = vpop.f32.mrf.mxu0
  %v862 = vadd.f32 0.0, %v861
  %863 = vmatmul.bf16.gmra.mxu0 %v373
  %v864 = vpop.f32.mrf.mxu0
  %v865 = vadd.f32 0.0, %v864
  %v866 = vpop.f32.mrf.mxu0
  %v867 = vadd.f32 0.0, %v866
  %868 = vdwg.mxu0
  %v869 = vadd.f32 %v780, %v831
  %v870 = vadd.f32 %v781, %v855
  %v871 = vadd.f32 %v782, %v833
  %v872 = vadd.f32 %v783, %v857
  %v873 = vadd.f32 %v784, %v836
  %v874 = vadd.f32 %v785, %v860
  %v875 = vadd.f32 %v786, %v838
  %v876 = vadd.f32 %v787, %v862
  %v877 = vadd.f32 %v788, %v841
  %v878 = vadd.f32 %v789, %v865
  %v879 = vadd.f32 %v790, %v843
  %v880 = vadd.f32 %v791, %v867
  %s881 = scalar_lea.vmem %s1, 288
  %v882 = vld [vmem:[%s881] sm:$0xff]
  %v883 = vld [vmem:[%s881 + $0x8] sm:$0xff]
  %v884 = vld [vmem:[%s881 + $0x10] sm:$0xff]
  %v885 = vld [vmem:[%s881 + $0x18] sm:$0x33]
  %v890 = vunpack.c.l.b16 %v882
  %v891 = vunpack.c.h.b16 %v882
  %v892 = vunpack.c.l.b16 %v883
  %v893 = vunpack.c.h.b16 %v883
  %v894 = vunpack.c.l.b16 %v884
  %v895 = vunpack.c.h.b16 %v884
  %v896 = vunpack.c.l.b16 %v885
  %v897 = vunpack.c.h.b16 %v885
  %v898 = vpack.c.b16 %v892, %v890
  %v899 = vpack.c.b16 %v893, %v891
  %v900 = vpack.c.b16 %v896, %v894
  %v901 = vpack.c.b16 %v897, %v895
  %v905 = vsel %vm89, %v900, 0
  %v908 = vsel %vm89, %v901, 0
  %910 = vmatpush.bf16.msra.mxu0 0
  %911 = vmatpush.bf16.msra.mxu0 0
  %912 = vmatpush.bf16.msra.mxu0 0
  %913 = vmatpush.bf16.msra.mxu0 0
  %914 = vmatpush.bf16.msra.mxu0 0
  %915 = vmatpush.bf16.msra.mxu0 0
  %916 = vmatpush.bf16.msra.mxu0 %v905
  %917 = vmatpush.bf16.msra.mxu0 %v898
  %918 = vmatmul.bf16.gmra.mxu0 %v475
  %v919 = vpop.f32.mrf.mxu0
  %v920 = vadd.f32 0.0, %v919
  %v921 = vpop.f32.mrf.mxu0
  %v922 = vadd.f32 0.0, %v921
  %923 = vmatmul.bf16.gmra.mxu0 %v478
  %v924 = vpop.f32.mrf.mxu0
  %v925 = vadd.f32 0.0, %v924
  %v926 = vpop.f32.mrf.mxu0
  %v927 = vadd.f32 0.0, %v926
  %928 = vmatmul.bf16.gmra.mxu0 %v481
  %v929 = vpop.f32.mrf.mxu0
  %v930 = vadd.f32 0.0, %v929
  %v931 = vpop.f32.mrf.mxu0
  %v932 = vadd.f32 0.0, %v931
  %933 = vdwg.mxu0
  %934 = vmatpush.bf16.msra.mxu0 0
  %935 = vmatpush.bf16.msra.mxu0 0
  %936 = vmatpush.bf16.msra.mxu0 0
  %937 = vmatpush.bf16.msra.mxu0 0
  %938 = vmatpush.bf16.msra.mxu0 0
  %939 = vmatpush.bf16.msra.mxu0 0
  %940 = vmatpush.bf16.msra.mxu0 %v908
  %941 = vmatpush.bf16.msra.mxu0 %v899
  %942 = vmatmul.bf16.gmra.mxu0 %v475
  %v943 = vpop.f32.mrf.mxu0
  %v944 = vadd.f32 0.0, %v943
  %v945 = vpop.f32.mrf.mxu0
  %v946 = vadd.f32 0.0, %v945
  %947 = vmatmul.bf16.gmra.mxu0 %v478
  %v948 = vpop.f32.mrf.mxu0
  %v949 = vadd.f32 0.0, %v948
  %v950 = vpop.f32.mrf.mxu0
  %v951 = vadd.f32 0.0, %v950
  %952 = vmatmul.bf16.gmra.mxu0 %v481
  %v953 = vpop.f32.mrf.mxu0
  %v954 = vadd.f32 0.0, %v953
  %v955 = vpop.f32.mrf.mxu0
  %v956 = vadd.f32 0.0, %v955
  %957 = vdwg.mxu0
  %v958 = vadd.f32 %v869, %v920
  %v959 = vadd.f32 %v870, %v944
  %v960 = vadd.f32 %v871, %v922
  %v961 = vadd.f32 %v872, %v946
  %v962 = vadd.f32 %v873, %v925
  %v963 = vadd.f32 %v874, %v949
  %v964 = vadd.f32 %v875, %v927
  %v965 = vadd.f32 %v876, %v951
  %v966 = vadd.f32 %v877, %v930
  %v967 = vadd.f32 %v878, %v954
  %v968 = vadd.f32 %v879, %v932
  %v969 = vadd.f32 %v880, %v956
  %v970 = vmax.f32 %v537, %v958
  %v971 = vmax.f32 %v538, %v959
  %v972 = vmax.f32 %v539, %v960
  %v973 = vmax.f32 %v540, %v961
  %v974 = vmax.f32 %v541, %v962
  %v975 = vmax.f32 %v542, %v963
  %v976 = vmax.f32 %v543, %v964
  %v977 = vmax.f32 %v544, %v965
  %v978 = vmax.f32 %v545, %v966
  %v979 = vmax.f32 %v546, %v967
  %v980 = vmax.f32 %v547, %v968
  %v981 = vmax.f32 %v548, %v969
  %982 = vmatpush.bf16.msra.mxu0 0
  %983 = vmatpush.bf16.msra.mxu0 0
  %984 = vmatpush.bf16.msra.mxu0 0
  %985 = vmatpush.bf16.msra.mxu0 0
  %986 = vmatpush.bf16.msra.mxu0 0
  %987 = vmatpush.bf16.msra.mxu0 0
  %988 = vmatpush.bf16.msra.mxu0 %v91
  %989 = vmatpush.bf16.msra.mxu0 %v73
  %990 = vmatmul.bf16.gmra.mxu0 %v259
  %v991 = vpop.f32.mrf.mxu0
  %v992 = vadd.f32 0.0, %v991
  %v993 = vpop.f32.mrf.mxu0
  %v994 = vadd.f32 0.0, %v993
  %995 = vmatmul.bf16.gmra.mxu0 %v262
  %v996 = vpop.f32.mrf.mxu0
  %v997 = vadd.f32 0.0, %v996
  %v998 = vpop.f32.mrf.mxu0
  %v999 = vadd.f32 0.0, %v998
  %1000 = vmatmul.bf16.gmra.mxu0 %v265
  %v1001 = vpop.f32.mrf.mxu0
  %v1002 = vadd.f32 0.0, %v1001
  %v1003 = vpop.f32.mrf.mxu0
  %v1004 = vadd.f32 0.0, %v1003
  %1005 = vdwg.mxu0
  %1006 = vmatpush.bf16.msra.mxu0 0
  %1007 = vmatpush.bf16.msra.mxu0 0
  %1008 = vmatpush.bf16.msra.mxu0 0
  %1009 = vmatpush.bf16.msra.mxu0 0
  %1010 = vmatpush.bf16.msra.mxu0 0
  %1011 = vmatpush.bf16.msra.mxu0 0
  %1012 = vmatpush.bf16.msra.mxu0 %v94
  %1013 = vmatpush.bf16.msra.mxu0 %v74
  %1014 = vmatmul.bf16.gmra.mxu0 %v259
  %v1015 = vpop.f32.mrf.mxu0
  %v1016 = vadd.f32 0.0, %v1015
  %v1017 = vpop.f32.mrf.mxu0
  %v1018 = vadd.f32 0.0, %v1017
  %1019 = vmatmul.bf16.gmra.mxu0 %v262
  %v1020 = vpop.f32.mrf.mxu0
  %v1021 = vadd.f32 0.0, %v1020
  %v1022 = vpop.f32.mrf.mxu0
  %v1023 = vadd.f32 0.0, %v1022
  %1024 = vmatmul.bf16.gmra.mxu0 %v265
  %v1025 = vpop.f32.mrf.mxu0
  %v1026 = vadd.f32 0.0, %v1025
  %v1027 = vpop.f32.mrf.mxu0
  %v1028 = vadd.f32 0.0, %v1027
  %1029 = vdwg.mxu0
  %1030 = vmatpush.bf16.msra.mxu0 0
  %1031 = vmatpush.bf16.msra.mxu0 0
  %1032 = vmatpush.bf16.msra.mxu0 0
  %1033 = vmatpush.bf16.msra.mxu0 0
  %1034 = vmatpush.bf16.msra.mxu0 0
  %1035 = vmatpush.bf16.msra.mxu0 0
  %1036 = vmatpush.bf16.msra.mxu0 %v172
  %1037 = vmatpush.bf16.msra.mxu0 %v156
  %1038 = vmatmul.bf16.gmra.mxu0 %v81
  %v1039 = vpop.f32.mrf.mxu0
  %v1040 = vadd.f32 %v992, %v1039
  %v1041 = vpop.f32.mrf.mxu0
  %v1042 = vadd.f32 %v994, %v1041
  %1043 = vmatmul.bf16.gmra.mxu0 %v84
  %v1044 = vpop.f32.mrf.mxu0
  %v1045 = vadd.f32 %v997, %v1044
  %v1046 = vpop.f32.mrf.mxu0
  %v1047 = vadd.f32 %v999, %v1046
  %1048 = vmatmul.bf16.gmra.mxu0 %v87
  %v1049 = vpop.f32.mrf.mxu0
  %v1050 = vadd.f32 %v1002, %v1049
  %v1051 = vpop.f32.mrf.mxu0
  %v1052 = vadd.f32 %v1004, %v1051
  %1053 = vdwg.mxu0
  %1054 = vmatpush.bf16.msra.mxu0 0
  %1055 = vmatpush.bf16.msra.mxu0 0
  %1056 = vmatpush.bf16.msra.mxu0 0
  %1057 = vmatpush.bf16.msra.mxu0 0
  %1058 = vmatpush.bf16.msra.mxu0 0
  %1059 = vmatpush.bf16.msra.mxu0 0
  %1060 = vmatpush.bf16.msra.mxu0 %v175
  %1061 = vmatpush.bf16.msra.mxu0 %v157
  %1062 = vmatmul.bf16.gmra.mxu0 %v81
  %v1063 = vpop.f32.mrf.mxu0
  %v1064 = vadd.f32 %v1016, %v1063
  %v1065 = vpop.f32.mrf.mxu0
  %v1066 = vadd.f32 %v1018, %v1065
  %1067 = vmatmul.bf16.gmra.mxu0 %v84
  %v1068 = vpop.f32.mrf.mxu0
  %v1069 = vadd.f32 %v1021, %v1068
  %v1070 = vpop.f32.mrf.mxu0
  %v1071 = vadd.f32 %v1023, %v1070
  %1072 = vmatmul.bf16.gmra.mxu0 %v87
  %v1073 = vpop.f32.mrf.mxu0
  %v1074 = vadd.f32 %v1026, %v1073
  %v1075 = vpop.f32.mrf.mxu0
  %v1076 = vadd.f32 %v1028, %v1075
  %1077 = vdwg.mxu0
  %1078 = vmatpush.bf16.msra.mxu0 0
  %1079 = vmatpush.bf16.msra.mxu0 0
  %1080 = vmatpush.bf16.msra.mxu0 0
  %1081 = vmatpush.bf16.msra.mxu0 0
  %1082 = vmatpush.bf16.msra.mxu0 0
  %1083 = vmatpush.bf16.msra.mxu0 0
  %1084 = vmatpush.bf16.msra.mxu0 %v268
  %1085 = vmatpush.bf16.msra.mxu0 %v252
  %1086 = vmatmul.bf16.gmra.mxu0 %v367
  %v1087 = vpop.f32.mrf.mxu0
  %v1088 = vadd.f32 0.0, %v1087
  %v1089 = vpop.f32.mrf.mxu0
  %v1090 = vadd.f32 0.0, %v1089
  %1091 = vmatmul.bf16.gmra.mxu0 %v370
  %v1092 = vpop.f32.mrf.mxu0
  %v1093 = vadd.f32 0.0, %v1092
  %v1094 = vpop.f32.mrf.mxu0
  %v1095 = vadd.f32 0.0, %v1094
  %1096 = vmatmul.bf16.gmra.mxu0 %v373
  %v1097 = vpop.f32.mrf.mxu0
  %v1098 = vadd.f32 0.0, %v1097
  %v1099 = vpop.f32.mrf.mxu0
  %v1100 = vadd.f32 0.0, %v1099
  %1101 = vdwg.mxu0
  %1102 = vmatpush.bf16.msra.mxu0 0
  %1103 = vmatpush.bf16.msra.mxu0 0
  %1104 = vmatpush.bf16.msra.mxu0 0
  %1105 = vmatpush.bf16.msra.mxu0 0
  %1106 = vmatpush.bf16.msra.mxu0 0
  %1107 = vmatpush.bf16.msra.mxu0 0
  %1108 = vmatpush.bf16.msra.mxu0 %v271
  %1109 = vmatpush.bf16.msra.mxu0 %v253
  %1110 = vmatmul.bf16.gmra.mxu0 %v367
  %v1111 = vpop.f32.mrf.mxu0
  %v1112 = vadd.f32 0.0, %v1111
  %v1113 = vpop.f32.mrf.mxu0
  %v1114 = vadd.f32 0.0, %v1113
  %1115 = vmatmul.bf16.gmra.mxu0 %v370
  %v1116 = vpop.f32.mrf.mxu0
  %v1117 = vadd.f32 0.0, %v1116
  %v1118 = vpop.f32.mrf.mxu0
  %v1119 = vadd.f32 0.0, %v1118
  %1120 = vmatmul.bf16.gmra.mxu0 %v373
  %v1121 = vpop.f32.mrf.mxu0
  %v1122 = vadd.f32 0.0, %v1121
  %v1123 = vpop.f32.mrf.mxu0
  %v1124 = vadd.f32 0.0, %v1123
  %1125 = vdwg.mxu0
  %v1126 = vadd.f32 %v1040, %v1088
  %v1127 = vadd.f32 %v1064, %v1112
  %v1128 = vadd.f32 %v1042, %v1090
  %v1129 = vadd.f32 %v1066, %v1114
  %v1130 = vadd.f32 %v1045, %v1093
  %v1131 = vadd.f32 %v1069, %v1117
  %v1132 = vadd.f32 %v1047, %v1095
  %v1133 = vadd.f32 %v1071, %v1119
  %v1134 = vadd.f32 %v1050, %v1098
  %v1135 = vadd.f32 %v1074, %v1122
  %v1136 = vadd.f32 %v1052, %v1100
  %v1137 = vadd.f32 %v1076, %v1124
  %1138 = vmatpush.bf16.msra.mxu0 0
  %1139 = vmatpush.bf16.msra.mxu0 0
  %1140 = vmatpush.bf16.msra.mxu0 0
  %1141 = vmatpush.bf16.msra.mxu0 0
  %1142 = vmatpush.bf16.msra.mxu0 0
  %1143 = vmatpush.bf16.msra.mxu0 0
  %1144 = vmatpush.bf16.msra.mxu0 %v376
  %1145 = vmatpush.bf16.msra.mxu0 %v360
  %1146 = vmatmul.bf16.gmra.mxu0 %v475
  %v1147 = vpop.f32.mrf.mxu0
  %v1148 = vadd.f32 0.0, %v1147
  %v1149 = vpop.f32.mrf.mxu0
  %v1150 = vadd.f32 0.0, %v1149
  %1151 = vmatmul.bf16.gmra.mxu0 %v478
  %v1152 = vpop.f32.mrf.mxu0
  %v1153 = vadd.f32 0.0, %v1152
  %v1154 = vpop.f32.mrf.mxu0
  %v1155 = vadd.f32 0.0, %v1154
  %1156 = vmatmul.bf16.gmra.mxu0 %v481
  %v1157 = vpop.f32.mrf.mxu0
  %v1158 = vadd.f32 0.0, %v1157
  %v1159 = vpop.f32.mrf.mxu0
  %v1160 = vadd.f32 0.0, %v1159
  %1161 = vdwg.mxu0
  %1162 = vmatpush.bf16.msra.mxu0 0
  %1163 = vmatpush.bf16.msra.mxu0 0
  %1164 = vmatpush.bf16.msra.mxu0 0
  %1165 = vmatpush.bf16.msra.mxu0 0
  %1166 = vmatpush.bf16.msra.mxu0 0
  %1167 = vmatpush.bf16.msra.mxu0 0
  %1168 = vmatpush.bf16.msra.mxu0 %v379
  %1169 = vmatpush.bf16.msra.mxu0 %v361
  %1170 = vmatmul.bf16.gmra.mxu0 %v475
  %v1171 = vpop.f32.mrf.mxu0
  %v1172 = vadd.f32 0.0, %v1171
  %v1173 = vpop.f32.mrf.mxu0
  %v1174 = vadd.f32 0.0, %v1173
  %1175 = vmatmul.bf16.gmra.mxu0 %v478
  %v1176 = vpop.f32.mrf.mxu0
  %v1177 = vadd.f32 0.0, %v1176
  %v1178 = vpop.f32.mrf.mxu0
  %v1179 = vadd.f32 0.0, %v1178
  %1180 = vmatmul.bf16.gmra.mxu0 %v481
  %v1181 = vpop.f32.mrf.mxu0
  %v1182 = vadd.f32 0.0, %v1181
  %v1183 = vpop.f32.mrf.mxu0
  %v1184 = vadd.f32 0.0, %v1183
  %1185 = vdwg.mxu0
  %v1186 = vadd.f32 %v1126, %v1148
  %v1187 = vadd.f32 %v1127, %v1172
  %v1188 = vadd.f32 %v1128, %v1150
  %v1189 = vadd.f32 %v1129, %v1174
  %v1190 = vadd.f32 %v1130, %v1153
  %v1191 = vadd.f32 %v1131, %v1177
  %v1192 = vadd.f32 %v1132, %v1155
  %v1193 = vadd.f32 %v1133, %v1179
  %v1194 = vadd.f32 %v1134, %v1158
  %v1195 = vadd.f32 %v1135, %v1182
  %v1196 = vadd.f32 %v1136, %v1160
  %v1197 = vadd.f32 %v1137, %v1184
  %s1198 = scalar_lea.vmem %s0, 240
  %v1199 = vld [vmem:[%s1198] sm:$0xff]
  %v1200 = vld [vmem:[%s1198 + $0x8] sm:$0xff]
  %v1201 = vld [vmem:[%s1198 + $0x10] sm:$0xff]
  %v1202 = vld [vmem:[%s1198 + $0x18] sm:$0xff]
  %v1203 = vld [vmem:[%s1198 + $0x20] sm:$0xff]
  %v1204 = vld [vmem:[%s1198 + $0x28] sm:$0xff]
  %v1205 = vpack.c.bf16 %v1200, %v1199
  %v1206 = vpack.c.bf16 %v1202, %v1201
  %v1207 = vpack.c.bf16 %v1204, %v1203
  %v1209 = vsel %vm79, %v1205, 0
  %v1212 = vsel %vm79, %v1206, 0
  %v1215 = vsel %vm79, %v1207, 0
  %1217 = vmatpush.bf16.msra.mxu0 0
  %1218 = vmatpush.bf16.msra.mxu0 0
  %1219 = vmatpush.bf16.msra.mxu0 0
  %1220 = vmatpush.bf16.msra.mxu0 0
  %1221 = vmatpush.bf16.msra.mxu0 0
  %1222 = vmatpush.bf16.msra.mxu0 0
  %1223 = vmatpush.bf16.msra.mxu0 %v484
  %1224 = vmatpush.bf16.msra.mxu0 %v468
  %1225 = vmatmul.bf16.gmra.mxu0 %v1209
  %v1226 = vpop.f32.mrf.mxu0
  %v1227 = vadd.f32 0.0, %v1226
  %v1228 = vpop.f32.mrf.mxu0
  %v1229 = vadd.f32 0.0, %v1228
  %1230 = vmatmul.bf16.gmra.mxu0 %v1212
  %v1231 = vpop.f32.mrf.mxu0
  %v1232 = vadd.f32 0.0, %v1231
  %v1233 = vpop.f32.mrf.mxu0
  %v1234 = vadd.f32 0.0, %v1233
  %1235 = vmatmul.bf16.gmra.mxu0 %v1215
  %v1236 = vpop.f32.mrf.mxu0
  %v1237 = vadd.f32 0.0, %v1236
  %v1238 = vpop.f32.mrf.mxu0
  %v1239 = vadd.f32 0.0, %v1238
  %1240 = vdwg.mxu0
  %1241 = vmatpush.bf16.msra.mxu0 0
  %1242 = vmatpush.bf16.msra.mxu0 0
  %1243 = vmatpush.bf16.msra.mxu0 0
  %1244 = vmatpush.bf16.msra.mxu0 0
  %1245 = vmatpush.bf16.msra.mxu0 0
  %1246 = vmatpush.bf16.msra.mxu0 0
  %1247 = vmatpush.bf16.msra.mxu0 %v487
  %1248 = vmatpush.bf16.msra.mxu0 %v469
  %1249 = vmatmul.bf16.gmra.mxu0 %v1209
  %v1250 = vpop.f32.mrf.mxu0
  %v1251 = vadd.f32 0.0, %v1250
  %v1252 = vpop.f32.mrf.mxu0
  %v1253 = vadd.f32 0.0, %v1252
  %1254 = vmatmul.bf16.gmra.mxu0 %v1212
  %v1255 = vpop.f32.mrf.mxu0
  %v1256 = vadd.f32 0.0, %v1255
  %v1257 = vpop.f32.mrf.mxu0
  %v1258 = vadd.f32 0.0, %v1257
  %1259 = vmatmul.bf16.gmra.mxu0 %v1215
  %v1260 = vpop.f32.mrf.mxu0
  %v1261 = vadd.f32 0.0, %v1260
  %v1262 = vpop.f32.mrf.mxu0
  %v1263 = vadd.f32 0.0, %v1262
  %1264 = vdwg.mxu0
  %v1265 = vadd.f32 %v1186, %v1227
  %v1266 = vadd.f32 %v1187, %v1251
  %v1267 = vadd.f32 %v1188, %v1229
  %v1268 = vadd.f32 %v1189, %v1253
  %v1269 = vadd.f32 %v1190, %v1232
  %v1270 = vadd.f32 %v1191, %v1256
  %v1271 = vadd.f32 %v1192, %v1234
  %v1272 = vadd.f32 %v1193, %v1258
  %v1273 = vadd.f32 %v1194, %v1237
  %v1274 = vadd.f32 %v1195, %v1261
  %v1275 = vadd.f32 %v1196, %v1239
  %v1276 = vadd.f32 %v1197, %v1263
  %v1277 = vmax.f32 %v970, %v1265
  %v1278 = vmax.f32 %v971, %v1266
  %v1279 = vmax.f32 %v972, %v1267
  %v1280 = vmax.f32 %v973, %v1268
  %v1281 = vmax.f32 %v974, %v1269
  %v1282 = vmax.f32 %v975, %v1270
  %v1283 = vmax.f32 %v976, %v1271
  %v1284 = vmax.f32 %v977, %v1272
  %v1285 = vmax.f32 %v978, %v1273
  %v1286 = vmax.f32 %v979, %v1274
  %v1287 = vmax.f32 %v980, %v1275
  %v1288 = vmax.f32 %v981, %v1276
  %1289 = vmatpush.bf16.msra.mxu0 0
  %1290 = vmatpush.bf16.msra.mxu0 0
  %1291 = vmatpush.bf16.msra.mxu0 0
  %1292 = vmatpush.bf16.msra.mxu0 0
  %1293 = vmatpush.bf16.msra.mxu0 0
  %1294 = vmatpush.bf16.msra.mxu0 0
  %1295 = vmatpush.bf16.msra.mxu0 %v578
  %1296 = vmatpush.bf16.msra.mxu0 %v571
  %1297 = vmatmul.bf16.gmra.mxu0 %v259
  %v1298 = vpop.f32.mrf.mxu0
  %v1299 = vadd.f32 0.0, %v1298
  %v1300 = vpop.f32.mrf.mxu0
  %v1301 = vadd.f32 0.0, %v1300
  %1302 = vmatmul.bf16.gmra.mxu0 %v262
  %v1303 = vpop.f32.mrf.mxu0
  %v1304 = vadd.f32 0.0, %v1303
  %v1305 = vpop.f32.mrf.mxu0
  %v1306 = vadd.f32 0.0, %v1305
  %1307 = vmatmul.bf16.gmra.mxu0 %v265
  %v1308 = vpop.f32.mrf.mxu0
  %v1309 = vadd.f32 0.0, %v1308
  %v1310 = vpop.f32.mrf.mxu0
  %v1311 = vadd.f32 0.0, %v1310
  %1312 = vdwg.mxu0
  %1313 = vmatpush.bf16.msra.mxu0 0
  %1314 = vmatpush.bf16.msra.mxu0 0
  %1315 = vmatpush.bf16.msra.mxu0 0
  %1316 = vmatpush.bf16.msra.mxu0 0
  %1317 = vmatpush.bf16.msra.mxu0 0
  %1318 = vmatpush.bf16.msra.mxu0 0
  %1319 = vmatpush.bf16.msra.mxu0 %v581
  %1320 = vmatpush.bf16.msra.mxu0 %v572
  %1321 = vmatmul.bf16.gmra.mxu0 %v259
  %v1322 = vpop.f32.mrf.mxu0
  %v1323 = vadd.f32 0.0, %v1322
  %v1324 = vpop.f32.mrf.mxu0
  %v1325 = vadd.f32 0.0, %v1324
  %1326 = vmatmul.bf16.gmra.mxu0 %v262
  %v1327 = vpop.f32.mrf.mxu0
  %v1328 = vadd.f32 0.0, %v1327
  %v1329 = vpop.f32.mrf.mxu0
  %v1330 = vadd.f32 0.0, %v1329
  %1331 = vmatmul.bf16.gmra.mxu0 %v265
  %v1332 = vpop.f32.mrf.mxu0
  %v1333 = vadd.f32 0.0, %v1332
  %v1334 = vpop.f32.mrf.mxu0
  %v1335 = vadd.f32 0.0, %v1334
  %1336 = vdwg.mxu0
  %1337 = vmatpush.bf16.msra.mxu0 0
  %1338 = vmatpush.bf16.msra.mxu0 0
  %1339 = vmatpush.bf16.msra.mxu0 0
  %1340 = vmatpush.bf16.msra.mxu0 0
  %1341 = vmatpush.bf16.msra.mxu0 0
  %1342 = vmatpush.bf16.msra.mxu0 0
  %1343 = vmatpush.bf16.msra.mxu0 %v650
  %1344 = vmatpush.bf16.msra.mxu0 %v643
  %1345 = vmatmul.bf16.gmra.mxu0 %v81
  %v1346 = vpop.f32.mrf.mxu0
  %v1347 = vadd.f32 %v1299, %v1346
  %v1348 = vpop.f32.mrf.mxu0
  %v1349 = vadd.f32 %v1301, %v1348
  %1350 = vmatmul.bf16.gmra.mxu0 %v84
  %v1351 = vpop.f32.mrf.mxu0
  %v1352 = vadd.f32 %v1304, %v1351
  %v1353 = vpop.f32.mrf.mxu0
  %v1354 = vadd.f32 %v1306, %v1353
  %1355 = vmatmul.bf16.gmra.mxu0 %v87
  %v1356 = vpop.f32.mrf.mxu0
  %v1357 = vadd.f32 %v1309, %v1356
  %v1358 = vpop.f32.mrf.mxu0
  %v1359 = vadd.f32 %v1311, %v1358
  %1360 = vdwg.mxu0
  %1361 = vmatpush.bf16.msra.mxu0 0
  %1362 = vmatpush.bf16.msra.mxu0 0
  %1363 = vmatpush.bf16.msra.mxu0 0
  %1364 = vmatpush.bf16.msra.mxu0 0
  %1365 = vmatpush.bf16.msra.mxu0 0
  %1366 = vmatpush.bf16.msra.mxu0 0
  %1367 = vmatpush.bf16.msra.mxu0 %v653
  %1368 = vmatpush.bf16.msra.mxu0 %v644
  %1369 = vmatmul.bf16.gmra.mxu0 %v81
  %v1370 = vpop.f32.mrf.mxu0
  %v1371 = vadd.f32 %v1323, %v1370
  %v1372 = vpop.f32.mrf.mxu0
  %v1373 = vadd.f32 %v1325, %v1372
  %1374 = vmatmul.bf16.gmra.mxu0 %v84
  %v1375 = vpop.f32.mrf.mxu0
  %v1376 = vadd.f32 %v1328, %v1375
  %v1377 = vpop.f32.mrf.mxu0
  %v1378 = vadd.f32 %v1330, %v1377
  %1379 = vmatmul.bf16.gmra.mxu0 %v87
  %v1380 = vpop.f32.mrf.mxu0
  %v1381 = vadd.f32 %v1333, %v1380
  %v1382 = vpop.f32.mrf.mxu0
  %v1383 = vadd.f32 %v1335, %v1382
  %1384 = vdwg.mxu0
  %1385 = vmatpush.bf16.msra.mxu0 0
  %1386 = vmatpush.bf16.msra.mxu0 0
  %1387 = vmatpush.bf16.msra.mxu0 0
  %1388 = vmatpush.bf16.msra.mxu0 0
  %1389 = vmatpush.bf16.msra.mxu0 0
  %1390 = vmatpush.bf16.msra.mxu0 0
  %1391 = vmatpush.bf16.msra.mxu0 %v727
  %1392 = vmatpush.bf16.msra.mxu0 %v720
  %1393 = vmatmul.bf16.gmra.mxu0 %v367
  %v1394 = vpop.f32.mrf.mxu0
  %v1395 = vadd.f32 0.0, %v1394
  %v1396 = vpop.f32.mrf.mxu0
  %v1397 = vadd.f32 0.0, %v1396
  %1398 = vmatmul.bf16.gmra.mxu0 %v370
  %v1399 = vpop.f32.mrf.mxu0
  %v1400 = vadd.f32 0.0, %v1399
  %v1401 = vpop.f32.mrf.mxu0
  %v1402 = vadd.f32 0.0, %v1401
  %1403 = vmatmul.bf16.gmra.mxu0 %v373
  %v1404 = vpop.f32.mrf.mxu0
  %v1405 = vadd.f32 0.0, %v1404
  %v1406 = vpop.f32.mrf.mxu0
  %v1407 = vadd.f32 0.0, %v1406
  %1408 = vdwg.mxu0
  %1409 = vmatpush.bf16.msra.mxu0 0
  %1410 = vmatpush.bf16.msra.mxu0 0
  %1411 = vmatpush.bf16.msra.mxu0 0
  %1412 = vmatpush.bf16.msra.mxu0 0
  %1413 = vmatpush.bf16.msra.mxu0 0
  %1414 = vmatpush.bf16.msra.mxu0 0
  %1415 = vmatpush.bf16.msra.mxu0 %v730
  %1416 = vmatpush.bf16.msra.mxu0 %v721
  %1417 = vmatmul.bf16.gmra.mxu0 %v367
  %v1418 = vpop.f32.mrf.mxu0
  %v1419 = vadd.f32 0.0, %v1418
  %v1420 = vpop.f32.mrf.mxu0
  %v1421 = vadd.f32 0.0, %v1420
  %1422 = vmatmul.bf16.gmra.mxu0 %v370
  %v1423 = vpop.f32.mrf.mxu0
  %v1424 = vadd.f32 0.0, %v1423
  %v1425 = vpop.f32.mrf.mxu0
  %v1426 = vadd.f32 0.0, %v1425
  %1427 = vmatmul.bf16.gmra.mxu0 %v373
  %v1428 = vpop.f32.mrf.mxu0
  %v1429 = vadd.f32 0.0, %v1428
  %v1430 = vpop.f32.mrf.mxu0
  %v1431 = vadd.f32 0.0, %v1430
  %1432 = vdwg.mxu0
  %v1433 = vadd.f32 %v1347, %v1395
  %v1434 = vadd.f32 %v1371, %v1419
  %v1435 = vadd.f32 %v1349, %v1397
  %v1436 = vadd.f32 %v1373, %v1421
  %v1437 = vadd.f32 %v1352, %v1400
  %v1438 = vadd.f32 %v1376, %v1424
  %v1439 = vadd.f32 %v1354, %v1402
  %v1440 = vadd.f32 %v1378, %v1426
  %v1441 = vadd.f32 %v1357, %v1405
  %v1442 = vadd.f32 %v1381, %v1429
  %v1443 = vadd.f32 %v1359, %v1407
  %v1444 = vadd.f32 %v1383, %v1431
  %1445 = vmatpush.bf16.msra.mxu0 0
  %1446 = vmatpush.bf16.msra.mxu0 0
  %1447 = vmatpush.bf16.msra.mxu0 0
  %1448 = vmatpush.bf16.msra.mxu0 0
  %1449 = vmatpush.bf16.msra.mxu0 0
  %1450 = vmatpush.bf16.msra.mxu0 0
  %1451 = vmatpush.bf16.msra.mxu0 %v816
  %1452 = vmatpush.bf16.msra.mxu0 %v809
  %1453 = vmatmul.bf16.gmra.mxu0 %v475
  %v1454 = vpop.f32.mrf.mxu0
  %v1455 = vadd.f32 0.0, %v1454
  %v1456 = vpop.f32.mrf.mxu0
  %v1457 = vadd.f32 0.0, %v1456
  %1458 = vmatmul.bf16.gmra.mxu0 %v478
  %v1459 = vpop.f32.mrf.mxu0
  %v1460 = vadd.f32 0.0, %v1459
  %v1461 = vpop.f32.mrf.mxu0
  %v1462 = vadd.f32 0.0, %v1461
  %1463 = vmatmul.bf16.gmra.mxu0 %v481
  %v1464 = vpop.f32.mrf.mxu0
  %v1465 = vadd.f32 0.0, %v1464
  %v1466 = vpop.f32.mrf.mxu0
  %v1467 = vadd.f32 0.0, %v1466
  %1468 = vdwg.mxu0
  %1469 = vmatpush.bf16.msra.mxu0 0
  %1470 = vmatpush.bf16.msra.mxu0 0
  %1471 = vmatpush.bf16.msra.mxu0 0
  %1472 = vmatpush.bf16.msra.mxu0 0
  %1473 = vmatpush.bf16.msra.mxu0 0
  %1474 = vmatpush.bf16.msra.mxu0 0
  %1475 = vmatpush.bf16.msra.mxu0 %v819
  %1476 = vmatpush.bf16.msra.mxu0 %v810
  %1477 = vmatmul.bf16.gmra.mxu0 %v475
  %v1478 = vpop.f32.mrf.mxu0
  %v1479 = vadd.f32 0.0, %v1478
  %v1480 = vpop.f32.mrf.mxu0
  %v1481 = vadd.f32 0.0, %v1480
  %1482 = vmatmul.bf16.gmra.mxu0 %v478
  %v1483 = vpop.f32.mrf.mxu0
  %v1484 = vadd.f32 0.0, %v1483
  %v1485 = vpop.f32.mrf.mxu0
  %v1486 = vadd.f32 0.0, %v1485
  %1487 = vmatmul.bf16.gmra.mxu0 %v481
  %v1488 = vpop.f32.mrf.mxu0
  %v1489 = vadd.f32 0.0, %v1488
  %v1490 = vpop.f32.mrf.mxu0
  %v1491 = vadd.f32 0.0, %v1490
  %1492 = vdwg.mxu0
  %v1493 = vadd.f32 %v1433, %v1455
  %v1494 = vadd.f32 %v1434, %v1479
  %v1495 = vadd.f32 %v1435, %v1457
  %v1496 = vadd.f32 %v1436, %v1481
  %v1497 = vadd.f32 %v1437, %v1460
  %v1498 = vadd.f32 %v1438, %v1484
  %v1499 = vadd.f32 %v1439, %v1462
  %v1500 = vadd.f32 %v1440, %v1486
  %v1501 = vadd.f32 %v1441, %v1465
  %v1502 = vadd.f32 %v1442, %v1489
  %v1503 = vadd.f32 %v1443, %v1467
  %v1504 = vadd.f32 %v1444, %v1491
  %1505 = vmatpush.bf16.msra.mxu0 0
  %1506 = vmatpush.bf16.msra.mxu0 0
  %1507 = vmatpush.bf16.msra.mxu0 0
  %1508 = vmatpush.bf16.msra.mxu0 0
  %1509 = vmatpush.bf16.msra.mxu0 0
  %1510 = vmatpush.bf16.msra.mxu0 0
  %1511 = vmatpush.bf16.msra.mxu0 %v905
  %1512 = vmatpush.bf16.msra.mxu0 %v898
  %1513 = vmatmul.bf16.gmra.mxu0 %v1209
  %v1514 = vpop.f32.mrf.mxu0
  %v1515 = vadd.f32 0.0, %v1514
  %v1516 = vpop.f32.mrf.mxu0
  %v1517 = vadd.f32 0.0, %v1516
  %1518 = vmatmul.bf16.gmra.mxu0 %v1212
  %v1519 = vpop.f32.mrf.mxu0
  %v1520 = vadd.f32 0.0, %v1519
  %v1521 = vpop.f32.mrf.mxu0
  %v1522 = vadd.f32 0.0, %v1521
  %1523 = vmatmul.bf16.gmra.mxu0 %v1215
  %v1524 = vpop.f32.mrf.mxu0
  %v1525 = vadd.f32 0.0, %v1524
  %v1526 = vpop.f32.mrf.mxu0
  %v1527 = vadd.f32 0.0, %v1526
  %1528 = vdwg.mxu0
  %1529 = vmatpush.bf16.msra.mxu0 0
  %1530 = vmatpush.bf16.msra.mxu0 0
  %1531 = vmatpush.bf16.msra.mxu0 0
  %1532 = vmatpush.bf16.msra.mxu0 0
  %1533 = vmatpush.bf16.msra.mxu0 0
  %1534 = vmatpush.bf16.msra.mxu0 0
  %1535 = vmatpush.bf16.msra.mxu0 %v908
  %1536 = vmatpush.bf16.msra.mxu0 %v899
  %1537 = vmatmul.bf16.gmra.mxu0 %v1209
  %v1538 = vpop.f32.mrf.mxu0
  %v1539 = vadd.f32 0.0, %v1538
  %v1540 = vpop.f32.mrf.mxu0
  %v1541 = vadd.f32 0.0, %v1540
  %1542 = vmatmul.bf16.gmra.mxu0 %v1212
  %v1543 = vpop.f32.mrf.mxu0
  %v1544 = vadd.f32 0.0, %v1543
  %v1545 = vpop.f32.mrf.mxu0
  %v1546 = vadd.f32 0.0, %v1545
  %1547 = vmatmul.bf16.gmra.mxu0 %v1215
  %v1548 = vpop.f32.mrf.mxu0
  %v1549 = vadd.f32 0.0, %v1548
  %v1550 = vpop.f32.mrf.mxu0
  %v1551 = vadd.f32 0.0, %v1550
  %1552 = vdwg.mxu0
  %v1553 = vadd.f32 %v1493, %v1515
  %v1554 = vadd.f32 %v1494, %v1539
  %v1555 = vadd.f32 %v1495, %v1517
  %v1556 = vadd.f32 %v1496, %v1541
  %v1557 = vadd.f32 %v1497, %v1520
  %v1558 = vadd.f32 %v1498, %v1544
  %v1559 = vadd.f32 %v1499, %v1522
  %v1560 = vadd.f32 %v1500, %v1546
  %v1561 = vadd.f32 %v1501, %v1525
  %v1562 = vadd.f32 %v1502, %v1549
  %v1563 = vadd.f32 %v1503, %v1527
  %v1564 = vadd.f32 %v1504, %v1551
  %v1565 = vmax.f32 %v1277, %v1553
  %v1566 = vmax.f32 %v1278, %v1554
  %v1567 = vmax.f32 %v1279, %v1555
  %v1568 = vmax.f32 %v1280, %v1556
  %v1569 = vmax.f32 %v1281, %v1557
  %v1570 = vmax.f32 %v1282, %v1558
  %v1571 = vmax.f32 %v1283, %v1559
  %v1572 = vmax.f32 %v1284, %v1560
  %v1573 = vmax.f32 %v1285, %v1561
  %v1574 = vmax.f32 %v1286, %v1562
  %v1575 = vmax.f32 %v1287, %v1563
  %v1576 = vmax.f32 %v1288, %v1564
  %v1577 = vld [vmem:[%s2] sm:$0x3]
  %v1579 = vperm.slane %v1577, 0
  %v1580 = vperm.slane %v1577, 1
  %v1583 = vadd.f32 %v1565, %v1579
  %v1584 = vadd.f32 %v1566, %v1580
  %v1585 = vadd.f32 %v1567, %v1579
  %v1586 = vadd.f32 %v1568, %v1580
  %v1587 = vadd.f32 %v1569, %v1579
  %v1588 = vadd.f32 %v1570, %v1580
  %v1589 = vadd.f32 %v1571, %v1579
  %v1590 = vadd.f32 %v1572, %v1580
  %v1591 = vadd.f32 %v1573, %v1579
  %v1592 = vadd.f32 %v1574, %v1580
  %v1593 = vadd.f32 %v1575, %v1579
  %v1594 = vadd.f32 %v1576, %v1580
  %v1595 = vmax.f32 %v1583, 0.0
  %v1596 = vmax.f32 %v1584, 0.0
  %v1597 = vmax.f32 %v1585, 0.0
  %v1598 = vmax.f32 %v1586, 0.0
  %v1599 = vmax.f32 %v1587, 0.0
  %v1600 = vmax.f32 %v1588, 0.0
  %v1601 = vmax.f32 %v1589, 0.0
  %v1602 = vmax.f32 %v1590, 0.0
  %v1603 = vmax.f32 %v1591, 0.0
  %v1604 = vmax.f32 %v1592, 0.0
  %v1605 = vmax.f32 %v1593, 0.0
  %v1606 = vmax.f32 %v1594, 0.0
  %1607 = vst [vmem:[#allocation2] sm:$0xff] %v1595
  %vm1608 = vcmask 916480
  %1609 = vst.msk [vmem:[#allocation2 + $0x8] sm:$0xff] %vm1608, %v1596
  %1610 = vst [vmem:[#allocation2 + $0x10] sm:$0xff] %v1597
  %1611 = vst.msk [vmem:[#allocation2 + $0x18] sm:$0xff] %vm1608, %v1598
  %1612 = vst [vmem:[#allocation2 + $0x20] sm:$0xff] %v1599
  %1613 = vst.msk [vmem:[#allocation2 + $0x28] sm:$0xff] %vm1608, %v1600
  %1614 = vst [vmem:[#allocation2 + $0x30] sm:$0xff] %v1601
  %1615 = vst.msk [vmem:[#allocation2 + $0x38] sm:$0xff] %vm1608, %v1602
  %1616 = vst [vmem:[#allocation2 + $0x40] sm:$0xff] %v1603
  %1617 = vst.msk [vmem:[#allocation2 + $0x48] sm:$0xff] %vm1608, %v1604
  %1618 = vst [vmem:[#allocation2 + $0x50] sm:$0xff] %v1605
  %1619 = vst.msk [vmem:[#allocation2 + $0x58] sm:$0xff] %vm1608, %v1606
  %v1620 = vld [vmem:[%s225] sm:$0xff]
  %v1621 = vld [vmem:[%s225 + $0x8] sm:$0xff]
  %v1622 = vld [vmem:[%s225 + $0x10] sm:$0xff]
  %v1623 = vld [vmem:[%s225 + $0x18] sm:$0xff]
  %v1624 = vld [vmem:[%s225 + $0x20] sm:$0xff]
  %v1625 = vld [vmem:[%s225 + $0x28] sm:$0xff]
  %v1626 = vpack.c.bf16 %v1621, %v1620
  %v1627 = vpack.c.bf16 %v1623, %v1622
  %v1628 = vpack.c.bf16 %v1625, %v1624
  %v1629 = vld [vmem:[%s1] sm:$0xff]
  %v1630 = vld [vmem:[%s1 + $0x8] sm:$0xff]
  %v1631 = vld [vmem:[%s1 + $0x10] sm:$0xff]
  %v1632 = vld [vmem:[%s1 + $0x18] sm:$0x33]
  %v1633 = vld [vmem:[%s333] sm:$0xff]
  %v1634 = vld [vmem:[%s333 + $0x8] sm:$0xff]
  %v1635 = vld [vmem:[%s333 + $0x10] sm:$0xff]
  %v1636 = vld [vmem:[%s333 + $0x18] sm:$0xff]
  %v1637 = vld [vmem:[%s333 + $0x20] sm:$0xff]
  %v1638 = vld [vmem:[%s333 + $0x28] sm:$0xff]
  %v1639 = vpack.c.bf16 %v1634, %v1633
  %v1640 = vpack.c.bf16 %v1636, %v1635
  %v1641 = vpack.c.bf16 %v1638, %v1637
  %v1642 = vld [vmem:[%s56] sm:$0xff]
  %v1643 = vld [vmem:[%s56 + $0x8] sm:$0xff]
  %v1644 = vld [vmem:[%s56 + $0x10] sm:$0xff]
  %v1645 = vld [vmem:[%s56 + $0x18] sm:$0x33]
  %v1650 = vunpack.c.l.b16 %v1642
  %v1651 = vunpack.c.h.b16 %v1642
  %v1652 = vunpack.c.l.b16 %v1643
  %v1653 = vunpack.c.h.b16 %v1643
  %v1654 = vunpack.c.l.b16 %v1644
  %v1655 = vunpack.c.h.b16 %v1644
  %v1656 = vunpack.c.l.b16 %v1645
  %v1657 = vunpack.c.h.b16 %v1645
  %v1658 = vpack.c.b16 %v1652, %v1650
  %v1659 = vpack.c.b16 %v1653, %v1651
  %v1660 = vpack.c.b16 %v1656, %v1654
  %v1661 = vpack.c.b16 %v1657, %v1655
  %v1665 = vsel %vm79, %v1639, 0
  %v1668 = vsel %vm79, %v1640, 0
  %v1671 = vsel %vm79, %v1641, 0
  %v1674 = vsel %vm89, %v1660, 0
  %v1677 = vsel %vm89, %v1661, 0
  %1679 = vmatpush.bf16.msra.mxu0 0
  %1680 = vmatpush.bf16.msra.mxu0 0
  %1681 = vmatpush.bf16.msra.mxu0 0
  %1682 = vmatpush.bf16.msra.mxu0 0
  %1683 = vmatpush.bf16.msra.mxu0 0
  %1684 = vmatpush.bf16.msra.mxu0 0
  %1685 = vmatpush.bf16.msra.mxu0 %v1674
  %1686 = vmatpush.bf16.msra.mxu0 %v1658
  %1687 = vmatmul.bf16.gmra.mxu0 %v1665
  %v1688 = vpop.f32.mrf.mxu0
  %v1689 = vadd.f32 0.0, %v1688
  %v1690 = vpop.f32.mrf.mxu0
  %v1691 = vadd.f32 0.0, %v1690
  %1692 = vmatmul.bf16.gmra.mxu0 %v1668
  %v1693 = vpop.f32.mrf.mxu0
  %v1694 = vadd.f32 0.0, %v1693
  %v1695 = vpop.f32.mrf.mxu0
  %v1696 = vadd.f32 0.0, %v1695
  %1697 = vmatmul.bf16.gmra.mxu0 %v1671
  %v1698 = vpop.f32.mrf.mxu0
  %v1699 = vadd.f32 0.0, %v1698
  %v1700 = vpop.f32.mrf.mxu0
  %v1701 = vadd.f32 0.0, %v1700
  %1702 = vdwg.mxu0
  %1703 = vmatpush.bf16.msra.mxu0 0
  %1704 = vmatpush.bf16.msra.mxu0 0
  %1705 = vmatpush.bf16.msra.mxu0 0
  %1706 = vmatpush.bf16.msra.mxu0 0
  %1707 = vmatpush.bf16.msra.mxu0 0
  %1708 = vmatpush.bf16.msra.mxu0 0
  %1709 = vmatpush.bf16.msra.mxu0 %v1677
  %1710 = vmatpush.bf16.msra.mxu0 %v1659
  %1711 = vmatmul.bf16.gmra.mxu0 %v1665
  %v1712 = vpop.f32.mrf.mxu0
  %v1713 = vadd.f32 0.0, %v1712
  %v1714 = vpop.f32.mrf.mxu0
  %v1715 = vadd.f32 0.0, %v1714
  %1716 = vmatmul.bf16.gmra.mxu0 %v1668
  %v1717 = vpop.f32.mrf.mxu0
  %v1718 = vadd.f32 0.0, %v1717
  %v1719 = vpop.f32.mrf.mxu0
  %v1720 = vadd.f32 0.0, %v1719
  %1721 = vmatmul.bf16.gmra.mxu0 %v1671
  %v1722 = vpop.f32.mrf.mxu0
  %v1723 = vadd.f32 0.0, %v1722
  %v1724 = vpop.f32.mrf.mxu0
  %v1725 = vadd.f32 0.0, %v1724
  %1726 = vdwg.mxu0
  %v1731 = vunpack.c.l.b16 %v1629
  %v1732 = vunpack.c.h.b16 %v1629
  %v1733 = vunpack.c.l.b16 %v1630
  %v1734 = vunpack.c.h.b16 %v1630
  %v1735 = vunpack.c.l.b16 %v1631
  %v1736 = vunpack.c.h.b16 %v1631
  %v1737 = vunpack.c.l.b16 %v1632
  %v1738 = vunpack.c.h.b16 %v1632
  %v1739 = vpack.c.b16 %v1733, %v1731
  %v1740 = vpack.c.b16 %v1734, %v1732
  %v1741 = vpack.c.b16 %v1737, %v1735
  %v1742 = vpack.c.b16 %v1738, %v1736
  %v1746 = vsel %vm79, %v1626, 0
  %v1749 = vsel %vm79, %v1627, 0
  %v1752 = vsel %vm79, %v1628, 0
  %v1755 = vsel %vm89, %v1741, 0
  %v1758 = vsel %vm89, %v1742, 0
  %1760 = vmatpush.bf16.msra.mxu0 0
  %1761 = vmatpush.bf16.msra.mxu0 0
  %1762 = vmatpush.bf16.msra.mxu0 0
  %1763 = vmatpush.bf16.msra.mxu0 0
  %1764 = vmatpush.bf16.msra.mxu0 0
  %1765 = vmatpush.bf16.msra.mxu0 0
  %1766 = vmatpush.bf16.msra.mxu0 %v1755
  %1767 = vmatpush.bf16.msra.mxu0 %v1739
  %1768 = vmatmul.bf16.gmra.mxu0 %v1746
  %v1769 = vpop.f32.mrf.mxu0
  %v1770 = vadd.f32 %v1689, %v1769
  %v1771 = vpop.f32.mrf.mxu0
  %v1772 = vadd.f32 %v1691, %v1771
  %1773 = vmatmul.bf16.gmra.mxu0 %v1749
  %v1774 = vpop.f32.mrf.mxu0
  %v1775 = vadd.f32 %v1694, %v1774
  %v1776 = vpop.f32.mrf.mxu0
  %v1777 = vadd.f32 %v1696, %v1776
  %1778 = vmatmul.bf16.gmra.mxu0 %v1752
  %v1779 = vpop.f32.mrf.mxu0
  %v1780 = vadd.f32 %v1699, %v1779
  %v1781 = vpop.f32.mrf.mxu0
  %v1782 = vadd.f32 %v1701, %v1781
  %1783 = vdwg.mxu0
  %1784 = vmatpush.bf16.msra.mxu0 0
  %1785 = vmatpush.bf16.msra.mxu0 0
  %1786 = vmatpush.bf16.msra.mxu0 0
  %1787 = vmatpush.bf16.msra.mxu0 0
  %1788 = vmatpush.bf16.msra.mxu0 0
  %1789 = vmatpush.bf16.msra.mxu0 0
  %1790 = vmatpush.bf16.msra.mxu0 %v1758
  %1791 = vmatpush.bf16.msra.mxu0 %v1740
  %1792 = vmatmul.bf16.gmra.mxu0 %v1746
  %v1793 = vpop.f32.mrf.mxu0
  %v1794 = vadd.f32 %v1713, %v1793
  %v1795 = vpop.f32.mrf.mxu0
  %v1796 = vadd.f32 %v1715, %v1795
  %1797 = vmatmul.bf16.gmra.mxu0 %v1749
  %v1798 = vpop.f32.mrf.mxu0
  %v1799 = vadd.f32 %v1718, %v1798
  %v1800 = vpop.f32.mrf.mxu0
  %v1801 = vadd.f32 %v1720, %v1800
  %1802 = vmatmul.bf16.gmra.mxu0 %v1752
  %v1803 = vpop.f32.mrf.mxu0
  %v1804 = vadd.f32 %v1723, %v1803
  %v1805 = vpop.f32.mrf.mxu0
  %v1806 = vadd.f32 %v1725, %v1805
  %1807 = vdwg.mxu0
  %v1808 = vld [vmem:[%s441] sm:$0xff]
  %v1809 = vld [vmem:[%s441 + $0x8] sm:$0xff]
  %v1810 = vld [vmem:[%s441 + $0x10] sm:$0xff]
  %v1811 = vld [vmem:[%s441 + $0x18] sm:$0xff]
  %v1812 = vld [vmem:[%s441 + $0x20] sm:$0xff]
  %v1813 = vld [vmem:[%s441 + $0x28] sm:$0xff]
  %v1814 = vpack.c.bf16 %v1809, %v1808
  %v1815 = vpack.c.bf16 %v1811, %v1810
  %v1816 = vpack.c.bf16 %v1813, %v1812
  %v1817 = vld [vmem:[%s235] sm:$0xff]
  %v1818 = vld [vmem:[%s235 + $0x8] sm:$0xff]
  %v1819 = vld [vmem:[%s235 + $0x10] sm:$0xff]
  %v1820 = vld [vmem:[%s235 + $0x18] sm:$0x33]
  %v1825 = vunpack.c.l.b16 %v1817
  %v1826 = vunpack.c.h.b16 %v1817
  %v1827 = vunpack.c.l.b16 %v1818
  %v1828 = vunpack.c.h.b16 %v1818
  %v1829 = vunpack.c.l.b16 %v1819
  %v1830 = vunpack.c.h.b16 %v1819
  %v1831 = vunpack.c.l.b16 %v1820
  %v1832 = vunpack.c.h.b16 %v1820
  %v1833 = vpack.c.b16 %v1827, %v1825
  %v1834 = vpack.c.b16 %v1828, %v1826
  %v1835 = vpack.c.b16 %v1831, %v1829
  %v1836 = vpack.c.b16 %v1832, %v1830
  %v1840 = vsel %vm79, %v1814, 0
  %v1843 = vsel %vm79, %v1815, 0
  %v1846 = vsel %vm79, %v1816, 0
  %v1849 = vsel %vm89, %v1835, 0
  %v1852 = vsel %vm89, %v1836, 0
  %1854 = vmatpush.bf16.msra.mxu0 0
  %1855 = vmatpush.bf16.msra.mxu0 0
  %1856 = vmatpush.bf16.msra.mxu0 0
  %1857 = vmatpush.bf16.msra.mxu0 0
  %1858 = vmatpush.bf16.msra.mxu0 0
  %1859 = vmatpush.bf16.msra.mxu0 0
  %1860 = vmatpush.bf16.msra.mxu0 %v1849
  %1861 = vmatpush.bf16.msra.mxu0 %v1833
  %1862 = vmatmul.bf16.gmra.mxu0 %v1840
  %v1863 = vpop.f32.mrf.mxu0
  %v1864 = vadd.f32 0.0, %v1863
  %v1865 = vpop.f32.mrf.mxu0
  %v1866 = vadd.f32 0.0, %v1865
  %1867 = vmatmul.bf16.gmra.mxu0 %v1843
  %v1868 = vpop.f32.mrf.mxu0
  %v1869 = vadd.f32 0.0, %v1868
  %v1870 = vpop.f32.mrf.mxu0
  %v1871 = vadd.f32 0.0, %v1870
  %1872 = vmatmul.bf16.gmra.mxu0 %v1846
  %v1873 = vpop.f32.mrf.mxu0
  %v1874 = vadd.f32 0.0, %v1873
  %v1875 = vpop.f32.mrf.mxu0
  %v1876 = vadd.f32 0.0, %v1875
  %1877 = vdwg.mxu0
  %1878 = vmatpush.bf16.msra.mxu0 0
  %1879 = vmatpush.bf16.msra.mxu0 0
  %1880 = vmatpush.bf16.msra.mxu0 0
  %1881 = vmatpush.bf16.msra.mxu0 0
  %1882 = vmatpush.bf16.msra.mxu0 0
  %1883 = vmatpush.bf16.msra.mxu0 0
  %1884 = vmatpush.bf16.msra.mxu0 %v1852
  %1885 = vmatpush.bf16.msra.mxu0 %v1834
  %1886 = vmatmul.bf16.gmra.mxu0 %v1840
  %v1887 = vpop.f32.mrf.mxu0
  %v1888 = vadd.f32 0.0, %v1887
  %v1889 = vpop.f32.mrf.mxu0
  %v1890 = vadd.f32 0.0, %v1889
  %1891 = vmatmul.bf16.gmra.mxu0 %v1843
  %v1892 = vpop.f32.mrf.mxu0
  %v1893 = vadd.f32 0.0, %v1892
  %v1894 = vpop.f32.mrf.mxu0
  %v1895 = vadd.f32 0.0, %v1894
  %1896 = vmatmul.bf16.gmra.mxu0 %v1846
  %v1897 = vpop.f32.mrf.mxu0
  %v1898 = vadd.f32 0.0, %v1897
  %v1899 = vpop.f32.mrf.mxu0
  %v1900 = vadd.f32 0.0, %v1899
  %1901 = vdwg.mxu0
  %v1902 = vadd.f32 %v1770, %v1864
  %v1903 = vadd.f32 %v1794, %v1888
  %v1904 = vadd.f32 %v1772, %v1866
  %v1905 = vadd.f32 %v1796, %v1890
  %v1906 = vadd.f32 %v1775, %v1869
  %v1907 = vadd.f32 %v1799, %v1893
  %v1908 = vadd.f32 %v1777, %v1871
  %v1909 = vadd.f32 %v1801, %v1895
  %v1910 = vadd.f32 %v1780, %v1874
  %v1911 = vadd.f32 %v1804, %v1898
  %v1912 = vadd.f32 %v1782, %v1876
  %v1913 = vadd.f32 %v1806, %v1900
  %v1914 = vld [vmem:[%s1198] sm:$0xff]
  %v1915 = vld [vmem:[%s1198 + $0x8] sm:$0xff]
  %v1916 = vld [vmem:[%s1198 + $0x10] sm:$0xff]
  %v1917 = vld [vmem:[%s1198 + $0x18] sm:$0xff]
  %v1918 = vld [vmem:[%s1198 + $0x20] sm:$0xff]
  %v1919 = vld [vmem:[%s1198 + $0x28] sm:$0xff]
  %v1920 = vpack.c.bf16 %v1915, %v1914
  %v1921 = vpack.c.bf16 %v1917, %v1916
  %v1922 = vpack.c.bf16 %v1919, %v1918
  %v1923 = vld [vmem:[%s343] sm:$0xff]
  %v1924 = vld [vmem:[%s343 + $0x8] sm:$0xff]
  %v1925 = vld [vmem:[%s343 + $0x10] sm:$0xff]
  %v1926 = vld [vmem:[%s343 + $0x18] sm:$0x33]
  %v1931 = vunpack.c.l.b16 %v1923
  %v1932 = vunpack.c.h.b16 %v1923
  %v1933 = vunpack.c.l.b16 %v1924
  %v1934 = vunpack.c.h.b16 %v1924
  %v1935 = vunpack.c.l.b16 %v1925
  %v1936 = vunpack.c.h.b16 %v1925
  %v1937 = vunpack.c.l.b16 %v1926
  %v1938 = vunpack.c.h.b16 %v1926
  %v1939 = vpack.c.b16 %v1933, %v1931
  %v1940 = vpack.c.b16 %v1934, %v1932
  %v1941 = vpack.c.b16 %v1937, %v1935
  %v1942 = vpack.c.b16 %v1938, %v1936
  %v1946 = vsel %vm79, %v1920, 0
  %v1949 = vsel %vm79, %v1921, 0
  %v1952 = vsel %vm79, %v1922, 0
  %v1955 = vsel %vm89, %v1941, 0
  %v1958 = vsel %vm89, %v1942, 0
  %1960 = vmatpush.bf16.msra.mxu0 0
  %1961 = vmatpush.bf16.msra.mxu0 0
  %1962 = vmatpush.bf16.msra.mxu0 0
  %1963 = vmatpush.bf16.msra.mxu0 0
  %1964 = vmatpush.bf16.msra.mxu0 0
  %1965 = vmatpush.bf16.msra.mxu0 0
  %1966 = vmatpush.bf16.msra.mxu0 %v1955
  %1967 = vmatpush.bf16.msra.mxu0 %v1939
  %1968 = vmatmul.bf16.gmra.mxu0 %v1946
  %v1969 = vpop.f32.mrf.mxu0
  %v1970 = vadd.f32 0.0, %v1969
  %v1971 = vpop.f32.mrf.mxu0
  %v1972 = vadd.f32 0.0, %v1971
  %1973 = vmatmul.bf16.gmra.mxu0 %v1949
  %v1974 = vpop.f32.mrf.mxu0
  %v1975 = vadd.f32 0.0, %v1974
  %v1976 = vpop.f32.mrf.mxu0
  %v1977 = vadd.f32 0.0, %v1976
  %1978 = vmatmul.bf16.gmra.mxu0 %v1952
  %v1979 = vpop.f32.mrf.mxu0
  %v1980 = vadd.f32 0.0, %v1979
  %v1981 = vpop.f32.mrf.mxu0
  %v1982 = vadd.f32 0.0, %v1981
  %1983 = vdwg.mxu0
  %1984 = vmatpush.bf16.msra.mxu0 0
  %1985 = vmatpush.bf16.msra.mxu0 0
  %1986 = vmatpush.bf16.msra.mxu0 0
  %1987 = vmatpush.bf16.msra.mxu0 0
  %1988 = vmatpush.bf16.msra.mxu0 0
  %1989 = vmatpush.bf16.msra.mxu0 0
  %1990 = vmatpush.bf16.msra.mxu0 %v1958
  %1991 = vmatpush.bf16.msra.mxu0 %v1940
  %1992 = vmatmul.bf16.gmra.mxu0 %v1946
  %v1993 = vpop.f32.mrf.mxu0
  %v1994 = vadd.f32 0.0, %v1993
  %v1995 = vpop.f32.mrf.mxu0
  %v1996 = vadd.f32 0.0, %v1995
  %1997 = vmatmul.bf16.gmra.mxu0 %v1949
  %v1998 = vpop.f32.mrf.mxu0
  %v1999 = vadd.f32 0.0, %v1998
  %v2000 = vpop.f32.mrf.mxu0
  %v2001 = vadd.f32 0.0, %v2000
  %2002 = vmatmul.bf16.gmra.mxu0 %v1952
  %v2003 = vpop.f32.mrf.mxu0
  %v2004 = vadd.f32 0.0, %v2003
  %v2005 = vpop.f32.mrf.mxu0
  %v2006 = vadd.f32 0.0, %v2005
  %2007 = vdwg.mxu0
  %v2008 = vadd.f32 %v1902, %v1970
  %v2009 = vadd.f32 %v1903, %v1994
  %v2010 = vadd.f32 %v1904, %v1972
  %v2011 = vadd.f32 %v1905, %v1996
  %v2012 = vadd.f32 %v1906, %v1975
  %v2013 = vadd.f32 %v1907, %v1999
  %v2014 = vadd.f32 %v1908, %v1977
  %v2015 = vadd.f32 %v1909, %v2001
  %v2016 = vadd.f32 %v1910, %v1980
  %v2017 = vadd.f32 %v1911, %v2004
  %v2018 = vadd.f32 %v1912, %v1982
  %v2019 = vadd.f32 %v1913, %v2006
  %s2020 = scalar_lea.vmem %s0, 288
  %v2021 = vld [vmem:[%s2020] sm:$0xff]
  %v2022 = vld [vmem:[%s2020 + $0x8] sm:$0xff]
  %v2023 = vld [vmem:[%s2020 + $0x10] sm:$0xff]
  %v2024 = vld [vmem:[%s2020 + $0x18] sm:$0xff]
  %v2025 = vld [vmem:[%s2020 + $0x20] sm:$0xff]
  %v2026 = vld [vmem:[%s2020 + $0x28] sm:$0xff]
  %v2027 = vpack.c.bf16 %v2022, %v2021
  %v2028 = vpack.c.bf16 %v2024, %v2023
  %v2029 = vpack.c.bf16 %v2026, %v2025
  %v2030 = vld [vmem:[%s451] sm:$0xff]
  %v2031 = vld [vmem:[%s451 + $0x8] sm:$0xff]
  %v2032 = vld [vmem:[%s451 + $0x10] sm:$0xff]
  %v2033 = vld [vmem:[%s451 + $0x18] sm:$0x33]
  %v2038 = vunpack.c.l.b16 %v2030
  %v2039 = vunpack.c.h.b16 %v2030
  %v2040 = vunpack.c.l.b16 %v2031
  %v2041 = vunpack.c.h.b16 %v2031
  %v2042 = vunpack.c.l.b16 %v2032
  %v2043 = vunpack.c.h.b16 %v2032
  %v2044 = vunpack.c.l.b16 %v2033
  %v2045 = vunpack.c.h.b16 %v2033
  %v2046 = vpack.c.b16 %v2040, %v2038
  %v2047 = vpack.c.b16 %v2041, %v2039
  %v2048 = vpack.c.b16 %v2044, %v2042
  %v2049 = vpack.c.b16 %v2045, %v2043
  %v2053 = vsel %vm79, %v2027, 0
  %v2056 = vsel %vm79, %v2028, 0
  %v2059 = vsel %vm79, %v2029, 0
  %v2062 = vsel %vm89, %v2048, 0
  %v2065 = vsel %vm89, %v2049, 0
  %2067 = vmatpush.bf16.msra.mxu0 0
  %2068 = vmatpush.bf16.msra.mxu0 0
  %2069 = vmatpush.bf16.msra.mxu0 0
  %2070 = vmatpush.bf16.msra.mxu0 0
  %2071 = vmatpush.bf16.msra.mxu0 0
  %2072 = vmatpush.bf16.msra.mxu0 0
  %2073 = vmatpush.bf16.msra.mxu0 %v2062
  %2074 = vmatpush.bf16.msra.mxu0 %v2046
  %2075 = vmatmul.bf16.gmra.mxu0 %v2053
  %v2076 = vpop.f32.mrf.mxu0
  %v2077 = vadd.f32 0.0, %v2076
  %v2078 = vpop.f32.mrf.mxu0
  %v2079 = vadd.f32 0.0, %v2078
  %2080 = vmatmul.bf16.gmra.mxu0 %v2056
  %v2081 = vpop.f32.mrf.mxu0
  %v2082 = vadd.f32 0.0, %v2081
  %v2083 = vpop.f32.mrf.mxu0
  %v2084 = vadd.f32 0.0, %v2083
  %2085 = vmatmul.bf16.gmra.mxu0 %v2059
  %v2086 = vpop.f32.mrf.mxu0
  %v2087 = vadd.f32 0.0, %v2086
  %v2088 = vpop.f32.mrf.mxu0
  %v2089 = vadd.f32 0.0, %v2088
  %2090 = vdwg.mxu0
  %2091 = vmatpush.bf16.msra.mxu0 0
  %2092 = vmatpush.bf16.msra.mxu0 0
  %2093 = vmatpush.bf16.msra.mxu0 0
  %2094 = vmatpush.bf16.msra.mxu0 0
  %2095 = vmatpush.bf16.msra.mxu0 0
  %2096 = vmatpush.bf16.msra.mxu0 0
  %2097 = vmatpush.bf16.msra.mxu0 %v2065
  %2098 = vmatpush.bf16.msra.mxu0 %v2047
  %2099 = vmatmul.bf16.gmra.mxu0 %v2053
  %v2100 = vpop.f32.mrf.mxu0
  %v2101 = vadd.f32 0.0, %v2100
  %v2102 = vpop.f32.mrf.mxu0
  %v2103 = vadd.f32 0.0, %v2102
  %2104 = vmatmul.bf16.gmra.mxu0 %v2056
  %v2105 = vpop.f32.mrf.mxu0
  %v2106 = vadd.f32 0.0, %v2105
  %v2107 = vpop.f32.mrf.mxu0
  %v2108 = vadd.f32 0.0, %v2107
  %2109 = vmatmul.bf16.gmra.mxu0 %v2059
  %v2110 = vpop.f32.mrf.mxu0
  %v2111 = vadd.f32 0.0, %v2110
  %v2112 = vpop.f32.mrf.mxu0
  %v2113 = vadd.f32 0.0, %v2112
  %2114 = vdwg.mxu0
  %v2115 = vadd.f32 %v2008, %v2077
  %v2116 = vadd.f32 %v2009, %v2101
  %v2117 = vadd.f32 %v2010, %v2079
  %v2118 = vadd.f32 %v2011, %v2103
  %v2119 = vadd.f32 %v2012, %v2082
  %v2120 = vadd.f32 %v2013, %v2106
  %v2121 = vadd.f32 %v2014, %v2084
  %v2122 = vadd.f32 %v2015, %v2108
  %v2123 = vadd.f32 %v2016, %v2087
  %v2124 = vadd.f32 %v2017, %v2111
  %v2125 = vadd.f32 %v2018, %v2089
  %v2126 = vadd.f32 %v2019, %v2113
  %v2127 = vld [vmem:[%s549] sm:$0xff]
  %v2128 = vld [vmem:[%s549 + $0x8] sm:$0xff]
  %v2129 = vld [vmem:[%s549 + $0x10] sm:$0xff]
  %v2130 = vld [vmem:[%s549 + $0x18] sm:$0x33]
  %v2131 = vld [vmem:[%s554] sm:$0xff]
  %v2132 = vld [vmem:[%s554 + $0x8] sm:$0xff]
  %v2133 = vld [vmem:[%s554 + $0x10] sm:$0xff]
  %v2134 = vld [vmem:[%s554 + $0x18] sm:$0x33]
  %v2139 = vunpack.c.l.b16 %v2131
  %v2140 = vunpack.c.h.b16 %v2131
  %v2141 = vunpack.c.l.b16 %v2132
  %v2142 = vunpack.c.h.b16 %v2132
  %v2143 = vunpack.c.l.b16 %v2133
  %v2144 = vunpack.c.h.b16 %v2133
  %v2145 = vunpack.c.l.b16 %v2134
  %v2146 = vunpack.c.h.b16 %v2134
  %v2147 = vpack.c.b16 %v2141, %v2139
  %v2148 = vpack.c.b16 %v2142, %v2140
  %v2149 = vpack.c.b16 %v2145, %v2143
  %v2150 = vpack.c.b16 %v2146, %v2144
  %v2154 = vsel %vm89, %v2149, 0
  %v2157 = vsel %vm89, %v2150, 0
  %2159 = vmatpush.bf16.msra.mxu0 0
  %2160 = vmatpush.bf16.msra.mxu0 0
  %2161 = vmatpush.bf16.msra.mxu0 0
  %2162 = vmatpush.bf16.msra.mxu0 0
  %2163 = vmatpush.bf16.msra.mxu0 0
  %2164 = vmatpush.bf16.msra.mxu0 0
  %2165 = vmatpush.bf16.msra.mxu0 %v2154
  %2166 = vmatpush.bf16.msra.mxu0 %v2147
  %2167 = vmatmul.bf16.gmra.mxu0 %v1665
  %v2168 = vpop.f32.mrf.mxu0
  %v2169 = vadd.f32 0.0, %v2168
  %v2170 = vpop.f32.mrf.mxu0
  %v2171 = vadd.f32 0.0, %v2170
  %2172 = vmatmul.bf16.gmra.mxu0 %v1668
  %v2173 = vpop.f32.mrf.mxu0
  %v2174 = vadd.f32 0.0, %v2173
  %v2175 = vpop.f32.mrf.mxu0
  %v2176 = vadd.f32 0.0, %v2175
  %2177 = vmatmul.bf16.gmra.mxu0 %v1671
  %v2178 = vpop.f32.mrf.mxu0
  %v2179 = vadd.f32 0.0, %v2178
  %v2180 = vpop.f32.mrf.mxu0
  %v2181 = vadd.f32 0.0, %v2180
  %2182 = vdwg.mxu0
  %2183 = vmatpush.bf16.msra.mxu0 0
  %2184 = vmatpush.bf16.msra.mxu0 0
  %2185 = vmatpush.bf16.msra.mxu0 0
  %2186 = vmatpush.bf16.msra.mxu0 0
  %2187 = vmatpush.bf16.msra.mxu0 0
  %2188 = vmatpush.bf16.msra.mxu0 0
  %2189 = vmatpush.bf16.msra.mxu0 %v2157
  %2190 = vmatpush.bf16.msra.mxu0 %v2148
  %2191 = vmatmul.bf16.gmra.mxu0 %v1665
  %v2192 = vpop.f32.mrf.mxu0
  %v2193 = vadd.f32 0.0, %v2192
  %v2194 = vpop.f32.mrf.mxu0
  %v2195 = vadd.f32 0.0, %v2194
  %2196 = vmatmul.bf16.gmra.mxu0 %v1668
  %v2197 = vpop.f32.mrf.mxu0
  %v2198 = vadd.f32 0.0, %v2197
  %v2199 = vpop.f32.mrf.mxu0
  %v2200 = vadd.f32 0.0, %v2199
  %2201 = vmatmul.bf16.gmra.mxu0 %v1671
  %v2202 = vpop.f32.mrf.mxu0
  %v2203 = vadd.f32 0.0, %v2202
  %v2204 = vpop.f32.mrf.mxu0
  %v2205 = vadd.f32 0.0, %v2204
  %2206 = vdwg.mxu0
  %v2211 = vunpack.c.l.b16 %v2127
  %v2212 = vunpack.c.h.b16 %v2127
  %v2213 = vunpack.c.l.b16 %v2128
  %v2214 = vunpack.c.h.b16 %v2128
  %v2215 = vunpack.c.l.b16 %v2129
  %v2216 = vunpack.c.h.b16 %v2129
  %v2217 = vunpack.c.l.b16 %v2130
  %v2218 = vunpack.c.h.b16 %v2130
  %v2219 = vpack.c.b16 %v2213, %v2211
  %v2220 = vpack.c.b16 %v2214, %v2212
  %v2221 = vpack.c.b16 %v2217, %v2215
  %v2222 = vpack.c.b16 %v2218, %v2216
  %v2226 = vsel %vm89, %v2221, 0
  %v2229 = vsel %vm89, %v2222, 0
  %2231 = vmatpush.bf16.msra.mxu0 0
  %2232 = vmatpush.bf16.msra.mxu0 0
  %2233 = vmatpush.bf16.msra.mxu0 0
  %2234 = vmatpush.bf16.msra.mxu0 0
  %2235 = vmatpush.bf16.msra.mxu0 0
  %2236 = vmatpush.bf16.msra.mxu0 0
  %2237 = vmatpush.bf16.msra.mxu0 %v2226
  %2238 = vmatpush.bf16.msra.mxu0 %v2219
  %2239 = vmatmul.bf16.gmra.mxu0 %v1746
  %v2240 = vpop.f32.mrf.mxu0
  %v2241 = vadd.f32 %v2169, %v2240
  %v2242 = vpop.f32.mrf.mxu0
  %v2243 = vadd.f32 %v2171, %v2242
  %2244 = vmatmul.bf16.gmra.mxu0 %v1749
  %v2245 = vpop.f32.mrf.mxu0
  %v2246 = vadd.f32 %v2174, %v2245
  %v2247 = vpop.f32.mrf.mxu0
  %v2248 = vadd.f32 %v2176, %v2247
  %2249 = vmatmul.bf16.gmra.mxu0 %v1752
  %v2250 = vpop.f32.mrf.mxu0
  %v2251 = vadd.f32 %v2179, %v2250
  %v2252 = vpop.f32.mrf.mxu0
  %v2253 = vadd.f32 %v2181, %v2252
  %2254 = vdwg.mxu0
  %2255 = vmatpush.bf16.msra.mxu0 0
  %2256 = vmatpush.bf16.msra.mxu0 0
  %2257 = vmatpush.bf16.msra.mxu0 0
  %2258 = vmatpush.bf16.msra.mxu0 0
  %2259 = vmatpush.bf16.msra.mxu0 0
  %2260 = vmatpush.bf16.msra.mxu0 0
  %2261 = vmatpush.bf16.msra.mxu0 %v2229
  %2262 = vmatpush.bf16.msra.mxu0 %v2220
  %2263 = vmatmul.bf16.gmra.mxu0 %v1746
  %v2264 = vpop.f32.mrf.mxu0
  %v2265 = vadd.f32 %v2193, %v2264
  %v2266 = vpop.f32.mrf.mxu0
  %v2267 = vadd.f32 %v2195, %v2266
  %2268 = vmatmul.bf16.gmra.mxu0 %v1749
  %v2269 = vpop.f32.mrf.mxu0
  %v2270 = vadd.f32 %v2198, %v2269
  %v2271 = vpop.f32.mrf.mxu0
  %v2272 = vadd.f32 %v2200, %v2271
  %2273 = vmatmul.bf16.gmra.mxu0 %v1752
  %v2274 = vpop.f32.mrf.mxu0
  %v2275 = vadd.f32 %v2203, %v2274
  %v2276 = vpop.f32.mrf.mxu0
  %v2277 = vadd.f32 %v2205, %v2276
  %2278 = vdwg.mxu0
  %v2279 = vld [vmem:[%s703] sm:$0xff]
  %v2280 = vld [vmem:[%s703 + $0x8] sm:$0xff]
  %v2281 = vld [vmem:[%s703 + $0x10] sm:$0xff]
  %v2282 = vld [vmem:[%s703 + $0x18] sm:$0x33]
  %v2287 = vunpack.c.l.b16 %v2279
  %v2288 = vunpack.c.h.b16 %v2279
  %v2289 = vunpack.c.l.b16 %v2280
  %v2290 = vunpack.c.h.b16 %v2280
  %v2291 = vunpack.c.l.b16 %v2281
  %v2292 = vunpack.c.h.b16 %v2281
  %v2293 = vunpack.c.l.b16 %v2282
  %v2294 = vunpack.c.h.b16 %v2282
  %v2295 = vpack.c.b16 %v2289, %v2287
  %v2296 = vpack.c.b16 %v2290, %v2288
  %v2297 = vpack.c.b16 %v2293, %v2291
  %v2298 = vpack.c.b16 %v2294, %v2292
  %v2302 = vsel %vm89, %v2297, 0
  %v2305 = vsel %vm89, %v2298, 0
  %2307 = vmatpush.bf16.msra.mxu0 0
  %2308 = vmatpush.bf16.msra.mxu0 0
  %2309 = vmatpush.bf16.msra.mxu0 0
  %2310 = vmatpush.bf16.msra.mxu0 0
  %2311 = vmatpush.bf16.msra.mxu0 0
  %2312 = vmatpush.bf16.msra.mxu0 0
  %2313 = vmatpush.bf16.msra.mxu0 %v2302
  %2314 = vmatpush.bf16.msra.mxu0 %v2295
  %2315 = vmatmul.bf16.gmra.mxu0 %v1840
  %v2316 = vpop.f32.mrf.mxu0
  %v2317 = vadd.f32 0.0, %v2316
  %v2318 = vpop.f32.mrf.mxu0
  %v2319 = vadd.f32 0.0, %v2318
  %2320 = vmatmul.bf16.gmra.mxu0 %v1843
  %v2321 = vpop.f32.mrf.mxu0
  %v2322 = vadd.f32 0.0, %v2321
  %v2323 = vpop.f32.mrf.mxu0
  %v2324 = vadd.f32 0.0, %v2323
  %2325 = vmatmul.bf16.gmra.mxu0 %v1846
  %v2326 = vpop.f32.mrf.mxu0
  %v2327 = vadd.f32 0.0, %v2326
  %v2328 = vpop.f32.mrf.mxu0
  %v2329 = vadd.f32 0.0, %v2328
  %2330 = vdwg.mxu0
  %2331 = vmatpush.bf16.msra.mxu0 0
  %2332 = vmatpush.bf16.msra.mxu0 0
  %2333 = vmatpush.bf16.msra.mxu0 0
  %2334 = vmatpush.bf16.msra.mxu0 0
  %2335 = vmatpush.bf16.msra.mxu0 0
  %2336 = vmatpush.bf16.msra.mxu0 0
  %2337 = vmatpush.bf16.msra.mxu0 %v2305
  %2338 = vmatpush.bf16.msra.mxu0 %v2296
  %2339 = vmatmul.bf16.gmra.mxu0 %v1840
  %v2340 = vpop.f32.mrf.mxu0
  %v2341 = vadd.f32 0.0, %v2340
  %v2342 = vpop.f32.mrf.mxu0
  %v2343 = vadd.f32 0.0, %v2342
  %2344 = vmatmul.bf16.gmra.mxu0 %v1843
  %v2345 = vpop.f32.mrf.mxu0
  %v2346 = vadd.f32 0.0, %v2345
  %v2347 = vpop.f32.mrf.mxu0
  %v2348 = vadd.f32 0.0, %v2347
  %2349 = vmatmul.bf16.gmra.mxu0 %v1846
  %v2350 = vpop.f32.mrf.mxu0
  %v2351 = vadd.f32 0.0, %v2350
  %v2352 = vpop.f32.mrf.mxu0
  %v2353 = vadd.f32 0.0, %v2352
  %2354 = vdwg.mxu0
  %v2355 = vadd.f32 %v2241, %v2317
  %v2356 = vadd.f32 %v2265, %v2341
  %v2357 = vadd.f32 %v2243, %v2319
  %v2358 = vadd.f32 %v2267, %v2343
  %v2359 = vadd.f32 %v2246, %v2322
  %v2360 = vadd.f32 %v2270, %v2346
  %v2361 = vadd.f32 %v2248, %v2324
  %v2362 = vadd.f32 %v2272, %v2348
  %v2363 = vadd.f32 %v2251, %v2327
  %v2364 = vadd.f32 %v2275, %v2351
  %v2365 = vadd.f32 %v2253, %v2329
  %v2366 = vadd.f32 %v2277, %v2353
  %v2367 = vld [vmem:[%s792] sm:$0xff]
  %v2368 = vld [vmem:[%s792 + $0x8] sm:$0xff]
  %v2369 = vld [vmem:[%s792 + $0x10] sm:$0xff]
  %v2370 = vld [vmem:[%s792 + $0x18] sm:$0x33]
  %v2375 = vunpack.c.l.b16 %v2367
  %v2376 = vunpack.c.h.b16 %v2367
  %v2377 = vunpack.c.l.b16 %v2368
  %v2378 = vunpack.c.h.b16 %v2368
  %v2379 = vunpack.c.l.b16 %v2369
  %v2380 = vunpack.c.h.b16 %v2369
  %v2381 = vunpack.c.l.b16 %v2370
  %v2382 = vunpack.c.h.b16 %v2370
  %v2383 = vpack.c.b16 %v2377, %v2375
  %v2384 = vpack.c.b16 %v2378, %v2376
  %v2385 = vpack.c.b16 %v2381, %v2379
  %v2386 = vpack.c.b16 %v2382, %v2380
  %v2390 = vsel %vm89, %v2385, 0
  %v2393 = vsel %vm89, %v2386, 0
  %2395 = vmatpush.bf16.msra.mxu0 0
  %2396 = vmatpush.bf16.msra.mxu0 0
  %2397 = vmatpush.bf16.msra.mxu0 0
  %2398 = vmatpush.bf16.msra.mxu0 0
  %2399 = vmatpush.bf16.msra.mxu0 0
  %2400 = vmatpush.bf16.msra.mxu0 0
  %2401 = vmatpush.bf16.msra.mxu0 %v2390
  %2402 = vmatpush.bf16.msra.mxu0 %v2383
  %2403 = vmatmul.bf16.gmra.mxu0 %v1946
  %v2404 = vpop.f32.mrf.mxu0
  %v2405 = vadd.f32 0.0, %v2404
  %v2406 = vpop.f32.mrf.mxu0
  %v2407 = vadd.f32 0.0, %v2406
  %2408 = vmatmul.bf16.gmra.mxu0 %v1949
  %v2409 = vpop.f32.mrf.mxu0
  %v2410 = vadd.f32 0.0, %v2409
  %v2411 = vpop.f32.mrf.mxu0
  %v2412 = vadd.f32 0.0, %v2411
  %2413 = vmatmul.bf16.gmra.mxu0 %v1952
  %v2414 = vpop.f32.mrf.mxu0
  %v2415 = vadd.f32 0.0, %v2414
  %v2416 = vpop.f32.mrf.mxu0
  %v2417 = vadd.f32 0.0, %v2416
  %2418 = vdwg.mxu0
  %2419 = vmatpush.bf16.msra.mxu0 0
  %2420 = vmatpush.bf16.msra.mxu0 0
  %2421 = vmatpush.bf16.msra.mxu0 0
  %2422 = vmatpush.bf16.msra.mxu0 0
  %2423 = vmatpush.bf16.msra.mxu0 0
  %2424 = vmatpush.bf16.msra.mxu0 0
  %2425 = vmatpush.bf16.msra.mxu0 %v2393
  %2426 = vmatpush.bf16.msra.mxu0 %v2384
  %2427 = vmatmul.bf16.gmra.mxu0 %v1946
  %v2428 = vpop.f32.mrf.mxu0
  %v2429 = vadd.f32 0.0, %v2428
  %v2430 = vpop.f32.mrf.mxu0
  %v2431 = vadd.f32 0.0, %v2430
  %2432 = vmatmul.bf16.gmra.mxu0 %v1949
  %v2433 = vpop.f32.mrf.mxu0
  %v2434 = vadd.f32 0.0, %v2433
  %v2435 = vpop.f32.mrf.mxu0
  %v2436 = vadd.f32 0.0, %v2435
  %2437 = vmatmul.bf16.gmra.mxu0 %v1952
  %v2438 = vpop.f32.mrf.mxu0
  %v2439 = vadd.f32 0.0, %v2438
  %v2440 = vpop.f32.mrf.mxu0
  %v2441 = vadd.f32 0.0, %v2440
  %2442 = vdwg.mxu0
  %v2443 = vadd.f32 %v2355, %v2405
  %v2444 = vadd.f32 %v2356, %v2429
  %v2445 = vadd.f32 %v2357, %v2407
  %v2446 = vadd.f32 %v2358, %v2431
  %v2447 = vadd.f32 %v2359, %v2410
  %v2448 = vadd.f32 %v2360, %v2434
  %v2449 = vadd.f32 %v2361, %v2412
  %v2450 = vadd.f32 %v2362, %v2436
  %v2451 = vadd.f32 %v2363, %v2415
  %v2452 = vadd.f32 %v2364, %v2439
  %v2453 = vadd.f32 %v2365, %v2417
  %v2454 = vadd.f32 %v2366, %v2441
  %v2455 = vld [vmem:[%s881] sm:$0xff]
  %v2456 = vld [vmem:[%s881 + $0x8] sm:$0xff]
  %v2457 = vld [vmem:[%s881 + $0x10] sm:$0xff]
  %v2458 = vld [vmem:[%s881 + $0x18] sm:$0x33]
  %v2463 = vunpack.c.l.b16 %v2455
  %v2464 = vunpack.c.h.b16 %v2455
  %v2465 = vunpack.c.l.b16 %v2456
  %v2466 = vunpack.c.h.b16 %v2456
  %v2467 = vunpack.c.l.b16 %v2457
  %v2468 = vunpack.c.h.b16 %v2457
  %v2469 = vunpack.c.l.b16 %v2458
  %v2470 = vunpack.c.h.b16 %v2458
  %v2471 = vpack.c.b16 %v2465, %v2463
  %v2472 = vpack.c.b16 %v2466, %v2464
  %v2473 = vpack.c.b16 %v2469, %v2467
  %v2474 = vpack.c.b16 %v2470, %v2468
  %v2478 = vsel %vm89, %v2473, 0
  %v2481 = vsel %vm89, %v2474, 0
  %2483 = vmatpush.bf16.msra.mxu0 0
  %2484 = vmatpush.bf16.msra.mxu0 0
  %2485 = vmatpush.bf16.msra.mxu0 0
  %2486 = vmatpush.bf16.msra.mxu0 0
  %2487 = vmatpush.bf16.msra.mxu0 0
  %2488 = vmatpush.bf16.msra.mxu0 0
  %2489 = vmatpush.bf16.msra.mxu0 %v2478
  %2490 = vmatpush.bf16.msra.mxu0 %v2471
  %2491 = vmatmul.bf16.gmra.mxu0 %v2053
  %v2492 = vpop.f32.mrf.mxu0
  %v2493 = vadd.f32 0.0, %v2492
  %v2494 = vpop.f32.mrf.mxu0
  %v2495 = vadd.f32 0.0, %v2494
  %2496 = vmatmul.bf16.gmra.mxu0 %v2056
  %v2497 = vpop.f32.mrf.mxu0
  %v2498 = vadd.f32 0.0, %v2497
  %v2499 = vpop.f32.mrf.mxu0
  %v2500 = vadd.f32 0.0, %v2499
  %2501 = vmatmul.bf16.gmra.mxu0 %v2059
  %v2502 = vpop.f32.mrf.mxu0
  %v2503 = vadd.f32 0.0, %v2502
  %v2504 = vpop.f32.mrf.mxu0
  %v2505 = vadd.f32 0.0, %v2504
  %2506 = vdwg.mxu0
  %2507 = vmatpush.bf16.msra.mxu0 0
  %2508 = vmatpush.bf16.msra.mxu0 0
  %2509 = vmatpush.bf16.msra.mxu0 0
  %2510 = vmatpush.bf16.msra.mxu0 0
  %2511 = vmatpush.bf16.msra.mxu0 0
  %2512 = vmatpush.bf16.msra.mxu0 0
  %2513 = vmatpush.bf16.msra.mxu0 %v2481
  %2514 = vmatpush.bf16.msra.mxu0 %v2472
  %2515 = vmatmul.bf16.gmra.mxu0 %v2053
  %v2516 = vpop.f32.mrf.mxu0
  %v2517 = vadd.f32 0.0, %v2516
  %v2518 = vpop.f32.mrf.mxu0
  %v2519 = vadd.f32 0.0, %v2518
  %2520 = vmatmul.bf16.gmra.mxu0 %v2056
  %v2521 = vpop.f32.mrf.mxu0
  %v2522 = vadd.f32 0.0, %v2521
  %v2523 = vpop.f32.mrf.mxu0
  %v2524 = vadd.f32 0.0, %v2523
  %2525 = vmatmul.bf16.gmra.mxu0 %v2059
  %v2526 = vpop.f32.mrf.mxu0
  %v2527 = vadd.f32 0.0, %v2526
  %v2528 = vpop.f32.mrf.mxu0
  %v2529 = vadd.f32 0.0, %v2528
  %2530 = vdwg.mxu0
  %v2531 = vadd.f32 %v2443, %v2493
  %v2532 = vadd.f32 %v2444, %v2517
  %v2533 = vadd.f32 %v2445, %v2495
  %v2534 = vadd.f32 %v2446, %v2519
  %v2535 = vadd.f32 %v2447, %v2498
  %v2536 = vadd.f32 %v2448, %v2522
  %v2537 = vadd.f32 %v2449, %v2500
  %v2538 = vadd.f32 %v2450, %v2524
  %v2539 = vadd.f32 %v2451, %v2503
  %v2540 = vadd.f32 %v2452, %v2527
  %v2541 = vadd.f32 %v2453, %v2505
  %v2542 = vadd.f32 %v2454, %v2529
  %v2543 = vmax.f32 %v2115, %v2531
  %v2544 = vmax.f32 %v2116, %v2532
  %v2545 = vmax.f32 %v2117, %v2533
  %v2546 = vmax.f32 %v2118, %v2534
  %v2547 = vmax.f32 %v2119, %v2535
  %v2548 = vmax.f32 %v2120, %v2536
  %v2549 = vmax.f32 %v2121, %v2537
  %v2550 = vmax.f32 %v2122, %v2538
  %v2551 = vmax.f32 %v2123, %v2539
  %v2552 = vmax.f32 %v2124, %v2540
  %v2553 = vmax.f32 %v2125, %v2541
  %v2554 = vmax.f32 %v2126, %v2542
  %2555 = vmatpush.bf16.msra.mxu0 0
  %2556 = vmatpush.bf16.msra.mxu0 0
  %2557 = vmatpush.bf16.msra.mxu0 0
  %2558 = vmatpush.bf16.msra.mxu0 0
  %2559 = vmatpush.bf16.msra.mxu0 0
  %2560 = vmatpush.bf16.msra.mxu0 0
  %2561 = vmatpush.bf16.msra.mxu0 %v1674
  %2562 = vmatpush.bf16.msra.mxu0 %v1658
  %2563 = vmatmul.bf16.gmra.mxu0 %v1840
  %v2564 = vpop.f32.mrf.mxu0
  %v2565 = vadd.f32 0.0, %v2564
  %v2566 = vpop.f32.mrf.mxu0
  %v2567 = vadd.f32 0.0, %v2566
  %2568 = vmatmul.bf16.gmra.mxu0 %v1843
  %v2569 = vpop.f32.mrf.mxu0
  %v2570 = vadd.f32 0.0, %v2569
  %v2571 = vpop.f32.mrf.mxu0
  %v2572 = vadd.f32 0.0, %v2571
  %2573 = vmatmul.bf16.gmra.mxu0 %v1846
  %v2574 = vpop.f32.mrf.mxu0
  %v2575 = vadd.f32 0.0, %v2574
  %v2576 = vpop.f32.mrf.mxu0
  %v2577 = vadd.f32 0.0, %v2576
  %2578 = vdwg.mxu0
  %2579 = vmatpush.bf16.msra.mxu0 0
  %2580 = vmatpush.bf16.msra.mxu0 0
  %2581 = vmatpush.bf16.msra.mxu0 0
  %2582 = vmatpush.bf16.msra.mxu0 0
  %2583 = vmatpush.bf16.msra.mxu0 0
  %2584 = vmatpush.bf16.msra.mxu0 0
  %2585 = vmatpush.bf16.msra.mxu0 %v1677
  %2586 = vmatpush.bf16.msra.mxu0 %v1659
  %2587 = vmatmul.bf16.gmra.mxu0 %v1840
  %v2588 = vpop.f32.mrf.mxu0
  %v2589 = vadd.f32 0.0, %v2588
  %v2590 = vpop.f32.mrf.mxu0
  %v2591 = vadd.f32 0.0, %v2590
  %2592 = vmatmul.bf16.gmra.mxu0 %v1843
  %v2593 = vpop.f32.mrf.mxu0
  %v2594 = vadd.f32 0.0, %v2593
  %v2595 = vpop.f32.mrf.mxu0
  %v2596 = vadd.f32 0.0, %v2595
  %2597 = vmatmul.bf16.gmra.mxu0 %v1846
  %v2598 = vpop.f32.mrf.mxu0
  %v2599 = vadd.f32 0.0, %v2598
  %v2600 = vpop.f32.mrf.mxu0
  %v2601 = vadd.f32 0.0, %v2600
  %2602 = vdwg.mxu0
  %2603 = vmatpush.bf16.msra.mxu0 0
  %2604 = vmatpush.bf16.msra.mxu0 0
  %2605 = vmatpush.bf16.msra.mxu0 0
  %2606 = vmatpush.bf16.msra.mxu0 0
  %2607 = vmatpush.bf16.msra.mxu0 0
  %2608 = vmatpush.bf16.msra.mxu0 0
  %2609 = vmatpush.bf16.msra.mxu0 %v1755
  %2610 = vmatpush.bf16.msra.mxu0 %v1739
  %2611 = vmatmul.bf16.gmra.mxu0 %v1665
  %v2612 = vpop.f32.mrf.mxu0
  %v2613 = vadd.f32 %v2565, %v2612
  %v2614 = vpop.f32.mrf.mxu0
  %v2615 = vadd.f32 %v2567, %v2614
  %2616 = vmatmul.bf16.gmra.mxu0 %v1668
  %v2617 = vpop.f32.mrf.mxu0
  %v2618 = vadd.f32 %v2570, %v2617
  %v2619 = vpop.f32.mrf.mxu0
  %v2620 = vadd.f32 %v2572, %v2619
  %2621 = vmatmul.bf16.gmra.mxu0 %v1671
  %v2622 = vpop.f32.mrf.mxu0
  %v2623 = vadd.f32 %v2575, %v2622
  %v2624 = vpop.f32.mrf.mxu0
  %v2625 = vadd.f32 %v2577, %v2624
  %2626 = vdwg.mxu0
  %2627 = vmatpush.bf16.msra.mxu0 0
  %2628 = vmatpush.bf16.msra.mxu0 0
  %2629 = vmatpush.bf16.msra.mxu0 0
  %2630 = vmatpush.bf16.msra.mxu0 0
  %2631 = vmatpush.bf16.msra.mxu0 0
  %2632 = vmatpush.bf16.msra.mxu0 0
  %2633 = vmatpush.bf16.msra.mxu0 %v1758
  %2634 = vmatpush.bf16.msra.mxu0 %v1740
  %2635 = vmatmul.bf16.gmra.mxu0 %v1665
  %v2636 = vpop.f32.mrf.mxu0
  %v2637 = vadd.f32 %v2589, %v2636
  %v2638 = vpop.f32.mrf.mxu0
  %v2639 = vadd.f32 %v2591, %v2638
  %2640 = vmatmul.bf16.gmra.mxu0 %v1668
  %v2641 = vpop.f32.mrf.mxu0
  %v2642 = vadd.f32 %v2594, %v2641
  %v2643 = vpop.f32.mrf.mxu0
  %v2644 = vadd.f32 %v2596, %v2643
  %2645 = vmatmul.bf16.gmra.mxu0 %v1671
  %v2646 = vpop.f32.mrf.mxu0
  %v2647 = vadd.f32 %v2599, %v2646
  %v2648 = vpop.f32.mrf.mxu0
  %v2649 = vadd.f32 %v2601, %v2648
  %2650 = vdwg.mxu0
  %2651 = vmatpush.bf16.msra.mxu0 0
  %2652 = vmatpush.bf16.msra.mxu0 0
  %2653 = vmatpush.bf16.msra.mxu0 0
  %2654 = vmatpush.bf16.msra.mxu0 0
  %2655 = vmatpush.bf16.msra.mxu0 0
  %2656 = vmatpush.bf16.msra.mxu0 0
  %2657 = vmatpush.bf16.msra.mxu0 %v1849
  %2658 = vmatpush.bf16.msra.mxu0 %v1833
  %2659 = vmatmul.bf16.gmra.mxu0 %v1946
  %v2660 = vpop.f32.mrf.mxu0
  %v2661 = vadd.f32 0.0, %v2660
  %v2662 = vpop.f32.mrf.mxu0
  %v2663 = vadd.f32 0.0, %v2662
  %2664 = vmatmul.bf16.gmra.mxu0 %v1949
  %v2665 = vpop.f32.mrf.mxu0
  %v2666 = vadd.f32 0.0, %v2665
  %v2667 = vpop.f32.mrf.mxu0
  %v2668 = vadd.f32 0.0, %v2667
  %2669 = vmatmul.bf16.gmra.mxu0 %v1952
  %v2670 = vpop.f32.mrf.mxu0
  %v2671 = vadd.f32 0.0, %v2670
  %v2672 = vpop.f32.mrf.mxu0
  %v2673 = vadd.f32 0.0, %v2672
  %2674 = vdwg.mxu0
  %2675 = vmatpush.bf16.msra.mxu0 0
  %2676 = vmatpush.bf16.msra.mxu0 0
  %2677 = vmatpush.bf16.msra.mxu0 0
  %2678 = vmatpush.bf16.msra.mxu0 0
  %2679 = vmatpush.bf16.msra.mxu0 0
  %2680 = vmatpush.bf16.msra.mxu0 0
  %2681 = vmatpush.bf16.msra.mxu0 %v1852
  %2682 = vmatpush.bf16.msra.mxu0 %v1834
  %2683 = vmatmul.bf16.gmra.mxu0 %v1946
  %v2684 = vpop.f32.mrf.mxu0
  %v2685 = vadd.f32 0.0, %v2684
  %v2686 = vpop.f32.mrf.mxu0
  %v2687 = vadd.f32 0.0, %v2686
  %2688 = vmatmul.bf16.gmra.mxu0 %v1949
  %v2689 = vpop.f32.mrf.mxu0
  %v2690 = vadd.f32 0.0, %v2689
  %v2691 = vpop.f32.mrf.mxu0
  %v2692 = vadd.f32 0.0, %v2691
  %2693 = vmatmul.bf16.gmra.mxu0 %v1952
  %v2694 = vpop.f32.mrf.mxu0
  %v2695 = vadd.f32 0.0, %v2694
  %v2696 = vpop.f32.mrf.mxu0
  %v2697 = vadd.f32 0.0, %v2696
  %2698 = vdwg.mxu0
  %v2699 = vadd.f32 %v2613, %v2661
  %v2700 = vadd.f32 %v2637, %v2685
  %v2701 = vadd.f32 %v2615, %v2663
  %v2702 = vadd.f32 %v2639, %v2687
  %v2703 = vadd.f32 %v2618, %v2666
  %v2704 = vadd.f32 %v2642, %v2690
  %v2705 = vadd.f32 %v2620, %v2668
  %v2706 = vadd.f32 %v2644, %v2692
  %v2707 = vadd.f32 %v2623, %v2671
  %v2708 = vadd.f32 %v2647, %v2695
  %v2709 = vadd.f32 %v2625, %v2673
  %v2710 = vadd.f32 %v2649, %v2697
  %2711 = vmatpush.bf16.msra.mxu0 0
  %2712 = vmatpush.bf16.msra.mxu0 0
  %2713 = vmatpush.bf16.msra.mxu0 0
  %2714 = vmatpush.bf16.msra.mxu0 0
  %2715 = vmatpush.bf16.msra.mxu0 0
  %2716 = vmatpush.bf16.msra.mxu0 0
  %2717 = vmatpush.bf16.msra.mxu0 %v1955
  %2718 = vmatpush.bf16.msra.mxu0 %v1939
  %2719 = vmatmul.bf16.gmra.mxu0 %v2053
  %v2720 = vpop.f32.mrf.mxu0
  %v2721 = vadd.f32 0.0, %v2720
  %v2722 = vpop.f32.mrf.mxu0
  %v2723 = vadd.f32 0.0, %v2722
  %2724 = vmatmul.bf16.gmra.mxu0 %v2056
  %v2725 = vpop.f32.mrf.mxu0
  %v2726 = vadd.f32 0.0, %v2725
  %v2727 = vpop.f32.mrf.mxu0
  %v2728 = vadd.f32 0.0, %v2727
  %2729 = vmatmul.bf16.gmra.mxu0 %v2059
  %v2730 = vpop.f32.mrf.mxu0
  %v2731 = vadd.f32 0.0, %v2730
  %v2732 = vpop.f32.mrf.mxu0
  %v2733 = vadd.f32 0.0, %v2732
  %2734 = vdwg.mxu0
  %2735 = vmatpush.bf16.msra.mxu0 0
  %2736 = vmatpush.bf16.msra.mxu0 0
  %2737 = vmatpush.bf16.msra.mxu0 0
  %2738 = vmatpush.bf16.msra.mxu0 0
  %2739 = vmatpush.bf16.msra.mxu0 0
  %2740 = vmatpush.bf16.msra.mxu0 0
  %2741 = vmatpush.bf16.msra.mxu0 %v1958
  %2742 = vmatpush.bf16.msra.mxu0 %v1940
  %2743 = vmatmul.bf16.gmra.mxu0 %v2053
  %v2744 = vpop.f32.mrf.mxu0
  %v2745 = vadd.f32 0.0, %v2744
  %v2746 = vpop.f32.mrf.mxu0
  %v2747 = vadd.f32 0.0, %v2746
  %2748 = vmatmul.bf16.gmra.mxu0 %v2056
  %v2749 = vpop.f32.mrf.mxu0
  %v2750 = vadd.f32 0.0, %v2749
  %v2751 = vpop.f32.mrf.mxu0
  %v2752 = vadd.f32 0.0, %v2751
  %2753 = vmatmul.bf16.gmra.mxu0 %v2059
  %v2754 = vpop.f32.mrf.mxu0
  %v2755 = vadd.f32 0.0, %v2754
  %v2756 = vpop.f32.mrf.mxu0
  %v2757 = vadd.f32 0.0, %v2756
  %2758 = vdwg.mxu0
  %v2759 = vadd.f32 %v2699, %v2721
  %v2760 = vadd.f32 %v2700, %v2745
  %v2761 = vadd.f32 %v2701, %v2723
  %v2762 = vadd.f32 %v2702, %v2747
  %v2763 = vadd.f32 %v2703, %v2726
  %v2764 = vadd.f32 %v2704, %v2750
  %v2765 = vadd.f32 %v2705, %v2728
  %v2766 = vadd.f32 %v2706, %v2752
  %v2767 = vadd.f32 %v2707, %v2731
  %v2768 = vadd.f32 %v2708, %v2755
  %v2769 = vadd.f32 %v2709, %v2733
  %v2770 = vadd.f32 %v2710, %v2757
  %s2771 = scalar_lea.vmem %s0, 336
  %v2772 = vld [vmem:[%s2771] sm:$0xff]
  %v2773 = vld [vmem:[%s2771 + $0x8] sm:$0xff]
  %v2774 = vld [vmem:[%s2771 + $0x10] sm:$0xff]
  %v2775 = vld [vmem:[%s2771 + $0x18] sm:$0xff]
  %v2776 = vld [vmem:[%s2771 + $0x20] sm:$0xff]
  %v2777 = vld [vmem:[%s2771 + $0x28] sm:$0xff]
  %v2778 = vpack.c.bf16 %v2773, %v2772
  %v2779 = vpack.c.bf16 %v2775, %v2774
  %v2780 = vpack.c.bf16 %v2777, %v2776
  %v2782 = vsel %vm79, %v2778, 0
  %v2785 = vsel %vm79, %v2779, 0
  %v2788 = vsel %vm79, %v2780, 0
  %2790 = vmatpush.bf16.msra.mxu0 0
  %2791 = vmatpush.bf16.msra.mxu0 0
  %2792 = vmatpush.bf16.msra.mxu0 0
  %2793 = vmatpush.bf16.msra.mxu0 0
  %2794 = vmatpush.bf16.msra.mxu0 0
  %2795 = vmatpush.bf16.msra.mxu0 0
  %2796 = vmatpush.bf16.msra.mxu0 %v2062
  %2797 = vmatpush.bf16.msra.mxu0 %v2046
  %2798 = vmatmul.bf16.gmra.mxu0 %v2782
  %v2799 = vpop.f32.mrf.mxu0
  %v2800 = vadd.f32 0.0, %v2799
  %v2801 = vpop.f32.mrf.mxu0
  %v2802 = vadd.f32 0.0, %v2801
  %2803 = vmatmul.bf16.gmra.mxu0 %v2785
  %v2804 = vpop.f32.mrf.mxu0
  %v2805 = vadd.f32 0.0, %v2804
  %v2806 = vpop.f32.mrf.mxu0
  %v2807 = vadd.f32 0.0, %v2806
  %2808 = vmatmul.bf16.gmra.mxu0 %v2788
  %v2809 = vpop.f32.mrf.mxu0
  %v2810 = vadd.f32 0.0, %v2809
  %v2811 = vpop.f32.mrf.mxu0
  %v2812 = vadd.f32 0.0, %v2811
  %2813 = vdwg.mxu0
  %2814 = vmatpush.bf16.msra.mxu0 0
  %2815 = vmatpush.bf16.msra.mxu0 0
  %2816 = vmatpush.bf16.msra.mxu0 0
  %2817 = vmatpush.bf16.msra.mxu0 0
  %2818 = vmatpush.bf16.msra.mxu0 0
  %2819 = vmatpush.bf16.msra.mxu0 0
  %2820 = vmatpush.bf16.msra.mxu0 %v2065
  %2821 = vmatpush.bf16.msra.mxu0 %v2047
  %2822 = vmatmul.bf16.gmra.mxu0 %v2782
  %v2823 = vpop.f32.mrf.mxu0
  %v2824 = vadd.f32 0.0, %v2823
  %v2825 = vpop.f32.mrf.mxu0
  %v2826 = vadd.f32 0.0, %v2825
  %2827 = vmatmul.bf16.gmra.mxu0 %v2785
  %v2828 = vpop.f32.mrf.mxu0
  %v2829 = vadd.f32 0.0, %v2828
  %v2830 = vpop.f32.mrf.mxu0
  %v2831 = vadd.f32 0.0, %v2830
  %2832 = vmatmul.bf16.gmra.mxu0 %v2788
  %v2833 = vpop.f32.mrf.mxu0
  %v2834 = vadd.f32 0.0, %v2833
  %v2835 = vpop.f32.mrf.mxu0
  %v2836 = vadd.f32 0.0, %v2835
  %2837 = vdwg.mxu0
  %v2838 = vadd.f32 %v2759, %v2800
  %v2839 = vadd.f32 %v2760, %v2824
  %v2840 = vadd.f32 %v2761, %v2802
  %v2841 = vadd.f32 %v2762, %v2826
  %v2842 = vadd.f32 %v2763, %v2805
  %v2843 = vadd.f32 %v2764, %v2829
  %v2844 = vadd.f32 %v2765, %v2807
  %v2845 = vadd.f32 %v2766, %v2831
  %v2846 = vadd.f32 %v2767, %v2810
  %v2847 = vadd.f32 %v2768, %v2834
  %v2848 = vadd.f32 %v2769, %v2812
  %v2849 = vadd.f32 %v2770, %v2836
  %v2850 = vmax.f32 %v2543, %v2838
  %v2851 = vmax.f32 %v2544, %v2839
  %v2852 = vmax.f32 %v2545, %v2840
  %v2853 = vmax.f32 %v2546, %v2841
  %v2854 = vmax.f32 %v2547, %v2842
  %v2855 = vmax.f32 %v2548, %v2843
  %v2856 = vmax.f32 %v2549, %v2844
  %v2857 = vmax.f32 %v2550, %v2845
  %v2858 = vmax.f32 %v2551, %v2846
  %v2859 = vmax.f32 %v2552, %v2847
  %v2860 = vmax.f32 %v2553, %v2848
  %v2861 = vmax.f32 %v2554, %v2849
  %2862 = vmatpush.bf16.msra.mxu0 0
  %2863 = vmatpush.bf16.msra.mxu0 0
  %2864 = vmatpush.bf16.msra.mxu0 0
  %2865 = vmatpush.bf16.msra.mxu0 0
  %2866 = vmatpush.bf16.msra.mxu0 0
  %2867 = vmatpush.bf16.msra.mxu0 0
  %2868 = vmatpush.bf16.msra.mxu0 %v2154
  %2869 = vmatpush.bf16.msra.mxu0 %v2147
  %2870 = vmatmul.bf16.gmra.mxu0 %v1840
  %v2871 = vpop.f32.mrf.mxu0
  %v2872 = vadd.f32 0.0, %v2871
  %v2873 = vpop.f32.mrf.mxu0
  %v2874 = vadd.f32 0.0, %v2873
  %2875 = vmatmul.bf16.gmra.mxu0 %v1843
  %v2876 = vpop.f32.mrf.mxu0
  %v2877 = vadd.f32 0.0, %v2876
  %v2878 = vpop.f32.mrf.mxu0
  %v2879 = vadd.f32 0.0, %v2878
  %2880 = vmatmul.bf16.gmra.mxu0 %v1846
  %v2881 = vpop.f32.mrf.mxu0
  %v2882 = vadd.f32 0.0, %v2881
  %v2883 = vpop.f32.mrf.mxu0
  %v2884 = vadd.f32 0.0, %v2883
  %2885 = vdwg.mxu0
  %2886 = vmatpush.bf16.msra.mxu0 0
  %2887 = vmatpush.bf16.msra.mxu0 0
  %2888 = vmatpush.bf16.msra.mxu0 0
  %2889 = vmatpush.bf16.msra.mxu0 0
  %2890 = vmatpush.bf16.msra.mxu0 0
  %2891 = vmatpush.bf16.msra.mxu0 0
  %2892 = vmatpush.bf16.msra.mxu0 %v2157
  %2893 = vmatpush.bf16.msra.mxu0 %v2148
  %2894 = vmatmul.bf16.gmra.mxu0 %v1840
  %v2895 = vpop.f32.mrf.mxu0
  %v2896 = vadd.f32 0.0, %v2895
  %v2897 = vpop.f32.mrf.mxu0
  %v2898 = vadd.f32 0.0, %v2897
  %2899 = vmatmul.bf16.gmra.mxu0 %v1843
  %v2900 = vpop.f32.mrf.mxu0
  %v2901 = vadd.f32 0.0, %v2900
  %v2902 = vpop.f32.mrf.mxu0
  %v2903 = vadd.f32 0.0, %v2902
  %2904 = vmatmul.bf16.gmra.mxu0 %v1846
  %v2905 = vpop.f32.mrf.mxu0
  %v2906 = vadd.f32 0.0, %v2905
  %v2907 = vpop.f32.mrf.mxu0
  %v2908 = vadd.f32 0.0, %v2907
  %2909 = vdwg.mxu0
  %2910 = vmatpush.bf16.msra.mxu0 0
  %2911 = vmatpush.bf16.msra.mxu0 0
  %2912 = vmatpush.bf16.msra.mxu0 0
  %2913 = vmatpush.bf16.msra.mxu0 0
  %2914 = vmatpush.bf16.msra.mxu0 0
  %2915 = vmatpush.bf16.msra.mxu0 0
  %2916 = vmatpush.bf16.msra.mxu0 %v2226
  %2917 = vmatpush.bf16.msra.mxu0 %v2219
  %2918 = vmatmul.bf16.gmra.mxu0 %v1665
  %v2919 = vpop.f32.mrf.mxu0
  %v2920 = vadd.f32 %v2872, %v2919
  %v2921 = vpop.f32.mrf.mxu0
  %v2922 = vadd.f32 %v2874, %v2921
  %2923 = vmatmul.bf16.gmra.mxu0 %v1668
  %v2924 = vpop.f32.mrf.mxu0
  %v2925 = vadd.f32 %v2877, %v2924
  %v2926 = vpop.f32.mrf.mxu0
  %v2927 = vadd.f32 %v2879, %v2926
  %2928 = vmatmul.bf16.gmra.mxu0 %v1671
  %v2929 = vpop.f32.mrf.mxu0
  %v2930 = vadd.f32 %v2882, %v2929
  %v2931 = vpop.f32.mrf.mxu0
  %v2932 = vadd.f32 %v2884, %v2931
  %2933 = vdwg.mxu0
  %2934 = vmatpush.bf16.msra.mxu0 0
  %2935 = vmatpush.bf16.msra.mxu0 0
  %2936 = vmatpush.bf16.msra.mxu0 0
  %2937 = vmatpush.bf16.msra.mxu0 0
  %2938 = vmatpush.bf16.msra.mxu0 0
  %2939 = vmatpush.bf16.msra.mxu0 0
  %2940 = vmatpush.bf16.msra.mxu0 %v2229
  %2941 = vmatpush.bf16.msra.mxu0 %v2220
  %2942 = vmatmul.bf16.gmra.mxu0 %v1665
  %v2943 = vpop.f32.mrf.mxu0
  %v2944 = vadd.f32 %v2896, %v2943
  %v2945 = vpop.f32.mrf.mxu0
  %v2946 = vadd.f32 %v2898, %v2945
  %2947 = vmatmul.bf16.gmra.mxu0 %v1668
  %v2948 = vpop.f32.mrf.mxu0
  %v2949 = vadd.f32 %v2901, %v2948
  %v2950 = vpop.f32.mrf.mxu0
  %v2951 = vadd.f32 %v2903, %v2950
  %2952 = vmatmul.bf16.gmra.mxu0 %v1671
  %v2953 = vpop.f32.mrf.mxu0
  %v2954 = vadd.f32 %v2906, %v2953
  %v2955 = vpop.f32.mrf.mxu0
  %v2956 = vadd.f32 %v2908, %v2955
  %2957 = vdwg.mxu0
  %2958 = vmatpush.bf16.msra.mxu0 0
  %2959 = vmatpush.bf16.msra.mxu0 0
  %2960 = vmatpush.bf16.msra.mxu0 0
  %2961 = vmatpush.bf16.msra.mxu0 0
  %2962 = vmatpush.bf16.msra.mxu0 0
  %2963 = vmatpush.bf16.msra.mxu0 0
  %2964 = vmatpush.bf16.msra.mxu0 %v2302
  %2965 = vmatpush.bf16.msra.mxu0 %v2295
  %2966 = vmatmul.bf16.gmra.mxu0 %v1946
  %v2967 = vpop.f32.mrf.mxu0
  %v2968 = vadd.f32 0.0, %v2967
  %v2969 = vpop.f32.mrf.mxu0
  %v2970 = vadd.f32 0.0, %v2969
  %2971 = vmatmul.bf16.gmra.mxu0 %v1949
  %v2972 = vpop.f32.mrf.mxu0
  %v2973 = vadd.f32 0.0, %v2972
  %v2974 = vpop.f32.mrf.mxu0
  %v2975 = vadd.f32 0.0, %v2974
  %2976 = vmatmul.bf16.gmra.mxu0 %v1952
  %v2977 = vpop.f32.mrf.mxu0
  %v2978 = vadd.f32 0.0, %v2977
  %v2979 = vpop.f32.mrf.mxu0
  %v2980 = vadd.f32 0.0, %v2979
  %2981 = vdwg.mxu0
  %2982 = vmatpush.bf16.msra.mxu0 0
  %2983 = vmatpush.bf16.msra.mxu0 0
  %2984 = vmatpush.bf16.msra.mxu0 0
  %2985 = vmatpush.bf16.msra.mxu0 0
  %2986 = vmatpush.bf16.msra.mxu0 0
  %2987 = vmatpush.bf16.msra.mxu0 0
  %2988 = vmatpush.bf16.msra.mxu0 %v2305
  %2989 = vmatpush.bf16.msra.mxu0 %v2296
  %2990 = vmatmul.bf16.gmra.mxu0 %v1946
  %v2991 = vpop.f32.mrf.mxu0
  %v2992 = vadd.f32 0.0, %v2991
  %v2993 = vpop.f32.mrf.mxu0
  %v2994 = vadd.f32 0.0, %v2993
  %2995 = vmatmul.bf16.gmra.mxu0 %v1949
  %v2996 = vpop.f32.mrf.mxu0
  %v2997 = vadd.f32 0.0, %v2996
  %v2998 = vpop.f32.mrf.mxu0
  %v2999 = vadd.f32 0.0, %v2998
  %3000 = vmatmul.bf16.gmra.mxu0 %v1952
  %v3001 = vpop.f32.mrf.mxu0
  %v3002 = vadd.f32 0.0, %v3001
  %v3003 = vpop.f32.mrf.mxu0
  %v3004 = vadd.f32 0.0, %v3003
  %3005 = vdwg.mxu0
  %v3006 = vadd.f32 %v2920, %v2968
  %v3007 = vadd.f32 %v2944, %v2992
  %v3008 = vadd.f32 %v2922, %v2970
  %v3009 = vadd.f32 %v2946, %v2994
  %v3010 = vadd.f32 %v2925, %v2973
  %v3011 = vadd.f32 %v2949, %v2997
  %v3012 = vadd.f32 %v2927, %v2975
  %v3013 = vadd.f32 %v2951, %v2999
  %v3014 = vadd.f32 %v2930, %v2978
  %v3015 = vadd.f32 %v2954, %v3002
  %v3016 = vadd.f32 %v2932, %v2980
  %v3017 = vadd.f32 %v2956, %v3004
  %3018 = vmatpush.bf16.msra.mxu0 0
  %3019 = vmatpush.bf16.msra.mxu0 0
  %3020 = vmatpush.bf16.msra.mxu0 0
  %3021 = vmatpush.bf16.msra.mxu0 0
  %3022 = vmatpush.bf16.msra.mxu0 0
  %3023 = vmatpush.bf16.msra.mxu0 0
  %3024 = vmatpush.bf16.msra.mxu0 %v2390
  %3025 = vmatpush.bf16.msra.mxu0 %v2383
  %3026 = vmatmul.bf16.gmra.mxu0 %v2053
  %v3027 = vpop.f32.mrf.mxu0
  %v3028 = vadd.f32 0.0, %v3027
  %v3029 = vpop.f32.mrf.mxu0
  %v3030 = vadd.f32 0.0, %v3029
  %3031 = vmatmul.bf16.gmra.mxu0 %v2056
  %v3032 = vpop.f32.mrf.mxu0
  %v3033 = vadd.f32 0.0, %v3032
  %v3034 = vpop.f32.mrf.mxu0
  %v3035 = vadd.f32 0.0, %v3034
  %3036 = vmatmul.bf16.gmra.mxu0 %v2059
  %v3037 = vpop.f32.mrf.mxu0
  %v3038 = vadd.f32 0.0, %v3037
  %v3039 = vpop.f32.mrf.mxu0
  %v3040 = vadd.f32 0.0, %v3039
  %3041 = vdwg.mxu0
  %3042 = vmatpush.bf16.msra.mxu0 0
  %3043 = vmatpush.bf16.msra.mxu0 0
  %3044 = vmatpush.bf16.msra.mxu0 0
  %3045 = vmatpush.bf16.msra.mxu0 0
  %3046 = vmatpush.bf16.msra.mxu0 0
  %3047 = vmatpush.bf16.msra.mxu0 0
  %3048 = vmatpush.bf16.msra.mxu0 %v2393
  %3049 = vmatpush.bf16.msra.mxu0 %v2384
  %3050 = vmatmul.bf16.gmra.mxu0 %v2053
  %v3051 = vpop.f32.mrf.mxu0
  %v3052 = vadd.f32 0.0, %v3051
  %v3053 = vpop.f32.mrf.mxu0
  %v3054 = vadd.f32 0.0, %v3053
  %3055 = vmatmul.bf16.gmra.mxu0 %v2056
  %v3056 = vpop.f32.mrf.mxu0
  %v3057 = vadd.f32 0.0, %v3056
  %v3058 = vpop.f32.mrf.mxu0
  %v3059 = vadd.f32 0.0, %v3058
  %3060 = vmatmul.bf16.gmra.mxu0 %v2059
  %v3061 = vpop.f32.mrf.mxu0
  %v3062 = vadd.f32 0.0, %v3061
  %v3063 = vpop.f32.mrf.mxu0
  %v3064 = vadd.f32 0.0, %v3063
  %3065 = vdwg.mxu0
  %v3066 = vadd.f32 %v3006, %v3028
  %v3067 = vadd.f32 %v3007, %v3052
  %v3068 = vadd.f32 %v3008, %v3030
  %v3069 = vadd.f32 %v3009, %v3054
  %v3070 = vadd.f32 %v3010, %v3033
  %v3071 = vadd.f32 %v3011, %v3057
  %v3072 = vadd.f32 %v3012, %v3035
  %v3073 = vadd.f32 %v3013, %v3059
  %v3074 = vadd.f32 %v3014, %v3038
  %v3075 = vadd.f32 %v3015, %v3062
  %v3076 = vadd.f32 %v3016, %v3040
  %v3077 = vadd.f32 %v3017, %v3064
  %3078 = vmatpush.bf16.msra.mxu0 0
  %3079 = vmatpush.bf16.msra.mxu0 0
  %3080 = vmatpush.bf16.msra.mxu0 0
  %3081 = vmatpush.bf16.msra.mxu0 0
  %3082 = vmatpush.bf16.msra.mxu0 0
  %3083 = vmatpush.bf16.msra.mxu0 0
  %3084 = vmatpush.bf16.msra.mxu0 %v2478
  %3085 = vmatpush.bf16.msra.mxu0 %v2471
  %3086 = vmatmul.bf16.gmra.mxu0 %v2782
  %v3087 = vpop.f32.mrf.mxu0
  %v3088 = vadd.f32 0.0, %v3087
  %v3089 = vpop.f32.mrf.mxu0
  %v3090 = vadd.f32 0.0, %v3089
  %3091 = vmatmul.bf16.gmra.mxu0 %v2785
  %v3092 = vpop.f32.mrf.mxu0
  %v3093 = vadd.f32 0.0, %v3092
  %v3094 = vpop.f32.mrf.mxu0
  %v3095 = vadd.f32 0.0, %v3094
  %3096 = vmatmul.bf16.gmra.mxu0 %v2788
  %v3097 = vpop.f32.mrf.mxu0
  %v3098 = vadd.f32 0.0, %v3097
  %v3099 = vpop.f32.mrf.mxu0
  %v3100 = vadd.f32 0.0, %v3099
  %3101 = vdwg.mxu0
  %3102 = vmatpush.bf16.msra.mxu0 0
  %3103 = vmatpush.bf16.msra.mxu0 0
  %3104 = vmatpush.bf16.msra.mxu0 0
  %3105 = vmatpush.bf16.msra.mxu0 0
  %3106 = vmatpush.bf16.msra.mxu0 0
  %3107 = vmatpush.bf16.msra.mxu0 0
  %3108 = vmatpush.bf16.msra.mxu0 %v2481
  %3109 = vmatpush.bf16.msra.mxu0 %v2472
  %3110 = vmatmul.bf16.gmra.mxu0 %v2782
  %v3111 = vpop.f32.mrf.mxu0
  %v3112 = vadd.f32 0.0, %v3111
  %v3113 = vpop.f32.mrf.mxu0
  %v3114 = vadd.f32 0.0, %v3113
  %3115 = vmatmul.bf16.gmra.mxu0 %v2785
  %v3116 = vpop.f32.mrf.mxu0
  %v3117 = vadd.f32 0.0, %v3116
  %v3118 = vpop.f32.mrf.mxu0
  %v3119 = vadd.f32 0.0, %v3118
  %3120 = vmatmul.bf16.gmra.mxu0 %v2788
  %v3121 = vpop.f32.mrf.mxu0
  %v3122 = vadd.f32 0.0, %v3121
  %v3123 = vpop.f32.mrf.mxu0
  %v3124 = vadd.f32 0.0, %v3123
  %3125 = vdwg.mxu0
  %v3126 = vadd.f32 %v3066, %v3088
  %v3127 = vadd.f32 %v3067, %v3112
  %v3128 = vadd.f32 %v3068, %v3090
  %v3129 = vadd.f32 %v3069, %v3114
  %v3130 = vadd.f32 %v3070, %v3093
  %v3131 = vadd.f32 %v3071, %v3117
  %v3132 = vadd.f32 %v3072, %v3095
  %v3133 = vadd.f32 %v3073, %v3119
  %v3134 = vadd.f32 %v3074, %v3098
  %v3135 = vadd.f32 %v3075, %v3122
  %v3136 = vadd.f32 %v3076, %v3100
  %v3137 = vadd.f32 %v3077, %v3124
  %v3138 = vmax.f32 %v2850, %v3126
  %v3139 = vmax.f32 %v2851, %v3127
  %v3140 = vmax.f32 %v2852, %v3128
  %v3141 = vmax.f32 %v2853, %v3129
  %v3142 = vmax.f32 %v2854, %v3130
  %v3143 = vmax.f32 %v2855, %v3131
  %v3144 = vmax.f32 %v2856, %v3132
  %v3145 = vmax.f32 %v2857, %v3133
  %v3146 = vmax.f32 %v2858, %v3134
  %v3147 = vmax.f32 %v2859, %v3135
  %v3148 = vmax.f32 %v2860, %v3136
  %v3149 = vmax.f32 %v2861, %v3137
  %v3150 = vld [vmem:[%s2] sm:$0x3]
  %v3152 = vperm.slane %v3150, 0
  %v3153 = vperm.slane %v3150, 1
  %v3156 = vadd.f32 %v3138, %v3152
  %v3157 = vadd.f32 %v3139, %v3153
  %v3158 = vadd.f32 %v3140, %v3152
  %v3159 = vadd.f32 %v3141, %v3153
  %v3160 = vadd.f32 %v3142, %v3152
  %v3161 = vadd.f32 %v3143, %v3153
  %v3162 = vadd.f32 %v3144, %v3152
  %v3163 = vadd.f32 %v3145, %v3153
  %v3164 = vadd.f32 %v3146, %v3152
  %v3165 = vadd.f32 %v3147, %v3153
  %v3166 = vadd.f32 %v3148, %v3152
  %v3167 = vadd.f32 %v3149, %v3153
  %v3168 = vmax.f32 %v3156, 0.0
  %v3169 = vmax.f32 %v3157, 0.0
  %v3170 = vmax.f32 %v3158, 0.0
  %v3171 = vmax.f32 %v3159, 0.0
  %v3172 = vmax.f32 %v3160, 0.0
  %v3173 = vmax.f32 %v3161, 0.0
  %v3174 = vmax.f32 %v3162, 0.0
  %v3175 = vmax.f32 %v3163, 0.0
  %v3176 = vmax.f32 %v3164, 0.0
  %v3177 = vmax.f32 %v3165, 0.0
  %v3178 = vmax.f32 %v3166, 0.0
  %v3179 = vmax.f32 %v3167, 0.0
  %3180 = vst [vmem:[#allocation3] sm:$0xff] %v3168
  %3181 = vst.msk [vmem:[#allocation3 + $0x8] sm:$0xff] %vm1608, %v3169
  %3182 = vst [vmem:[#allocation3 + $0x10] sm:$0xff] %v3170
  %3183 = vst.msk [vmem:[#allocation3 + $0x18] sm:$0xff] %vm1608, %v3171
  %3184 = vst [vmem:[#allocation3 + $0x20] sm:$0xff] %v3172
  %3185 = vst.msk [vmem:[#allocation3 + $0x28] sm:$0xff] %vm1608, %v3173
  %3186 = vst [vmem:[#allocation3 + $0x30] sm:$0xff] %v3174
  %3187 = vst.msk [vmem:[#allocation3 + $0x38] sm:$0xff] %vm1608, %v3175
  %3188 = vst [vmem:[#allocation3 + $0x40] sm:$0xff] %v3176
  %3189 = vst.msk [vmem:[#allocation3 + $0x48] sm:$0xff] %vm1608, %v3177
  %3190 = vst [vmem:[#allocation3 + $0x50] sm:$0xff] %v3178
  %3191 = vst.msk [vmem:[#allocation3 + $0x58] sm:$0xff] %vm1608, %v3179
  %v3192 = vld [vmem:[#allocation2] sm:$0xff]
  %v3193 = vld [vmem:[#allocation2 + $0x8] sm:$0xff]
  %v3194 = vld [vmem:[#allocation2 + $0x10] sm:$0xff]
  %v3195 = vld [vmem:[#allocation2 + $0x18] sm:$0xff]
  %v3196 = vld [vmem:[#allocation2 + $0x20] sm:$0xff]
  %v3197 = vld [vmem:[#allocation2 + $0x28] sm:$0xff]
  %v3198 = vld [vmem:[#allocation2 + $0x30] sm:$0xff]
  %v3199 = vld [vmem:[#allocation2 + $0x38] sm:$0xff]
  %v3200 = vpack.c.bf16 %v3194, %v3192
  %v3201 = vpack.c.bf16 %v3195, %v3193
  %v3202 = vpack.c.bf16 %v3198, %v3196
  %v3203 = vpack.c.bf16 %v3199, %v3197
  %v3204 = vld [vmem:[%s3] sm:$0xff]
  %v3205 = vld [vmem:[%s3 + $0x8] sm:$0xff]
  %v3206 = vld [vmem:[%s3 + $0x10] sm:$0xff]
  %v3207 = vld [vmem:[%s3 + $0x18] sm:$0xff]
  %v3208 = vld [vmem:[%s3 + $0x20] sm:$0xff]
  %v3209 = vld [vmem:[%s3 + $0x28] sm:$0xff]
  %v3210 = vld [vmem:[%s3 + $0x30] sm:$0xff]
  %v3211 = vld [vmem:[%s3 + $0x38] sm:$0xff]
  %v3212 = vld [vmem:[%s3 + $0x40] sm:$0xff]
  %v3213 = vld [vmem:[%s3 + $0x48] sm:$0xff]
  %v3214 = vld [vmem:[%s3 + $0x50] sm:$0xff]
  %v3215 = vld [vmem:[%s3 + $0x58] sm:$0xff]
  %v3216 = vld [vmem:[%s3 + $0x60] sm:$0xff]
  %v3217 = vld [vmem:[%s3 + $0x68] sm:$0xff]
  %v3218 = vld [vmem:[%s3 + $0x70] sm:$0xff]
  %v3219 = vld [vmem:[%s3 + $0x78] sm:$0xff]
  %v3220 = vld [vmem:[%s3 + $0x80] sm:$0xff]
  %v3221 = vld [vmem:[%s3 + $0x88] sm:$0xff]
  %v3222 = vld [vmem:[%s3 + $0x90] sm:$0xff]
  %v3223 = vld [vmem:[%s3 + $0x98] sm:$0xff]
  %v3224 = vld [vmem:[%s3 + $0xa0] sm:$0xff]
  %v3225 = vld [vmem:[%s3 + $0xa8] sm:$0xff]
  %v3226 = vld [vmem:[%s3 + $0xb0] sm:$0xff]
  %v3227 = vld [vmem:[%s3 + $0xb8] sm:$0xff]
  %v3228 = vld [vmem:[%s3 + $0xc0] sm:$0xff]
  %v3229 = vld [vmem:[%s3 + $0xc8] sm:$0xff]
  %v3230 = vld [vmem:[%s3 + $0xd0] sm:$0xff]
  %v3231 = vld [vmem:[%s3 + $0xd8] sm:$0xff]
  %v3232 = vld [vmem:[%s3 + $0xe0] sm:$0xff]
  %v3233 = vld [vmem:[%s3 + $0xe8] sm:$0xff]
  %v3234 = vld [vmem:[#allocation3] sm:$0xff]
  %v3235 = vld [vmem:[#allocation3 + $0x8] sm:$0xff]
  %v3236 = vld [vmem:[#allocation3 + $0x10] sm:$0xff]
  %v3237 = vld [vmem:[#allocation3 + $0x18] sm:$0xff]
  %v3238 = vld [vmem:[#allocation3 + $0x20] sm:$0xff]
  %v3239 = vld [vmem:[#allocation3 + $0x28] sm:$0xff]
  %v3240 = vld [vmem:[#allocation3 + $0x30] sm:$0xff]
  %v3241 = vld [vmem:[#allocation3 + $0x38] sm:$0xff]
  %v3242 = vpack.c.bf16 %v3236, %v3234
  %v3243 = vpack.c.bf16 %v3237, %v3235
  %v3244 = vpack.c.bf16 %v3240, %v3238
  %v3245 = vpack.c.bf16 %v3241, %v3239
  %s3246 = scalar_lea.vmem %s3, 240
  %v3247 = vld [vmem:[%s3246] sm:$0xff]
  %v3248 = vld [vmem:[%s3246 + $0x8] sm:$0xff]
  %v3249 = vld [vmem:[%s3246 + $0x10] sm:$0xff]
  %v3250 = vld [vmem:[%s3246 + $0x18] sm:$0xff]
  %v3251 = vld [vmem:[%s3246 + $0x20] sm:$0xff]
  %v3252 = vld [vmem:[%s3246 + $0x28] sm:$0xff]
  %v3253 = vld [vmem:[%s3246 + $0x30] sm:$0xff]
  %v3254 = vld [vmem:[%s3246 + $0x38] sm:$0xff]
  %v3255 = vld [vmem:[%s3246 + $0x40] sm:$0xff]
  %v3256 = vld [vmem:[%s3246 + $0x48] sm:$0xff]
  %v3257 = vld [vmem:[%s3246 + $0x50] sm:$0xff]
  %v3258 = vld [vmem:[%s3246 + $0x58] sm:$0xff]
  %v3259 = vld [vmem:[%s3246 + $0x60] sm:$0xff]
  %v3260 = vld [vmem:[%s3246 + $0x68] sm:$0xff]
  %v3261 = vld [vmem:[%s3246 + $0x70] sm:$0xff]
  %v3262 = vld [vmem:[%s3246 + $0x78] sm:$0xff]
  %v3263 = vld [vmem:[%s3246 + $0x80] sm:$0xff]
  %v3264 = vld [vmem:[%s3246 + $0x88] sm:$0xff]
  %v3265 = vld [vmem:[%s3246 + $0x90] sm:$0xff]
  %v3266 = vld [vmem:[%s3246 + $0x98] sm:$0xff]
  %v3267 = vld [vmem:[%s3246 + $0xa0] sm:$0xff]
  %v3268 = vld [vmem:[%s3246 + $0xa8] sm:$0xff]
  %v3269 = vld [vmem:[%s3246 + $0xb0] sm:$0xff]
  %v3270 = vld [vmem:[%s3246 + $0xb8] sm:$0xff]
  %v3271 = vld [vmem:[%s3246 + $0xc0] sm:$0xff]
  %v3272 = vld [vmem:[%s3246 + $0xc8] sm:$0xff]
  %v3273 = vld [vmem:[%s3246 + $0xd0] sm:$0xff]
  %v3274 = vld [vmem:[%s3246 + $0xd8] sm:$0xff]
  %v3275 = vld [vmem:[%s3246 + $0xe0] sm:$0xff]
  %v3276 = vld [vmem:[%s3246 + $0xe8] sm:$0xff]
  %v3307 = vunpack.c.l.b16 %v3247
  %v3308 = vunpack.c.h.b16 %v3247
  %v3309 = vunpack.c.l.b16 %v3248
  %v3310 = vunpack.c.h.b16 %v3248
  %v3311 = vunpack.c.l.b16 %v3249
  %v3312 = vunpack.c.h.b16 %v3249
  %v3313 = vunpack.c.l.b16 %v3250
  %v3314 = vunpack.c.h.b16 %v3250
  %v3315 = vunpack.c.l.b16 %v3251
  %v3316 = vunpack.c.h.b16 %v3251
  %v3317 = vunpack.c.l.b16 %v3252
  %v3318 = vunpack.c.h.b16 %v3252
  %v3319 = vunpack.c.l.b16 %v3253
  %v3320 = vunpack.c.h.b16 %v3253
  %v3321 = vunpack.c.l.b16 %v3254
  %v3322 = vunpack.c.h.b16 %v3254
  %v3323 = vunpack.c.l.b16 %v3255
  %v3324 = vunpack.c.h.b16 %v3255
  %v3325 = vunpack.c.l.b16 %v3256
  %v3326 = vunpack.c.h.b16 %v3256
  %v3327 = vunpack.c.l.b16 %v3257
  %v3328 = vunpack.c.h.b16 %v3257
  %v3329 = vunpack.c.l.b16 %v3258
  %v3330 = vunpack.c.h.b16 %v3258
  %v3331 = vunpack.c.l.b16 %v3259
  %v3332 = vunpack.c.h.b16 %v3259
  %v3333 = vunpack.c.l.b16 %v3260
  %v3334 = vunpack.c.h.b16 %v3260
  %v3335 = vunpack.c.l.b16 %v3261
  %v3336 = vunpack.c.h.b16 %v3261
  %v3337 = vunpack.c.l.b16 %v3262
  %v3338 = vunpack.c.h.b16 %v3262
  %v3339 = vunpack.c.l.b16 %v3263
  %v3340 = vunpack.c.h.b16 %v3263
  %v3341 = vunpack.c.l.b16 %v3264
  %v3342 = vunpack.c.h.b16 %v3264
  %v3343 = vunpack.c.l.b16 %v3265
  %v3344 = vunpack.c.h.b16 %v3265
  %v3345 = vunpack.c.l.b16 %v3266
  %v3346 = vunpack.c.h.b16 %v3266
  %v3347 = vunpack.c.l.b16 %v3267
  %v3348 = vunpack.c.h.b16 %v3267
  %v3349 = vunpack.c.l.b16 %v3268
  %v3350 = vunpack.c.h.b16 %v3268
  %v3351 = vunpack.c.l.b16 %v3269
  %v3352 = vunpack.c.h.b16 %v3269
  %v3353 = vunpack.c.l.b16 %v3270
  %v3354 = vunpack.c.h.b16 %v3270
  %v3355 = vunpack.c.l.b16 %v3271
  %v3356 = vunpack.c.h.b16 %v3271
  %v3357 = vunpack.c.l.b16 %v3272
  %v3358 = vunpack.c.h.b16 %v3272
  %v3359 = vunpack.c.l.b16 %v3273
  %v3360 = vunpack.c.h.b16 %v3273
  %v3361 = vunpack.c.l.b16 %v3274
  %v3362 = vunpack.c.h.b16 %v3274
  %v3363 = vunpack.c.l.b16 %v3275
  %v3364 = vunpack.c.h.b16 %v3275
  %v3365 = vunpack.c.l.b16 %v3276
  %v3366 = vunpack.c.h.b16 %v3276
  %v3367 = vpack.c.b16 %v3309, %v3307
  %v3368 = vpack.c.b16 %v3310, %v3308
  %v3369 = vpack.c.b16 %v3313, %v3311
  %v3370 = vpack.c.b16 %v3314, %v3312
  %v3371 = vpack.c.b16 %v3317, %v3315
  %v3372 = vpack.c.b16 %v3318, %v3316
  %v3373 = vpack.c.b16 %v3321, %v3319
  %v3374 = vpack.c.b16 %v3322, %v3320
  %v3375 = vpack.c.b16 %v3325, %v3323
  %v3376 = vpack.c.b16 %v3326, %v3324
  %v3377 = vpack.c.b16 %v3329, %v3327
  %v3378 = vpack.c.b16 %v3330, %v3328
  %v3379 = vpack.c.b16 %v3333, %v3331
  %v3380 = vpack.c.b16 %v3334, %v3332
  %v3381 = vpack.c.b16 %v3337, %v3335
  %v3382 = vpack.c.b16 %v3338, %v3336
  %v3383 = vpack.c.b16 %v3341, %v3339
  %v3384 = vpack.c.b16 %v3342, %v3340
  %v3385 = vpack.c.b16 %v3345, %v3343
  %v3386 = vpack.c.b16 %v3346, %v3344
  %v3387 = vpack.c.b16 %v3349, %v3347
  %v3388 = vpack.c.b16 %v3350, %v3348
  %v3389 = vpack.c.b16 %v3353, %v3351
  %v3390 = vpack.c.b16 %v3354, %v3352
  %v3391 = vpack.c.b16 %v3357, %v3355
  %v3392 = vpack.c.b16 %v3358, %v3356
  %v3393 = vpack.c.b16 %v3361, %v3359
  %v3394 = vpack.c.b16 %v3362, %v3360
  %v3395 = vpack.c.b16 %v3365, %v3363
  %v3396 = vpack.c.b16 %v3366, %v3364
  %v3428 = vsel %vm1608, %v3243, 0
  %v3431 = vsel %vm1608, %v3245, 0
  %3433 = vmatpush.bf16.msra.mxu0 %v3381
  %3434 = vmatpush.bf16.msra.mxu0 %v3379
  %3435 = vmatpush.bf16.msra.mxu0 %v3377
  %3436 = vmatpush.bf16.msra.mxu0 %v3375
  %3437 = vmatpush.bf16.msra.mxu0 %v3373
  %3438 = vmatpush.bf16.msra.mxu0 %v3371
  %3439 = vmatpush.bf16.msra.mxu0 %v3369
  %3440 = vmatpush.bf16.msra.mxu0 %v3367
  %3441 = vmatmul.bf16.gmra.mxu0 %v3242
  %v3442 = vpop.f32.mrf.mxu0
  %v3443 = vadd.f32 0.0, %v3442
  %v3444 = vpop.f32.mrf.mxu0
  %v3445 = vadd.f32 0.0, %v3444
  %3446 = vmatmul.bf16.gmra.mxu0 %v3244
  %v3447 = vpop.f32.mrf.mxu0
  %v3448 = vadd.f32 0.0, %v3447
  %v3449 = vpop.f32.mrf.mxu0
  %v3450 = vadd.f32 0.0, %v3449
  %3451 = vdwg.mxu0
  %3452 = vmatpush.bf16.msra.mxu0 0
  %3453 = vmatpush.bf16.msra.mxu0 %v3395
  %3454 = vmatpush.bf16.msra.mxu0 %v3393
  %3455 = vmatpush.bf16.msra.mxu0 %v3391
  %3456 = vmatpush.bf16.msra.mxu0 %v3389
  %3457 = vmatpush.bf16.msra.mxu0 %v3387
  %3458 = vmatpush.bf16.msra.mxu0 %v3385
  %3459 = vmatpush.bf16.msra.mxu0 %v3383
  %3460 = vmatmul.bf16.gmra.mxu0 %v3428
  %v3461 = vpop.f32.mrf.mxu0
  %v3462 = vadd.f32 %v3443, %v3461
  %v3463 = vpop.f32.mrf.mxu0
  %v3464 = vadd.f32 %v3445, %v3463
  %3465 = vmatmul.bf16.gmra.mxu0 %v3431
  %v3466 = vpop.f32.mrf.mxu0
  %v3467 = vadd.f32 %v3448, %v3466
  %v3468 = vpop.f32.mrf.mxu0
  %v3469 = vadd.f32 %v3450, %v3468
  %3470 = vdwg.mxu0
  %3471 = vmatpush.bf16.msra.mxu0 %v3382
  %3472 = vmatpush.bf16.msra.mxu0 %v3380
  %3473 = vmatpush.bf16.msra.mxu0 %v3378
  %3474 = vmatpush.bf16.msra.mxu0 %v3376
  %3475 = vmatpush.bf16.msra.mxu0 %v3374
  %3476 = vmatpush.bf16.msra.mxu0 %v3372
  %3477 = vmatpush.bf16.msra.mxu0 %v3370
  %3478 = vmatpush.bf16.msra.mxu0 %v3368
  %3479 = vmatmul.bf16.gmra.mxu0 %v3242
  %v3480 = vpop.f32.mrf.mxu0
  %v3481 = vadd.f32 0.0, %v3480
  %v3482 = vpop.f32.mrf.mxu0
  %v3483 = vadd.f32 0.0, %v3482
  %3484 = vmatmul.bf16.gmra.mxu0 %v3244
  %v3485 = vpop.f32.mrf.mxu0
  %v3486 = vadd.f32 0.0, %v3485
  %v3487 = vpop.f32.mrf.mxu0
  %v3488 = vadd.f32 0.0, %v3487
  %3489 = vdwg.mxu0
  %3490 = vmatpush.bf16.msra.mxu0 0
  %3491 = vmatpush.bf16.msra.mxu0 %v3396
  %3492 = vmatpush.bf16.msra.mxu0 %v3394
  %3493 = vmatpush.bf16.msra.mxu0 %v3392
  %3494 = vmatpush.bf16.msra.mxu0 %v3390
  %3495 = vmatpush.bf16.msra.mxu0 %v3388
  %3496 = vmatpush.bf16.msra.mxu0 %v3386
  %3497 = vmatpush.bf16.msra.mxu0 %v3384
  %3498 = vmatmul.bf16.gmra.mxu0 %v3428
  %v3499 = vpop.f32.mrf.mxu0
  %v3500 = vadd.f32 %v3481, %v3499
  %v3501 = vpop.f32.mrf.mxu0
  %v3502 = vadd.f32 %v3483, %v3501
  %3503 = vmatmul.bf16.gmra.mxu0 %v3431
  %v3504 = vpop.f32.mrf.mxu0
  %v3505 = vadd.f32 %v3486, %v3504
  %v3506 = vpop.f32.mrf.mxu0
  %v3507 = vadd.f32 %v3488, %v3506
  %3508 = vdwg.mxu0
  %v3539 = vunpack.c.l.b16 %v3204
  %v3540 = vunpack.c.h.b16 %v3204
  %v3541 = vunpack.c.l.b16 %v3205
  %v3542 = vunpack.c.h.b16 %v3205
  %v3543 = vunpack.c.l.b16 %v3206
  %v3544 = vunpack.c.h.b16 %v3206
  %v3545 = vunpack.c.l.b16 %v3207
  %v3546 = vunpack.c.h.b16 %v3207
  %v3547 = vunpack.c.l.b16 %v3208
  %v3548 = vunpack.c.h.b16 %v3208
  %v3549 = vunpack.c.l.b16 %v3209
  %v3550 = vunpack.c.h.b16 %v3209
  %v3551 = vunpack.c.l.b16 %v3210
  %v3552 = vunpack.c.h.b16 %v3210
  %v3553 = vunpack.c.l.b16 %v3211
  %v3554 = vunpack.c.h.b16 %v3211
  %v3555 = vunpack.c.l.b16 %v3212
  %v3556 = vunpack.c.h.b16 %v3212
  %v3557 = vunpack.c.l.b16 %v3213
  %v3558 = vunpack.c.h.b16 %v3213
  %v3559 = vunpack.c.l.b16 %v3214
  %v3560 = vunpack.c.h.b16 %v3214
  %v3561 = vunpack.c.l.b16 %v3215
  %v3562 = vunpack.c.h.b16 %v3215
  %v3563 = vunpack.c.l.b16 %v3216
  %v3564 = vunpack.c.h.b16 %v3216
  %v3565 = vunpack.c.l.b16 %v3217
  %v3566 = vunpack.c.h.b16 %v3217
  %v3567 = vunpack.c.l.b16 %v3218
  %v3568 = vunpack.c.h.b16 %v3218
  %v3569 = vunpack.c.l.b16 %v3219
  %v3570 = vunpack.c.h.b16 %v3219
  %v3571 = vunpack.c.l.b16 %v3220
  %v3572 = vunpack.c.h.b16 %v3220
  %v3573 = vunpack.c.l.b16 %v3221
  %v3574 = vunpack.c.h.b16 %v3221
  %v3575 = vunpack.c.l.b16 %v3222
  %v3576 = vunpack.c.h.b16 %v3222
  %v3577 = vunpack.c.l.b16 %v3223
  %v3578 = vunpack.c.h.b16 %v3223
  %v3579 = vunpack.c.l.b16 %v3224
  %v3580 = vunpack.c.h.b16 %v3224
  %v3581 = vunpack.c.l.b16 %v3225
  %v3582 = vunpack.c.h.b16 %v3225
  %v3583 = vunpack.c.l.b16 %v3226
  %v3584 = vunpack.c.h.b16 %v3226
  %v3585 = vunpack.c.l.b16 %v3227
  %v3586 = vunpack.c.h.b16 %v3227
  %v3587 = vunpack.c.l.b16 %v3228
  %v3588 = vunpack.c.h.b16 %v3228
  %v3589 = vunpack.c.l.b16 %v3229
  %v3590 = vunpack.c.h.b16 %v3229
  %v3591 = vunpack.c.l.b16 %v3230
  %v3592 = vunpack.c.h.b16 %v3230
  %v3593 = vunpack.c.l.b16 %v3231
  %v3594 = vunpack.c.h.b16 %v3231
  %v3595 = vunpack.c.l.b16 %v3232
  %v3596 = vunpack.c.h.b16 %v3232
  %v3597 = vunpack.c.l.b16 %v3233
  %v3598 = vunpack.c.h.b16 %v3233
  %v3599 = vpack.c.b16 %v3541, %v3539
  %v3600 = vpack.c.b16 %v3542, %v3540
  %v3601 = vpack.c.b16 %v3545, %v3543
  %v3602 = vpack.c.b16 %v3546, %v3544
  %v3603 = vpack.c.b16 %v3549, %v3547
  %v3604 = vpack.c.b16 %v3550, %v3548
  %v3605 = vpack.c.b16 %v3553, %v3551
  %v3606 = vpack.c.b16 %v3554, %v3552
  %v3607 = vpack.c.b16 %v3557, %v3555
  %v3608 = vpack.c.b16 %v3558, %v3556
  %v3609 = vpack.c.b16 %v3561, %v3559
  %v3610 = vpack.c.b16 %v3562, %v3560
  %v3611 = vpack.c.b16 %v3565, %v3563
  %v3612 = vpack.c.b16 %v3566, %v3564
  %v3613 = vpack.c.b16 %v3569, %v3567
  %v3614 = vpack.c.b16 %v3570, %v3568
  %v3615 = vpack.c.b16 %v3573, %v3571
  %v3616 = vpack.c.b16 %v3574, %v3572
  %v3617 = vpack.c.b16 %v3577, %v3575
  %v3618 = vpack.c.b16 %v3578, %v3576
  %v3619 = vpack.c.b16 %v3581, %v3579
  %v3620 = vpack.c.b16 %v3582, %v3580
  %v3621 = vpack.c.b16 %v3585, %v3583
  %v3622 = vpack.c.b16 %v3586, %v3584
  %v3623 = vpack.c.b16 %v3589, %v3587
  %v3624 = vpack.c.b16 %v3590, %v3588
  %v3625 = vpack.c.b16 %v3593, %v3591
  %v3626 = vpack.c.b16 %v3594, %v3592
  %v3627 = vpack.c.b16 %v3597, %v3595
  %v3628 = vpack.c.b16 %v3598, %v3596
  %v3660 = vsel %vm1608, %v3201, 0
  %v3663 = vsel %vm1608, %v3203, 0
  %3665 = vmatpush.bf16.msra.mxu0 %v3613
  %3666 = vmatpush.bf16.msra.mxu0 %v3611
  %3667 = vmatpush.bf16.msra.mxu0 %v3609
  %3668 = vmatpush.bf16.msra.mxu0 %v3607
  %3669 = vmatpush.bf16.msra.mxu0 %v3605
  %3670 = vmatpush.bf16.msra.mxu0 %v3603
  %3671 = vmatpush.bf16.msra.mxu0 %v3601
  %3672 = vmatpush.bf16.msra.mxu0 %v3599
  %3673 = vmatmul.bf16.gmra.mxu0 %v3200
  %v3674 = vpop.f32.mrf.mxu0
  %v3675 = vadd.f32 %v3462, %v3674
  %v3676 = vpop.f32.mrf.mxu0
  %v3677 = vadd.f32 %v3464, %v3676
  %3678 = vmatmul.bf16.gmra.mxu0 %v3202
  %v3679 = vpop.f32.mrf.mxu0
  %v3680 = vadd.f32 %v3467, %v3679
  %v3681 = vpop.f32.mrf.mxu0
  %v3682 = vadd.f32 %v3469, %v3681
  %3683 = vdwg.mxu0
  %3684 = vmatpush.bf16.msra.mxu0 0
  %3685 = vmatpush.bf16.msra.mxu0 %v3627
  %3686 = vmatpush.bf16.msra.mxu0 %v3625
  %3687 = vmatpush.bf16.msra.mxu0 %v3623
  %3688 = vmatpush.bf16.msra.mxu0 %v3621
  %3689 = vmatpush.bf16.msra.mxu0 %v3619
  %3690 = vmatpush.bf16.msra.mxu0 %v3617
  %3691 = vmatpush.bf16.msra.mxu0 %v3615
  %3692 = vmatmul.bf16.gmra.mxu0 %v3660
  %v3693 = vpop.f32.mrf.mxu0
  %v3694 = vadd.f32 %v3675, %v3693
  %v3695 = vpop.f32.mrf.mxu0
  %v3696 = vadd.f32 %v3677, %v3695
  %3697 = vmatmul.bf16.gmra.mxu0 %v3663
  %v3698 = vpop.f32.mrf.mxu0
  %v3699 = vadd.f32 %v3680, %v3698
  %v3700 = vpop.f32.mrf.mxu0
  %v3701 = vadd.f32 %v3682, %v3700
  %3702 = vdwg.mxu0
  %3703 = vmatpush.bf16.msra.mxu0 %v3614
  %3704 = vmatpush.bf16.msra.mxu0 %v3612
  %3705 = vmatpush.bf16.msra.mxu0 %v3610
  %3706 = vmatpush.bf16.msra.mxu0 %v3608
  %3707 = vmatpush.bf16.msra.mxu0 %v3606
  %3708 = vmatpush.bf16.msra.mxu0 %v3604
  %3709 = vmatpush.bf16.msra.mxu0 %v3602
  %3710 = vmatpush.bf16.msra.mxu0 %v3600
  %3711 = vmatmul.bf16.gmra.mxu0 %v3200
  %v3712 = vpop.f32.mrf.mxu0
  %v3713 = vadd.f32 %v3500, %v3712
  %v3714 = vpop.f32.mrf.mxu0
  %v3715 = vadd.f32 %v3502, %v3714
  %3716 = vmatmul.bf16.gmra.mxu0 %v3202
  %v3717 = vpop.f32.mrf.mxu0
  %v3718 = vadd.f32 %v3505, %v3717
  %v3719 = vpop.f32.mrf.mxu0
  %v3720 = vadd.f32 %v3507, %v3719
  %3721 = vdwg.mxu0
  %3722 = vmatpush.bf16.msra.mxu0 0
  %3723 = vmatpush.bf16.msra.mxu0 %v3628
  %3724 = vmatpush.bf16.msra.mxu0 %v3626
  %3725 = vmatpush.bf16.msra.mxu0 %v3624
  %3726 = vmatpush.bf16.msra.mxu0 %v3622
  %3727 = vmatpush.bf16.msra.mxu0 %v3620
  %3728 = vmatpush.bf16.msra.mxu0 %v3618
  %3729 = vmatpush.bf16.msra.mxu0 %v3616
  %3730 = vmatmul.bf16.gmra.mxu0 %v3660
  %v3731 = vpop.f32.mrf.mxu0
  %v3732 = vadd.f32 %v3713, %v3731
  %v3733 = vpop.f32.mrf.mxu0
  %v3734 = vadd.f32 %v3715, %v3733
  %3735 = vmatmul.bf16.gmra.mxu0 %v3663
  %v3736 = vpop.f32.mrf.mxu0
  %v3737 = vadd.f32 %v3718, %v3736
  %v3738 = vpop.f32.mrf.mxu0
  %v3739 = vadd.f32 %v3720, %v3738
  %3740 = vdwg.mxu0
  %v3741 = vld [vmem:[#allocation2 + $0x10] sm:$0xff]
  %v3742 = vld [vmem:[#allocation2 + $0x18] sm:$0xff]
  %v3743 = vld [vmem:[#allocation2 + $0x20] sm:$0xff]
  %v3744 = vld [vmem:[#allocation2 + $0x28] sm:$0xff]
  %v3745 = vld [vmem:[#allocation2 + $0x30] sm:$0xff]
  %v3746 = vld [vmem:[#allocation2 + $0x38] sm:$0xff]
  %v3747 = vld [vmem:[#allocation2 + $0x40] sm:$0xff]
  %v3748 = vld [vmem:[#allocation2 + $0x48] sm:$0xff]
  %v3749 = vpack.c.bf16 %v3743, %v3741
  %v3750 = vpack.c.bf16 %v3744, %v3742
  %v3751 = vpack.c.bf16 %v3747, %v3745
  %v3752 = vpack.c.bf16 %v3748, %v3746
  %s3753 = scalar_lea.vmem %s3, 480
  %v3754 = vld [vmem:[%s3753] sm:$0xff]
  %v3755 = vld [vmem:[%s3753 + $0x8] sm:$0xff]
  %v3756 = vld [vmem:[%s3753 + $0x10] sm:$0xff]
  %v3757 = vld [vmem:[%s3753 + $0x18] sm:$0xff]
  %v3758 = vld [vmem:[%s3753 + $0x20] sm:$0xff]
  %v3759 = vld [vmem:[%s3753 + $0x28] sm:$0xff]
  %v3760 = vld [vmem:[%s3753 + $0x30] sm:$0xff]
  %v3761 = vld [vmem:[%s3753 + $0x38] sm:$0xff]
  %v3762 = vld [vmem:[%s3753 + $0x40] sm:$0xff]
  %v3763 = vld [vmem:[%s3753 + $0x48] sm:$0xff]
  %v3764 = vld [vmem:[%s3753 + $0x50] sm:$0xff]
  %v3765 = vld [vmem:[%s3753 + $0x58] sm:$0xff]
  %v3766 = vld [vmem:[%s3753 + $0x60] sm:$0xff]
  %v3767 = vld [vmem:[%s3753 + $0x68] sm:$0xff]
  %v3768 = vld [vmem:[%s3753 + $0x70] sm:$0xff]
  %v3769 = vld [vmem:[%s3753 + $0x78] sm:$0xff]
  %v3770 = vld [vmem:[%s3753 + $0x80] sm:$0xff]
  %v3771 = vld [vmem:[%s3753 + $0x88] sm:$0xff]
  %v3772 = vld [vmem:[%s3753 + $0x90] sm:$0xff]
  %v3773 = vld [vmem:[%s3753 + $0x98] sm:$0xff]
  %v3774 = vld [vmem:[%s3753 + $0xa0] sm:$0xff]
  %v3775 = vld [vmem:[%s3753 + $0xa8] sm:$0xff]
  %v3776 = vld [vmem:[%s3753 + $0xb0] sm:$0xff]
  %v3777 = vld [vmem:[%s3753 + $0xb8] sm:$0xff]
  %v3778 = vld [vmem:[%s3753 + $0xc0] sm:$0xff]
  %v3779 = vld [vmem:[%s3753 + $0xc8] sm:$0xff]
  %v3780 = vld [vmem:[%s3753 + $0xd0] sm:$0xff]
  %v3781 = vld [vmem:[%s3753 + $0xd8] sm:$0xff]
  %v3782 = vld [vmem:[%s3753 + $0xe0] sm:$0xff]
  %v3783 = vld [vmem:[%s3753 + $0xe8] sm:$0xff]
  %v3814 = vunpack.c.l.b16 %v3754
  %v3815 = vunpack.c.h.b16 %v3754
  %v3816 = vunpack.c.l.b16 %v3755
  %v3817 = vunpack.c.h.b16 %v3755
  %v3818 = vunpack.c.l.b16 %v3756
  %v3819 = vunpack.c.h.b16 %v3756
  %v3820 = vunpack.c.l.b16 %v3757
  %v3821 = vunpack.c.h.b16 %v3757
  %v3822 = vunpack.c.l.b16 %v3758
  %v3823 = vunpack.c.h.b16 %v3758
  %v3824 = vunpack.c.l.b16 %v3759
  %v3825 = vunpack.c.h.b16 %v3759
  %v3826 = vunpack.c.l.b16 %v3760
  %v3827 = vunpack.c.h.b16 %v3760
  %v3828 = vunpack.c.l.b16 %v3761
  %v3829 = vunpack.c.h.b16 %v3761
  %v3830 = vunpack.c.l.b16 %v3762
  %v3831 = vunpack.c.h.b16 %v3762
  %v3832 = vunpack.c.l.b16 %v3763
  %v3833 = vunpack.c.h.b16 %v3763
  %v3834 = vunpack.c.l.b16 %v3764
  %v3835 = vunpack.c.h.b16 %v3764
  %v3836 = vunpack.c.l.b16 %v3765
  %v3837 = vunpack.c.h.b16 %v3765
  %v3838 = vunpack.c.l.b16 %v3766
  %v3839 = vunpack.c.h.b16 %v3766
  %v3840 = vunpack.c.l.b16 %v3767
  %v3841 = vunpack.c.h.b16 %v3767
  %v3842 = vunpack.c.l.b16 %v3768
  %v3843 = vunpack.c.h.b16 %v3768
  %v3844 = vunpack.c.l.b16 %v3769
  %v3845 = vunpack.c.h.b16 %v3769
  %v3846 = vunpack.c.l.b16 %v3770
  %v3847 = vunpack.c.h.b16 %v3770
  %v3848 = vunpack.c.l.b16 %v3771
  %v3849 = vunpack.c.h.b16 %v3771
  %v3850 = vunpack.c.l.b16 %v3772
  %v3851 = vunpack.c.h.b16 %v3772
  %v3852 = vunpack.c.l.b16 %v3773
  %v3853 = vunpack.c.h.b16 %v3773
  %v3854 = vunpack.c.l.b16 %v3774
  %v3855 = vunpack.c.h.b16 %v3774
  %v3856 = vunpack.c.l.b16 %v3775
  %v3857 = vunpack.c.h.b16 %v3775
  %v3858 = vunpack.c.l.b16 %v3776
  %v3859 = vunpack.c.h.b16 %v3776
  %v3860 = vunpack.c.l.b16 %v3777
  %v3861 = vunpack.c.h.b16 %v3777
  %v3862 = vunpack.c.l.b16 %v3778
  %v3863 = vunpack.c.h.b16 %v3778
  %v3864 = vunpack.c.l.b16 %v3779
  %v3865 = vunpack.c.h.b16 %v3779
  %v3866 = vunpack.c.l.b16 %v3780
  %v3867 = vunpack.c.h.b16 %v3780
  %v3868 = vunpack.c.l.b16 %v3781
  %v3869 = vunpack.c.h.b16 %v3781
  %v3870 = vunpack.c.l.b16 %v3782
  %v3871 = vunpack.c.h.b16 %v3782
  %v3872 = vunpack.c.l.b16 %v3783
  %v3873 = vunpack.c.h.b16 %v3783
  %v3874 = vpack.c.b16 %v3816, %v3814
  %v3875 = vpack.c.b16 %v3817, %v3815
  %v3876 = vpack.c.b16 %v3820, %v3818
  %v3877 = vpack.c.b16 %v3821, %v3819
  %v3878 = vpack.c.b16 %v3824, %v3822
  %v3879 = vpack.c.b16 %v3825, %v3823
  %v3880 = vpack.c.b16 %v3828, %v3826
  %v3881 = vpack.c.b16 %v3829, %v3827
  %v3882 = vpack.c.b16 %v3832, %v3830
  %v3883 = vpack.c.b16 %v3833, %v3831
  %v3884 = vpack.c.b16 %v3836, %v3834
  %v3885 = vpack.c.b16 %v3837, %v3835
  %v3886 = vpack.c.b16 %v3840, %v3838
  %v3887 = vpack.c.b16 %v3841, %v3839
  %v3888 = vpack.c.b16 %v3844, %v3842
  %v3889 = vpack.c.b16 %v3845, %v3843
  %v3890 = vpack.c.b16 %v3848, %v3846
  %v3891 = vpack.c.b16 %v3849, %v3847
  %v3892 = vpack.c.b16 %v3852, %v3850
  %v3893 = vpack.c.b16 %v3853, %v3851
  %v3894 = vpack.c.b16 %v3856, %v3854
  %v3895 = vpack.c.b16 %v3857, %v3855
  %v3896 = vpack.c.b16 %v3860, %v3858
  %v3897 = vpack.c.b16 %v3861, %v3859
  %v3898 = vpack.c.b16 %v3864, %v3862
  %v3899 = vpack.c.b16 %v3865, %v3863
  %v3900 = vpack.c.b16 %v3868, %v3866
  %v3901 = vpack.c.b16 %v3869, %v3867
  %v3902 = vpack.c.b16 %v3872, %v3870
  %v3903 = vpack.c.b16 %v3873, %v3871
  %v3935 = vsel %vm1608, %v3750, 0
  %v3938 = vsel %vm1608, %v3752, 0
  %3940 = vmatpush.bf16.msra.mxu0 %v3888
  %3941 = vmatpush.bf16.msra.mxu0 %v3886
  %3942 = vmatpush.bf16.msra.mxu0 %v3884
  %3943 = vmatpush.bf16.msra.mxu0 %v3882
  %3944 = vmatpush.bf16.msra.mxu0 %v3880
  %3945 = vmatpush.bf16.msra.mxu0 %v3878
  %3946 = vmatpush.bf16.msra.mxu0 %v3876
  %3947 = vmatpush.bf16.msra.mxu0 %v3874
  %3948 = vmatmul.bf16.gmra.mxu0 %v3749
  %v3949 = vpop.f32.mrf.mxu0
  %v3950 = vadd.f32 0.0, %v3949
  %v3951 = vpop.f32.mrf.mxu0
  %v3952 = vadd.f32 0.0, %v3951
  %3953 = vmatmul.bf16.gmra.mxu0 %v3751
  %v3954 = vpop.f32.mrf.mxu0
  %v3955 = vadd.f32 0.0, %v3954
  %v3956 = vpop.f32.mrf.mxu0
  %v3957 = vadd.f32 0.0, %v3956
  %3958 = vdwg.mxu0
  %3959 = vmatpush.bf16.msra.mxu0 0
  %3960 = vmatpush.bf16.msra.mxu0 %v3902
  %3961 = vmatpush.bf16.msra.mxu0 %v3900
  %3962 = vmatpush.bf16.msra.mxu0 %v3898
  %3963 = vmatpush.bf16.msra.mxu0 %v3896
  %3964 = vmatpush.bf16.msra.mxu0 %v3894
  %3965 = vmatpush.bf16.msra.mxu0 %v3892
  %3966 = vmatpush.bf16.msra.mxu0 %v3890
  %3967 = vmatmul.bf16.gmra.mxu0 %v3935
  %v3968 = vpop.f32.mrf.mxu0
  %v3969 = vadd.f32 %v3950, %v3968
  %v3970 = vpop.f32.mrf.mxu0
  %v3971 = vadd.f32 %v3952, %v3970
  %3972 = vmatmul.bf16.gmra.mxu0 %v3938
  %v3973 = vpop.f32.mrf.mxu0
  %v3974 = vadd.f32 %v3955, %v3973
  %v3975 = vpop.f32.mrf.mxu0
  %v3976 = vadd.f32 %v3957, %v3975
  %3977 = vdwg.mxu0
  %3978 = vmatpush.bf16.msra.mxu0 %v3889
  %3979 = vmatpush.bf16.msra.mxu0 %v3887
  %3980 = vmatpush.bf16.msra.mxu0 %v3885
  %3981 = vmatpush.bf16.msra.mxu0 %v3883
  %3982 = vmatpush.bf16.msra.mxu0 %v3881
  %3983 = vmatpush.bf16.msra.mxu0 %v3879
  %3984 = vmatpush.bf16.msra.mxu0 %v3877
  %3985 = vmatpush.bf16.msra.mxu0 %v3875
  %3986 = vmatmul.bf16.gmra.mxu0 %v3749
  %v3987 = vpop.f32.mrf.mxu0
  %v3988 = vadd.f32 0.0, %v3987
  %v3989 = vpop.f32.mrf.mxu0
  %v3990 = vadd.f32 0.0, %v3989
  %3991 = vmatmul.bf16.gmra.mxu0 %v3751
  %v3992 = vpop.f32.mrf.mxu0
  %v3993 = vadd.f32 0.0, %v3992
  %v3994 = vpop.f32.mrf.mxu0
  %v3995 = vadd.f32 0.0, %v3994
  %3996 = vdwg.mxu0
  %3997 = vmatpush.bf16.msra.mxu0 0
  %3998 = vmatpush.bf16.msra.mxu0 %v3903
  %3999 = vmatpush.bf16.msra.mxu0 %v3901
  %4000 = vmatpush.bf16.msra.mxu0 %v3899
  %4001 = vmatpush.bf16.msra.mxu0 %v3897
  %4002 = vmatpush.bf16.msra.mxu0 %v3895
  %4003 = vmatpush.bf16.msra.mxu0 %v3893
  %4004 = vmatpush.bf16.msra.mxu0 %v3891
  %4005 = vmatmul.bf16.gmra.mxu0 %v3935
  %v4006 = vpop.f32.mrf.mxu0
  %v4007 = vadd.f32 %v3988, %v4006
  %v4008 = vpop.f32.mrf.mxu0
  %v4009 = vadd.f32 %v3990, %v4008
  %4010 = vmatmul.bf16.gmra.mxu0 %v3938
  %v4011 = vpop.f32.mrf.mxu0
  %v4012 = vadd.f32 %v3993, %v4011
  %v4013 = vpop.f32.mrf.mxu0
  %v4014 = vadd.f32 %v3995, %v4013
  %4015 = vdwg.mxu0
  %v4016 = vadd.f32 %v3694, %v3969
  %v4017 = vadd.f32 %v3732, %v4007
  %v4018 = vadd.f32 %v3696, %v3971
  %v4019 = vadd.f32 %v3734, %v4009
  %v4020 = vadd.f32 %v3699, %v3974
  %v4021 = vadd.f32 %v3737, %v4012
  %v4022 = vadd.f32 %v3701, %v3976
  %v4023 = vadd.f32 %v3739, %v4014
  %v4024 = vld [vmem:[#allocation3 + $0x10] sm:$0xff]
  %v4025 = vld [vmem:[#allocation3 + $0x18] sm:$0xff]
  %v4026 = vld [vmem:[#allocation3 + $0x20] sm:$0xff]
  %v4027 = vld [vmem:[#allocation3 + $0x28] sm:$0xff]
  %v4028 = vld [vmem:[#allocation3 + $0x30] sm:$0xff]
  %v4029 = vld [vmem:[#allocation3 + $0x38] sm:$0xff]
  %v4030 = vld [vmem:[#allocation3 + $0x40] sm:$0xff]
  %v4031 = vld [vmem:[#allocation3 + $0x48] sm:$0xff]
  %v4032 = vpack.c.bf16 %v4026, %v4024
  %v4033 = vpack.c.bf16 %v4027, %v4025
  %v4034 = vpack.c.bf16 %v4030, %v4028
  %v4035 = vpack.c.bf16 %v4031, %v4029
  %s4036 = scalar_lea.vmem %s3, 720
  %v4037 = vld [vmem:[%s4036] sm:$0xff]
  %v4038 = vld [vmem:[%s4036 + $0x8] sm:$0xff]
  %v4039 = vld [vmem:[%s4036 + $0x10] sm:$0xff]
  %v4040 = vld [vmem:[%s4036 + $0x18] sm:$0xff]
  %v4041 = vld [vmem:[%s4036 + $0x20] sm:$0xff]
  %v4042 = vld [vmem:[%s4036 + $0x28] sm:$0xff]
  %v4043 = vld [vmem:[%s4036 + $0x30] sm:$0xff]
  %v4044 = vld [vmem:[%s4036 + $0x38] sm:$0xff]
  %v4045 = vld [vmem:[%s4036 + $0x40] sm:$0xff]
  %v4046 = vld [vmem:[%s4036 + $0x48] sm:$0xff]
  %v4047 = vld [vmem:[%s4036 + $0x50] sm:$0xff]
  %v4048 = vld [vmem:[%s4036 + $0x58] sm:$0xff]
  %v4049 = vld [vmem:[%s4036 + $0x60] sm:$0xff]
  %v4050 = vld [vmem:[%s4036 + $0x68] sm:$0xff]
  %v4051 = vld [vmem:[%s4036 + $0x70] sm:$0xff]
  %v4052 = vld [vmem:[%s4036 + $0x78] sm:$0xff]
  %v4053 = vld [vmem:[%s4036 + $0x80] sm:$0xff]
  %v4054 = vld [vmem:[%s4036 + $0x88] sm:$0xff]
  %v4055 = vld [vmem:[%s4036 + $0x90] sm:$0xff]
  %v4056 = vld [vmem:[%s4036 + $0x98] sm:$0xff]
  %v4057 = vld [vmem:[%s4036 + $0xa0] sm:$0xff]
  %v4058 = vld [vmem:[%s4036 + $0xa8] sm:$0xff]
  %v4059 = vld [vmem:[%s4036 + $0xb0] sm:$0xff]
  %v4060 = vld [vmem:[%s4036 + $0xb8] sm:$0xff]
  %v4061 = vld [vmem:[%s4036 + $0xc0] sm:$0xff]
  %v4062 = vld [vmem:[%s4036 + $0xc8] sm:$0xff]
  %v4063 = vld [vmem:[%s4036 + $0xd0] sm:$0xff]
  %v4064 = vld [vmem:[%s4036 + $0xd8] sm:$0xff]
  %v4065 = vld [vmem:[%s4036 + $0xe0] sm:$0xff]
  %v4066 = vld [vmem:[%s4036 + $0xe8] sm:$0xff]
  %v4097 = vunpack.c.l.b16 %v4037
  %v4098 = vunpack.c.h.b16 %v4037
  %v4099 = vunpack.c.l.b16 %v4038
  %v4100 = vunpack.c.h.b16 %v4038
  %v4101 = vunpack.c.l.b16 %v4039
  %v4102 = vunpack.c.h.b16 %v4039
  %v4103 = vunpack.c.l.b16 %v4040
  %v4104 = vunpack.c.h.b16 %v4040
  %v4105 = vunpack.c.l.b16 %v4041
  %v4106 = vunpack.c.h.b16 %v4041
  %v4107 = vunpack.c.l.b16 %v4042
  %v4108 = vunpack.c.h.b16 %v4042
  %v4109 = vunpack.c.l.b16 %v4043
  %v4110 = vunpack.c.h.b16 %v4043
  %v4111 = vunpack.c.l.b16 %v4044
  %v4112 = vunpack.c.h.b16 %v4044
  %v4113 = vunpack.c.l.b16 %v4045
  %v4114 = vunpack.c.h.b16 %v4045
  %v4115 = vunpack.c.l.b16 %v4046
  %v4116 = vunpack.c.h.b16 %v4046
  %v4117 = vunpack.c.l.b16 %v4047
  %v4118 = vunpack.c.h.b16 %v4047
  %v4119 = vunpack.c.l.b16 %v4048
  %v4120 = vunpack.c.h.b16 %v4048
  %v4121 = vunpack.c.l.b16 %v4049
  %v4122 = vunpack.c.h.b16 %v4049
  %v4123 = vunpack.c.l.b16 %v4050
  %v4124 = vunpack.c.h.b16 %v4050
  %v4125 = vunpack.c.l.b16 %v4051
  %v4126 = vunpack.c.h.b16 %v4051
  %v4127 = vunpack.c.l.b16 %v4052
  %v4128 = vunpack.c.h.b16 %v4052
  %v4129 = vunpack.c.l.b16 %v4053
  %v4130 = vunpack.c.h.b16 %v4053
  %v4131 = vunpack.c.l.b16 %v4054
  %v4132 = vunpack.c.h.b16 %v4054
  %v4133 = vunpack.c.l.b16 %v4055
  %v4134 = vunpack.c.h.b16 %v4055
  %v4135 = vunpack.c.l.b16 %v4056
  %v4136 = vunpack.c.h.b16 %v4056
  %v4137 = vunpack.c.l.b16 %v4057
  %v4138 = vunpack.c.h.b16 %v4057
  %v4139 = vunpack.c.l.b16 %v4058
  %v4140 = vunpack.c.h.b16 %v4058
  %v4141 = vunpack.c.l.b16 %v4059
  %v4142 = vunpack.c.h.b16 %v4059
  %v4143 = vunpack.c.l.b16 %v4060
  %v4144 = vunpack.c.h.b16 %v4060
  %v4145 = vunpack.c.l.b16 %v4061
  %v4146 = vunpack.c.h.b16 %v4061
  %v4147 = vunpack.c.l.b16 %v4062
  %v4148 = vunpack.c.h.b16 %v4062
  %v4149 = vunpack.c.l.b16 %v4063
  %v4150 = vunpack.c.h.b16 %v4063
  %v4151 = vunpack.c.l.b16 %v4064
  %v4152 = vunpack.c.h.b16 %v4064
  %v4153 = vunpack.c.l.b16 %v4065
  %v4154 = vunpack.c.h.b16 %v4065
  %v4155 = vunpack.c.l.b16 %v4066
  %v4156 = vunpack.c.h.b16 %v4066
  %v4157 = vpack.c.b16 %v4099, %v4097
  %v4158 = vpack.c.b16 %v4100, %v4098
  %v4159 = vpack.c.b16 %v4103, %v4101
  %v4160 = vpack.c.b16 %v4104, %v4102
  %v4161 = vpack.c.b16 %v4107, %v4105
  %v4162 = vpack.c.b16 %v4108, %v4106
  %v4163 = vpack.c.b16 %v4111, %v4109
  %v4164 = vpack.c.b16 %v4112, %v4110
  %v4165 = vpack.c.b16 %v4115, %v4113
  %v4166 = vpack.c.b16 %v4116, %v4114
  %v4167 = vpack.c.b16 %v4119, %v4117
  %v4168 = vpack.c.b16 %v4120, %v4118
  %v4169 = vpack.c.b16 %v4123, %v4121
  %v4170 = vpack.c.b16 %v4124, %v4122
  %v4171 = vpack.c.b16 %v4127, %v4125
  %v4172 = vpack.c.b16 %v4128, %v4126
  %v4173 = vpack.c.b16 %v4131, %v4129
  %v4174 = vpack.c.b16 %v4132, %v4130
  %v4175 = vpack.c.b16 %v4135, %v4133
  %v4176 = vpack.c.b16 %v4136, %v4134
  %v4177 = vpack.c.b16 %v4139, %v4137
  %v4178 = vpack.c.b16 %v4140, %v4138
  %v4179 = vpack.c.b16 %v4143, %v4141
  %v4180 = vpack.c.b16 %v4144, %v4142
  %v4181 = vpack.c.b16 %v4147, %v4145
  %v4182 = vpack.c.b16 %v4148, %v4146
  %v4183 = vpack.c.b16 %v4151, %v4149
  %v4184 = vpack.c.b16 %v4152, %v4150
  %v4185 = vpack.c.b16 %v4155, %v4153
  %v4186 = vpack.c.b16 %v4156, %v4154
  %v4218 = vsel %vm1608, %v4033, 0
  %v4221 = vsel %vm1608, %v4035, 0
  %4223 = vmatpush.bf16.msra.mxu0 %v4171
  %4224 = vmatpush.bf16.msra.mxu0 %v4169
  %4225 = vmatpush.bf16.msra.mxu0 %v4167
  %4226 = vmatpush.bf16.msra.mxu0 %v4165
  %4227 = vmatpush.bf16.msra.mxu0 %v4163
  %4228 = vmatpush.bf16.msra.mxu0 %v4161
  %4229 = vmatpush.bf16.msra.mxu0 %v4159
  %4230 = vmatpush.bf16.msra.mxu0 %v4157
  %4231 = vmatmul.bf16.gmra.mxu0 %v4032
  %v4232 = vpop.f32.mrf.mxu0
  %v4233 = vadd.f32 0.0, %v4232
  %v4234 = vpop.f32.mrf.mxu0
  %v4235 = vadd.f32 0.0, %v4234
  %4236 = vmatmul.bf16.gmra.mxu0 %v4034
  %v4237 = vpop.f32.mrf.mxu0
  %v4238 = vadd.f32 0.0, %v4237
  %v4239 = vpop.f32.mrf.mxu0
  %v4240 = vadd.f32 0.0, %v4239
  %4241 = vdwg.mxu0
  %4242 = vmatpush.bf16.msra.mxu0 0
  %4243 = vmatpush.bf16.msra.mxu0 %v4185
  %4244 = vmatpush.bf16.msra.mxu0 %v4183
  %4245 = vmatpush.bf16.msra.mxu0 %v4181
  %4246 = vmatpush.bf16.msra.mxu0 %v4179
  %4247 = vmatpush.bf16.msra.mxu0 %v4177
  %4248 = vmatpush.bf16.msra.mxu0 %v4175
  %4249 = vmatpush.bf16.msra.mxu0 %v4173
  %4250 = vmatmul.bf16.gmra.mxu0 %v4218
  %v4251 = vpop.f32.mrf.mxu0
  %v4252 = vadd.f32 %v4233, %v4251
  %v4253 = vpop.f32.mrf.mxu0
  %v4254 = vadd.f32 %v4235, %v4253
  %4255 = vmatmul.bf16.gmra.mxu0 %v4221
  %v4256 = vpop.f32.mrf.mxu0
  %v4257 = vadd.f32 %v4238, %v4256
  %v4258 = vpop.f32.mrf.mxu0
  %v4259 = vadd.f32 %v4240, %v4258
  %4260 = vdwg.mxu0
  %4261 = vmatpush.bf16.msra.mxu0 %v4172
  %4262 = vmatpush.bf16.msra.mxu0 %v4170
  %4263 = vmatpush.bf16.msra.mxu0 %v4168
  %4264 = vmatpush.bf16.msra.mxu0 %v4166
  %4265 = vmatpush.bf16.msra.mxu0 %v4164
  %4266 = vmatpush.bf16.msra.mxu0 %v4162
  %4267 = vmatpush.bf16.msra.mxu0 %v4160
  %4268 = vmatpush.bf16.msra.mxu0 %v4158
  %4269 = vmatmul.bf16.gmra.mxu0 %v4032
  %v4270 = vpop.f32.mrf.mxu0
  %v4271 = vadd.f32 0.0, %v4270
  %v4272 = vpop.f32.mrf.mxu0
  %v4273 = vadd.f32 0.0, %v4272
  %4274 = vmatmul.bf16.gmra.mxu0 %v4034
  %v4275 = vpop.f32.mrf.mxu0
  %v4276 = vadd.f32 0.0, %v4275
  %v4277 = vpop.f32.mrf.mxu0
  %v4278 = vadd.f32 0.0, %v4277
  %4279 = vdwg.mxu0
  %4280 = vmatpush.bf16.msra.mxu0 0
  %4281 = vmatpush.bf16.msra.mxu0 %v4186
  %4282 = vmatpush.bf16.msra.mxu0 %v4184
  %4283 = vmatpush.bf16.msra.mxu0 %v4182
  %4284 = vmatpush.bf16.msra.mxu0 %v4180
  %4285 = vmatpush.bf16.msra.mxu0 %v4178
  %4286 = vmatpush.bf16.msra.mxu0 %v4176
  %4287 = vmatpush.bf16.msra.mxu0 %v4174
  %4288 = vmatmul.bf16.gmra.mxu0 %v4218
  %v4289 = vpop.f32.mrf.mxu0
  %v4290 = vadd.f32 %v4271, %v4289
  %v4291 = vpop.f32.mrf.mxu0
  %v4292 = vadd.f32 %v4273, %v4291
  %4293 = vmatmul.bf16.gmra.mxu0 %v4221
  %v4294 = vpop.f32.mrf.mxu0
  %v4295 = vadd.f32 %v4276, %v4294
  %v4296 = vpop.f32.mrf.mxu0
  %v4297 = vadd.f32 %v4278, %v4296
  %4298 = vdwg.mxu0
  %v4299 = vadd.f32 %v4016, %v4252
  %v4300 = vadd.f32 %v4017, %v4290
  %v4301 = vadd.f32 %v4018, %v4254
  %v4302 = vadd.f32 %v4019, %v4292
  %v4303 = vadd.f32 %v4020, %v4257
  %v4304 = vadd.f32 %v4021, %v4295
  %v4305 = vadd.f32 %v4022, %v4259
  %v4306 = vadd.f32 %v4023, %v4297
  %v4307 = vld [vmem:[#allocation2 + $0x20] sm:$0xff]
  %v4308 = vld [vmem:[#allocation2 + $0x28] sm:$0xff]
  %v4309 = vld [vmem:[#allocation2 + $0x30] sm:$0xff]
  %v4310 = vld [vmem:[#allocation2 + $0x38] sm:$0xff]
  %v4311 = vld [vmem:[#allocation2 + $0x40] sm:$0xff]
  %v4312 = vld [vmem:[#allocation2 + $0x48] sm:$0xff]
  %v4313 = vld [vmem:[#allocation2 + $0x50] sm:$0xff]
  %v4314 = vld [vmem:[#allocation2 + $0x58] sm:$0xff]
  %v4315 = vpack.c.bf16 %v4309, %v4307
  %v4316 = vpack.c.bf16 %v4310, %v4308
  %v4317 = vpack.c.bf16 %v4313, %v4311
  %v4318 = vpack.c.bf16 %v4314, %v4312
  %s4319 = scalar_lea.vmem %s3, 960
  %v4320 = vld [vmem:[%s4319] sm:$0xff]
  %v4321 = vld [vmem:[%s4319 + $0x8] sm:$0xff]
  %v4322 = vld [vmem:[%s4319 + $0x10] sm:$0xff]
  %v4323 = vld [vmem:[%s4319 + $0x18] sm:$0xff]
  %v4324 = vld [vmem:[%s4319 + $0x20] sm:$0xff]
  %v4325 = vld [vmem:[%s4319 + $0x28] sm:$0xff]
  %v4326 = vld [vmem:[%s4319 + $0x30] sm:$0xff]
  %v4327 = vld [vmem:[%s4319 + $0x38] sm:$0xff]
  %v4328 = vld [vmem:[%s4319 + $0x40] sm:$0xff]
  %v4329 = vld [vmem:[%s4319 + $0x48] sm:$0xff]
  %v4330 = vld [vmem:[%s4319 + $0x50] sm:$0xff]
  %v4331 = vld [vmem:[%s4319 + $0x58] sm:$0xff]
  %v4332 = vld [vmem:[%s4319 + $0x60] sm:$0xff]
  %v4333 = vld [vmem:[%s4319 + $0x68] sm:$0xff]
  %v4334 = vld [vmem:[%s4319 + $0x70] sm:$0xff]
  %v4335 = vld [vmem:[%s4319 + $0x78] sm:$0xff]
  %v4336 = vld [vmem:[%s4319 + $0x80] sm:$0xff]
  %v4337 = vld [vmem:[%s4319 + $0x88] sm:$0xff]
  %v4338 = vld [vmem:[%s4319 + $0x90] sm:$0xff]
  %v4339 = vld [vmem:[%s4319 + $0x98] sm:$0xff]
  %v4340 = vld [vmem:[%s4319 + $0xa0] sm:$0xff]
  %v4341 = vld [vmem:[%s4319 + $0xa8] sm:$0xff]
  %v4342 = vld [vmem:[%s4319 + $0xb0] sm:$0xff]
  %v4343 = vld [vmem:[%s4319 + $0xb8] sm:$0xff]
  %v4344 = vld [vmem:[%s4319 + $0xc0] sm:$0xff]
  %v4345 = vld [vmem:[%s4319 + $0xc8] sm:$0xff]
  %v4346 = vld [vmem:[%s4319 + $0xd0] sm:$0xff]
  %v4347 = vld [vmem:[%s4319 + $0xd8] sm:$0xff]
  %v4348 = vld [vmem:[%s4319 + $0xe0] sm:$0xff]
  %v4349 = vld [vmem:[%s4319 + $0xe8] sm:$0xff]
  %v4380 = vunpack.c.l.b16 %v4320
  %v4381 = vunpack.c.h.b16 %v4320
  %v4382 = vunpack.c.l.b16 %v4321
  %v4383 = vunpack.c.h.b16 %v4321
  %v4384 = vunpack.c.l.b16 %v4322
  %v4385 = vunpack.c.h.b16 %v4322
  %v4386 = vunpack.c.l.b16 %v4323
  %v4387 = vunpack.c.h.b16 %v4323
  %v4388 = vunpack.c.l.b16 %v4324
  %v4389 = vunpack.c.h.b16 %v4324
  %v4390 = vunpack.c.l.b16 %v4325
  %v4391 = vunpack.c.h.b16 %v4325
  %v4392 = vunpack.c.l.b16 %v4326
  %v4393 = vunpack.c.h.b16 %v4326
  %v4394 = vunpack.c.l.b16 %v4327
  %v4395 = vunpack.c.h.b16 %v4327
  %v4396 = vunpack.c.l.b16 %v4328
  %v4397 = vunpack.c.h.b16 %v4328
  %v4398 = vunpack.c.l.b16 %v4329
  %v4399 = vunpack.c.h.b16 %v4329
  %v4400 = vunpack.c.l.b16 %v4330
  %v4401 = vunpack.c.h.b16 %v4330
  %v4402 = vunpack.c.l.b16 %v4331
  %v4403 = vunpack.c.h.b16 %v4331
  %v4404 = vunpack.c.l.b16 %v4332
  %v4405 = vunpack.c.h.b16 %v4332
  %v4406 = vunpack.c.l.b16 %v4333
  %v4407 = vunpack.c.h.b16 %v4333
  %v4408 = vunpack.c.l.b16 %v4334
  %v4409 = vunpack.c.h.b16 %v4334
  %v4410 = vunpack.c.l.b16 %v4335
  %v4411 = vunpack.c.h.b16 %v4335
  %v4412 = vunpack.c.l.b16 %v4336
  %v4413 = vunpack.c.h.b16 %v4336
  %v4414 = vunpack.c.l.b16 %v4337
  %v4415 = vunpack.c.h.b16 %v4337
  %v4416 = vunpack.c.l.b16 %v4338
  %v4417 = vunpack.c.h.b16 %v4338
  %v4418 = vunpack.c.l.b16 %v4339
  %v4419 = vunpack.c.h.b16 %v4339
  %v4420 = vunpack.c.l.b16 %v4340
  %v4421 = vunpack.c.h.b16 %v4340
  %v4422 = vunpack.c.l.b16 %v4341
  %v4423 = vunpack.c.h.b16 %v4341
  %v4424 = vunpack.c.l.b16 %v4342
  %v4425 = vunpack.c.h.b16 %v4342
  %v4426 = vunpack.c.l.b16 %v4343
  %v4427 = vunpack.c.h.b16 %v4343
  %v4428 = vunpack.c.l.b16 %v4344
  %v4429 = vunpack.c.h.b16 %v4344
  %v4430 = vunpack.c.l.b16 %v4345
  %v4431 = vunpack.c.h.b16 %v4345
  %v4432 = vunpack.c.l.b16 %v4346
  %v4433 = vunpack.c.h.b16 %v4346
  %v4434 = vunpack.c.l.b16 %v4347
  %v4435 = vunpack.c.h.b16 %v4347
  %v4436 = vunpack.c.l.b16 %v4348
  %v4437 = vunpack.c.h.b16 %v4348
  %v4438 = vunpack.c.l.b16 %v4349
  %v4439 = vunpack.c.h.b16 %v4349
  %v4440 = vpack.c.b16 %v4382, %v4380
  %v4441 = vpack.c.b16 %v4383, %v4381
  %v4442 = vpack.c.b16 %v4386, %v4384
  %v4443 = vpack.c.b16 %v4387, %v4385
  %v4444 = vpack.c.b16 %v4390, %v4388
  %v4445 = vpack.c.b16 %v4391, %v4389
  %v4446 = vpack.c.b16 %v4394, %v4392
  %v4447 = vpack.c.b16 %v4395, %v4393
  %v4448 = vpack.c.b16 %v4398, %v4396
  %v4449 = vpack.c.b16 %v4399, %v4397
  %v4450 = vpack.c.b16 %v4402, %v4400
  %v4451 = vpack.c.b16 %v4403, %v4401
  %v4452 = vpack.c.b16 %v4406, %v4404
  %v4453 = vpack.c.b16 %v4407, %v4405
  %v4454 = vpack.c.b16 %v4410, %v4408
  %v4455 = vpack.c.b16 %v4411, %v4409
  %v4456 = vpack.c.b16 %v4414, %v4412
  %v4457 = vpack.c.b16 %v4415, %v4413
  %v4458 = vpack.c.b16 %v4418, %v4416
  %v4459 = vpack.c.b16 %v4419, %v4417
  %v4460 = vpack.c.b16 %v4422, %v4420
  %v4461 = vpack.c.b16 %v4423, %v4421
  %v4462 = vpack.c.b16 %v4426, %v4424
  %v4463 = vpack.c.b16 %v4427, %v4425
  %v4464 = vpack.c.b16 %v4430, %v4428
  %v4465 = vpack.c.b16 %v4431, %v4429
  %v4466 = vpack.c.b16 %v4434, %v4432
  %v4467 = vpack.c.b16 %v4435, %v4433
  %v4468 = vpack.c.b16 %v4438, %v4436
  %v4469 = vpack.c.b16 %v4439, %v4437
  %v4501 = vsel %vm1608, %v4316, 0
  %v4504 = vsel %vm1608, %v4318, 0
  %4506 = vmatpush.bf16.msra.mxu0 %v4454
  %4507 = vmatpush.bf16.msra.mxu0 %v4452
  %4508 = vmatpush.bf16.msra.mxu0 %v4450
  %4509 = vmatpush.bf16.msra.mxu0 %v4448
  %4510 = vmatpush.bf16.msra.mxu0 %v4446
  %4511 = vmatpush.bf16.msra.mxu0 %v4444
  %4512 = vmatpush.bf16.msra.mxu0 %v4442
  %4513 = vmatpush.bf16.msra.mxu0 %v4440
  %4514 = vmatmul.bf16.gmra.mxu0 %v4315
  %v4515 = vpop.f32.mrf.mxu0
  %v4516 = vadd.f32 0.0, %v4515
  %v4517 = vpop.f32.mrf.mxu0
  %v4518 = vadd.f32 0.0, %v4517
  %4519 = vmatmul.bf16.gmra.mxu0 %v4317
  %v4520 = vpop.f32.mrf.mxu0
  %v4521 = vadd.f32 0.0, %v4520
  %v4522 = vpop.f32.mrf.mxu0
  %v4523 = vadd.f32 0.0, %v4522
  %4524 = vdwg.mxu0
  %4525 = vmatpush.bf16.msra.mxu0 0
  %4526 = vmatpush.bf16.msra.mxu0 %v4468
  %4527 = vmatpush.bf16.msra.mxu0 %v4466
  %4528 = vmatpush.bf16.msra.mxu0 %v4464
  %4529 = vmatpush.bf16.msra.mxu0 %v4462
  %4530 = vmatpush.bf16.msra.mxu0 %v4460
  %4531 = vmatpush.bf16.msra.mxu0 %v4458
  %4532 = vmatpush.bf16.msra.mxu0 %v4456
  %4533 = vmatmul.bf16.gmra.mxu0 %v4501
  %v4534 = vpop.f32.mrf.mxu0
  %v4535 = vadd.f32 %v4516, %v4534
  %v4536 = vpop.f32.mrf.mxu0
  %v4537 = vadd.f32 %v4518, %v4536
  %4538 = vmatmul.bf16.gmra.mxu0 %v4504
  %v4539 = vpop.f32.mrf.mxu0
  %v4540 = vadd.f32 %v4521, %v4539
  %v4541 = vpop.f32.mrf.mxu0
  %v4542 = vadd.f32 %v4523, %v4541
  %4543 = vdwg.mxu0
  %4544 = vmatpush.bf16.msra.mxu0 %v4455
  %4545 = vmatpush.bf16.msra.mxu0 %v4453
  %4546 = vmatpush.bf16.msra.mxu0 %v4451
  %4547 = vmatpush.bf16.msra.mxu0 %v4449
  %4548 = vmatpush.bf16.msra.mxu0 %v4447
  %4549 = vmatpush.bf16.msra.mxu0 %v4445
  %4550 = vmatpush.bf16.msra.mxu0 %v4443
  %4551 = vmatpush.bf16.msra.mxu0 %v4441
  %4552 = vmatmul.bf16.gmra.mxu0 %v4315
  %v4553 = vpop.f32.mrf.mxu0
  %v4554 = vadd.f32 0.0, %v4553
  %v4555 = vpop.f32.mrf.mxu0
  %v4556 = vadd.f32 0.0, %v4555
  %4557 = vmatmul.bf16.gmra.mxu0 %v4317
  %v4558 = vpop.f32.mrf.mxu0
  %v4559 = vadd.f32 0.0, %v4558
  %v4560 = vpop.f32.mrf.mxu0
  %v4561 = vadd.f32 0.0, %v4560
  %4562 = vdwg.mxu0
  %4563 = vmatpush.bf16.msra.mxu0 0
  %4564 = vmatpush.bf16.msra.mxu0 %v4469
  %4565 = vmatpush.bf16.msra.mxu0 %v4467
  %4566 = vmatpush.bf16.msra.mxu0 %v4465
  %4567 = vmatpush.bf16.msra.mxu0 %v4463
  %4568 = vmatpush.bf16.msra.mxu0 %v4461
  %4569 = vmatpush.bf16.msra.mxu0 %v4459
  %4570 = vmatpush.bf16.msra.mxu0 %v4457
  %4571 = vmatmul.bf16.gmra.mxu0 %v4501
  %v4572 = vpop.f32.mrf.mxu0
  %v4573 = vadd.f32 %v4554, %v4572
  %v4574 = vpop.f32.mrf.mxu0
  %v4575 = vadd.f32 %v4556, %v4574
  %4576 = vmatmul.bf16.gmra.mxu0 %v4504
  %v4577 = vpop.f32.mrf.mxu0
  %v4578 = vadd.f32 %v4559, %v4577
  %v4579 = vpop.f32.mrf.mxu0
  %v4580 = vadd.f32 %v4561, %v4579
  %4581 = vdwg.mxu0
  %v4582 = vadd.f32 %v4299, %v4535
  %v4583 = vadd.f32 %v4300, %v4573
  %v4584 = vadd.f32 %v4301, %v4537
  %v4585 = vadd.f32 %v4302, %v4575
  %v4586 = vadd.f32 %v4303, %v4540
  %v4587 = vadd.f32 %v4304, %v4578
  %v4588 = vadd.f32 %v4305, %v4542
  %v4589 = vadd.f32 %v4306, %v4580
  %s4590 = scalar_lea.vmem %s3, 1200
  %v4591 = vld [vmem:[%s4590] sm:$0xff]
  %v4592 = vld [vmem:[%s4590 + $0x8] sm:$0xff]
  %v4593 = vld [vmem:[%s4590 + $0x10] sm:$0xff]
  %v4594 = vld [vmem:[%s4590 + $0x18] sm:$0xff]
  %v4595 = vld [vmem:[%s4590 + $0x20] sm:$0xff]
  %v4596 = vld [vmem:[%s4590 + $0x28] sm:$0xff]
  %v4597 = vld [vmem:[%s4590 + $0x30] sm:$0xff]
  %v4598 = vld [vmem:[%s4590 + $0x38] sm:$0xff]
  %v4599 = vld [vmem:[%s4590 + $0x40] sm:$0xff]
  %v4600 = vld [vmem:[%s4590 + $0x48] sm:$0xff]
  %v4601 = vld [vmem:[%s4590 + $0x50] sm:$0xff]
  %v4602 = vld [vmem:[%s4590 + $0x58] sm:$0xff]
  %v4603 = vld [vmem:[%s4590 + $0x60] sm:$0xff]
  %v4604 = vld [vmem:[%s4590 + $0x68] sm:$0xff]
  %v4605 = vld [vmem:[%s4590 + $0x70] sm:$0xff]
  %v4606 = vld [vmem:[%s4590 + $0x78] sm:$0xff]
  %v4607 = vld [vmem:[%s4590 + $0x80] sm:$0xff]
  %v4608 = vld [vmem:[%s4590 + $0x88] sm:$0xff]
  %v4609 = vld [vmem:[%s4590 + $0x90] sm:$0xff]
  %v4610 = vld [vmem:[%s4590 + $0x98] sm:$0xff]
  %v4611 = vld [vmem:[%s4590 + $0xa0] sm:$0xff]
  %v4612 = vld [vmem:[%s4590 + $0xa8] sm:$0xff]
  %v4613 = vld [vmem:[%s4590 + $0xb0] sm:$0xff]
  %v4614 = vld [vmem:[%s4590 + $0xb8] sm:$0xff]
  %v4615 = vld [vmem:[%s4590 + $0xc0] sm:$0xff]
  %v4616 = vld [vmem:[%s4590 + $0xc8] sm:$0xff]
  %v4617 = vld [vmem:[%s4590 + $0xd0] sm:$0xff]
  %v4618 = vld [vmem:[%s4590 + $0xd8] sm:$0xff]
  %v4619 = vld [vmem:[%s4590 + $0xe0] sm:$0xff]
  %v4620 = vld [vmem:[%s4590 + $0xe8] sm:$0xff]
  %s4621 = scalar_lea.vmem %s3, 1440
  %v4622 = vld [vmem:[%s4621] sm:$0xff]
  %v4623 = vld [vmem:[%s4621 + $0x8] sm:$0xff]
  %v4624 = vld [vmem:[%s4621 + $0x10] sm:$0xff]
  %v4625 = vld [vmem:[%s4621 + $0x18] sm:$0xff]
  %v4626 = vld [vmem:[%s4621 + $0x20] sm:$0xff]
  %v4627 = vld [vmem:[%s4621 + $0x28] sm:$0xff]
  %v4628 = vld [vmem:[%s4621 + $0x30] sm:$0xff]
  %v4629 = vld [vmem:[%s4621 + $0x38] sm:$0xff]
  %v4630 = vld [vmem:[%s4621 + $0x40] sm:$0xff]
  %v4631 = vld [vmem:[%s4621 + $0x48] sm:$0xff]
  %v4632 = vld [vmem:[%s4621 + $0x50] sm:$0xff]
  %v4633 = vld [vmem:[%s4621 + $0x58] sm:$0xff]
  %v4634 = vld [vmem:[%s4621 + $0x60] sm:$0xff]
  %v4635 = vld [vmem:[%s4621 + $0x68] sm:$0xff]
  %v4636 = vld [vmem:[%s4621 + $0x70] sm:$0xff]
  %v4637 = vld [vmem:[%s4621 + $0x78] sm:$0xff]
  %v4638 = vld [vmem:[%s4621 + $0x80] sm:$0xff]
  %v4639 = vld [vmem:[%s4621 + $0x88] sm:$0xff]
  %v4640 = vld [vmem:[%s4621 + $0x90] sm:$0xff]
  %v4641 = vld [vmem:[%s4621 + $0x98] sm:$0xff]
  %v4642 = vld [vmem:[%s4621 + $0xa0] sm:$0xff]
  %v4643 = vld [vmem:[%s4621 + $0xa8] sm:$0xff]
  %v4644 = vld [vmem:[%s4621 + $0xb0] sm:$0xff]
  %v4645 = vld [vmem:[%s4621 + $0xb8] sm:$0xff]
  %v4646 = vld [vmem:[%s4621 + $0xc0] sm:$0xff]
  %v4647 = vld [vmem:[%s4621 + $0xc8] sm:$0xff]
  %v4648 = vld [vmem:[%s4621 + $0xd0] sm:$0xff]
  %v4649 = vld [vmem:[%s4621 + $0xd8] sm:$0xff]
  %v4650 = vld [vmem:[%s4621 + $0xe0] sm:$0xff]
  %v4651 = vld [vmem:[%s4621 + $0xe8] sm:$0xff]
  %v4682 = vunpack.c.l.b16 %v4622
  %v4683 = vunpack.c.h.b16 %v4622
  %v4684 = vunpack.c.l.b16 %v4623
  %v4685 = vunpack.c.h.b16 %v4623
  %v4686 = vunpack.c.l.b16 %v4624
  %v4687 = vunpack.c.h.b16 %v4624
  %v4688 = vunpack.c.l.b16 %v4625
  %v4689 = vunpack.c.h.b16 %v4625
  %v4690 = vunpack.c.l.b16 %v4626
  %v4691 = vunpack.c.h.b16 %v4626
  %v4692 = vunpack.c.l.b16 %v4627
  %v4693 = vunpack.c.h.b16 %v4627
  %v4694 = vunpack.c.l.b16 %v4628
  %v4695 = vunpack.c.h.b16 %v4628
  %v4696 = vunpack.c.l.b16 %v4629
  %v4697 = vunpack.c.h.b16 %v4629
  %v4698 = vunpack.c.l.b16 %v4630
  %v4699 = vunpack.c.h.b16 %v4630
  %v4700 = vunpack.c.l.b16 %v4631
  %v4701 = vunpack.c.h.b16 %v4631
  %v4702 = vunpack.c.l.b16 %v4632
  %v4703 = vunpack.c.h.b16 %v4632
  %v4704 = vunpack.c.l.b16 %v4633
  %v4705 = vunpack.c.h.b16 %v4633
  %v4706 = vunpack.c.l.b16 %v4634
  %v4707 = vunpack.c.h.b16 %v4634
  %v4708 = vunpack.c.l.b16 %v4635
  %v4709 = vunpack.c.h.b16 %v4635
  %v4710 = vunpack.c.l.b16 %v4636
  %v4711 = vunpack.c.h.b16 %v4636
  %v4712 = vunpack.c.l.b16 %v4637
  %v4713 = vunpack.c.h.b16 %v4637
  %v4714 = vunpack.c.l.b16 %v4638
  %v4715 = vunpack.c.h.b16 %v4638
  %v4716 = vunpack.c.l.b16 %v4639
  %v4717 = vunpack.c.h.b16 %v4639
  %v4718 = vunpack.c.l.b16 %v4640
  %v4719 = vunpack.c.h.b16 %v4640
  %v4720 = vunpack.c.l.b16 %v4641
  %v4721 = vunpack.c.h.b16 %v4641
  %v4722 = vunpack.c.l.b16 %v4642
  %v4723 = vunpack.c.h.b16 %v4642
  %v4724 = vunpack.c.l.b16 %v4643
  %v4725 = vunpack.c.h.b16 %v4643
  %v4726 = vunpack.c.l.b16 %v4644
  %v4727 = vunpack.c.h.b16 %v4644
  %v4728 = vunpack.c.l.b16 %v4645
  %v4729 = vunpack.c.h.b16 %v4645
  %v4730 = vunpack.c.l.b16 %v4646
  %v4731 = vunpack.c.h.b16 %v4646
  %v4732 = vunpack.c.l.b16 %v4647
  %v4733 = vunpack.c.h.b16 %v4647
  %v4734 = vunpack.c.l.b16 %v4648
  %v4735 = vunpack.c.h.b16 %v4648
  %v4736 = vunpack.c.l.b16 %v4649
  %v4737 = vunpack.c.h.b16 %v4649
  %v4738 = vunpack.c.l.b16 %v4650
  %v4739 = vunpack.c.h.b16 %v4650
  %v4740 = vunpack.c.l.b16 %v4651
  %v4741 = vunpack.c.h.b16 %v4651
  %v4742 = vpack.c.b16 %v4684, %v4682
  %v4743 = vpack.c.b16 %v4685, %v4683
  %v4744 = vpack.c.b16 %v4688, %v4686
  %v4745 = vpack.c.b16 %v4689, %v4687
  %v4746 = vpack.c.b16 %v4692, %v4690
  %v4747 = vpack.c.b16 %v4693, %v4691
  %v4748 = vpack.c.b16 %v4696, %v4694
  %v4749 = vpack.c.b16 %v4697, %v4695
  %v4750 = vpack.c.b16 %v4700, %v4698
  %v4751 = vpack.c.b16 %v4701, %v4699
  %v4752 = vpack.c.b16 %v4704, %v4702
  %v4753 = vpack.c.b16 %v4705, %v4703
  %v4754 = vpack.c.b16 %v4708, %v4706
  %v4755 = vpack.c.b16 %v4709, %v4707
  %v4756 = vpack.c.b16 %v4712, %v4710
  %v4757 = vpack.c.b16 %v4713, %v4711
  %v4758 = vpack.c.b16 %v4716, %v4714
  %v4759 = vpack.c.b16 %v4717, %v4715
  %v4760 = vpack.c.b16 %v4720, %v4718
  %v4761 = vpack.c.b16 %v4721, %v4719
  %v4762 = vpack.c.b16 %v4724, %v4722
  %v4763 = vpack.c.b16 %v4725, %v4723
  %v4764 = vpack.c.b16 %v4728, %v4726
  %v4765 = vpack.c.b16 %v4729, %v4727
  %v4766 = vpack.c.b16 %v4732, %v4730
  %v4767 = vpack.c.b16 %v4733, %v4731
  %v4768 = vpack.c.b16 %v4736, %v4734
  %v4769 = vpack.c.b16 %v4737, %v4735
  %v4770 = vpack.c.b16 %v4740, %v4738
  %v4771 = vpack.c.b16 %v4741, %v4739
  %4802 = vmatpush.bf16.msra.mxu0 %v4756
  %4803 = vmatpush.bf16.msra.mxu0 %v4754
  %4804 = vmatpush.bf16.msra.mxu0 %v4752
  %4805 = vmatpush.bf16.msra.mxu0 %v4750
  %4806 = vmatpush.bf16.msra.mxu0 %v4748
  %4807 = vmatpush.bf16.msra.mxu0 %v4746
  %4808 = vmatpush.bf16.msra.mxu0 %v4744
  %4809 = vmatpush.bf16.msra.mxu0 %v4742
  %4810 = vmatmul.bf16.gmra.mxu0 %v3242
  %v4811 = vpop.f32.mrf.mxu0
  %v4812 = vadd.f32 0.0, %v4811
  %v4813 = vpop.f32.mrf.mxu0
  %v4814 = vadd.f32 0.0, %v4813
  %4815 = vmatmul.bf16.gmra.mxu0 %v3244
  %v4816 = vpop.f32.mrf.mxu0
  %v4817 = vadd.f32 0.0, %v4816
  %v4818 = vpop.f32.mrf.mxu0
  %v4819 = vadd.f32 0.0, %v4818
  %4820 = vdwg.mxu0
  %4821 = vmatpush.bf16.msra.mxu0 0
  %4822 = vmatpush.bf16.msra.mxu0 %v4770
  %4823 = vmatpush.bf16.msra.mxu0 %v4768
  %4824 = vmatpush.bf16.msra.mxu0 %v4766
  %4825 = vmatpush.bf16.msra.mxu0 %v4764
  %4826 = vmatpush.bf16.msra.mxu0 %v4762
  %4827 = vmatpush.bf16.msra.mxu0 %v4760
  %4828 = vmatpush.bf16.msra.mxu0 %v4758
  %4829 = vmatmul.bf16.gmra.mxu0 %v3428
  %v4830 = vpop.f32.mrf.mxu0
  %v4831 = vadd.f32 %v4812, %v4830
  %v4832 = vpop.f32.mrf.mxu0
  %v4833 = vadd.f32 %v4814, %v4832
  %4834 = vmatmul.bf16.gmra.mxu0 %v3431
  %v4835 = vpop.f32.mrf.mxu0
  %v4836 = vadd.f32 %v4817, %v4835
  %v4837 = vpop.f32.mrf.mxu0
  %v4838 = vadd.f32 %v4819, %v4837
  %4839 = vdwg.mxu0
  %4840 = vmatpush.bf16.msra.mxu0 %v4757
  %4841 = vmatpush.bf16.msra.mxu0 %v4755
  %4842 = vmatpush.bf16.msra.mxu0 %v4753
  %4843 = vmatpush.bf16.msra.mxu0 %v4751
  %4844 = vmatpush.bf16.msra.mxu0 %v4749
  %4845 = vmatpush.bf16.msra.mxu0 %v4747
  %4846 = vmatpush.bf16.msra.mxu0 %v4745
  %4847 = vmatpush.bf16.msra.mxu0 %v4743
  %4848 = vmatmul.bf16.gmra.mxu0 %v3242
  %v4849 = vpop.f32.mrf.mxu0
  %v4850 = vadd.f32 0.0, %v4849
  %v4851 = vpop.f32.mrf.mxu0
  %v4852 = vadd.f32 0.0, %v4851
  %4853 = vmatmul.bf16.gmra.mxu0 %v3244
  %v4854 = vpop.f32.mrf.mxu0
  %v4855 = vadd.f32 0.0, %v4854
  %v4856 = vpop.f32.mrf.mxu0
  %v4857 = vadd.f32 0.0, %v4856
  %4858 = vdwg.mxu0
  %4859 = vmatpush.bf16.msra.mxu0 0
  %4860 = vmatpush.bf16.msra.mxu0 %v4771
  %4861 = vmatpush.bf16.msra.mxu0 %v4769
  %4862 = vmatpush.bf16.msra.mxu0 %v4767
  %4863 = vmatpush.bf16.msra.mxu0 %v4765
  %4864 = vmatpush.bf16.msra.mxu0 %v4763
  %4865 = vmatpush.bf16.msra.mxu0 %v4761
  %4866 = vmatpush.bf16.msra.mxu0 %v4759
  %4867 = vmatmul.bf16.gmra.mxu0 %v3428
  %v4868 = vpop.f32.mrf.mxu0
  %v4869 = vadd.f32 %v4850, %v4868
  %v4870 = vpop.f32.mrf.mxu0
  %v4871 = vadd.f32 %v4852, %v4870
  %4872 = vmatmul.bf16.gmra.mxu0 %v3431
  %v4873 = vpop.f32.mrf.mxu0
  %v4874 = vadd.f32 %v4855, %v4873
  %v4875 = vpop.f32.mrf.mxu0
  %v4876 = vadd.f32 %v4857, %v4875
  %4877 = vdwg.mxu0
  %v4908 = vunpack.c.l.b16 %v4591
  %v4909 = vunpack.c.h.b16 %v4591
  %v4910 = vunpack.c.l.b16 %v4592
  %v4911 = vunpack.c.h.b16 %v4592
  %v4912 = vunpack.c.l.b16 %v4593
  %v4913 = vunpack.c.h.b16 %v4593
  %v4914 = vunpack.c.l.b16 %v4594
  %v4915 = vunpack.c.h.b16 %v4594
  %v4916 = vunpack.c.l.b16 %v4595
  %v4917 = vunpack.c.h.b16 %v4595
  %v4918 = vunpack.c.l.b16 %v4596
  %v4919 = vunpack.c.h.b16 %v4596
  %v4920 = vunpack.c.l.b16 %v4597
  %v4921 = vunpack.c.h.b16 %v4597
  %v4922 = vunpack.c.l.b16 %v4598
  %v4923 = vunpack.c.h.b16 %v4598
  %v4924 = vunpack.c.l.b16 %v4599
  %v4925 = vunpack.c.h.b16 %v4599
  %v4926 = vunpack.c.l.b16 %v4600
  %v4927 = vunpack.c.h.b16 %v4600
  %v4928 = vunpack.c.l.b16 %v4601
  %v4929 = vunpack.c.h.b16 %v4601
  %v4930 = vunpack.c.l.b16 %v4602
  %v4931 = vunpack.c.h.b16 %v4602
  %v4932 = vunpack.c.l.b16 %v4603
  %v4933 = vunpack.c.h.b16 %v4603
  %v4934 = vunpack.c.l.b16 %v4604
  %v4935 = vunpack.c.h.b16 %v4604
  %v4936 = vunpack.c.l.b16 %v4605
  %v4937 = vunpack.c.h.b16 %v4605
  %v4938 = vunpack.c.l.b16 %v4606
  %v4939 = vunpack.c.h.b16 %v4606
  %v4940 = vunpack.c.l.b16 %v4607
  %v4941 = vunpack.c.h.b16 %v4607
  %v4942 = vunpack.c.l.b16 %v4608
  %v4943 = vunpack.c.h.b16 %v4608
  %v4944 = vunpack.c.l.b16 %v4609
  %v4945 = vunpack.c.h.b16 %v4609
  %v4946 = vunpack.c.l.b16 %v4610
  %v4947 = vunpack.c.h.b16 %v4610
  %v4948 = vunpack.c.l.b16 %v4611
  %v4949 = vunpack.c.h.b16 %v4611
  %v4950 = vunpack.c.l.b16 %v4612
  %v4951 = vunpack.c.h.b16 %v4612
  %v4952 = vunpack.c.l.b16 %v4613
  %v4953 = vunpack.c.h.b16 %v4613
  %v4954 = vunpack.c.l.b16 %v4614
  %v4955 = vunpack.c.h.b16 %v4614
  %v4956 = vunpack.c.l.b16 %v4615
  %v4957 = vunpack.c.h.b16 %v4615
  %v4958 = vunpack.c.l.b16 %v4616
  %v4959 = vunpack.c.h.b16 %v4616
  %v4960 = vunpack.c.l.b16 %v4617
  %v4961 = vunpack.c.h.b16 %v4617
  %v4962 = vunpack.c.l.b16 %v4618
  %v4963 = vunpack.c.h.b16 %v4618
  %v4964 = vunpack.c.l.b16 %v4619
  %v4965 = vunpack.c.h.b16 %v4619
  %v4966 = vunpack.c.l.b16 %v4620
  %v4967 = vunpack.c.h.b16 %v4620
  %v4968 = vpack.c.b16 %v4910, %v4908
  %v4969 = vpack.c.b16 %v4911, %v4909
  %v4970 = vpack.c.b16 %v4914, %v4912
  %v4971 = vpack.c.b16 %v4915, %v4913
  %v4972 = vpack.c.b16 %v4918, %v4916
  %v4973 = vpack.c.b16 %v4919, %v4917
  %v4974 = vpack.c.b16 %v4922, %v4920
  %v4975 = vpack.c.b16 %v4923, %v4921
  %v4976 = vpack.c.b16 %v4926, %v4924
  %v4977 = vpack.c.b16 %v4927, %v4925
  %v4978 = vpack.c.b16 %v4930, %v4928
  %v4979 = vpack.c.b16 %v4931, %v4929
  %v4980 = vpack.c.b16 %v4934, %v4932
  %v4981 = vpack.c.b16 %v4935, %v4933
  %v4982 = vpack.c.b16 %v4938, %v4936
  %v4983 = vpack.c.b16 %v4939, %v4937
  %v4984 = vpack.c.b16 %v4942, %v4940
  %v4985 = vpack.c.b16 %v4943, %v4941
  %v4986 = vpack.c.b16 %v4946, %v4944
  %v4987 = vpack.c.b16 %v4947, %v4945
  %v4988 = vpack.c.b16 %v4950, %v4948
  %v4989 = vpack.c.b16 %v4951, %v4949
  %v4990 = vpack.c.b16 %v4954, %v4952
  %v4991 = vpack.c.b16 %v4955, %v4953
  %v4992 = vpack.c.b16 %v4958, %v4956
  %v4993 = vpack.c.b16 %v4959, %v4957
  %v4994 = vpack.c.b16 %v4962, %v4960
  %v4995 = vpack.c.b16 %v4963, %v4961
  %v4996 = vpack.c.b16 %v4966, %v4964
  %v4997 = vpack.c.b16 %v4967, %v4965
  %5028 = vmatpush.bf16.msra.mxu0 %v4982
  %5029 = vmatpush.bf16.msra.mxu0 %v4980
  %5030 = vmatpush.bf16.msra.mxu0 %v4978
  %5031 = vmatpush.bf16.msra.mxu0 %v4976
  %5032 = vmatpush.bf16.msra.mxu0 %v4974
  %5033 = vmatpush.bf16.msra.mxu0 %v4972
  %5034 = vmatpush.bf16.msra.mxu0 %v4970
  %5035 = vmatpush.bf16.msra.mxu0 %v4968
  %5036 = vmatmul.bf16.gmra.mxu0 %v3200
  %v5037 = vpop.f32.mrf.mxu0
  %v5038 = vadd.f32 %v4831, %v5037
  %v5039 = vpop.f32.mrf.mxu0
  %v5040 = vadd.f32 %v4833, %v5039
  %5041 = vmatmul.bf16.gmra.mxu0 %v3202
  %v5042 = vpop.f32.mrf.mxu0
  %v5043 = vadd.f32 %v4836, %v5042
  %v5044 = vpop.f32.mrf.mxu0
  %v5045 = vadd.f32 %v4838, %v5044
  %5046 = vdwg.mxu0
  %5047 = vmatpush.bf16.msra.mxu0 0
  %5048 = vmatpush.bf16.msra.mxu0 %v4996
  %5049 = vmatpush.bf16.msra.mxu0 %v4994
  %5050 = vmatpush.bf16.msra.mxu0 %v4992
  %5051 = vmatpush.bf16.msra.mxu0 %v4990
  %5052 = vmatpush.bf16.msra.mxu0 %v4988
  %5053 = vmatpush.bf16.msra.mxu0 %v4986
  %5054 = vmatpush.bf16.msra.mxu0 %v4984
  %5055 = vmatmul.bf16.gmra.mxu0 %v3660
  %v5056 = vpop.f32.mrf.mxu0
  %v5057 = vadd.f32 %v5038, %v5056
  %v5058 = vpop.f32.mrf.mxu0
  %v5059 = vadd.f32 %v5040, %v5058
  %5060 = vmatmul.bf16.gmra.mxu0 %v3663
  %v5061 = vpop.f32.mrf.mxu0
  %v5062 = vadd.f32 %v5043, %v5061
  %v5063 = vpop.f32.mrf.mxu0
  %v5064 = vadd.f32 %v5045, %v5063
  %5065 = vdwg.mxu0
  %5066 = vmatpush.bf16.msra.mxu0 %v4983
  %5067 = vmatpush.bf16.msra.mxu0 %v4981
  %5068 = vmatpush.bf16.msra.mxu0 %v4979
  %5069 = vmatpush.bf16.msra.mxu0 %v4977
  %5070 = vmatpush.bf16.msra.mxu0 %v4975
  %5071 = vmatpush.bf16.msra.mxu0 %v4973
  %5072 = vmatpush.bf16.msra.mxu0 %v4971
  %5073 = vmatpush.bf16.msra.mxu0 %v4969
  %5074 = vmatmul.bf16.gmra.mxu0 %v3200
  %v5075 = vpop.f32.mrf.mxu0
  %v5076 = vadd.f32 %v4869, %v5075
  %v5077 = vpop.f32.mrf.mxu0
  %v5078 = vadd.f32 %v4871, %v5077
  %5079 = vmatmul.bf16.gmra.mxu0 %v3202
  %v5080 = vpop.f32.mrf.mxu0
  %v5081 = vadd.f32 %v4874, %v5080
  %v5082 = vpop.f32.mrf.mxu0
  %v5083 = vadd.f32 %v4876, %v5082
  %5084 = vdwg.mxu0
  %5085 = vmatpush.bf16.msra.mxu0 0
  %5086 = vmatpush.bf16.msra.mxu0 %v4997
  %5087 = vmatpush.bf16.msra.mxu0 %v4995
  %5088 = vmatpush.bf16.msra.mxu0 %v4993
  %5089 = vmatpush.bf16.msra.mxu0 %v4991
  %5090 = vmatpush.bf16.msra.mxu0 %v4989
  %5091 = vmatpush.bf16.msra.mxu0 %v4987
  %5092 = vmatpush.bf16.msra.mxu0 %v4985
  %5093 = vmatmul.bf16.gmra.mxu0 %v3660
  %v5094 = vpop.f32.mrf.mxu0
  %v5095 = vadd.f32 %v5076, %v5094
  %v5096 = vpop.f32.mrf.mxu0
  %v5097 = vadd.f32 %v5078, %v5096
  %5098 = vmatmul.bf16.gmra.mxu0 %v3663
  %v5099 = vpop.f32.mrf.mxu0
  %v5100 = vadd.f32 %v5081, %v5099
  %v5101 = vpop.f32.mrf.mxu0
  %v5102 = vadd.f32 %v5083, %v5101
  %5103 = vdwg.mxu0
  %s5104 = scalar_lea.vmem %s3, 1680
  %v5105 = vld [vmem:[%s5104] sm:$0xff]
  %v5106 = vld [vmem:[%s5104 + $0x8] sm:$0xff]
  %v5107 = vld [vmem:[%s5104 + $0x10] sm:$0xff]
  %v5108 = vld [vmem:[%s5104 + $0x18] sm:$0xff]
  %v5109 = vld [vmem:[%s5104 + $0x20] sm:$0xff]
  %v5110 = vld [vmem:[%s5104 + $0x28] sm:$0xff]
  %v5111 = vld [vmem:[%s5104 + $0x30] sm:$0xff]
  %v5112 = vld [vmem:[%s5104 + $0x38] sm:$0xff]
  %v5113 = vld [vmem:[%s5104 + $0x40] sm:$0xff]
  %v5114 = vld [vmem:[%s5104 + $0x48] sm:$0xff]
  %v5115 = vld [vmem:[%s5104 + $0x50] sm:$0xff]
  %v5116 = vld [vmem:[%s5104 + $0x58] sm:$0xff]
  %v5117 = vld [vmem:[%s5104 + $0x60] sm:$0xff]
  %v5118 = vld [vmem:[%s5104 + $0x68] sm:$0xff]
  %v5119 = vld [vmem:[%s5104 + $0x70] sm:$0xff]
  %v5120 = vld [vmem:[%s5104 + $0x78] sm:$0xff]
  %v5121 = vld [vmem:[%s5104 + $0x80] sm:$0xff]
  %v5122 = vld [vmem:[%s5104 + $0x88] sm:$0xff]
  %v5123 = vld [vmem:[%s5104 + $0x90] sm:$0xff]
  %v5124 = vld [vmem:[%s5104 + $0x98] sm:$0xff]
  %v5125 = vld [vmem:[%s5104 + $0xa0] sm:$0xff]
  %v5126 = vld [vmem:[%s5104 + $0xa8] sm:$0xff]
  %v5127 = vld [vmem:[%s5104 + $0xb0] sm:$0xff]
  %v5128 = vld [vmem:[%s5104 + $0xb8] sm:$0xff]
  %v5129 = vld [vmem:[%s5104 + $0xc0] sm:$0xff]
  %v5130 = vld [vmem:[%s5104 + $0xc8] sm:$0xff]
  %v5131 = vld [vmem:[%s5104 + $0xd0] sm:$0xff]
  %v5132 = vld [vmem:[%s5104 + $0xd8] sm:$0xff]
  %v5133 = vld [vmem:[%s5104 + $0xe0] sm:$0xff]
  %v5134 = vld [vmem:[%s5104 + $0xe8] sm:$0xff]
  %v5165 = vunpack.c.l.b16 %v5105
  %v5166 = vunpack.c.h.b16 %v5105
  %v5167 = vunpack.c.l.b16 %v5106
  %v5168 = vunpack.c.h.b16 %v5106
  %v5169 = vunpack.c.l.b16 %v5107
  %v5170 = vunpack.c.h.b16 %v5107
  %v5171 = vunpack.c.l.b16 %v5108
  %v5172 = vunpack.c.h.b16 %v5108
  %v5173 = vunpack.c.l.b16 %v5109
  %v5174 = vunpack.c.h.b16 %v5109
  %v5175 = vunpack.c.l.b16 %v5110
  %v5176 = vunpack.c.h.b16 %v5110
  %v5177 = vunpack.c.l.b16 %v5111
  %v5178 = vunpack.c.h.b16 %v5111
  %v5179 = vunpack.c.l.b16 %v5112
  %v5180 = vunpack.c.h.b16 %v5112
  %v5181 = vunpack.c.l.b16 %v5113
  %v5182 = vunpack.c.h.b16 %v5113
  %v5183 = vunpack.c.l.b16 %v5114
  %v5184 = vunpack.c.h.b16 %v5114
  %v5185 = vunpack.c.l.b16 %v5115
  %v5186 = vunpack.c.h.b16 %v5115
  %v5187 = vunpack.c.l.b16 %v5116
  %v5188 = vunpack.c.h.b16 %v5116
  %v5189 = vunpack.c.l.b16 %v5117
  %v5190 = vunpack.c.h.b16 %v5117
  %v5191 = vunpack.c.l.b16 %v5118
  %v5192 = vunpack.c.h.b16 %v5118
  %v5193 = vunpack.c.l.b16 %v5119
  %v5194 = vunpack.c.h.b16 %v5119
  %v5195 = vunpack.c.l.b16 %v5120
  %v5196 = vunpack.c.h.b16 %v5120
  %v5197 = vunpack.c.l.b16 %v5121
  %v5198 = vunpack.c.h.b16 %v5121
  %v5199 = vunpack.c.l.b16 %v5122
  %v5200 = vunpack.c.h.b16 %v5122
  %v5201 = vunpack.c.l.b16 %v5123
  %v5202 = vunpack.c.h.b16 %v5123
  %v5203 = vunpack.c.l.b16 %v5124
  %v5204 = vunpack.c.h.b16 %v5124
  %v5205 = vunpack.c.l.b16 %v5125
  %v5206 = vunpack.c.h.b16 %v5125
  %v5207 = vunpack.c.l.b16 %v5126
  %v5208 = vunpack.c.h.b16 %v5126
  %v5209 = vunpack.c.l.b16 %v5127
  %v5210 = vunpack.c.h.b16 %v5127
  %v5211 = vunpack.c.l.b16 %v5128
  %v5212 = vunpack.c.h.b16 %v5128
  %v5213 = vunpack.c.l.b16 %v5129
  %v5214 = vunpack.c.h.b16 %v5129
  %v5215 = vunpack.c.l.b16 %v5130
  %v5216 = vunpack.c.h.b16 %v5130
  %v5217 = vunpack.c.l.b16 %v5131
  %v5218 = vunpack.c.h.b16 %v5131
  %v5219 = vunpack.c.l.b16 %v5132
  %v5220 = vunpack.c.h.b16 %v5132
  %v5221 = vunpack.c.l.b16 %v5133
  %v5222 = vunpack.c.h.b16 %v5133
  %v5223 = vunpack.c.l.b16 %v5134
  %v5224 = vunpack.c.h.b16 %v5134
  %v5225 = vpack.c.b16 %v5167, %v5165
  %v5226 = vpack.c.b16 %v5168, %v5166
  %v5227 = vpack.c.b16 %v5171, %v5169
  %v5228 = vpack.c.b16 %v5172, %v5170
  %v5229 = vpack.c.b16 %v5175, %v5173
  %v5230 = vpack.c.b16 %v5176, %v5174
  %v5231 = vpack.c.b16 %v5179, %v5177
  %v5232 = vpack.c.b16 %v5180, %v5178
  %v5233 = vpack.c.b16 %v5183, %v5181
  %v5234 = vpack.c.b16 %v5184, %v5182
  %v5235 = vpack.c.b16 %v5187, %v5185
  %v5236 = vpack.c.b16 %v5188, %v5186
  %v5237 = vpack.c.b16 %v5191, %v5189
  %v5238 = vpack.c.b16 %v5192, %v5190
  %v5239 = vpack.c.b16 %v5195, %v5193
  %v5240 = vpack.c.b16 %v5196, %v5194
  %v5241 = vpack.c.b16 %v5199, %v5197
  %v5242 = vpack.c.b16 %v5200, %v5198
  %v5243 = vpack.c.b16 %v5203, %v5201
  %v5244 = vpack.c.b16 %v5204, %v5202
  %v5245 = vpack.c.b16 %v5207, %v5205
  %v5246 = vpack.c.b16 %v5208, %v5206
  %v5247 = vpack.c.b16 %v5211, %v5209
  %v5248 = vpack.c.b16 %v5212, %v5210
  %v5249 = vpack.c.b16 %v5215, %v5213
  %v5250 = vpack.c.b16 %v5216, %v5214
  %v5251 = vpack.c.b16 %v5219, %v5217
  %v5252 = vpack.c.b16 %v5220, %v5218
  %v5253 = vpack.c.b16 %v5223, %v5221
  %v5254 = vpack.c.b16 %v5224, %v5222
  %5285 = vmatpush.bf16.msra.mxu0 %v5239
  %5286 = vmatpush.bf16.msra.mxu0 %v5237
  %5287 = vmatpush.bf16.msra.mxu0 %v5235
  %5288 = vmatpush.bf16.msra.mxu0 %v5233
  %5289 = vmatpush.bf16.msra.mxu0 %v5231
  %5290 = vmatpush.bf16.msra.mxu0 %v5229
  %5291 = vmatpush.bf16.msra.mxu0 %v5227
  %5292 = vmatpush.bf16.msra.mxu0 %v5225
  %5293 = vmatmul.bf16.gmra.mxu0 %v3749
  %v5294 = vpop.f32.mrf.mxu0
  %v5295 = vadd.f32 0.0, %v5294
  %v5296 = vpop.f32.mrf.mxu0
  %v5297 = vadd.f32 0.0, %v5296
  %5298 = vmatmul.bf16.gmra.mxu0 %v3751
  %v5299 = vpop.f32.mrf.mxu0
  %v5300 = vadd.f32 0.0, %v5299
  %v5301 = vpop.f32.mrf.mxu0
  %v5302 = vadd.f32 0.0, %v5301
  %5303 = vdwg.mxu0
  %5304 = vmatpush.bf16.msra.mxu0 0
  %5305 = vmatpush.bf16.msra.mxu0 %v5253
  %5306 = vmatpush.bf16.msra.mxu0 %v5251
  %5307 = vmatpush.bf16.msra.mxu0 %v5249
  %5308 = vmatpush.bf16.msra.mxu0 %v5247
  %5309 = vmatpush.bf16.msra.mxu0 %v5245
  %5310 = vmatpush.bf16.msra.mxu0 %v5243
  %5311 = vmatpush.bf16.msra.mxu0 %v5241
  %5312 = vmatmul.bf16.gmra.mxu0 %v3935
  %v5313 = vpop.f32.mrf.mxu0
  %v5314 = vadd.f32 %v5295, %v5313
  %v5315 = vpop.f32.mrf.mxu0
  %v5316 = vadd.f32 %v5297, %v5315
  %5317 = vmatmul.bf16.gmra.mxu0 %v3938
  %v5318 = vpop.f32.mrf.mxu0
  %v5319 = vadd.f32 %v5300, %v5318
  %v5320 = vpop.f32.mrf.mxu0
  %v5321 = vadd.f32 %v5302, %v5320
  %5322 = vdwg.mxu0
  %5323 = vmatpush.bf16.msra.mxu0 %v5240
  %5324 = vmatpush.bf16.msra.mxu0 %v5238
  %5325 = vmatpush.bf16.msra.mxu0 %v5236
  %5326 = vmatpush.bf16.msra.mxu0 %v5234
  %5327 = vmatpush.bf16.msra.mxu0 %v5232
  %5328 = vmatpush.bf16.msra.mxu0 %v5230
  %5329 = vmatpush.bf16.msra.mxu0 %v5228
  %5330 = vmatpush.bf16.msra.mxu0 %v5226
  %5331 = vmatmul.bf16.gmra.mxu0 %v3749
  %v5332 = vpop.f32.mrf.mxu0
  %v5333 = vadd.f32 0.0, %v5332
  %v5334 = vpop.f32.mrf.mxu0
  %v5335 = vadd.f32 0.0, %v5334
  %5336 = vmatmul.bf16.gmra.mxu0 %v3751
  %v5337 = vpop.f32.mrf.mxu0
  %v5338 = vadd.f32 0.0, %v5337
  %v5339 = vpop.f32.mrf.mxu0
  %v5340 = vadd.f32 0.0, %v5339
  %5341 = vdwg.mxu0
  %5342 = vmatpush.bf16.msra.mxu0 0
  %5343 = vmatpush.bf16.msra.mxu0 %v5254
  %5344 = vmatpush.bf16.msra.mxu0 %v5252
  %5345 = vmatpush.bf16.msra.mxu0 %v5250
  %5346 = vmatpush.bf16.msra.mxu0 %v5248
  %5347 = vmatpush.bf16.msra.mxu0 %v5246
  %5348 = vmatpush.bf16.msra.mxu0 %v5244
  %5349 = vmatpush.bf16.msra.mxu0 %v5242
  %5350 = vmatmul.bf16.gmra.mxu0 %v3935
  %v5351 = vpop.f32.mrf.mxu0
  %v5352 = vadd.f32 %v5333, %v5351
  %v5353 = vpop.f32.mrf.mxu0
  %v5354 = vadd.f32 %v5335, %v5353
  %5355 = vmatmul.bf16.gmra.mxu0 %v3938
  %v5356 = vpop.f32.mrf.mxu0
  %v5357 = vadd.f32 %v5338, %v5356
  %v5358 = vpop.f32.mrf.mxu0
  %v5359 = vadd.f32 %v5340, %v5358
  %5360 = vdwg.mxu0
  %v5361 = vadd.f32 %v5057, %v5314
  %v5362 = vadd.f32 %v5095, %v5352
  %v5363 = vadd.f32 %v5059, %v5316
  %v5364 = vadd.f32 %v5097, %v5354
  %v5365 = vadd.f32 %v5062, %v5319
  %v5366 = vadd.f32 %v5100, %v5357
  %v5367 = vadd.f32 %v5064, %v5321
  %v5368 = vadd.f32 %v5102, %v5359
  %s5369 = scalar_lea.vmem %s3, 1920
  %v5370 = vld [vmem:[%s5369] sm:$0xff]
  %v5371 = vld [vmem:[%s5369 + $0x8] sm:$0xff]
  %v5372 = vld [vmem:[%s5369 + $0x10] sm:$0xff]
  %v5373 = vld [vmem:[%s5369 + $0x18] sm:$0xff]
  %v5374 = vld [vmem:[%s5369 + $0x20] sm:$0xff]
  %v5375 = vld [vmem:[%s5369 + $0x28] sm:$0xff]
  %v5376 = vld [vmem:[%s5369 + $0x30] sm:$0xff]
  %v5377 = vld [vmem:[%s5369 + $0x38] sm:$0xff]
  %v5378 = vld [vmem:[%s5369 + $0x40] sm:$0xff]
  %v5379 = vld [vmem:[%s5369 + $0x48] sm:$0xff]
  %v5380 = vld [vmem:[%s5369 + $0x50] sm:$0xff]
  %v5381 = vld [vmem:[%s5369 + $0x58] sm:$0xff]
  %v5382 = vld [vmem:[%s5369 + $0x60] sm:$0xff]
  %v5383 = vld [vmem:[%s5369 + $0x68] sm:$0xff]
  %v5384 = vld [vmem:[%s5369 + $0x70] sm:$0xff]
  %v5385 = vld [vmem:[%s5369 + $0x78] sm:$0xff]
  %v5386 = vld [vmem:[%s5369 + $0x80] sm:$0xff]
  %v5387 = vld [vmem:[%s5369 + $0x88] sm:$0xff]
  %v5388 = vld [vmem:[%s5369 + $0x90] sm:$0xff]
  %v5389 = vld [vmem:[%s5369 + $0x98] sm:$0xff]
  %v5390 = vld [vmem:[%s5369 + $0xa0] sm:$0xff]
  %v5391 = vld [vmem:[%s5369 + $0xa8] sm:$0xff]
  %v5392 = vld [vmem:[%s5369 + $0xb0] sm:$0xff]
  %v5393 = vld [vmem:[%s5369 + $0xb8] sm:$0xff]
  %v5394 = vld [vmem:[%s5369 + $0xc0] sm:$0xff]
  %v5395 = vld [vmem:[%s5369 + $0xc8] sm:$0xff]
  %v5396 = vld [vmem:[%s5369 + $0xd0] sm:$0xff]
  %v5397 = vld [vmem:[%s5369 + $0xd8] sm:$0xff]
  %v5398 = vld [vmem:[%s5369 + $0xe0] sm:$0xff]
  %v5399 = vld [vmem:[%s5369 + $0xe8] sm:$0xff]
  %v5430 = vunpack.c.l.b16 %v5370
  %v5431 = vunpack.c.h.b16 %v5370
  %v5432 = vunpack.c.l.b16 %v5371
  %v5433 = vunpack.c.h.b16 %v5371
  %v5434 = vunpack.c.l.b16 %v5372
  %v5435 = vunpack.c.h.b16 %v5372
  %v5436 = vunpack.c.l.b16 %v5373
  %v5437 = vunpack.c.h.b16 %v5373
  %v5438 = vunpack.c.l.b16 %v5374
  %v5439 = vunpack.c.h.b16 %v5374
  %v5440 = vunpack.c.l.b16 %v5375
  %v5441 = vunpack.c.h.b16 %v5375
  %v5442 = vunpack.c.l.b16 %v5376
  %v5443 = vunpack.c.h.b16 %v5376
  %v5444 = vunpack.c.l.b16 %v5377
  %v5445 = vunpack.c.h.b16 %v5377
  %v5446 = vunpack.c.l.b16 %v5378
  %v5447 = vunpack.c.h.b16 %v5378
  %v5448 = vunpack.c.l.b16 %v5379
  %v5449 = vunpack.c.h.b16 %v5379
  %v5450 = vunpack.c.l.b16 %v5380
  %v5451 = vunpack.c.h.b16 %v5380
  %v5452 = vunpack.c.l.b16 %v5381
  %v5453 = vunpack.c.h.b16 %v5381
  %v5454 = vunpack.c.l.b16 %v5382
  %v5455 = vunpack.c.h.b16 %v5382
  %v5456 = vunpack.c.l.b16 %v5383
  %v5457 = vunpack.c.h.b16 %v5383
  %v5458 = vunpack.c.l.b16 %v5384
  %v5459 = vunpack.c.h.b16 %v5384
  %v5460 = vunpack.c.l.b16 %v5385
  %v5461 = vunpack.c.h.b16 %v5385
  %v5462 = vunpack.c.l.b16 %v5386
  %v5463 = vunpack.c.h.b16 %v5386
  %v5464 = vunpack.c.l.b16 %v5387
  %v5465 = vunpack.c.h.b16 %v5387
  %v5466 = vunpack.c.l.b16 %v5388
  %v5467 = vunpack.c.h.b16 %v5388
  %v5468 = vunpack.c.l.b16 %v5389
  %v5469 = vunpack.c.h.b16 %v5389
  %v5470 = vunpack.c.l.b16 %v5390
  %v5471 = vunpack.c.h.b16 %v5390
  %v5472 = vunpack.c.l.b16 %v5391
  %v5473 = vunpack.c.h.b16 %v5391
  %v5474 = vunpack.c.l.b16 %v5392
  %v5475 = vunpack.c.h.b16 %v5392
  %v5476 = vunpack.c.l.b16 %v5393
  %v5477 = vunpack.c.h.b16 %v5393
  %v5478 = vunpack.c.l.b16 %v5394
  %v5479 = vunpack.c.h.b16 %v5394
  %v5480 = vunpack.c.l.b16 %v5395
  %v5481 = vunpack.c.h.b16 %v5395
  %v5482 = vunpack.c.l.b16 %v5396
  %v5483 = vunpack.c.h.b16 %v5396
  %v5484 = vunpack.c.l.b16 %v5397
  %v5485 = vunpack.c.h.b16 %v5397
  %v5486 = vunpack.c.l.b16 %v5398
  %v5487 = vunpack.c.h.b16 %v5398
  %v5488 = vunpack.c.l.b16 %v5399
  %v5489 = vunpack.c.h.b16 %v5399
  %v5490 = vpack.c.b16 %v5432, %v5430
  %v5491 = vpack.c.b16 %v5433, %v5431
  %v5492 = vpack.c.b16 %v5436, %v5434
  %v5493 = vpack.c.b16 %v5437, %v5435
  %v5494 = vpack.c.b16 %v5440, %v5438
  %v5495 = vpack.c.b16 %v5441, %v5439
  %v5496 = vpack.c.b16 %v5444, %v5442
  %v5497 = vpack.c.b16 %v5445, %v5443
  %v5498 = vpack.c.b16 %v5448, %v5446
  %v5499 = vpack.c.b16 %v5449, %v5447
  %v5500 = vpack.c.b16 %v5452, %v5450
  %v5501 = vpack.c.b16 %v5453, %v5451
  %v5502 = vpack.c.b16 %v5456, %v5454
  %v5503 = vpack.c.b16 %v5457, %v5455
  %v5504 = vpack.c.b16 %v5460, %v5458
  %v5505 = vpack.c.b16 %v5461, %v5459
  %v5506 = vpack.c.b16 %v5464, %v5462
  %v5507 = vpack.c.b16 %v5465, %v5463
  %v5508 = vpack.c.b16 %v5468, %v5466
  %v5509 = vpack.c.b16 %v5469, %v5467
  %v5510 = vpack.c.b16 %v5472, %v5470
  %v5511 = vpack.c.b16 %v5473, %v5471
  %v5512 = vpack.c.b16 %v5476, %v5474
  %v5513 = vpack.c.b16 %v5477, %v5475
  %v5514 = vpack.c.b16 %v5480, %v5478
  %v5515 = vpack.c.b16 %v5481, %v5479
  %v5516 = vpack.c.b16 %v5484, %v5482
  %v5517 = vpack.c.b16 %v5485, %v5483
  %v5518 = vpack.c.b16 %v5488, %v5486
  %v5519 = vpack.c.b16 %v5489, %v5487
  %5550 = vmatpush.bf16.msra.mxu0 %v5504
  %5551 = vmatpush.bf16.msra.mxu0 %v5502
  %5552 = vmatpush.bf16.msra.mxu0 %v5500
  %5553 = vmatpush.bf16.msra.mxu0 %v5498
  %5554 = vmatpush.bf16.msra.mxu0 %v5496
  %5555 = vmatpush.bf16.msra.mxu0 %v5494
  %5556 = vmatpush.bf16.msra.mxu0 %v5492
  %5557 = vmatpush.bf16.msra.mxu0 %v5490
  %5558 = vmatmul.bf16.gmra.mxu0 %v4032
  %v5559 = vpop.f32.mrf.mxu0
  %v5560 = vadd.f32 0.0, %v5559
  %v5561 = vpop.f32.mrf.mxu0
  %v5562 = vadd.f32 0.0, %v5561
  %5563 = vmatmul.bf16.gmra.mxu0 %v4034
  %v5564 = vpop.f32.mrf.mxu0
  %v5565 = vadd.f32 0.0, %v5564
  %v5566 = vpop.f32.mrf.mxu0
  %v5567 = vadd.f32 0.0, %v5566
  %5568 = vdwg.mxu0
  %5569 = vmatpush.bf16.msra.mxu0 0
  %5570 = vmatpush.bf16.msra.mxu0 %v5518
  %5571 = vmatpush.bf16.msra.mxu0 %v5516
  %5572 = vmatpush.bf16.msra.mxu0 %v5514
  %5573 = vmatpush.bf16.msra.mxu0 %v5512
  %5574 = vmatpush.bf16.msra.mxu0 %v5510
  %5575 = vmatpush.bf16.msra.mxu0 %v5508
  %5576 = vmatpush.bf16.msra.mxu0 %v5506
  %5577 = vmatmul.bf16.gmra.mxu0 %v4218
  %v5578 = vpop.f32.mrf.mxu0
  %v5579 = vadd.f32 %v5560, %v5578
  %v5580 = vpop.f32.mrf.mxu0
  %v5581 = vadd.f32 %v5562, %v5580
  %5582 = vmatmul.bf16.gmra.mxu0 %v4221
  %v5583 = vpop.f32.mrf.mxu0
  %v5584 = vadd.f32 %v5565, %v5583
  %v5585 = vpop.f32.mrf.mxu0
  %v5586 = vadd.f32 %v5567, %v5585
  %5587 = vdwg.mxu0
  %5588 = vmatpush.bf16.msra.mxu0 %v5505
  %5589 = vmatpush.bf16.msra.mxu0 %v5503
  %5590 = vmatpush.bf16.msra.mxu0 %v5501
  %5591 = vmatpush.bf16.msra.mxu0 %v5499
  %5592 = vmatpush.bf16.msra.mxu0 %v5497
  %5593 = vmatpush.bf16.msra.mxu0 %v5495
  %5594 = vmatpush.bf16.msra.mxu0 %v5493
  %5595 = vmatpush.bf16.msra.mxu0 %v5491
  %5596 = vmatmul.bf16.gmra.mxu0 %v4032
  %v5597 = vpop.f32.mrf.mxu0
  %v5598 = vadd.f32 0.0, %v5597
  %v5599 = vpop.f32.mrf.mxu0
  %v5600 = vadd.f32 0.0, %v5599
  %5601 = vmatmul.bf16.gmra.mxu0 %v4034
  %v5602 = vpop.f32.mrf.mxu0
  %v5603 = vadd.f32 0.0, %v5602
  %v5604 = vpop.f32.mrf.mxu0
  %v5605 = vadd.f32 0.0, %v5604
  %5606 = vdwg.mxu0
  %5607 = vmatpush.bf16.msra.mxu0 0
  %5608 = vmatpush.bf16.msra.mxu0 %v5519
  %5609 = vmatpush.bf16.msra.mxu0 %v5517
  %5610 = vmatpush.bf16.msra.mxu0 %v5515
  %5611 = vmatpush.bf16.msra.mxu0 %v5513
  %5612 = vmatpush.bf16.msra.mxu0 %v5511
  %5613 = vmatpush.bf16.msra.mxu0 %v5509
  %5614 = vmatpush.bf16.msra.mxu0 %v5507
  %5615 = vmatmul.bf16.gmra.mxu0 %v4218
  %v5616 = vpop.f32.mrf.mxu0
  %v5617 = vadd.f32 %v5598, %v5616
  %v5618 = vpop.f32.mrf.mxu0
  %v5619 = vadd.f32 %v5600, %v5618
  %5620 = vmatmul.bf16.gmra.mxu0 %v4221
  %v5621 = vpop.f32.mrf.mxu0
  %v5622 = vadd.f32 %v5603, %v5621
  %v5623 = vpop.f32.mrf.mxu0
  %v5624 = vadd.f32 %v5605, %v5623
  %5625 = vdwg.mxu0
  %v5626 = vadd.f32 %v5361, %v5579
  %v5627 = vadd.f32 %v5362, %v5617
  %v5628 = vadd.f32 %v5363, %v5581
  %v5629 = vadd.f32 %v5364, %v5619
  %v5630 = vadd.f32 %v5365, %v5584
  %v5631 = vadd.f32 %v5366, %v5622
  %v5632 = vadd.f32 %v5367, %v5586
  %v5633 = vadd.f32 %v5368, %v5624
  %s5634 = scalar_lea.vmem %s3, 2160
  %v5635 = vld [vmem:[%s5634] sm:$0xff]
  %v5636 = vld [vmem:[%s5634 + $0x8] sm:$0xff]
  %v5637 = vld [vmem:[%s5634 + $0x10] sm:$0xff]
  %v5638 = vld [vmem:[%s5634 + $0x18] sm:$0xff]
  %v5639 = vld [vmem:[%s5634 + $0x20] sm:$0xff]
  %v5640 = vld [vmem:[%s5634 + $0x28] sm:$0xff]
  %v5641 = vld [vmem:[%s5634 + $0x30] sm:$0xff]
  %v5642 = vld [vmem:[%s5634 + $0x38] sm:$0xff]
  %v5643 = vld [vmem:[%s5634 + $0x40] sm:$0xff]
  %v5644 = vld [vmem:[%s5634 + $0x48] sm:$0xff]
  %v5645 = vld [vmem:[%s5634 + $0x50] sm:$0xff]
  %v5646 = vld [vmem:[%s5634 + $0x58] sm:$0xff]
  %v5647 = vld [vmem:[%s5634 + $0x60] sm:$0xff]
  %v5648 = vld [vmem:[%s5634 + $0x68] sm:$0xff]
  %v5649 = vld [vmem:[%s5634 + $0x70] sm:$0xff]
  %v5650 = vld [vmem:[%s5634 + $0x78] sm:$0xff]
  %v5651 = vld [vmem:[%s5634 + $0x80] sm:$0xff]
  %v5652 = vld [vmem:[%s5634 + $0x88] sm:$0xff]
  %v5653 = vld [vmem:[%s5634 + $0x90] sm:$0xff]
  %v5654 = vld [vmem:[%s5634 + $0x98] sm:$0xff]
  %v5655 = vld [vmem:[%s5634 + $0xa0] sm:$0xff]
  %v5656 = vld [vmem:[%s5634 + $0xa8] sm:$0xff]
  %v5657 = vld [vmem:[%s5634 + $0xb0] sm:$0xff]
  %v5658 = vld [vmem:[%s5634 + $0xb8] sm:$0xff]
  %v5659 = vld [vmem:[%s5634 + $0xc0] sm:$0xff]
  %v5660 = vld [vmem:[%s5634 + $0xc8] sm:$0xff]
  %v5661 = vld [vmem:[%s5634 + $0xd0] sm:$0xff]
  %v5662 = vld [vmem:[%s5634 + $0xd8] sm:$0xff]
  %v5663 = vld [vmem:[%s5634 + $0xe0] sm:$0xff]
  %v5664 = vld [vmem:[%s5634 + $0xe8] sm:$0xff]
  %v5695 = vunpack.c.l.b16 %v5635
  %v5696 = vunpack.c.h.b16 %v5635
  %v5697 = vunpack.c.l.b16 %v5636
  %v5698 = vunpack.c.h.b16 %v5636
  %v5699 = vunpack.c.l.b16 %v5637
  %v5700 = vunpack.c.h.b16 %v5637
  %v5701 = vunpack.c.l.b16 %v5638
  %v5702 = vunpack.c.h.b16 %v5638
  %v5703 = vunpack.c.l.b16 %v5639
  %v5704 = vunpack.c.h.b16 %v5639
  %v5705 = vunpack.c.l.b16 %v5640
  %v5706 = vunpack.c.h.b16 %v5640
  %v5707 = vunpack.c.l.b16 %v5641
  %v5708 = vunpack.c.h.b16 %v5641
  %v5709 = vunpack.c.l.b16 %v5642
  %v5710 = vunpack.c.h.b16 %v5642
  %v5711 = vunpack.c.l.b16 %v5643
  %v5712 = vunpack.c.h.b16 %v5643
  %v5713 = vunpack.c.l.b16 %v5644
  %v5714 = vunpack.c.h.b16 %v5644
  %v5715 = vunpack.c.l.b16 %v5645
  %v5716 = vunpack.c.h.b16 %v5645
  %v5717 = vunpack.c.l.b16 %v5646
  %v5718 = vunpack.c.h.b16 %v5646
  %v5719 = vunpack.c.l.b16 %v5647
  %v5720 = vunpack.c.h.b16 %v5647
  %v5721 = vunpack.c.l.b16 %v5648
  %v5722 = vunpack.c.h.b16 %v5648
  %v5723 = vunpack.c.l.b16 %v5649
  %v5724 = vunpack.c.h.b16 %v5649
  %v5725 = vunpack.c.l.b16 %v5650
  %v5726 = vunpack.c.h.b16 %v5650
  %v5727 = vunpack.c.l.b16 %v5651
  %v5728 = vunpack.c.h.b16 %v5651
  %v5729 = vunpack.c.l.b16 %v5652
  %v5730 = vunpack.c.h.b16 %v5652
  %v5731 = vunpack.c.l.b16 %v5653
  %v5732 = vunpack.c.h.b16 %v5653
  %v5733 = vunpack.c.l.b16 %v5654
  %v5734 = vunpack.c.h.b16 %v5654
  %v5735 = vunpack.c.l.b16 %v5655
  %v5736 = vunpack.c.h.b16 %v5655
  %v5737 = vunpack.c.l.b16 %v5656
  %v5738 = vunpack.c.h.b16 %v5656
  %v5739 = vunpack.c.l.b16 %v5657
  %v5740 = vunpack.c.h.b16 %v5657
  %v5741 = vunpack.c.l.b16 %v5658
  %v5742 = vunpack.c.h.b16 %v5658
  %v5743 = vunpack.c.l.b16 %v5659
  %v5744 = vunpack.c.h.b16 %v5659
  %v5745 = vunpack.c.l.b16 %v5660
  %v5746 = vunpack.c.h.b16 %v5660
  %v5747 = vunpack.c.l.b16 %v5661
  %v5748 = vunpack.c.h.b16 %v5661
  %v5749 = vunpack.c.l.b16 %v5662
  %v5750 = vunpack.c.h.b16 %v5662
  %v5751 = vunpack.c.l.b16 %v5663
  %v5752 = vunpack.c.h.b16 %v5663
  %v5753 = vunpack.c.l.b16 %v5664
  %v5754 = vunpack.c.h.b16 %v5664
  %v5755 = vpack.c.b16 %v5697, %v5695
  %v5756 = vpack.c.b16 %v5698, %v5696
  %v5757 = vpack.c.b16 %v5701, %v5699
  %v5758 = vpack.c.b16 %v5702, %v5700
  %v5759 = vpack.c.b16 %v5705, %v5703
  %v5760 = vpack.c.b16 %v5706, %v5704
  %v5761 = vpack.c.b16 %v5709, %v5707
  %v5762 = vpack.c.b16 %v5710, %v5708
  %v5763 = vpack.c.b16 %v5713, %v5711
  %v5764 = vpack.c.b16 %v5714, %v5712
  %v5765 = vpack.c.b16 %v5717, %v5715
  %v5766 = vpack.c.b16 %v5718, %v5716
  %v5767 = vpack.c.b16 %v5721, %v5719
  %v5768 = vpack.c.b16 %v5722, %v5720
  %v5769 = vpack.c.b16 %v5725, %v5723
  %v5770 = vpack.c.b16 %v5726, %v5724
  %v5771 = vpack.c.b16 %v5729, %v5727
  %v5772 = vpack.c.b16 %v5730, %v5728
  %v5773 = vpack.c.b16 %v5733, %v5731
  %v5774 = vpack.c.b16 %v5734, %v5732
  %v5775 = vpack.c.b16 %v5737, %v5735
  %v5776 = vpack.c.b16 %v5738, %v5736
  %v5777 = vpack.c.b16 %v5741, %v5739
  %v5778 = vpack.c.b16 %v5742, %v5740
  %v5779 = vpack.c.b16 %v5745, %v5743
  %v5780 = vpack.c.b16 %v5746, %v5744
  %v5781 = vpack.c.b16 %v5749, %v5747
  %v5782 = vpack.c.b16 %v5750, %v5748
  %v5783 = vpack.c.b16 %v5753, %v5751
  %v5784 = vpack.c.b16 %v5754, %v5752
  %5815 = vmatpush.bf16.msra.mxu0 %v5769
  %5816 = vmatpush.bf16.msra.mxu0 %v5767
  %5817 = vmatpush.bf16.msra.mxu0 %v5765
  %5818 = vmatpush.bf16.msra.mxu0 %v5763
  %5819 = vmatpush.bf16.msra.mxu0 %v5761
  %5820 = vmatpush.bf16.msra.mxu0 %v5759
  %5821 = vmatpush.bf16.msra.mxu0 %v5757
  %5822 = vmatpush.bf16.msra.mxu0 %v5755
  %5823 = vmatmul.bf16.gmra.mxu0 %v4315
  %v5824 = vpop.f32.mrf.mxu0
  %v5825 = vadd.f32 0.0, %v5824
  %v5826 = vpop.f32.mrf.mxu0
  %v5827 = vadd.f32 0.0, %v5826
  %5828 = vmatmul.bf16.gmra.mxu0 %v4317
  %v5829 = vpop.f32.mrf.mxu0
  %v5830 = vadd.f32 0.0, %v5829
  %v5831 = vpop.f32.mrf.mxu0
  %v5832 = vadd.f32 0.0, %v5831
  %5833 = vdwg.mxu0
  %5834 = vmatpush.bf16.msra.mxu0 0
  %5835 = vmatpush.bf16.msra.mxu0 %v5783
  %5836 = vmatpush.bf16.msra.mxu0 %v5781
  %5837 = vmatpush.bf16.msra.mxu0 %v5779
  %5838 = vmatpush.bf16.msra.mxu0 %v5777
  %5839 = vmatpush.bf16.msra.mxu0 %v5775
  %5840 = vmatpush.bf16.msra.mxu0 %v5773
  %5841 = vmatpush.bf16.msra.mxu0 %v5771
  %5842 = vmatmul.bf16.gmra.mxu0 %v4501
  %v5843 = vpop.f32.mrf.mxu0
  %v5844 = vadd.f32 %v5825, %v5843
  %v5845 = vpop.f32.mrf.mxu0
  %v5846 = vadd.f32 %v5827, %v5845
  %5847 = vmatmul.bf16.gmra.mxu0 %v4504
  %v5848 = vpop.f32.mrf.mxu0
  %v5849 = vadd.f32 %v5830, %v5848
  %v5850 = vpop.f32.mrf.mxu0
  %v5851 = vadd.f32 %v5832, %v5850
  %5852 = vdwg.mxu0
  %5853 = vmatpush.bf16.msra.mxu0 %v5770
  %5854 = vmatpush.bf16.msra.mxu0 %v5768
  %5855 = vmatpush.bf16.msra.mxu0 %v5766
  %5856 = vmatpush.bf16.msra.mxu0 %v5764
  %5857 = vmatpush.bf16.msra.mxu0 %v5762
  %5858 = vmatpush.bf16.msra.mxu0 %v5760
  %5859 = vmatpush.bf16.msra.mxu0 %v5758
  %5860 = vmatpush.bf16.msra.mxu0 %v5756
  %5861 = vmatmul.bf16.gmra.mxu0 %v4315
  %v5862 = vpop.f32.mrf.mxu0
  %v5863 = vadd.f32 0.0, %v5862
  %v5864 = vpop.f32.mrf.mxu0
  %v5865 = vadd.f32 0.0, %v5864
  %5866 = vmatmul.bf16.gmra.mxu0 %v4317
  %v5867 = vpop.f32.mrf.mxu0
  %v5868 = vadd.f32 0.0, %v5867
  %v5869 = vpop.f32.mrf.mxu0
  %v5870 = vadd.f32 0.0, %v5869
  %5871 = vdwg.mxu0
  %5872 = vmatpush.bf16.msra.mxu0 0
  %5873 = vmatpush.bf16.msra.mxu0 %v5784
  %5874 = vmatpush.bf16.msra.mxu0 %v5782
  %5875 = vmatpush.bf16.msra.mxu0 %v5780
  %5876 = vmatpush.bf16.msra.mxu0 %v5778
  %5877 = vmatpush.bf16.msra.mxu0 %v5776
  %5878 = vmatpush.bf16.msra.mxu0 %v5774
  %5879 = vmatpush.bf16.msra.mxu0 %v5772
  %5880 = vmatmul.bf16.gmra.mxu0 %v4501
  %v5881 = vpop.f32.mrf.mxu0
  %v5882 = vadd.f32 %v5863, %v5881
  %v5883 = vpop.f32.mrf.mxu0
  %v5884 = vadd.f32 %v5865, %v5883
  %5885 = vmatmul.bf16.gmra.mxu0 %v4504
  %v5886 = vpop.f32.mrf.mxu0
  %v5887 = vadd.f32 %v5868, %v5886
  %v5888 = vpop.f32.mrf.mxu0
  %v5889 = vadd.f32 %v5870, %v5888
  %5890 = vdwg.mxu0
  %v5891 = vadd.f32 %v5626, %v5844
  %v5892 = vadd.f32 %v5627, %v5882
  %v5893 = vadd.f32 %v5628, %v5846
  %v5894 = vadd.f32 %v5629, %v5884
  %v5895 = vadd.f32 %v5630, %v5849
  %v5896 = vadd.f32 %v5631, %v5887
  %v5897 = vadd.f32 %v5632, %v5851
  %v5898 = vadd.f32 %v5633, %v5889
  %v5899 = vmax.f32 %v4582, %v5891
  %v5900 = vmax.f32 %v4583, %v5892
  %v5901 = vmax.f32 %v4584, %v5893
  %v5902 = vmax.f32 %v4585, %v5894
  %v5903 = vmax.f32 %v4586, %v5895
  %v5904 = vmax.f32 %v4587, %v5896
  %v5905 = vmax.f32 %v4588, %v5897
  %v5906 = vmax.f32 %v4589, %v5898
  %5907 = vmatpush.bf16.msra.mxu0 %v3381
  %5908 = vmatpush.bf16.msra.mxu0 %v3379
  %5909 = vmatpush.bf16.msra.mxu0 %v3377
  %5910 = vmatpush.bf16.msra.mxu0 %v3375
  %5911 = vmatpush.bf16.msra.mxu0 %v3373
  %5912 = vmatpush.bf16.msra.mxu0 %v3371
  %5913 = vmatpush.bf16.msra.mxu0 %v3369
  %5914 = vmatpush.bf16.msra.mxu0 %v3367
  %5915 = vmatmul.bf16.gmra.mxu0 %v3749
  %v5916 = vpop.f32.mrf.mxu0
  %v5917 = vadd.f32 0.0, %v5916
  %v5918 = vpop.f32.mrf.mxu0
  %v5919 = vadd.f32 0.0, %v5918
  %5920 = vmatmul.bf16.gmra.mxu0 %v3751
  %v5921 = vpop.f32.mrf.mxu0
  %v5922 = vadd.f32 0.0, %v5921
  %v5923 = vpop.f32.mrf.mxu0
  %v5924 = vadd.f32 0.0, %v5923
  %5925 = vdwg.mxu0
  %5926 = vmatpush.bf16.msra.mxu0 0
  %5927 = vmatpush.bf16.msra.mxu0 %v3395
  %5928 = vmatpush.bf16.msra.mxu0 %v3393
  %5929 = vmatpush.bf16.msra.mxu0 %v3391
  %5930 = vmatpush.bf16.msra.mxu0 %v3389
  %5931 = vmatpush.bf16.msra.mxu0 %v3387
  %5932 = vmatpush.bf16.msra.mxu0 %v3385
  %5933 = vmatpush.bf16.msra.mxu0 %v3383
  %5934 = vmatmul.bf16.gmra.mxu0 %v3935
  %v5935 = vpop.f32.mrf.mxu0
  %v5936 = vadd.f32 %v5917, %v5935
  %v5937 = vpop.f32.mrf.mxu0
  %v5938 = vadd.f32 %v5919, %v5937
  %5939 = vmatmul.bf16.gmra.mxu0 %v3938
  %v5940 = vpop.f32.mrf.mxu0
  %v5941 = vadd.f32 %v5922, %v5940
  %v5942 = vpop.f32.mrf.mxu0
  %v5943 = vadd.f32 %v5924, %v5942
  %5944 = vdwg.mxu0
  %5945 = vmatpush.bf16.msra.mxu0 %v3382
  %5946 = vmatpush.bf16.msra.mxu0 %v3380
  %5947 = vmatpush.bf16.msra.mxu0 %v3378
  %5948 = vmatpush.bf16.msra.mxu0 %v3376
  %5949 = vmatpush.bf16.msra.mxu0 %v3374
  %5950 = vmatpush.bf16.msra.mxu0 %v3372
  %5951 = vmatpush.bf16.msra.mxu0 %v3370
  %5952 = vmatpush.bf16.msra.mxu0 %v3368
  %5953 = vmatmul.bf16.gmra.mxu0 %v3749
  %v5954 = vpop.f32.mrf.mxu0
  %v5955 = vadd.f32 0.0, %v5954
  %v5956 = vpop.f32.mrf.mxu0
  %v5957 = vadd.f32 0.0, %v5956
  %5958 = vmatmul.bf16.gmra.mxu0 %v3751
  %v5959 = vpop.f32.mrf.mxu0
  %v5960 = vadd.f32 0.0, %v5959
  %v5961 = vpop.f32.mrf.mxu0
  %v5962 = vadd.f32 0.0, %v5961
  %5963 = vdwg.mxu0
  %5964 = vmatpush.bf16.msra.mxu0 0
  %5965 = vmatpush.bf16.msra.mxu0 %v3396
  %5966 = vmatpush.bf16.msra.mxu0 %v3394
  %5967 = vmatpush.bf16.msra.mxu0 %v3392
  %5968 = vmatpush.bf16.msra.mxu0 %v3390
  %5969 = vmatpush.bf16.msra.mxu0 %v3388
  %5970 = vmatpush.bf16.msra.mxu0 %v3386
  %5971 = vmatpush.bf16.msra.mxu0 %v3384
  %5972 = vmatmul.bf16.gmra.mxu0 %v3935
  %v5973 = vpop.f32.mrf.mxu0
  %v5974 = vadd.f32 %v5955, %v5973
  %v5975 = vpop.f32.mrf.mxu0
  %v5976 = vadd.f32 %v5957, %v5975
  %5977 = vmatmul.bf16.gmra.mxu0 %v3938
  %v5978 = vpop.f32.mrf.mxu0
  %v5979 = vadd.f32 %v5960, %v5978
  %v5980 = vpop.f32.mrf.mxu0
  %v5981 = vadd.f32 %v5962, %v5980
  %5982 = vdwg.mxu0
  %5983 = vmatpush.bf16.msra.mxu0 %v3613
  %5984 = vmatpush.bf16.msra.mxu0 %v3611
  %5985 = vmatpush.bf16.msra.mxu0 %v3609
  %5986 = vmatpush.bf16.msra.mxu0 %v3607
  %5987 = vmatpush.bf16.msra.mxu0 %v3605
  %5988 = vmatpush.bf16.msra.mxu0 %v3603
  %5989 = vmatpush.bf16.msra.mxu0 %v3601
  %5990 = vmatpush.bf16.msra.mxu0 %v3599
  %5991 = vmatmul.bf16.gmra.mxu0 %v3242
  %v5992 = vpop.f32.mrf.mxu0
  %v5993 = vadd.f32 %v5936, %v5992
  %v5994 = vpop.f32.mrf.mxu0
  %v5995 = vadd.f32 %v5938, %v5994
  %5996 = vmatmul.bf16.gmra.mxu0 %v3244
  %v5997 = vpop.f32.mrf.mxu0
  %v5998 = vadd.f32 %v5941, %v5997
  %v5999 = vpop.f32.mrf.mxu0
  %v6000 = vadd.f32 %v5943, %v5999
  %6001 = vdwg.mxu0
  %6002 = vmatpush.bf16.msra.mxu0 0
  %6003 = vmatpush.bf16.msra.mxu0 %v3627
  %6004 = vmatpush.bf16.msra.mxu0 %v3625
  %6005 = vmatpush.bf16.msra.mxu0 %v3623
  %6006 = vmatpush.bf16.msra.mxu0 %v3621
  %6007 = vmatpush.bf16.msra.mxu0 %v3619
  %6008 = vmatpush.bf16.msra.mxu0 %v3617
  %6009 = vmatpush.bf16.msra.mxu0 %v3615
  %6010 = vmatmul.bf16.gmra.mxu0 %v3428
  %v6011 = vpop.f32.mrf.mxu0
  %v6012 = vadd.f32 %v5993, %v6011
  %v6013 = vpop.f32.mrf.mxu0
  %v6014 = vadd.f32 %v5995, %v6013
  %6015 = vmatmul.bf16.gmra.mxu0 %v3431
  %v6016 = vpop.f32.mrf.mxu0
  %v6017 = vadd.f32 %v5998, %v6016
  %v6018 = vpop.f32.mrf.mxu0
  %v6019 = vadd.f32 %v6000, %v6018
  %6020 = vdwg.mxu0
  %6021 = vmatpush.bf16.msra.mxu0 %v3614
  %6022 = vmatpush.bf16.msra.mxu0 %v3612
  %6023 = vmatpush.bf16.msra.mxu0 %v3610
  %6024 = vmatpush.bf16.msra.mxu0 %v3608
  %6025 = vmatpush.bf16.msra.mxu0 %v3606
  %6026 = vmatpush.bf16.msra.mxu0 %v3604
  %6027 = vmatpush.bf16.msra.mxu0 %v3602
  %6028 = vmatpush.bf16.msra.mxu0 %v3600
  %6029 = vmatmul.bf16.gmra.mxu0 %v3242
  %v6030 = vpop.f32.mrf.mxu0
  %v6031 = vadd.f32 %v5974, %v6030
  %v6032 = vpop.f32.mrf.mxu0
  %v6033 = vadd.f32 %v5976, %v6032
  %6034 = vmatmul.bf16.gmra.mxu0 %v3244
  %v6035 = vpop.f32.mrf.mxu0
  %v6036 = vadd.f32 %v5979, %v6035
  %v6037 = vpop.f32.mrf.mxu0
  %v6038 = vadd.f32 %v5981, %v6037
  %6039 = vdwg.mxu0
  %6040 = vmatpush.bf16.msra.mxu0 0
  %6041 = vmatpush.bf16.msra.mxu0 %v3628
  %6042 = vmatpush.bf16.msra.mxu0 %v3626
  %6043 = vmatpush.bf16.msra.mxu0 %v3624
  %6044 = vmatpush.bf16.msra.mxu0 %v3622
  %6045 = vmatpush.bf16.msra.mxu0 %v3620
  %6046 = vmatpush.bf16.msra.mxu0 %v3618
  %6047 = vmatpush.bf16.msra.mxu0 %v3616
  %6048 = vmatmul.bf16.gmra.mxu0 %v3428
  %v6049 = vpop.f32.mrf.mxu0
  %v6050 = vadd.f32 %v6031, %v6049
  %v6051 = vpop.f32.mrf.mxu0
  %v6052 = vadd.f32 %v6033, %v6051
  %6053 = vmatmul.bf16.gmra.mxu0 %v3431
  %v6054 = vpop.f32.mrf.mxu0
  %v6055 = vadd.f32 %v6036, %v6054
  %v6056 = vpop.f32.mrf.mxu0
  %v6057 = vadd.f32 %v6038, %v6056
  %6058 = vdwg.mxu0
  %6059 = vmatpush.bf16.msra.mxu0 %v3888
  %6060 = vmatpush.bf16.msra.mxu0 %v3886
  %6061 = vmatpush.bf16.msra.mxu0 %v3884
  %6062 = vmatpush.bf16.msra.mxu0 %v3882
  %6063 = vmatpush.bf16.msra.mxu0 %v3880
  %6064 = vmatpush.bf16.msra.mxu0 %v3878
  %6065 = vmatpush.bf16.msra.mxu0 %v3876
  %6066 = vmatpush.bf16.msra.mxu0 %v3874
  %6067 = vmatmul.bf16.gmra.mxu0 %v4032
  %v6068 = vpop.f32.mrf.mxu0
  %v6069 = vadd.f32 0.0, %v6068
  %v6070 = vpop.f32.mrf.mxu0
  %v6071 = vadd.f32 0.0, %v6070
  %6072 = vmatmul.bf16.gmra.mxu0 %v4034
  %v6073 = vpop.f32.mrf.mxu0
  %v6074 = vadd.f32 0.0, %v6073
  %v6075 = vpop.f32.mrf.mxu0
  %v6076 = vadd.f32 0.0, %v6075
  %6077 = vdwg.mxu0
  %6078 = vmatpush.bf16.msra.mxu0 0
  %6079 = vmatpush.bf16.msra.mxu0 %v3902
  %6080 = vmatpush.bf16.msra.mxu0 %v3900
  %6081 = vmatpush.bf16.msra.mxu0 %v3898
  %6082 = vmatpush.bf16.msra.mxu0 %v3896
  %6083 = vmatpush.bf16.msra.mxu0 %v3894
  %6084 = vmatpush.bf16.msra.mxu0 %v3892
  %6085 = vmatpush.bf16.msra.mxu0 %v3890
  %6086 = vmatmul.bf16.gmra.mxu0 %v4218
  %v6087 = vpop.f32.mrf.mxu0
  %v6088 = vadd.f32 %v6069, %v6087
  %v6089 = vpop.f32.mrf.mxu0
  %v6090 = vadd.f32 %v6071, %v6089
  %6091 = vmatmul.bf16.gmra.mxu0 %v4221
  %v6092 = vpop.f32.mrf.mxu0
  %v6093 = vadd.f32 %v6074, %v6092
  %v6094 = vpop.f32.mrf.mxu0
  %v6095 = vadd.f32 %v6076, %v6094
  %6096 = vdwg.mxu0
  %6097 = vmatpush.bf16.msra.mxu0 %v3889
  %6098 = vmatpush.bf16.msra.mxu0 %v3887
  %6099 = vmatpush.bf16.msra.mxu0 %v3885
  %6100 = vmatpush.bf16.msra.mxu0 %v3883
  %6101 = vmatpush.bf16.msra.mxu0 %v3881
  %6102 = vmatpush.bf16.msra.mxu0 %v3879
  %6103 = vmatpush.bf16.msra.mxu0 %v3877
  %6104 = vmatpush.bf16.msra.mxu0 %v3875
  %6105 = vmatmul.bf16.gmra.mxu0 %v4032
  %v6106 = vpop.f32.mrf.mxu0
  %v6107 = vadd.f32 0.0, %v6106
  %v6108 = vpop.f32.mrf.mxu0
  %v6109 = vadd.f32 0.0, %v6108
  %6110 = vmatmul.bf16.gmra.mxu0 %v4034
  %v6111 = vpop.f32.mrf.mxu0
  %v6112 = vadd.f32 0.0, %v6111
  %v6113 = vpop.f32.mrf.mxu0
  %v6114 = vadd.f32 0.0, %v6113
  %6115 = vdwg.mxu0
  %6116 = vmatpush.bf16.msra.mxu0 0
  %6117 = vmatpush.bf16.msra.mxu0 %v3903
  %6118 = vmatpush.bf16.msra.mxu0 %v3901
  %6119 = vmatpush.bf16.msra.mxu0 %v3899
  %6120 = vmatpush.bf16.msra.mxu0 %v3897
  %6121 = vmatpush.bf16.msra.mxu0 %v3895
  %6122 = vmatpush.bf16.msra.mxu0 %v3893
  %6123 = vmatpush.bf16.msra.mxu0 %v3891
  %6124 = vmatmul.bf16.gmra.mxu0 %v4218
  %v6125 = vpop.f32.mrf.mxu0
  %v6126 = vadd.f32 %v6107, %v6125
  %v6127 = vpop.f32.mrf.mxu0
  %v6128 = vadd.f32 %v6109, %v6127
  %6129 = vmatmul.bf16.gmra.mxu0 %v4221
  %v6130 = vpop.f32.mrf.mxu0
  %v6131 = vadd.f32 %v6112, %v6130
  %v6132 = vpop.f32.mrf.mxu0
  %v6133 = vadd.f32 %v6114, %v6132
  %6134 = vdwg.mxu0
  %v6135 = vadd.f32 %v6012, %v6088
  %v6136 = vadd.f32 %v6050, %v6126
  %v6137 = vadd.f32 %v6014, %v6090
  %v6138 = vadd.f32 %v6052, %v6128
  %v6139 = vadd.f32 %v6017, %v6093
  %v6140 = vadd.f32 %v6055, %v6131
  %v6141 = vadd.f32 %v6019, %v6095
  %v6142 = vadd.f32 %v6057, %v6133
  %6143 = vmatpush.bf16.msra.mxu0 %v4171
  %6144 = vmatpush.bf16.msra.mxu0 %v4169
  %6145 = vmatpush.bf16.msra.mxu0 %v4167
  %6146 = vmatpush.bf16.msra.mxu0 %v4165
  %6147 = vmatpush.bf16.msra.mxu0 %v4163
  %6148 = vmatpush.bf16.msra.mxu0 %v4161
  %6149 = vmatpush.bf16.msra.mxu0 %v4159
  %6150 = vmatpush.bf16.msra.mxu0 %v4157
  %6151 = vmatmul.bf16.gmra.mxu0 %v4315
  %v6152 = vpop.f32.mrf.mxu0
  %v6153 = vadd.f32 0.0, %v6152
  %v6154 = vpop.f32.mrf.mxu0
  %v6155 = vadd.f32 0.0, %v6154
  %6156 = vmatmul.bf16.gmra.mxu0 %v4317
  %v6157 = vpop.f32.mrf.mxu0
  %v6158 = vadd.f32 0.0, %v6157
  %v6159 = vpop.f32.mrf.mxu0
  %v6160 = vadd.f32 0.0, %v6159
  %6161 = vdwg.mxu0
  %6162 = vmatpush.bf16.msra.mxu0 0
  %6163 = vmatpush.bf16.msra.mxu0 %v4185
  %6164 = vmatpush.bf16.msra.mxu0 %v4183
  %6165 = vmatpush.bf16.msra.mxu0 %v4181
  %6166 = vmatpush.bf16.msra.mxu0 %v4179
  %6167 = vmatpush.bf16.msra.mxu0 %v4177
  %6168 = vmatpush.bf16.msra.mxu0 %v4175
  %6169 = vmatpush.bf16.msra.mxu0 %v4173
  %6170 = vmatmul.bf16.gmra.mxu0 %v4501
  %v6171 = vpop.f32.mrf.mxu0
  %v6172 = vadd.f32 %v6153, %v6171
  %v6173 = vpop.f32.mrf.mxu0
  %v6174 = vadd.f32 %v6155, %v6173
  %6175 = vmatmul.bf16.gmra.mxu0 %v4504
  %v6176 = vpop.f32.mrf.mxu0
  %v6177 = vadd.f32 %v6158, %v6176
  %v6178 = vpop.f32.mrf.mxu0
  %v6179 = vadd.f32 %v6160, %v6178
  %6180 = vdwg.mxu0
  %6181 = vmatpush.bf16.msra.mxu0 %v4172
  %6182 = vmatpush.bf16.msra.mxu0 %v4170
  %6183 = vmatpush.bf16.msra.mxu0 %v4168
  %6184 = vmatpush.bf16.msra.mxu0 %v4166
  %6185 = vmatpush.bf16.msra.mxu0 %v4164
  %6186 = vmatpush.bf16.msra.mxu0 %v4162
  %6187 = vmatpush.bf16.msra.mxu0 %v4160
  %6188 = vmatpush.bf16.msra.mxu0 %v4158
  %6189 = vmatmul.bf16.gmra.mxu0 %v4315
  %v6190 = vpop.f32.mrf.mxu0
  %v6191 = vadd.f32 0.0, %v6190
  %v6192 = vpop.f32.mrf.mxu0
  %v6193 = vadd.f32 0.0, %v6192
  %6194 = vmatmul.bf16.gmra.mxu0 %v4317
  %v6195 = vpop.f32.mrf.mxu0
  %v6196 = vadd.f32 0.0, %v6195
  %v6197 = vpop.f32.mrf.mxu0
  %v6198 = vadd.f32 0.0, %v6197
  %6199 = vdwg.mxu0
  %6200 = vmatpush.bf16.msra.mxu0 0
  %6201 = vmatpush.bf16.msra.mxu0 %v4186
  %6202 = vmatpush.bf16.msra.mxu0 %v4184
  %6203 = vmatpush.bf16.msra.mxu0 %v4182
  %6204 = vmatpush.bf16.msra.mxu0 %v4180
  %6205 = vmatpush.bf16.msra.mxu0 %v4178
  %6206 = vmatpush.bf16.msra.mxu0 %v4176
  %6207 = vmatpush.bf16.msra.mxu0 %v4174
  %6208 = vmatmul.bf16.gmra.mxu0 %v4501
  %v6209 = vpop.f32.mrf.mxu0
  %v6210 = vadd.f32 %v6191, %v6209
  %v6211 = vpop.f32.mrf.mxu0
  %v6212 = vadd.f32 %v6193, %v6211
  %6213 = vmatmul.bf16.gmra.mxu0 %v4504
  %v6214 = vpop.f32.mrf.mxu0
  %v6215 = vadd.f32 %v6196, %v6214
  %v6216 = vpop.f32.mrf.mxu0
  %v6217 = vadd.f32 %v6198, %v6216
  %6218 = vdwg.mxu0
  %v6219 = vadd.f32 %v6135, %v6172
  %v6220 = vadd.f32 %v6136, %v6210
  %v6221 = vadd.f32 %v6137, %v6174
  %v6222 = vadd.f32 %v6138, %v6212
  %v6223 = vadd.f32 %v6139, %v6177
  %v6224 = vadd.f32 %v6140, %v6215
  %v6225 = vadd.f32 %v6141, %v6179
  %v6226 = vadd.f32 %v6142, %v6217
  %v6227 = vld [vmem:[#allocation3 + $0x20] sm:$0xff]
  %v6228 = vld [vmem:[#allocation3 + $0x28] sm:$0xff]
  %v6229 = vld [vmem:[#allocation3 + $0x30] sm:$0xff]
  %v6230 = vld [vmem:[#allocation3 + $0x38] sm:$0xff]
  %v6231 = vld [vmem:[#allocation3 + $0x40] sm:$0xff]
  %v6232 = vld [vmem:[#allocation3 + $0x48] sm:$0xff]
  %v6233 = vld [vmem:[#allocation3 + $0x50] sm:$0xff]
  %v6234 = vld [vmem:[#allocation3 + $0x58] sm:$0xff]
  %v6235 = vpack.c.bf16 %v6229, %v6227
  %v6236 = vpack.c.bf16 %v6230, %v6228
  %v6237 = vpack.c.bf16 %v6233, %v6231
  %v6238 = vpack.c.bf16 %v6234, %v6232
  %v6240 = vsel %vm1608, %v6236, 0
  %v6243 = vsel %vm1608, %v6238, 0
  %6245 = vmatpush.bf16.msra.mxu0 %v4454
  %6246 = vmatpush.bf16.msra.mxu0 %v4452
  %6247 = vmatpush.bf16.msra.mxu0 %v4450
  %6248 = vmatpush.bf16.msra.mxu0 %v4448
  %6249 = vmatpush.bf16.msra.mxu0 %v4446
  %6250 = vmatpush.bf16.msra.mxu0 %v4444
  %6251 = vmatpush.bf16.msra.mxu0 %v4442
  %6252 = vmatpush.bf16.msra.mxu0 %v4440
  %6253 = vmatmul.bf16.gmra.mxu0 %v6235
  %v6254 = vpop.f32.mrf.mxu0
  %v6255 = vadd.f32 0.0, %v6254
  %v6256 = vpop.f32.mrf.mxu0
  %v6257 = vadd.f32 0.0, %v6256
  %6258 = vmatmul.bf16.gmra.mxu0 %v6237
  %v6259 = vpop.f32.mrf.mxu0
  %v6260 = vadd.f32 0.0, %v6259
  %v6261 = vpop.f32.mrf.mxu0
  %v6262 = vadd.f32 0.0, %v6261
  %6263 = vdwg.mxu0
  %6264 = vmatpush.bf16.msra.mxu0 0
  %6265 = vmatpush.bf16.msra.mxu0 %v4468
  %6266 = vmatpush.bf16.msra.mxu0 %v4466
  %6267 = vmatpush.bf16.msra.mxu0 %v4464
  %6268 = vmatpush.bf16.msra.mxu0 %v4462
  %6269 = vmatpush.bf16.msra.mxu0 %v4460
  %6270 = vmatpush.bf16.msra.mxu0 %v4458
  %6271 = vmatpush.bf16.msra.mxu0 %v4456
  %6272 = vmatmul.bf16.gmra.mxu0 %v6240
  %v6273 = vpop.f32.mrf.mxu0
  %v6274 = vadd.f32 %v6255, %v6273
  %v6275 = vpop.f32.mrf.mxu0
  %v6276 = vadd.f32 %v6257, %v6275
  %6277 = vmatmul.bf16.gmra.mxu0 %v6243
  %v6278 = vpop.f32.mrf.mxu0
  %v6279 = vadd.f32 %v6260, %v6278
  %v6280 = vpop.f32.mrf.mxu0
  %v6281 = vadd.f32 %v6262, %v6280
  %6282 = vdwg.mxu0
  %6283 = vmatpush.bf16.msra.mxu0 %v4455
  %6284 = vmatpush.bf16.msra.mxu0 %v4453
  %6285 = vmatpush.bf16.msra.mxu0 %v4451
  %6286 = vmatpush.bf16.msra.mxu0 %v4449
  %6287 = vmatpush.bf16.msra.mxu0 %v4447
  %6288 = vmatpush.bf16.msra.mxu0 %v4445
  %6289 = vmatpush.bf16.msra.mxu0 %v4443
  %6290 = vmatpush.bf16.msra.mxu0 %v4441
  %6291 = vmatmul.bf16.gmra.mxu0 %v6235
  %v6292 = vpop.f32.mrf.mxu0
  %v6293 = vadd.f32 0.0, %v6292
  %v6294 = vpop.f32.mrf.mxu0
  %v6295 = vadd.f32 0.0, %v6294
  %6296 = vmatmul.bf16.gmra.mxu0 %v6237
  %v6297 = vpop.f32.mrf.mxu0
  %v6298 = vadd.f32 0.0, %v6297
  %v6299 = vpop.f32.mrf.mxu0
  %v6300 = vadd.f32 0.0, %v6299
  %6301 = vdwg.mxu0
  %6302 = vmatpush.bf16.msra.mxu0 0
  %6303 = vmatpush.bf16.msra.mxu0 %v4469
  %6304 = vmatpush.bf16.msra.mxu0 %v4467
  %6305 = vmatpush.bf16.msra.mxu0 %v4465
  %6306 = vmatpush.bf16.msra.mxu0 %v4463
  %6307 = vmatpush.bf16.msra.mxu0 %v4461
  %6308 = vmatpush.bf16.msra.mxu0 %v4459
  %6309 = vmatpush.bf16.msra.mxu0 %v4457
  %6310 = vmatmul.bf16.gmra.mxu0 %v6240
  %v6311 = vpop.f32.mrf.mxu0
  %v6312 = vadd.f32 %v6293, %v6311
  %v6313 = vpop.f32.mrf.mxu0
  %v6314 = vadd.f32 %v6295, %v6313
  %6315 = vmatmul.bf16.gmra.mxu0 %v6243
  %v6316 = vpop.f32.mrf.mxu0
  %v6317 = vadd.f32 %v6298, %v6316
  %v6318 = vpop.f32.mrf.mxu0
  %v6319 = vadd.f32 %v6300, %v6318
  %6320 = vdwg.mxu0
  %v6321 = vadd.f32 %v6219, %v6274
  %v6322 = vadd.f32 %v6220, %v6312
  %v6323 = vadd.f32 %v6221, %v6276
  %v6324 = vadd.f32 %v6222, %v6314
  %v6325 = vadd.f32 %v6223, %v6279
  %v6326 = vadd.f32 %v6224, %v6317
  %v6327 = vadd.f32 %v6225, %v6281
  %v6328 = vadd.f32 %v6226, %v6319
  %v6329 = vmax.f32 %v5899, %v6321
  %v6330 = vmax.f32 %v5900, %v6322
  %v6331 = vmax.f32 %v5901, %v6323
  %v6332 = vmax.f32 %v5902, %v6324
  %v6333 = vmax.f32 %v5903, %v6325
  %v6334 = vmax.f32 %v5904, %v6326
  %v6335 = vmax.f32 %v5905, %v6327
  %v6336 = vmax.f32 %v5906, %v6328
  %6337 = vmatpush.bf16.msra.mxu0 %v4756
  %6338 = vmatpush.bf16.msra.mxu0 %v4754
  %6339 = vmatpush.bf16.msra.mxu0 %v4752
  %6340 = vmatpush.bf16.msra.mxu0 %v4750
  %6341 = vmatpush.bf16.msra.mxu0 %v4748
  %6342 = vmatpush.bf16.msra.mxu0 %v4746
  %6343 = vmatpush.bf16.msra.mxu0 %v4744
  %6344 = vmatpush.bf16.msra.mxu0 %v4742
  %6345 = vmatmul.bf16.gmra.mxu0 %v3749
  %v6346 = vpop.f32.mrf.mxu0
  %v6347 = vadd.f32 0.0, %v6346
  %v6348 = vpop.f32.mrf.mxu0
  %v6349 = vadd.f32 0.0, %v6348
  %6350 = vmatmul.bf16.gmra.mxu0 %v3751
  %v6351 = vpop.f32.mrf.mxu0
  %v6352 = vadd.f32 0.0, %v6351
  %v6353 = vpop.f32.mrf.mxu0
  %v6354 = vadd.f32 0.0, %v6353
  %6355 = vdwg.mxu0
  %6356 = vmatpush.bf16.msra.mxu0 0
  %6357 = vmatpush.bf16.msra.mxu0 %v4770
  %6358 = vmatpush.bf16.msra.mxu0 %v4768
  %6359 = vmatpush.bf16.msra.mxu0 %v4766
  %6360 = vmatpush.bf16.msra.mxu0 %v4764
  %6361 = vmatpush.bf16.msra.mxu0 %v4762
  %6362 = vmatpush.bf16.msra.mxu0 %v4760
  %6363 = vmatpush.bf16.msra.mxu0 %v4758
  %6364 = vmatmul.bf16.gmra.mxu0 %v3935
  %v6365 = vpop.f32.mrf.mxu0
  %v6366 = vadd.f32 %v6347, %v6365
  %v6367 = vpop.f32.mrf.mxu0
  %v6368 = vadd.f32 %v6349, %v6367
  %6369 = vmatmul.bf16.gmra.mxu0 %v3938
  %v6370 = vpop.f32.mrf.mxu0
  %v6371 = vadd.f32 %v6352, %v6370
  %v6372 = vpop.f32.mrf.mxu0
  %v6373 = vadd.f32 %v6354, %v6372
  %6374 = vdwg.mxu0
  %6375 = vmatpush.bf16.msra.mxu0 %v4757
  %6376 = vmatpush.bf16.msra.mxu0 %v4755
  %6377 = vmatpush.bf16.msra.mxu0 %v4753
  %6378 = vmatpush.bf16.msra.mxu0 %v4751
  %6379 = vmatpush.bf16.msra.mxu0 %v4749
  %6380 = vmatpush.bf16.msra.mxu0 %v4747
  %6381 = vmatpush.bf16.msra.mxu0 %v4745
  %6382 = vmatpush.bf16.msra.mxu0 %v4743
  %6383 = vmatmul.bf16.gmra.mxu0 %v3749
  %v6384 = vpop.f32.mrf.mxu0
  %v6385 = vadd.f32 0.0, %v6384
  %v6386 = vpop.f32.mrf.mxu0
  %v6387 = vadd.f32 0.0, %v6386
  %6388 = vmatmul.bf16.gmra.mxu0 %v3751
  %v6389 = vpop.f32.mrf.mxu0
  %v6390 = vadd.f32 0.0, %v6389
  %v6391 = vpop.f32.mrf.mxu0
  %v6392 = vadd.f32 0.0, %v6391
  %6393 = vdwg.mxu0
  %6394 = vmatpush.bf16.msra.mxu0 0
  %6395 = vmatpush.bf16.msra.mxu0 %v4771
  %6396 = vmatpush.bf16.msra.mxu0 %v4769
  %6397 = vmatpush.bf16.msra.mxu0 %v4767
  %6398 = vmatpush.bf16.msra.mxu0 %v4765
  %6399 = vmatpush.bf16.msra.mxu0 %v4763
  %6400 = vmatpush.bf16.msra.mxu0 %v4761
  %6401 = vmatpush.bf16.msra.mxu0 %v4759
  %6402 = vmatmul.bf16.gmra.mxu0 %v3935
  %v6403 = vpop.f32.mrf.mxu0
  %v6404 = vadd.f32 %v6385, %v6403
  %v6405 = vpop.f32.mrf.mxu0
  %v6406 = vadd.f32 %v6387, %v6405
  %6407 = vmatmul.bf16.gmra.mxu0 %v3938
  %v6408 = vpop.f32.mrf.mxu0
  %v6409 = vadd.f32 %v6390, %v6408
  %v6410 = vpop.f32.mrf.mxu0
  %v6411 = vadd.f32 %v6392, %v6410
  %6412 = vdwg.mxu0
  %6413 = vmatpush.bf16.msra.mxu0 %v4982
  %6414 = vmatpush.bf16.msra.mxu0 %v4980
  %6415 = vmatpush.bf16.msra.mxu0 %v4978
  %6416 = vmatpush.bf16.msra.mxu0 %v4976
  %6417 = vmatpush.bf16.msra.mxu0 %v4974
  %6418 = vmatpush.bf16.msra.mxu0 %v4972
  %6419 = vmatpush.bf16.msra.mxu0 %v4970
  %6420 = vmatpush.bf16.msra.mxu0 %v4968
  %6421 = vmatmul.bf16.gmra.mxu0 %v3242
  %v6422 = vpop.f32.mrf.mxu0
  %v6423 = vadd.f32 %v6366, %v6422
  %v6424 = vpop.f32.mrf.mxu0
  %v6425 = vadd.f32 %v6368, %v6424
  %6426 = vmatmul.bf16.gmra.mxu0 %v3244
  %v6427 = vpop.f32.mrf.mxu0
  %v6428 = vadd.f32 %v6371, %v6427
  %v6429 = vpop.f32.mrf.mxu0
  %v6430 = vadd.f32 %v6373, %v6429
  %6431 = vdwg.mxu0
  %6432 = vmatpush.bf16.msra.mxu0 0
  %6433 = vmatpush.bf16.msra.mxu0 %v4996
  %6434 = vmatpush.bf16.msra.mxu0 %v4994
  %6435 = vmatpush.bf16.msra.mxu0 %v4992
  %6436 = vmatpush.bf16.msra.mxu0 %v4990
  %6437 = vmatpush.bf16.msra.mxu0 %v4988
  %6438 = vmatpush.bf16.msra.mxu0 %v4986
  %6439 = vmatpush.bf16.msra.mxu0 %v4984
  %6440 = vmatmul.bf16.gmra.mxu0 %v3428
  %v6441 = vpop.f32.mrf.mxu0
  %v6442 = vadd.f32 %v6423, %v6441
  %v6443 = vpop.f32.mrf.mxu0
  %v6444 = vadd.f32 %v6425, %v6443
  %6445 = vmatmul.bf16.gmra.mxu0 %v3431
  %v6446 = vpop.f32.mrf.mxu0
  %v6447 = vadd.f32 %v6428, %v6446
  %v6448 = vpop.f32.mrf.mxu0
  %v6449 = vadd.f32 %v6430, %v6448
  %6450 = vdwg.mxu0
  %6451 = vmatpush.bf16.msra.mxu0 %v4983
  %6452 = vmatpush.bf16.msra.mxu0 %v4981
  %6453 = vmatpush.bf16.msra.mxu0 %v4979
  %6454 = vmatpush.bf16.msra.mxu0 %v4977
  %6455 = vmatpush.bf16.msra.mxu0 %v4975
  %6456 = vmatpush.bf16.msra.mxu0 %v4973
  %6457 = vmatpush.bf16.msra.mxu0 %v4971
  %6458 = vmatpush.bf16.msra.mxu0 %v4969
  %6459 = vmatmul.bf16.gmra.mxu0 %v3242
  %v6460 = vpop.f32.mrf.mxu0
  %v6461 = vadd.f32 %v6404, %v6460
  %v6462 = vpop.f32.mrf.mxu0
  %v6463 = vadd.f32 %v6406, %v6462
  %6464 = vmatmul.bf16.gmra.mxu0 %v3244
  %v6465 = vpop.f32.mrf.mxu0
  %v6466 = vadd.f32 %v6409, %v6465
  %v6467 = vpop.f32.mrf.mxu0
  %v6468 = vadd.f32 %v6411, %v6467
  %6469 = vdwg.mxu0
  %6470 = vmatpush.bf16.msra.mxu0 0
  %6471 = vmatpush.bf16.msra.mxu0 %v4997
  %6472 = vmatpush.bf16.msra.mxu0 %v4995
  %6473 = vmatpush.bf16.msra.mxu0 %v4993
  %6474 = vmatpush.bf16.msra.mxu0 %v4991
  %6475 = vmatpush.bf16.msra.mxu0 %v4989
  %6476 = vmatpush.bf16.msra.mxu0 %v4987
  %6477 = vmatpush.bf16.msra.mxu0 %v4985
  %6478 = vmatmul.bf16.gmra.mxu0 %v3428
  %v6479 = vpop.f32.mrf.mxu0
  %v6480 = vadd.f32 %v6461, %v6479
  %v6481 = vpop.f32.mrf.mxu0
  %v6482 = vadd.f32 %v6463, %v6481
  %6483 = vmatmul.bf16.gmra.mxu0 %v3431
  %v6484 = vpop.f32.mrf.mxu0
  %v6485 = vadd.f32 %v6466, %v6484
  %v6486 = vpop.f32.mrf.mxu0
  %v6487 = vadd.f32 %v6468, %v6486
  %6488 = vdwg.mxu0
  %6489 = vmatpush.bf16.msra.mxu0 %v5239
  %6490 = vmatpush.bf16.msra.mxu0 %v5237
  %6491 = vmatpush.bf16.msra.mxu0 %v5235
  %6492 = vmatpush.bf16.msra.mxu0 %v5233
  %6493 = vmatpush.bf16.msra.mxu0 %v5231
  %6494 = vmatpush.bf16.msra.mxu0 %v5229
  %6495 = vmatpush.bf16.msra.mxu0 %v5227
  %6496 = vmatpush.bf16.msra.mxu0 %v5225
  %6497 = vmatmul.bf16.gmra.mxu0 %v4032
  %v6498 = vpop.f32.mrf.mxu0
  %v6499 = vadd.f32 0.0, %v6498
  %v6500 = vpop.f32.mrf.mxu0
  %v6501 = vadd.f32 0.0, %v6500
  %6502 = vmatmul.bf16.gmra.mxu0 %v4034
  %v6503 = vpop.f32.mrf.mxu0
  %v6504 = vadd.f32 0.0, %v6503
  %v6505 = vpop.f32.mrf.mxu0
  %v6506 = vadd.f32 0.0, %v6505
  %6507 = vdwg.mxu0
  %6508 = vmatpush.bf16.msra.mxu0 0
  %6509 = vmatpush.bf16.msra.mxu0 %v5253
  %6510 = vmatpush.bf16.msra.mxu0 %v5251
  %6511 = vmatpush.bf16.msra.mxu0 %v5249
  %6512 = vmatpush.bf16.msra.mxu0 %v5247
  %6513 = vmatpush.bf16.msra.mxu0 %v5245
  %6514 = vmatpush.bf16.msra.mxu0 %v5243
  %6515 = vmatpush.bf16.msra.mxu0 %v5241
  %6516 = vmatmul.bf16.gmra.mxu0 %v4218
  %v6517 = vpop.f32.mrf.mxu0
  %v6518 = vadd.f32 %v6499, %v6517
  %v6519 = vpop.f32.mrf.mxu0
  %v6520 = vadd.f32 %v6501, %v6519
  %6521 = vmatmul.bf16.gmra.mxu0 %v4221
  %v6522 = vpop.f32.mrf.mxu0
  %v6523 = vadd.f32 %v6504, %v6522
  %v6524 = vpop.f32.mrf.mxu0
  %v6525 = vadd.f32 %v6506, %v6524
  %6526 = vdwg.mxu0
  %6527 = vmatpush.bf16.msra.mxu0 %v5240
  %6528 = vmatpush.bf16.msra.mxu0 %v5238
  %6529 = vmatpush.bf16.msra.mxu0 %v5236
  %6530 = vmatpush.bf16.msra.mxu0 %v5234
  %6531 = vmatpush.bf16.msra.mxu0 %v5232
  %6532 = vmatpush.bf16.msra.mxu0 %v5230
  %6533 = vmatpush.bf16.msra.mxu0 %v5228
  %6534 = vmatpush.bf16.msra.mxu0 %v5226
  %6535 = vmatmul.bf16.gmra.mxu0 %v4032
  %v6536 = vpop.f32.mrf.mxu0
  %v6537 = vadd.f32 0.0, %v6536
  %v6538 = vpop.f32.mrf.mxu0
  %v6539 = vadd.f32 0.0, %v6538
  %6540 = vmatmul.bf16.gmra.mxu0 %v4034
  %v6541 = vpop.f32.mrf.mxu0
  %v6542 = vadd.f32 0.0, %v6541
  %v6543 = vpop.f32.mrf.mxu0
  %v6544 = vadd.f32 0.0, %v6543
  %6545 = vdwg.mxu0
  %6546 = vmatpush.bf16.msra.mxu0 0
  %6547 = vmatpush.bf16.msra.mxu0 %v5254
  %6548 = vmatpush.bf16.msra.mxu0 %v5252
  %6549 = vmatpush.bf16.msra.mxu0 %v5250
  %6550 = vmatpush.bf16.msra.mxu0 %v5248
  %6551 = vmatpush.bf16.msra.mxu0 %v5246
  %6552 = vmatpush.bf16.msra.mxu0 %v5244
  %6553 = vmatpush.bf16.msra.mxu0 %v5242
  %6554 = vmatmul.bf16.gmra.mxu0 %v4218
  %v6555 = vpop.f32.mrf.mxu0
  %v6556 = vadd.f32 %v6537, %v6555
  %v6557 = vpop.f32.mrf.mxu0
  %v6558 = vadd.f32 %v6539, %v6557
  %6559 = vmatmul.bf16.gmra.mxu0 %v4221
  %v6560 = vpop.f32.mrf.mxu0
  %v6561 = vadd.f32 %v6542, %v6560
  %v6562 = vpop.f32.mrf.mxu0
  %v6563 = vadd.f32 %v6544, %v6562
  %6564 = vdwg.mxu0
  %v6565 = vadd.f32 %v6442, %v6518
  %v6566 = vadd.f32 %v6480, %v6556
  %v6567 = vadd.f32 %v6444, %v6520
  %v6568 = vadd.f32 %v6482, %v6558
  %v6569 = vadd.f32 %v6447, %v6523
  %v6570 = vadd.f32 %v6485, %v6561
  %v6571 = vadd.f32 %v6449, %v6525
  %v6572 = vadd.f32 %v6487, %v6563
  %6573 = vmatpush.bf16.msra.mxu0 %v5504
  %6574 = vmatpush.bf16.msra.mxu0 %v5502
  %6575 = vmatpush.bf16.msra.mxu0 %v5500
  %6576 = vmatpush.bf16.msra.mxu0 %v5498
  %6577 = vmatpush.bf16.msra.mxu0 %v5496
  %6578 = vmatpush.bf16.msra.mxu0 %v5494
  %6579 = vmatpush.bf16.msra.mxu0 %v5492
  %6580 = vmatpush.bf16.msra.mxu0 %v5490
  %6581 = vmatmul.bf16.gmra.mxu0 %v4315
  %v6582 = vpop.f32.mrf.mxu0
  %v6583 = vadd.f32 0.0, %v6582
  %v6584 = vpop.f32.mrf.mxu0
  %v6585 = vadd.f32 0.0, %v6584
  %6586 = vmatmul.bf16.gmra.mxu0 %v4317
  %v6587 = vpop.f32.mrf.mxu0
  %v6588 = vadd.f32 0.0, %v6587
  %v6589 = vpop.f32.mrf.mxu0
  %v6590 = vadd.f32 0.0, %v6589
  %6591 = vdwg.mxu0
  %6592 = vmatpush.bf16.msra.mxu0 0
  %6593 = vmatpush.bf16.msra.mxu0 %v5518
  %6594 = vmatpush.bf16.msra.mxu0 %v5516
  %6595 = vmatpush.bf16.msra.mxu0 %v5514
  %6596 = vmatpush.bf16.msra.mxu0 %v5512
  %6597 = vmatpush.bf16.msra.mxu0 %v5510
  %6598 = vmatpush.bf16.msra.mxu0 %v5508
  %6599 = vmatpush.bf16.msra.mxu0 %v5506
  %6600 = vmatmul.bf16.gmra.mxu0 %v4501
  %v6601 = vpop.f32.mrf.mxu0
  %v6602 = vadd.f32 %v6583, %v6601
  %v6603 = vpop.f32.mrf.mxu0
  %v6604 = vadd.f32 %v6585, %v6603
  %6605 = vmatmul.bf16.gmra.mxu0 %v4504
  %v6606 = vpop.f32.mrf.mxu0
  %v6607 = vadd.f32 %v6588, %v6606
  %v6608 = vpop.f32.mrf.mxu0
  %v6609 = vadd.f32 %v6590, %v6608
  %6610 = vdwg.mxu0
  %6611 = vmatpush.bf16.msra.mxu0 %v5505
  %6612 = vmatpush.bf16.msra.mxu0 %v5503
  %6613 = vmatpush.bf16.msra.mxu0 %v5501
  %6614 = vmatpush.bf16.msra.mxu0 %v5499
  %6615 = vmatpush.bf16.msra.mxu0 %v5497
  %6616 = vmatpush.bf16.msra.mxu0 %v5495
  %6617 = vmatpush.bf16.msra.mxu0 %v5493
  %6618 = vmatpush.bf16.msra.mxu0 %v5491
  %6619 = vmatmul.bf16.gmra.mxu0 %v4315
  %v6620 = vpop.f32.mrf.mxu0
  %v6621 = vadd.f32 0.0, %v6620
  %v6622 = vpop.f32.mrf.mxu0
  %v6623 = vadd.f32 0.0, %v6622
  %6624 = vmatmul.bf16.gmra.mxu0 %v4317
  %v6625 = vpop.f32.mrf.mxu0
  %v6626 = vadd.f32 0.0, %v6625
  %v6627 = vpop.f32.mrf.mxu0
  %v6628 = vadd.f32 0.0, %v6627
  %6629 = vdwg.mxu0
  %6630 = vmatpush.bf16.msra.mxu0 0
  %6631 = vmatpush.bf16.msra.mxu0 %v5519
  %6632 = vmatpush.bf16.msra.mxu0 %v5517
  %6633 = vmatpush.bf16.msra.mxu0 %v5515
  %6634 = vmatpush.bf16.msra.mxu0 %v5513
  %6635 = vmatpush.bf16.msra.mxu0 %v5511
  %6636 = vmatpush.bf16.msra.mxu0 %v5509
  %6637 = vmatpush.bf16.msra.mxu0 %v5507
  %6638 = vmatmul.bf16.gmra.mxu0 %v4501
  %v6639 = vpop.f32.mrf.mxu0
  %v6640 = vadd.f32 %v6621, %v6639
  %v6641 = vpop.f32.mrf.mxu0
  %v6642 = vadd.f32 %v6623, %v6641
  %6643 = vmatmul.bf16.gmra.mxu0 %v4504
  %v6644 = vpop.f32.mrf.mxu0
  %v6645 = vadd.f32 %v6626, %v6644
  %v6646 = vpop.f32.mrf.mxu0
  %v6647 = vadd.f32 %v6628, %v6646
  %6648 = vdwg.mxu0
  %v6649 = vadd.f32 %v6565, %v6602
  %v6650 = vadd.f32 %v6566, %v6640
  %v6651 = vadd.f32 %v6567, %v6604
  %v6652 = vadd.f32 %v6568, %v6642
  %v6653 = vadd.f32 %v6569, %v6607
  %v6654 = vadd.f32 %v6570, %v6645
  %v6655 = vadd.f32 %v6571, %v6609
  %v6656 = vadd.f32 %v6572, %v6647
  %6657 = vmatpush.bf16.msra.mxu0 %v5769
  %6658 = vmatpush.bf16.msra.mxu0 %v5767
  %6659 = vmatpush.bf16.msra.mxu0 %v5765
  %6660 = vmatpush.bf16.msra.mxu0 %v5763
  %6661 = vmatpush.bf16.msra.mxu0 %v5761
  %6662 = vmatpush.bf16.msra.mxu0 %v5759
  %6663 = vmatpush.bf16.msra.mxu0 %v5757
  %6664 = vmatpush.bf16.msra.mxu0 %v5755
  %6665 = vmatmul.bf16.gmra.mxu0 %v6235
  %v6666 = vpop.f32.mrf.mxu0
  %v6667 = vadd.f32 0.0, %v6666
  %v6668 = vpop.f32.mrf.mxu0
  %v6669 = vadd.f32 0.0, %v6668
  %6670 = vmatmul.bf16.gmra.mxu0 %v6237
  %v6671 = vpop.f32.mrf.mxu0
  %v6672 = vadd.f32 0.0, %v6671
  %v6673 = vpop.f32.mrf.mxu0
  %v6674 = vadd.f32 0.0, %v6673
  %6675 = vdwg.mxu0
  %6676 = vmatpush.bf16.msra.mxu0 0
  %6677 = vmatpush.bf16.msra.mxu0 %v5783
  %6678 = vmatpush.bf16.msra.mxu0 %v5781
  %6679 = vmatpush.bf16.msra.mxu0 %v5779
  %6680 = vmatpush.bf16.msra.mxu0 %v5777
  %6681 = vmatpush.bf16.msra.mxu0 %v5775
  %6682 = vmatpush.bf16.msra.mxu0 %v5773
  %6683 = vmatpush.bf16.msra.mxu0 %v5771
  %6684 = vmatmul.bf16.gmra.mxu0 %v6240
  %v6685 = vpop.f32.mrf.mxu0
  %v6686 = vadd.f32 %v6667, %v6685
  %v6687 = vpop.f32.mrf.mxu0
  %v6688 = vadd.f32 %v6669, %v6687
  %6689 = vmatmul.bf16.gmra.mxu0 %v6243
  %v6690 = vpop.f32.mrf.mxu0
  %v6691 = vadd.f32 %v6672, %v6690
  %v6692 = vpop.f32.mrf.mxu0
  %v6693 = vadd.f32 %v6674, %v6692
  %6694 = vdwg.mxu0
  %6695 = vmatpush.bf16.msra.mxu0 %v5770
  %6696 = vmatpush.bf16.msra.mxu0 %v5768
  %6697 = vmatpush.bf16.msra.mxu0 %v5766
  %6698 = vmatpush.bf16.msra.mxu0 %v5764
  %6699 = vmatpush.bf16.msra.mxu0 %v5762
  %6700 = vmatpush.bf16.msra.mxu0 %v5760
  %6701 = vmatpush.bf16.msra.mxu0 %v5758
  %6702 = vmatpush.bf16.msra.mxu0 %v5756
  %6703 = vmatmul.bf16.gmra.mxu0 %v6235
  %v6704 = vpop.f32.mrf.mxu0
  %v6705 = vadd.f32 0.0, %v6704
  %v6706 = vpop.f32.mrf.mxu0
  %v6707 = vadd.f32 0.0, %v6706
  %6708 = vmatmul.bf16.gmra.mxu0 %v6237
  %v6709 = vpop.f32.mrf.mxu0
  %v6710 = vadd.f32 0.0, %v6709
  %v6711 = vpop.f32.mrf.mxu0
  %v6712 = vadd.f32 0.0, %v6711
  %6713 = vdwg.mxu0
  %6714 = vmatpush.bf16.msra.mxu0 0
  %6715 = vmatpush.bf16.msra.mxu0 %v5784
  %6716 = vmatpush.bf16.msra.mxu0 %v5782
  %6717 = vmatpush.bf16.msra.mxu0 %v5780
  %6718 = vmatpush.bf16.msra.mxu0 %v5778
  %6719 = vmatpush.bf16.msra.mxu0 %v5776
  %6720 = vmatpush.bf16.msra.mxu0 %v5774
  %6721 = vmatpush.bf16.msra.mxu0 %v5772
  %6722 = vmatmul.bf16.gmra.mxu0 %v6240
  %v6723 = vpop.f32.mrf.mxu0
  %v6724 = vadd.f32 %v6705, %v6723
  %v6725 = vpop.f32.mrf.mxu0
  %v6726 = vadd.f32 %v6707, %v6725
  %6727 = vmatmul.bf16.gmra.mxu0 %v6243
  %v6728 = vpop.f32.mrf.mxu0
  %v6729 = vadd.f32 %v6710, %v6728
  %v6730 = vpop.f32.mrf.mxu0
  %v6731 = vadd.f32 %v6712, %v6730
  %6732 = vdwg.mxu0
  %v6733 = vadd.f32 %v6649, %v6686
  %v6734 = vadd.f32 %v6650, %v6724
  %v6735 = vadd.f32 %v6651, %v6688
  %v6736 = vadd.f32 %v6652, %v6726
  %v6737 = vadd.f32 %v6653, %v6691
  %v6738 = vadd.f32 %v6654, %v6729
  %v6739 = vadd.f32 %v6655, %v6693
  %v6740 = vadd.f32 %v6656, %v6731
  %v6741 = vmax.f32 %v6329, %v6733
  %v6742 = vmax.f32 %v6330, %v6734
  %v6743 = vmax.f32 %v6331, %v6735
  %v6744 = vmax.f32 %v6332, %v6736
  %v6745 = vmax.f32 %v6333, %v6737
  %v6746 = vmax.f32 %v6334, %v6738
  %v6747 = vmax.f32 %v6335, %v6739
  %v6748 = vmax.f32 %v6336, %v6740
  %v6749 = vld [vmem:[%s4] sm:$0x3]
  %v6751 = vperm.slane %v6749, 0
  %v6752 = vperm.slane %v6749, 1
  %v6755 = vadd.f32 %v6741, %v6751
  %v6756 = vadd.f32 %v6742, %v6752
  %v6757 = vadd.f32 %v6743, %v6751
  %v6758 = vadd.f32 %v6744, %v6752
  %v6759 = vadd.f32 %v6745, %v6751
  %v6760 = vadd.f32 %v6746, %v6752
  %v6761 = vadd.f32 %v6747, %v6751
  %v6762 = vadd.f32 %v6748, %v6752
  %v6763 = vmax.f32 %v6755, 0.0
  %v6764 = vmax.f32 %v6756, 0.0
  %v6765 = vmax.f32 %v6757, 0.0
  %v6766 = vmax.f32 %v6758, 0.0
  %v6767 = vmax.f32 %v6759, 0.0
  %v6768 = vmax.f32 %v6760, 0.0
  %v6769 = vmax.f32 %v6761, 0.0
  %v6770 = vmax.f32 %v6762, 0.0
  %v6771 = vpack.c.bf16 %v6763, %v6763
  %v6772 = vpack.c.bf16 %v6764, %v6764
  %v6773 = vld [vmem:[%s5] sm:$0xff]
  %v6774 = vld [vmem:[%s5 + $0x8] sm:$0xff]
  %v6775 = vld [vmem:[%s5 + $0x10] sm:$0xff]
  %v6776 = vld [vmem:[%s5 + $0x18] sm:$0xff]
  %v6777 = vld [vmem:[%s5 + $0x20] sm:$0xff]
  %v6778 = vld [vmem:[%s5 + $0x28] sm:$0xff]
  %v6779 = vld [vmem:[%s5 + $0x30] sm:$0xff]
  %v6780 = vld [vmem:[%s5 + $0x38] sm:$0xff]
  %v6781 = vld [vmem:[%s5 + $0x40] sm:$0xff]
  %v6782 = vld [vmem:[%s5 + $0x48] sm:$0xff]
  %v6783 = vld [vmem:[%s5 + $0x50] sm:$0xff]
  %v6784 = vld [vmem:[%s5 + $0x58] sm:$0xff]
  %v6785 = vld [vmem:[%s5 + $0x60] sm:$0xff]
  %v6786 = vld [vmem:[%s5 + $0x68] sm:$0xff]
  %v6787 = vld [vmem:[%s5 + $0x70] sm:$0xff]
  %v6788 = vld [vmem:[%s5 + $0x78] sm:$0xff]
  %v6789 = vld [vmem:[%s5 + $0x80] sm:$0xff]
  %v6790 = vld [vmem:[%s5 + $0x88] sm:$0xff]
  %v6791 = vld [vmem:[%s5 + $0x90] sm:$0xff]
  %v6792 = vld [vmem:[%s5 + $0x98] sm:$0xff]
  %v6793 = vld [vmem:[%s5 + $0xa0] sm:$0xff]
  %v6794 = vld [vmem:[%s5 + $0xa8] sm:$0xff]
  %v6795 = vld [vmem:[%s5 + $0xb0] sm:$0xff]
  %v6796 = vld [vmem:[%s5 + $0xb8] sm:$0xff]
  %v6797 = vld [vmem:[%s5 + $0xc0] sm:$0xff]
  %v6798 = vld [vmem:[%s5 + $0xc8] sm:$0xff]
  %v6799 = vld [vmem:[%s5 + $0xd0] sm:$0xff]
  %v6800 = vld [vmem:[%s5 + $0xd8] sm:$0xff]
  %v6801 = vld [vmem:[%s5 + $0xe0] sm:$0xff]
  %v6802 = vld [vmem:[%s5 + $0xe8] sm:$0xff]
  %v6803 = vld [vmem:[%s5 + $0xf0] sm:$0xff]
  %v6804 = vld [vmem:[%s5 + $0xf8] sm:$0xff]
  %v6805 = vld [vmem:[%s5 + $0x100] sm:$0xff]
  %v6806 = vld [vmem:[%s5 + $0x108] sm:$0xff]
  %v6807 = vld [vmem:[%s5 + $0x110] sm:$0xff]
  %v6808 = vld [vmem:[%s5 + $0x118] sm:$0xff]
  %v6809 = vld [vmem:[%s5 + $0x120] sm:$0xff]
  %v6810 = vld [vmem:[%s5 + $0x128] sm:$0xff]
  %v6811 = vld [vmem:[%s5 + $0x130] sm:$0xff]
  %v6812 = vld [vmem:[%s5 + $0x138] sm:$0xff]
  %v6813 = vld [vmem:[%s5 + $0x140] sm:$0xff]
  %v6814 = vld [vmem:[%s5 + $0x148] sm:$0xff]
  %v6815 = vld [vmem:[%s5 + $0x150] sm:$0xff]
  %v6816 = vld [vmem:[%s5 + $0x158] sm:$0xff]
  %v6817 = vld [vmem:[%s5 + $0x160] sm:$0xff]
  %v6818 = vld [vmem:[%s5 + $0x168] sm:$0xff]
  %v6819 = vld [vmem:[%s5 + $0x170] sm:$0xff]
  %v6820 = vld [vmem:[%s5 + $0x178] sm:$0xff]
  %v6821 = vld [vmem:[%s5 + $0x180] sm:$0xff]
  %v6822 = vld [vmem:[%s5 + $0x188] sm:$0xff]
  %v6823 = vpack.c.bf16 %v6765, %v6765
  %v6824 = vpack.c.bf16 %v6766, %v6766
  %s6825 = scalar_lea.vmem %s5, 400
  %v6826 = vld [vmem:[%s6825] sm:$0xff]
  %v6827 = vld [vmem:[%s6825 + $0x8] sm:$0xff]
  %v6828 = vld [vmem:[%s6825 + $0x10] sm:$0xff]
  %v6829 = vld [vmem:[%s6825 + $0x18] sm:$0xff]
  %v6830 = vld [vmem:[%s6825 + $0x20] sm:$0xff]
  %v6831 = vld [vmem:[%s6825 + $0x28] sm:$0xff]
  %v6832 = vld [vmem:[%s6825 + $0x30] sm:$0xff]
  %v6833 = vld [vmem:[%s6825 + $0x38] sm:$0xff]
  %v6834 = vld [vmem:[%s6825 + $0x40] sm:$0xff]
  %v6835 = vld [vmem:[%s6825 + $0x48] sm:$0xff]
  %v6836 = vld [vmem:[%s6825 + $0x50] sm:$0xff]
  %v6837 = vld [vmem:[%s6825 + $0x58] sm:$0xff]
  %v6838 = vld [vmem:[%s6825 + $0x60] sm:$0xff]
  %v6839 = vld [vmem:[%s6825 + $0x68] sm:$0xff]
  %v6840 = vld [vmem:[%s6825 + $0x70] sm:$0xff]
  %v6841 = vld [vmem:[%s6825 + $0x78] sm:$0xff]
  %v6842 = vld [vmem:[%s6825 + $0x80] sm:$0xff]
  %v6843 = vld [vmem:[%s6825 + $0x88] sm:$0xff]
  %v6844 = vld [vmem:[%s6825 + $0x90] sm:$0xff]
  %v6845 = vld [vmem:[%s6825 + $0x98] sm:$0xff]
  %v6846 = vld [vmem:[%s6825 + $0xa0] sm:$0xff]
  %v6847 = vld [vmem:[%s6825 + $0xa8] sm:$0xff]
  %v6848 = vld [vmem:[%s6825 + $0xb0] sm:$0xff]
  %v6849 = vld [vmem:[%s6825 + $0xb8] sm:$0xff]
  %v6850 = vld [vmem:[%s6825 + $0xc0] sm:$0xff]
  %v6851 = vld [vmem:[%s6825 + $0xc8] sm:$0xff]
  %v6852 = vld [vmem:[%s6825 + $0xd0] sm:$0xff]
  %v6853 = vld [vmem:[%s6825 + $0xd8] sm:$0xff]
  %v6854 = vld [vmem:[%s6825 + $0xe0] sm:$0xff]
  %v6855 = vld [vmem:[%s6825 + $0xe8] sm:$0xff]
  %v6856 = vld [vmem:[%s6825 + $0xf0] sm:$0xff]
  %v6857 = vld [vmem:[%s6825 + $0xf8] sm:$0xff]
  %v6858 = vld [vmem:[%s6825 + $0x100] sm:$0xff]
  %v6859 = vld [vmem:[%s6825 + $0x108] sm:$0xff]
  %v6860 = vld [vmem:[%s6825 + $0x110] sm:$0xff]
  %v6861 = vld [vmem:[%s6825 + $0x118] sm:$0xff]
  %v6862 = vld [vmem:[%s6825 + $0x120] sm:$0xff]
  %v6863 = vld [vmem:[%s6825 + $0x128] sm:$0xff]
  %v6864 = vld [vmem:[%s6825 + $0x130] sm:$0xff]
  %v6865 = vld [vmem:[%s6825 + $0x138] sm:$0xff]
  %v6866 = vld [vmem:[%s6825 + $0x140] sm:$0xff]
  %v6867 = vld [vmem:[%s6825 + $0x148] sm:$0xff]
  %v6868 = vld [vmem:[%s6825 + $0x150] sm:$0xff]
  %v6869 = vld [vmem:[%s6825 + $0x158] sm:$0xff]
  %v6870 = vld [vmem:[%s6825 + $0x160] sm:$0xff]
  %v6871 = vld [vmem:[%s6825 + $0x168] sm:$0xff]
  %v6872 = vld [vmem:[%s6825 + $0x170] sm:$0xff]
  %v6873 = vld [vmem:[%s6825 + $0x178] sm:$0xff]
  %v6874 = vld [vmem:[%s6825 + $0x180] sm:$0xff]
  %v6875 = vld [vmem:[%s6825 + $0x188] sm:$0xff]
  %v6926 = vunpack.c.l.b16 %v6826
  %v6927 = vunpack.c.h.b16 %v6826
  %v6928 = vunpack.c.l.b16 %v6827
  %v6929 = vunpack.c.h.b16 %v6827
  %v6930 = vunpack.c.l.b16 %v6828
  %v6931 = vunpack.c.h.b16 %v6828
  %v6932 = vunpack.c.l.b16 %v6829
  %v6933 = vunpack.c.h.b16 %v6829
  %v6934 = vunpack.c.l.b16 %v6830
  %v6935 = vunpack.c.h.b16 %v6830
  %v6936 = vunpack.c.l.b16 %v6831
  %v6937 = vunpack.c.h.b16 %v6831
  %v6938 = vunpack.c.l.b16 %v6832
  %v6939 = vunpack.c.h.b16 %v6832
  %v6940 = vunpack.c.l.b16 %v6833
  %v6941 = vunpack.c.h.b16 %v6833
  %v6942 = vunpack.c.l.b16 %v6834
  %v6943 = vunpack.c.h.b16 %v6834
  %v6944 = vunpack.c.l.b16 %v6835
  %v6945 = vunpack.c.h.b16 %v6835
  %v6946 = vunpack.c.l.b16 %v6836
  %v6947 = vunpack.c.h.b16 %v6836
  %v6948 = vunpack.c.l.b16 %v6837
  %v6949 = vunpack.c.h.b16 %v6837
  %v6950 = vunpack.c.l.b16 %v6838
  %v6951 = vunpack.c.h.b16 %v6838
  %v6952 = vunpack.c.l.b16 %v6839
  %v6953 = vunpack.c.h.b16 %v6839
  %v6954 = vunpack.c.l.b16 %v6840
  %v6955 = vunpack.c.h.b16 %v6840
  %v6956 = vunpack.c.l.b16 %v6841
  %v6957 = vunpack.c.h.b16 %v6841
  %v6958 = vunpack.c.l.b16 %v6842
  %v6959 = vunpack.c.h.b16 %v6842
  %v6960 = vunpack.c.l.b16 %v6843
  %v6961 = vunpack.c.h.b16 %v6843
  %v6962 = vunpack.c.l.b16 %v6844
  %v6963 = vunpack.c.h.b16 %v6844
  %v6964 = vunpack.c.l.b16 %v6845
  %v6965 = vunpack.c.h.b16 %v6845
  %v6966 = vunpack.c.l.b16 %v6846
  %v6967 = vunpack.c.h.b16 %v6846
  %v6968 = vunpack.c.l.b16 %v6847
  %v6969 = vunpack.c.h.b16 %v6847
  %v6970 = vunpack.c.l.b16 %v6848
  %v6971 = vunpack.c.h.b16 %v6848
  %v6972 = vunpack.c.l.b16 %v6849
  %v6973 = vunpack.c.h.b16 %v6849
  %v6974 = vunpack.c.l.b16 %v6850
  %v6975 = vunpack.c.h.b16 %v6850
  %v6976 = vunpack.c.l.b16 %v6851
  %v6977 = vunpack.c.h.b16 %v6851
  %v6978 = vunpack.c.l.b16 %v6852
  %v6979 = vunpack.c.h.b16 %v6852
  %v6980 = vunpack.c.l.b16 %v6853
  %v6981 = vunpack.c.h.b16 %v6853
  %v6982 = vunpack.c.l.b16 %v6854
  %v6983 = vunpack.c.h.b16 %v6854
  %v6984 = vunpack.c.l.b16 %v6855
  %v6985 = vunpack.c.h.b16 %v6855
  %v6986 = vunpack.c.l.b16 %v6856
  %v6987 = vunpack.c.h.b16 %v6856
  %v6988 = vunpack.c.l.b16 %v6857
  %v6989 = vunpack.c.h.b16 %v6857
  %v6990 = vunpack.c.l.b16 %v6858
  %v6991 = vunpack.c.h.b16 %v6858
  %v6992 = vunpack.c.l.b16 %v6859
  %v6993 = vunpack.c.h.b16 %v6859
  %v6994 = vunpack.c.l.b16 %v6860
  %v6995 = vunpack.c.h.b16 %v6860
  %v6996 = vunpack.c.l.b16 %v6861
  %v6997 = vunpack.c.h.b16 %v6861
  %v6998 = vunpack.c.l.b16 %v6862
  %v6999 = vunpack.c.h.b16 %v6862
  %v7000 = vunpack.c.l.b16 %v6863
  %v7001 = vunpack.c.h.b16 %v6863
  %v7002 = vunpack.c.l.b16 %v6864
  %v7003 = vunpack.c.h.b16 %v6864
  %v7004 = vunpack.c.l.b16 %v6865
  %v7005 = vunpack.c.h.b16 %v6865
  %v7006 = vunpack.c.l.b16 %v6866
  %v7007 = vunpack.c.h.b16 %v6866
  %v7008 = vunpack.c.l.b16 %v6867
  %v7009 = vunpack.c.h.b16 %v6867
  %v7010 = vunpack.c.l.b16 %v6868
  %v7011 = vunpack.c.h.b16 %v6868
  %v7012 = vunpack.c.l.b16 %v6869
  %v7013 = vunpack.c.h.b16 %v6869
  %v7014 = vunpack.c.l.b16 %v6870
  %v7015 = vunpack.c.h.b16 %v6870
  %v7016 = vunpack.c.l.b16 %v6871
  %v7017 = vunpack.c.h.b16 %v6871
  %v7018 = vunpack.c.l.b16 %v6872
  %v7019 = vunpack.c.h.b16 %v6872
  %v7020 = vunpack.c.l.b16 %v6873
  %v7021 = vunpack.c.h.b16 %v6873
  %v7022 = vunpack.c.l.b16 %v6874
  %v7023 = vunpack.c.h.b16 %v6874
  %v7024 = vunpack.c.l.b16 %v6875
  %v7025 = vunpack.c.h.b16 %v6875
  %v7026 = vpack.c.b16 %v6930, %v6926
  %v7027 = vpack.c.b16 %v6931, %v6927
  %v7028 = vpack.c.b16 %v6932, %v6928
  %v7029 = vpack.c.b16 %v6933, %v6929
  %v7030 = vpack.c.b16 %v6938, %v6934
  %v7031 = vpack.c.b16 %v6939, %v6935
  %v7032 = vpack.c.b16 %v6940, %v6936
  %v7033 = vpack.c.b16 %v6941, %v6937
  %v7034 = vpack.c.b16 %v6946, %v6942
  %v7035 = vpack.c.b16 %v6947, %v6943
  %v7036 = vpack.c.b16 %v6948, %v6944
  %v7037 = vpack.c.b16 %v6949, %v6945
  %v7038 = vpack.c.b16 %v6954, %v6950
  %v7039 = vpack.c.b16 %v6955, %v6951
  %v7040 = vpack.c.b16 %v6956, %v6952
  %v7041 = vpack.c.b16 %v6957, %v6953
  %v7042 = vpack.c.b16 %v6962, %v6958
  %v7043 = vpack.c.b16 %v6963, %v6959
  %v7044 = vpack.c.b16 %v6964, %v6960
  %v7045 = vpack.c.b16 %v6965, %v6961
  %v7046 = vpack.c.b16 %v6970, %v6966
  %v7047 = vpack.c.b16 %v6971, %v6967
  %v7048 = vpack.c.b16 %v6972, %v6968
  %v7049 = vpack.c.b16 %v6973, %v6969
  %v7050 = vpack.c.b16 %v6978, %v6974
  %v7051 = vpack.c.b16 %v6979, %v6975
  %v7052 = vpack.c.b16 %v6980, %v6976
  %v7053 = vpack.c.b16 %v6981, %v6977
  %v7054 = vpack.c.b16 %v6986, %v6982
  %v7055 = vpack.c.b16 %v6987, %v6983
  %v7056 = vpack.c.b16 %v6988, %v6984
  %v7057 = vpack.c.b16 %v6989, %v6985
  %v7058 = vpack.c.b16 %v6994, %v6990
  %v7059 = vpack.c.b16 %v6995, %v6991
  %v7060 = vpack.c.b16 %v6996, %v6992
  %v7061 = vpack.c.b16 %v6997, %v6993
  %v7062 = vpack.c.b16 %v7002, %v6998
  %v7063 = vpack.c.b16 %v7003, %v6999
  %v7064 = vpack.c.b16 %v7004, %v7000
  %v7065 = vpack.c.b16 %v7005, %v7001
  %v7066 = vpack.c.b16 %v7010, %v7006
  %v7067 = vpack.c.b16 %v7011, %v7007
  %v7068 = vpack.c.b16 %v7012, %v7008
  %v7069 = vpack.c.b16 %v7013, %v7009
  %v7070 = vpack.c.b16 %v7018, %v7014
  %v7071 = vpack.c.b16 %v7019, %v7015
  %v7072 = vpack.c.b16 %v7020, %v7016
  %v7073 = vpack.c.b16 %v7021, %v7017
  %v7074 = vpack.c.b16 %v7022, %v7022
  %v7075 = vpack.c.b16 %v7023, %v7023
  %v7076 = vpack.c.b16 %v7024, %v7024
  %v7077 = vpack.c.b16 %v7025, %v7025
  %vm7126 = vcmask 588800
  %v7128 = vsel %vm7126, %v6824, 0
  %vm7130 = vcmask 1043456
  %v7132 = vsel %vm7130, %v7074, 0
  %v7135 = vsel %vm7130, %v7075, 0
  %v7138 = vsel %vm7130, %v7076, 0
  %v7141 = vsel %vm7130, %v7077, 0
  %7143 = vmatpush.bf16.msra.mxu0 %v7054
  %7144 = vmatpush.bf16.msra.mxu0 %v7050
  %7145 = vmatpush.bf16.msra.mxu0 %v7046
  %7146 = vmatpush.bf16.msra.mxu0 %v7042
  %7147 = vmatpush.bf16.msra.mxu0 %v7038
  %7148 = vmatpush.bf16.msra.mxu0 %v7034
  %7149 = vmatpush.bf16.msra.mxu0 %v7030
  %7150 = vmatpush.bf16.msra.mxu0 %v7026
  %7151 = vmatmul.bf16.gmra.mxu0 %v6823
  %v7152 = vpop.f32.mrf.mxu0
  %v7153 = vadd.f32 0.0, %v7152
  %v7154 = vpop.f32.mrf.mxu0
  %7155 = vdwg.mxu0
  %7156 = vmatpush.bf16.msra.mxu0 0
  %7157 = vmatpush.bf16.msra.mxu0 0
  %7158 = vmatpush.bf16.msra.mxu0 0
  %7159 = vmatpush.bf16.msra.mxu0 %v7132
  %7160 = vmatpush.bf16.msra.mxu0 %v7070
  %7161 = vmatpush.bf16.msra.mxu0 %v7066
  %7162 = vmatpush.bf16.msra.mxu0 %v7062
  %7163 = vmatpush.bf16.msra.mxu0 %v7058
  %7164 = vmatmul.bf16.gmra.mxu0 %v7128
  %v7165 = vpop.f32.mrf.mxu0
  %v7166 = vadd.f32 %v7153, %v7165
  %v7167 = vpop.f32.mrf.mxu0
  %7168 = vdwg.mxu0
  %7169 = vmatpush.bf16.msra.mxu0 %v7055
  %7170 = vmatpush.bf16.msra.mxu0 %v7051
  %7171 = vmatpush.bf16.msra.mxu0 %v7047
  %7172 = vmatpush.bf16.msra.mxu0 %v7043
  %7173 = vmatpush.bf16.msra.mxu0 %v7039
  %7174 = vmatpush.bf16.msra.mxu0 %v7035
  %7175 = vmatpush.bf16.msra.mxu0 %v7031
  %7176 = vmatpush.bf16.msra.mxu0 %v7027
  %7177 = vmatmul.bf16.gmra.mxu0 %v6823
  %v7178 = vpop.f32.mrf.mxu0
  %v7179 = vadd.f32 0.0, %v7178
  %v7180 = vpop.f32.mrf.mxu0
  %7181 = vdwg.mxu0
  %7182 = vmatpush.bf16.msra.mxu0 0
  %7183 = vmatpush.bf16.msra.mxu0 0
  %7184 = vmatpush.bf16.msra.mxu0 0
  %7185 = vmatpush.bf16.msra.mxu0 %v7135
  %7186 = vmatpush.bf16.msra.mxu0 %v7071
  %7187 = vmatpush.bf16.msra.mxu0 %v7067
  %7188 = vmatpush.bf16.msra.mxu0 %v7063
  %7189 = vmatpush.bf16.msra.mxu0 %v7059
  %7190 = vmatmul.bf16.gmra.mxu0 %v7128
  %v7191 = vpop.f32.mrf.mxu0
  %v7192 = vadd.f32 %v7179, %v7191
  %v7193 = vpop.f32.mrf.mxu0
  %7194 = vdwg.mxu0
  %7195 = vmatpush.bf16.msra.mxu0 %v7056
  %7196 = vmatpush.bf16.msra.mxu0 %v7052
  %7197 = vmatpush.bf16.msra.mxu0 %v7048
  %7198 = vmatpush.bf16.msra.mxu0 %v7044
  %7199 = vmatpush.bf16.msra.mxu0 %v7040
  %7200 = vmatpush.bf16.msra.mxu0 %v7036
  %7201 = vmatpush.bf16.msra.mxu0 %v7032
  %7202 = vmatpush.bf16.msra.mxu0 %v7028
  %7203 = vmatmul.bf16.gmra.mxu0 %v6823
  %v7204 = vpop.f32.mrf.mxu0
  %v7205 = vadd.f32 0.0, %v7204
  %v7206 = vpop.f32.mrf.mxu0
  %7207 = vdwg.mxu0
  %7208 = vmatpush.bf16.msra.mxu0 0
  %7209 = vmatpush.bf16.msra.mxu0 0
  %7210 = vmatpush.bf16.msra.mxu0 0
  %7211 = vmatpush.bf16.msra.mxu0 %v7138
  %7212 = vmatpush.bf16.msra.mxu0 %v7072
  %7213 = vmatpush.bf16.msra.mxu0 %v7068
  %7214 = vmatpush.bf16.msra.mxu0 %v7064
  %7215 = vmatpush.bf16.msra.mxu0 %v7060
  %7216 = vmatmul.bf16.gmra.mxu0 %v7128
  %v7217 = vpop.f32.mrf.mxu0
  %v7218 = vadd.f32 %v7205, %v7217
  %v7219 = vpop.f32.mrf.mxu0
  %7220 = vdwg.mxu0
  %7221 = vmatpush.bf16.msra.mxu0 %v7057
  %7222 = vmatpush.bf16.msra.mxu0 %v7053
  %7223 = vmatpush.bf16.msra.mxu0 %v7049
  %7224 = vmatpush.bf16.msra.mxu0 %v7045
  %7225 = vmatpush.bf16.msra.mxu0 %v7041
  %7226 = vmatpush.bf16.msra.mxu0 %v7037
  %7227 = vmatpush.bf16.msra.mxu0 %v7033
  %7228 = vmatpush.bf16.msra.mxu0 %v7029
  %7229 = vmatmul.bf16.gmra.mxu0 %v6823
  %v7230 = vpop.f32.mrf.mxu0
  %v7231 = vadd.f32 0.0, %v7230
  %v7232 = vpop.f32.mrf.mxu0
  %7233 = vdwg.mxu0
  %7234 = vmatpush.bf16.msra.mxu0 0
  %7235 = vmatpush.bf16.msra.mxu0 0
  %7236 = vmatpush.bf16.msra.mxu0 0
  %7237 = vmatpush.bf16.msra.mxu0 %v7141
  %7238 = vmatpush.bf16.msra.mxu0 %v7073
  %7239 = vmatpush.bf16.msra.mxu0 %v7069
  %7240 = vmatpush.bf16.msra.mxu0 %v7065
  %7241 = vmatpush.bf16.msra.mxu0 %v7061
  %7242 = vmatmul.bf16.gmra.mxu0 %v7128
  %v7243 = vpop.f32.mrf.mxu0
  %v7244 = vadd.f32 %v7231, %v7243
  %v7245 = vpop.f32.mrf.mxu0
  %7246 = vdwg.mxu0
  %v7297 = vunpack.c.l.b16 %v6773
  %v7298 = vunpack.c.h.b16 %v6773
  %v7299 = vunpack.c.l.b16 %v6774
  %v7300 = vunpack.c.h.b16 %v6774
  %v7301 = vunpack.c.l.b16 %v6775
  %v7302 = vunpack.c.h.b16 %v6775
  %v7303 = vunpack.c.l.b16 %v6776
  %v7304 = vunpack.c.h.b16 %v6776
  %v7305 = vunpack.c.l.b16 %v6777
  %v7306 = vunpack.c.h.b16 %v6777
  %v7307 = vunpack.c.l.b16 %v6778
  %v7308 = vunpack.c.h.b16 %v6778
  %v7309 = vunpack.c.l.b16 %v6779
  %v7310 = vunpack.c.h.b16 %v6779
  %v7311 = vunpack.c.l.b16 %v6780
  %v7312 = vunpack.c.h.b16 %v6780
  %v7313 = vunpack.c.l.b16 %v6781
  %v7314 = vunpack.c.h.b16 %v6781
  %v7315 = vunpack.c.l.b16 %v6782
  %v7316 = vunpack.c.h.b16 %v6782
  %v7317 = vunpack.c.l.b16 %v6783
  %v7318 = vunpack.c.h.b16 %v6783
  %v7319 = vunpack.c.l.b16 %v6784
  %v7320 = vunpack.c.h.b16 %v6784
  %v7321 = vunpack.c.l.b16 %v6785
  %v7322 = vunpack.c.h.b16 %v6785
  %v7323 = vunpack.c.l.b16 %v6786
  %v7324 = vunpack.c.h.b16 %v6786
  %v7325 = vunpack.c.l.b16 %v6787
  %v7326 = vunpack.c.h.b16 %v6787
  %v7327 = vunpack.c.l.b16 %v6788
  %v7328 = vunpack.c.h.b16 %v6788
  %v7329 = vunpack.c.l.b16 %v6789
  %v7330 = vunpack.c.h.b16 %v6789
  %v7331 = vunpack.c.l.b16 %v6790
  %v7332 = vunpack.c.h.b16 %v6790
  %v7333 = vunpack.c.l.b16 %v6791
  %v7334 = vunpack.c.h.b16 %v6791
  %v7335 = vunpack.c.l.b16 %v6792
  %v7336 = vunpack.c.h.b16 %v6792
  %v7337 = vunpack.c.l.b16 %v6793
  %v7338 = vunpack.c.h.b16 %v6793
  %v7339 = vunpack.c.l.b16 %v6794
  %v7340 = vunpack.c.h.b16 %v6794
  %v7341 = vunpack.c.l.b16 %v6795
  %v7342 = vunpack.c.h.b16 %v6795
  %v7343 = vunpack.c.l.b16 %v6796
  %v7344 = vunpack.c.h.b16 %v6796
  %v7345 = vunpack.c.l.b16 %v6797
  %v7346 = vunpack.c.h.b16 %v6797
  %v7347 = vunpack.c.l.b16 %v6798
  %v7348 = vunpack.c.h.b16 %v6798
  %v7349 = vunpack.c.l.b16 %v6799
  %v7350 = vunpack.c.h.b16 %v6799
  %v7351 = vunpack.c.l.b16 %v6800
  %v7352 = vunpack.c.h.b16 %v6800
  %v7353 = vunpack.c.l.b16 %v6801
  %v7354 = vunpack.c.h.b16 %v6801
  %v7355 = vunpack.c.l.b16 %v6802
  %v7356 = vunpack.c.h.b16 %v6802
  %v7357 = vunpack.c.l.b16 %v6803
  %v7358 = vunpack.c.h.b16 %v6803
  %v7359 = vunpack.c.l.b16 %v6804
  %v7360 = vunpack.c.h.b16 %v6804
  %v7361 = vunpack.c.l.b16 %v6805
  %v7362 = vunpack.c.h.b16 %v6805
  %v7363 = vunpack.c.l.b16 %v6806
  %v7364 = vunpack.c.h.b16 %v6806
  %v7365 = vunpack.c.l.b16 %v6807
  %v7366 = vunpack.c.h.b16 %v6807
  %v7367 = vunpack.c.l.b16 %v6808
  %v7368 = vunpack.c.h.b16 %v6808
  %v7369 = vunpack.c.l.b16 %v6809
  %v7370 = vunpack.c.h.b16 %v6809
  %v7371 = vunpack.c.l.b16 %v6810
  %v7372 = vunpack.c.h.b16 %v6810
  %v7373 = vunpack.c.l.b16 %v6811
  %v7374 = vunpack.c.h.b16 %v6811
  %v7375 = vunpack.c.l.b16 %v6812
  %v7376 = vunpack.c.h.b16 %v6812
  %v7377 = vunpack.c.l.b16 %v6813
  %v7378 = vunpack.c.h.b16 %v6813
  %v7379 = vunpack.c.l.b16 %v6814
  %v7380 = vunpack.c.h.b16 %v6814
  %v7381 = vunpack.c.l.b16 %v6815
  %v7382 = vunpack.c.h.b16 %v6815
  %v7383 = vunpack.c.l.b16 %v6816
  %v7384 = vunpack.c.h.b16 %v6816
  %v7385 = vunpack.c.l.b16 %v6817
  %v7386 = vunpack.c.h.b16 %v6817
  %v7387 = vunpack.c.l.b16 %v6818
  %v7388 = vunpack.c.h.b16 %v6818
  %v7389 = vunpack.c.l.b16 %v6819
  %v7390 = vunpack.c.h.b16 %v6819
  %v7391 = vunpack.c.l.b16 %v6820
  %v7392 = vunpack.c.h.b16 %v6820
  %v7393 = vunpack.c.l.b16 %v6821
  %v7394 = vunpack.c.h.b16 %v6821
  %v7395 = vunpack.c.l.b16 %v6822
  %v7396 = vunpack.c.h.b16 %v6822
  %v7397 = vpack.c.b16 %v7301, %v7297
  %v7398 = vpack.c.b16 %v7302, %v7298
  %v7399 = vpack.c.b16 %v7303, %v7299
  %v7400 = vpack.c.b16 %v7304, %v7300
  %v7401 = vpack.c.b16 %v7309, %v7305
  %v7402 = vpack.c.b16 %v7310, %v7306
  %v7403 = vpack.c.b16 %v7311, %v7307
  %v7404 = vpack.c.b16 %v7312, %v7308
  %v7405 = vpack.c.b16 %v7317, %v7313
  %v7406 = vpack.c.b16 %v7318, %v7314
  %v7407 = vpack.c.b16 %v7319, %v7315
  %v7408 = vpack.c.b16 %v7320, %v7316
  %v7409 = vpack.c.b16 %v7325, %v7321
  %v7410 = vpack.c.b16 %v7326, %v7322
  %v7411 = vpack.c.b16 %v7327, %v7323
  %v7412 = vpack.c.b16 %v7328, %v7324
  %v7413 = vpack.c.b16 %v7333, %v7329
  %v7414 = vpack.c.b16 %v7334, %v7330
  %v7415 = vpack.c.b16 %v7335, %v7331
  %v7416 = vpack.c.b16 %v7336, %v7332
  %v7417 = vpack.c.b16 %v7341, %v7337
  %v7418 = vpack.c.b16 %v7342, %v7338
  %v7419 = vpack.c.b16 %v7343, %v7339
  %v7420 = vpack.c.b16 %v7344, %v7340
  %v7421 = vpack.c.b16 %v7349, %v7345
  %v7422 = vpack.c.b16 %v7350, %v7346
  %v7423 = vpack.c.b16 %v7351, %v7347
  %v7424 = vpack.c.b16 %v7352, %v7348
  %v7425 = vpack.c.b16 %v7357, %v7353
  %v7426 = vpack.c.b16 %v7358, %v7354
  %v7427 = vpack.c.b16 %v7359, %v7355
  %v7428 = vpack.c.b16 %v7360, %v7356
  %v7429 = vpack.c.b16 %v7365, %v7361
  %v7430 = vpack.c.b16 %v7366, %v7362
  %v7431 = vpack.c.b16 %v7367, %v7363
  %v7432 = vpack.c.b16 %v7368, %v7364
  %v7433 = vpack.c.b16 %v7373, %v7369
  %v7434 = vpack.c.b16 %v7374, %v7370
  %v7435 = vpack.c.b16 %v7375, %v7371
  %v7436 = vpack.c.b16 %v7376, %v7372
  %v7437 = vpack.c.b16 %v7381, %v7377
  %v7438 = vpack.c.b16 %v7382, %v7378
  %v7439 = vpack.c.b16 %v7383, %v7379
  %v7440 = vpack.c.b16 %v7384, %v7380
  %v7441 = vpack.c.b16 %v7389, %v7385
  %v7442 = vpack.c.b16 %v7390, %v7386
  %v7443 = vpack.c.b16 %v7391, %v7387
  %v7444 = vpack.c.b16 %v7392, %v7388
  %v7445 = vpack.c.b16 %v7393, %v7393
  %v7446 = vpack.c.b16 %v7394, %v7394
  %v7447 = vpack.c.b16 %v7395, %v7395
  %v7448 = vpack.c.b16 %v7396, %v7396
  %v7498 = vsel %vm7126, %v6772, 0
  %v7501 = vsel %vm7130, %v7445, 0
  %v7504 = vsel %vm7130, %v7446, 0
  %v7507 = vsel %vm7130, %v7447, 0
  %v7510 = vsel %vm7130, %v7448, 0
  %7512 = vmatpush.bf16.msra.mxu0 %v7425
  %7513 = vmatpush.bf16.msra.mxu0 %v7421
  %7514 = vmatpush.bf16.msra.mxu0 %v7417
  %7515 = vmatpush.bf16.msra.mxu0 %v7413
  %7516 = vmatpush.bf16.msra.mxu0 %v7409
  %7517 = vmatpush.bf16.msra.mxu0 %v7405
  %7518 = vmatpush.bf16.msra.mxu0 %v7401
  %7519 = vmatpush.bf16.msra.mxu0 %v7397
  %7520 = vmatmul.bf16.gmra.mxu0 %v6771
  %v7521 = vpop.f32.mrf.mxu0
  %v7522 = vadd.f32 %v7166, %v7521
  %v7523 = vpop.f32.mrf.mxu0
  %7524 = vdwg.mxu0
  %7525 = vmatpush.bf16.msra.mxu0 0
  %7526 = vmatpush.bf16.msra.mxu0 0
  %7527 = vmatpush.bf16.msra.mxu0 0
  %7528 = vmatpush.bf16.msra.mxu0 %v7501
  %7529 = vmatpush.bf16.msra.mxu0 %v7441
  %7530 = vmatpush.bf16.msra.mxu0 %v7437
  %7531 = vmatpush.bf16.msra.mxu0 %v7433
  %7532 = vmatpush.bf16.msra.mxu0 %v7429
  %7533 = vmatmul.bf16.gmra.mxu0 %v7498
  %v7534 = vpop.f32.mrf.mxu0
  %v7535 = vadd.f32 %v7522, %v7534
  %v7536 = vpop.f32.mrf.mxu0
  %7537 = vdwg.mxu0
  %7538 = vmatpush.bf16.msra.mxu0 %v7426
  %7539 = vmatpush.bf16.msra.mxu0 %v7422
  %7540 = vmatpush.bf16.msra.mxu0 %v7418
  %7541 = vmatpush.bf16.msra.mxu0 %v7414
  %7542 = vmatpush.bf16.msra.mxu0 %v7410
  %7543 = vmatpush.bf16.msra.mxu0 %v7406
  %7544 = vmatpush.bf16.msra.mxu0 %v7402
  %7545 = vmatpush.bf16.msra.mxu0 %v7398
  %7546 = vmatmul.bf16.gmra.mxu0 %v6771
  %v7547 = vpop.f32.mrf.mxu0
  %v7548 = vadd.f32 %v7192, %v7547
  %v7549 = vpop.f32.mrf.mxu0
  %7550 = vdwg.mxu0
  %7551 = vmatpush.bf16.msra.mxu0 0
  %7552 = vmatpush.bf16.msra.mxu0 0
  %7553 = vmatpush.bf16.msra.mxu0 0
  %7554 = vmatpush.bf16.msra.mxu0 %v7504
  %7555 = vmatpush.bf16.msra.mxu0 %v7442
  %7556 = vmatpush.bf16.msra.mxu0 %v7438
  %7557 = vmatpush.bf16.msra.mxu0 %v7434
  %7558 = vmatpush.bf16.msra.mxu0 %v7430
  %7559 = vmatmul.bf16.gmra.mxu0 %v7498
  %v7560 = vpop.f32.mrf.mxu0
  %v7561 = vadd.f32 %v7548, %v7560
  %v7562 = vpop.f32.mrf.mxu0
  %7563 = vdwg.mxu0
  %7564 = vmatpush.bf16.msra.mxu0 %v7427
  %7565 = vmatpush.bf16.msra.mxu0 %v7423
  %7566 = vmatpush.bf16.msra.mxu0 %v7419
  %7567 = vmatpush.bf16.msra.mxu0 %v7415
  %7568 = vmatpush.bf16.msra.mxu0 %v7411
  %7569 = vmatpush.bf16.msra.mxu0 %v7407
  %7570 = vmatpush.bf16.msra.mxu0 %v7403
  %7571 = vmatpush.bf16.msra.mxu0 %v7399
  %7572 = vmatmul.bf16.gmra.mxu0 %v6771
  %v7573 = vpop.f32.mrf.mxu0
  %v7574 = vadd.f32 %v7218, %v7573
  %v7575 = vpop.f32.mrf.mxu0
  %7576 = vdwg.mxu0
  %7577 = vmatpush.bf16.msra.mxu0 0
  %7578 = vmatpush.bf16.msra.mxu0 0
  %7579 = vmatpush.bf16.msra.mxu0 0
  %7580 = vmatpush.bf16.msra.mxu0 %v7507
  %7581 = vmatpush.bf16.msra.mxu0 %v7443
  %7582 = vmatpush.bf16.msra.mxu0 %v7439
  %7583 = vmatpush.bf16.msra.mxu0 %v7435
  %7584 = vmatpush.bf16.msra.mxu0 %v7431
  %7585 = vmatmul.bf16.gmra.mxu0 %v7498
  %v7586 = vpop.f32.mrf.mxu0
  %v7587 = vadd.f32 %v7574, %v7586
  %v7588 = vpop.f32.mrf.mxu0
  %7589 = vdwg.mxu0
  %7590 = vmatpush.bf16.msra.mxu0 %v7428
  %7591 = vmatpush.bf16.msra.mxu0 %v7424
  %7592 = vmatpush.bf16.msra.mxu0 %v7420
  %7593 = vmatpush.bf16.msra.mxu0 %v7416
  %7594 = vmatpush.bf16.msra.mxu0 %v7412
  %7595 = vmatpush.bf16.msra.mxu0 %v7408
  %7596 = vmatpush.bf16.msra.mxu0 %v7404
  %7597 = vmatpush.bf16.msra.mxu0 %v7400
  %7598 = vmatmul.bf16.gmra.mxu0 %v6771
  %v7599 = vpop.f32.mrf.mxu0
  %v7600 = vadd.f32 %v7244, %v7599
  %v7601 = vpop.f32.mrf.mxu0
  %7602 = vdwg.mxu0
  %7603 = vmatpush.bf16.msra.mxu0 0
  %7604 = vmatpush.bf16.msra.mxu0 0
  %7605 = vmatpush.bf16.msra.mxu0 0
  %7606 = vmatpush.bf16.msra.mxu0 %v7510
  %7607 = vmatpush.bf16.msra.mxu0 %v7444
  %7608 = vmatpush.bf16.msra.mxu0 %v7440
  %7609 = vmatpush.bf16.msra.mxu0 %v7436
  %7610 = vmatpush.bf16.msra.mxu0 %v7432
  %7611 = vmatmul.bf16.gmra.mxu0 %v7498
  %v7612 = vpop.f32.mrf.mxu0
  %v7613 = vadd.f32 %v7600, %v7612
  %v7614 = vpop.f32.mrf.mxu0
  %7615 = vdwg.mxu0
  %v7616 = vpack.c.bf16 %v6767, %v6767
  %v7617 = vpack.c.bf16 %v6768, %v6768
  %s7618 = scalar_lea.vmem %s5, 800
  %v7619 = vld [vmem:[%s7618] sm:$0xff]
  %v7620 = vld [vmem:[%s7618 + $0x8] sm:$0xff]
  %v7621 = vld [vmem:[%s7618 + $0x10] sm:$0xff]
  %v7622 = vld [vmem:[%s7618 + $0x18] sm:$0xff]
  %v7623 = vld [vmem:[%s7618 + $0x20] sm:$0xff]
  %v7624 = vld [vmem:[%s7618 + $0x28] sm:$0xff]
  %v7625 = vld [vmem:[%s7618 + $0x30] sm:$0xff]
  %v7626 = vld [vmem:[%s7618 + $0x38] sm:$0xff]
  %v7627 = vld [vmem:[%s7618 + $0x40] sm:$0xff]
  %v7628 = vld [vmem:[%s7618 + $0x48] sm:$0xff]
  %v7629 = vld [vmem:[%s7618 + $0x50] sm:$0xff]
  %v7630 = vld [vmem:[%s7618 + $0x58] sm:$0xff]
  %v7631 = vld [vmem:[%s7618 + $0x60] sm:$0xff]
  %v7632 = vld [vmem:[%s7618 + $0x68] sm:$0xff]
  %v7633 = vld [vmem:[%s7618 + $0x70] sm:$0xff]
  %v7634 = vld [vmem:[%s7618 + $0x78] sm:$0xff]
  %v7635 = vld [vmem:[%s7618 + $0x80] sm:$0xff]
  %v7636 = vld [vmem:[%s7618 + $0x88] sm:$0xff]
  %v7637 = vld [vmem:[%s7618 + $0x90] sm:$0xff]
  %v7638 = vld [vmem:[%s7618 + $0x98] sm:$0xff]
  %v7639 = vld [vmem:[%s7618 + $0xa0] sm:$0xff]
  %v7640 = vld [vmem:[%s7618 + $0xa8] sm:$0xff]
  %v7641 = vld [vmem:[%s7618 + $0xb0] sm:$0xff]
  %v7642 = vld [vmem:[%s7618 + $0xb8] sm:$0xff]
  %v7643 = vld [vmem:[%s7618 + $0xc0] sm:$0xff]
  %v7644 = vld [vmem:[%s7618 + $0xc8] sm:$0xff]
  %v7645 = vld [vmem:[%s7618 + $0xd0] sm:$0xff]
  %v7646 = vld [vmem:[%s7618 + $0xd8] sm:$0xff]
  %v7647 = vld [vmem:[%s7618 + $0xe0] sm:$0xff]
  %v7648 = vld [vmem:[%s7618 + $0xe8] sm:$0xff]
  %v7649 = vld [vmem:[%s7618 + $0xf0] sm:$0xff]
  %v7650 = vld [vmem:[%s7618 + $0xf8] sm:$0xff]
  %v7651 = vld [vmem:[%s7618 + $0x100] sm:$0xff]
  %v7652 = vld [vmem:[%s7618 + $0x108] sm:$0xff]
  %v7653 = vld [vmem:[%s7618 + $0x110] sm:$0xff]
  %v7654 = vld [vmem:[%s7618 + $0x118] sm:$0xff]
  %v7655 = vld [vmem:[%s7618 + $0x120] sm:$0xff]
  %v7656 = vld [vmem:[%s7618 + $0x128] sm:$0xff]
  %v7657 = vld [vmem:[%s7618 + $0x130] sm:$0xff]
  %v7658 = vld [vmem:[%s7618 + $0x138] sm:$0xff]
  %v7659 = vld [vmem:[%s7618 + $0x140] sm:$0xff]
  %v7660 = vld [vmem:[%s7618 + $0x148] sm:$0xff]
  %v7661 = vld [vmem:[%s7618 + $0x150] sm:$0xff]
  %v7662 = vld [vmem:[%s7618 + $0x158] sm:$0xff]
  %v7663 = vld [vmem:[%s7618 + $0x160] sm:$0xff]
  %v7664 = vld [vmem:[%s7618 + $0x168] sm:$0xff]
  %v7665 = vld [vmem:[%s7618 + $0x170] sm:$0xff]
  %v7666 = vld [vmem:[%s7618 + $0x178] sm:$0xff]
  %v7667 = vld [vmem:[%s7618 + $0x180] sm:$0xff]
  %v7668 = vld [vmem:[%s7618 + $0x188] sm:$0xff]
  %v7719 = vunpack.c.l.b16 %v7619
  %v7720 = vunpack.c.h.b16 %v7619
  %v7721 = vunpack.c.l.b16 %v7620
  %v7722 = vunpack.c.h.b16 %v7620
  %v7723 = vunpack.c.l.b16 %v7621
  %v7724 = vunpack.c.h.b16 %v7621
  %v7725 = vunpack.c.l.b16 %v7622
  %v7726 = vunpack.c.h.b16 %v7622
  %v7727 = vunpack.c.l.b16 %v7623
  %v7728 = vunpack.c.h.b16 %v7623
  %v7729 = vunpack.c.l.b16 %v7624
  %v7730 = vunpack.c.h.b16 %v7624
  %v7731 = vunpack.c.l.b16 %v7625
  %v7732 = vunpack.c.h.b16 %v7625
  %v7733 = vunpack.c.l.b16 %v7626
  %v7734 = vunpack.c.h.b16 %v7626
  %v7735 = vunpack.c.l.b16 %v7627
  %v7736 = vunpack.c.h.b16 %v7627
  %v7737 = vunpack.c.l.b16 %v7628
  %v7738 = vunpack.c.h.b16 %v7628
  %v7739 = vunpack.c.l.b16 %v7629
  %v7740 = vunpack.c.h.b16 %v7629
  %v7741 = vunpack.c.l.b16 %v7630
  %v7742 = vunpack.c.h.b16 %v7630
  %v7743 = vunpack.c.l.b16 %v7631
  %v7744 = vunpack.c.h.b16 %v7631
  %v7745 = vunpack.c.l.b16 %v7632
  %v7746 = vunpack.c.h.b16 %v7632
  %v7747 = vunpack.c.l.b16 %v7633
  %v7748 = vunpack.c.h.b16 %v7633
  %v7749 = vunpack.c.l.b16 %v7634
  %v7750 = vunpack.c.h.b16 %v7634
  %v7751 = vunpack.c.l.b16 %v7635
  %v7752 = vunpack.c.h.b16 %v7635
  %v7753 = vunpack.c.l.b16 %v7636
  %v7754 = vunpack.c.h.b16 %v7636
  %v7755 = vunpack.c.l.b16 %v7637
  %v7756 = vunpack.c.h.b16 %v7637
  %v7757 = vunpack.c.l.b16 %v7638
  %v7758 = vunpack.c.h.b16 %v7638
  %v7759 = vunpack.c.l.b16 %v7639
  %v7760 = vunpack.c.h.b16 %v7639
  %v7761 = vunpack.c.l.b16 %v7640
  %v7762 = vunpack.c.h.b16 %v7640
  %v7763 = vunpack.c.l.b16 %v7641
  %v7764 = vunpack.c.h.b16 %v7641
  %v7765 = vunpack.c.l.b16 %v7642
  %v7766 = vunpack.c.h.b16 %v7642
  %v7767 = vunpack.c.l.b16 %v7643
  %v7768 = vunpack.c.h.b16 %v7643
  %v7769 = vunpack.c.l.b16 %v7644
  %v7770 = vunpack.c.h.b16 %v7644
  %v7771 = vunpack.c.l.b16 %v7645
  %v7772 = vunpack.c.h.b16 %v7645
  %v7773 = vunpack.c.l.b16 %v7646
  %v7774 = vunpack.c.h.b16 %v7646
  %v7775 = vunpack.c.l.b16 %v7647
  %v7776 = vunpack.c.h.b16 %v7647
  %v7777 = vunpack.c.l.b16 %v7648
  %v7778 = vunpack.c.h.b16 %v7648
  %v7779 = vunpack.c.l.b16 %v7649
  %v7780 = vunpack.c.h.b16 %v7649
  %v7781 = vunpack.c.l.b16 %v7650
  %v7782 = vunpack.c.h.b16 %v7650
  %v7783 = vunpack.c.l.b16 %v7651
  %v7784 = vunpack.c.h.b16 %v7651
  %v7785 = vunpack.c.l.b16 %v7652
  %v7786 = vunpack.c.h.b16 %v7652
  %v7787 = vunpack.c.l.b16 %v7653
  %v7788 = vunpack.c.h.b16 %v7653
  %v7789 = vunpack.c.l.b16 %v7654
  %v7790 = vunpack.c.h.b16 %v7654
  %v7791 = vunpack.c.l.b16 %v7655
  %v7792 = vunpack.c.h.b16 %v7655
  %v7793 = vunpack.c.l.b16 %v7656
  %v7794 = vunpack.c.h.b16 %v7656
  %v7795 = vunpack.c.l.b16 %v7657
  %v7796 = vunpack.c.h.b16 %v7657
  %v7797 = vunpack.c.l.b16 %v7658
  %v7798 = vunpack.c.h.b16 %v7658
  %v7799 = vunpack.c.l.b16 %v7659
  %v7800 = vunpack.c.h.b16 %v7659
  %v7801 = vunpack.c.l.b16 %v7660
  %v7802 = vunpack.c.h.b16 %v7660
  %v7803 = vunpack.c.l.b16 %v7661
  %v7804 = vunpack.c.h.b16 %v7661
  %v7805 = vunpack.c.l.b16 %v7662
  %v7806 = vunpack.c.h.b16 %v7662
  %v7807 = vunpack.c.l.b16 %v7663
  %v7808 = vunpack.c.h.b16 %v7663
  %v7809 = vunpack.c.l.b16 %v7664
  %v7810 = vunpack.c.h.b16 %v7664
  %v7811 = vunpack.c.l.b16 %v7665
  %v7812 = vunpack.c.h.b16 %v7665
  %v7813 = vunpack.c.l.b16 %v7666
  %v7814 = vunpack.c.h.b16 %v7666
  %v7815 = vunpack.c.l.b16 %v7667
  %v7816 = vunpack.c.h.b16 %v7667
  %v7817 = vunpack.c.l.b16 %v7668
  %v7818 = vunpack.c.h.b16 %v7668
  %v7819 = vpack.c.b16 %v7723, %v7719
  %v7820 = vpack.c.b16 %v7724, %v7720
  %v7821 = vpack.c.b16 %v7725, %v7721
  %v7822 = vpack.c.b16 %v7726, %v7722
  %v7823 = vpack.c.b16 %v7731, %v7727
  %v7824 = vpack.c.b16 %v7732, %v7728
  %v7825 = vpack.c.b16 %v7733, %v7729
  %v7826 = vpack.c.b16 %v7734, %v7730
  %v7827 = vpack.c.b16 %v7739, %v7735
  %v7828 = vpack.c.b16 %v7740, %v7736
  %v7829 = vpack.c.b16 %v7741, %v7737
  %v7830 = vpack.c.b16 %v7742, %v7738
  %v7831 = vpack.c.b16 %v7747, %v7743
  %v7832 = vpack.c.b16 %v7748, %v7744
  %v7833 = vpack.c.b16 %v7749, %v7745
  %v7834 = vpack.c.b16 %v7750, %v7746
  %v7835 = vpack.c.b16 %v7755, %v7751
  %v7836 = vpack.c.b16 %v7756, %v7752
  %v7837 = vpack.c.b16 %v7757, %v7753
  %v7838 = vpack.c.b16 %v7758, %v7754
  %v7839 = vpack.c.b16 %v7763, %v7759
  %v7840 = vpack.c.b16 %v7764, %v7760
  %v7841 = vpack.c.b16 %v7765, %v7761
  %v7842 = vpack.c.b16 %v7766, %v7762
  %v7843 = vpack.c.b16 %v7771, %v7767
  %v7844 = vpack.c.b16 %v7772, %v7768
  %v7845 = vpack.c.b16 %v7773, %v7769
  %v7846 = vpack.c.b16 %v7774, %v7770
  %v7847 = vpack.c.b16 %v7779, %v7775
  %v7848 = vpack.c.b16 %v7780, %v7776
  %v7849 = vpack.c.b16 %v7781, %v7777
  %v7850 = vpack.c.b16 %v7782, %v7778
  %v7851 = vpack.c.b16 %v7787, %v7783
  %v7852 = vpack.c.b16 %v7788, %v7784
  %v7853 = vpack.c.b16 %v7789, %v7785
  %v7854 = vpack.c.b16 %v7790, %v7786
  %v7855 = vpack.c.b16 %v7795, %v7791
  %v7856 = vpack.c.b16 %v7796, %v7792
  %v7857 = vpack.c.b16 %v7797, %v7793
  %v7858 = vpack.c.b16 %v7798, %v7794
  %v7859 = vpack.c.b16 %v7803, %v7799
  %v7860 = vpack.c.b16 %v7804, %v7800
  %v7861 = vpack.c.b16 %v7805, %v7801
  %v7862 = vpack.c.b16 %v7806, %v7802
  %v7863 = vpack.c.b16 %v7811, %v7807
  %v7864 = vpack.c.b16 %v7812, %v7808
  %v7865 = vpack.c.b16 %v7813, %v7809
  %v7866 = vpack.c.b16 %v7814, %v7810
  %v7867 = vpack.c.b16 %v7815, %v7815
  %v7868 = vpack.c.b16 %v7816, %v7816
  %v7869 = vpack.c.b16 %v7817, %v7817
  %v7870 = vpack.c.b16 %v7818, %v7818
  %v7920 = vsel %vm7126, %v7617, 0
  %v7923 = vsel %vm7130, %v7867, 0
  %v7926 = vsel %vm7130, %v7868, 0
  %v7929 = vsel %vm7130, %v7869, 0
  %v7932 = vsel %vm7130, %v7870, 0
  %7934 = vmatpush.bf16.msra.mxu0 %v7847
  %7935 = vmatpush.bf16.msra.mxu0 %v7843
  %7936 = vmatpush.bf16.msra.mxu0 %v7839
  %7937 = vmatpush.bf16.msra.mxu0 %v7835
  %7938 = vmatpush.bf16.msra.mxu0 %v7831
  %7939 = vmatpush.bf16.msra.mxu0 %v7827
  %7940 = vmatpush.bf16.msra.mxu0 %v7823
  %7941 = vmatpush.bf16.msra.mxu0 %v7819
  %7942 = vmatmul.bf16.gmra.mxu0 %v7616
  %v7943 = vpop.f32.mrf.mxu0
  %v7944 = vadd.f32 0.0, %v7943
  %v7945 = vpop.f32.mrf.mxu0
  %7946 = vdwg.mxu0
  %7947 = vmatpush.bf16.msra.mxu0 0
  %7948 = vmatpush.bf16.msra.mxu0 0
  %7949 = vmatpush.bf16.msra.mxu0 0
  %7950 = vmatpush.bf16.msra.mxu0 %v7923
  %7951 = vmatpush.bf16.msra.mxu0 %v7863
  %7952 = vmatpush.bf16.msra.mxu0 %v7859
  %7953 = vmatpush.bf16.msra.mxu0 %v7855
  %7954 = vmatpush.bf16.msra.mxu0 %v7851
  %7955 = vmatmul.bf16.gmra.mxu0 %v7920
  %v7956 = vpop.f32.mrf.mxu0
  %v7957 = vadd.f32 %v7944, %v7956
  %v7958 = vpop.f32.mrf.mxu0
  %7959 = vdwg.mxu0
  %7960 = vmatpush.bf16.msra.mxu0 %v7848
  %7961 = vmatpush.bf16.msra.mxu0 %v7844
  %7962 = vmatpush.bf16.msra.mxu0 %v7840
  %7963 = vmatpush.bf16.msra.mxu0 %v7836
  %7964 = vmatpush.bf16.msra.mxu0 %v7832
  %7965 = vmatpush.bf16.msra.mxu0 %v7828
  %7966 = vmatpush.bf16.msra.mxu0 %v7824
  %7967 = vmatpush.bf16.msra.mxu0 %v7820
  %7968 = vmatmul.bf16.gmra.mxu0 %v7616
  %v7969 = vpop.f32.mrf.mxu0
  %v7970 = vadd.f32 0.0, %v7969
  %v7971 = vpop.f32.mrf.mxu0
  %7972 = vdwg.mxu0
  %7973 = vmatpush.bf16.msra.mxu0 0
  %7974 = vmatpush.bf16.msra.mxu0 0
  %7975 = vmatpush.bf16.msra.mxu0 0
  %7976 = vmatpush.bf16.msra.mxu0 %v7926
  %7977 = vmatpush.bf16.msra.mxu0 %v7864
  %7978 = vmatpush.bf16.msra.mxu0 %v7860
  %7979 = vmatpush.bf16.msra.mxu0 %v7856
  %7980 = vmatpush.bf16.msra.mxu0 %v7852
  %7981 = vmatmul.bf16.gmra.mxu0 %v7920
  %v7982 = vpop.f32.mrf.mxu0
  %v7983 = vadd.f32 %v7970, %v7982
  %v7984 = vpop.f32.mrf.mxu0
  %7985 = vdwg.mxu0
  %7986 = vmatpush.bf16.msra.mxu0 %v7849
  %7987 = vmatpush.bf16.msra.mxu0 %v7845
  %7988 = vmatpush.bf16.msra.mxu0 %v7841
  %7989 = vmatpush.bf16.msra.mxu0 %v7837
  %7990 = vmatpush.bf16.msra.mxu0 %v7833
  %7991 = vmatpush.bf16.msra.mxu0 %v7829
  %7992 = vmatpush.bf16.msra.mxu0 %v7825
  %7993 = vmatpush.bf16.msra.mxu0 %v7821
  %7994 = vmatmul.bf16.gmra.mxu0 %v7616
  %v7995 = vpop.f32.mrf.mxu0
  %v7996 = vadd.f32 0.0, %v7995
  %v7997 = vpop.f32.mrf.mxu0
  %7998 = vdwg.mxu0
  %7999 = vmatpush.bf16.msra.mxu0 0
  %8000 = vmatpush.bf16.msra.mxu0 0
  %8001 = vmatpush.bf16.msra.mxu0 0
  %8002 = vmatpush.bf16.msra.mxu0 %v7929
  %8003 = vmatpush.bf16.msra.mxu0 %v7865
  %8004 = vmatpush.bf16.msra.mxu0 %v7861
  %8005 = vmatpush.bf16.msra.mxu0 %v7857
  %8006 = vmatpush.bf16.msra.mxu0 %v7853
  %8007 = vmatmul.bf16.gmra.mxu0 %v7920
  %v8008 = vpop.f32.mrf.mxu0
  %v8009 = vadd.f32 %v7996, %v8008
  %v8010 = vpop.f32.mrf.mxu0
  %8011 = vdwg.mxu0
  %8012 = vmatpush.bf16.msra.mxu0 %v7850
  %8013 = vmatpush.bf16.msra.mxu0 %v7846
  %8014 = vmatpush.bf16.msra.mxu0 %v7842
  %8015 = vmatpush.bf16.msra.mxu0 %v7838
  %8016 = vmatpush.bf16.msra.mxu0 %v7834
  %8017 = vmatpush.bf16.msra.mxu0 %v7830
  %8018 = vmatpush.bf16.msra.mxu0 %v7826
  %8019 = vmatpush.bf16.msra.mxu0 %v7822
  %8020 = vmatmul.bf16.gmra.mxu0 %v7616
  %v8021 = vpop.f32.mrf.mxu0
  %v8022 = vadd.f32 0.0, %v8021
  %v8023 = vpop.f32.mrf.mxu0
  %8024 = vdwg.mxu0
  %8025 = vmatpush.bf16.msra.mxu0 0
  %8026 = vmatpush.bf16.msra.mxu0 0
  %8027 = vmatpush.bf16.msra.mxu0 0
  %8028 = vmatpush.bf16.msra.mxu0 %v7932
  %8029 = vmatpush.bf16.msra.mxu0 %v7866
  %8030 = vmatpush.bf16.msra.mxu0 %v7862
  %8031 = vmatpush.bf16.msra.mxu0 %v7858
  %8032 = vmatpush.bf16.msra.mxu0 %v7854
  %8033 = vmatmul.bf16.gmra.mxu0 %v7920
  %v8034 = vpop.f32.mrf.mxu0
  %v8035 = vadd.f32 %v8022, %v8034
  %v8036 = vpop.f32.mrf.mxu0
  %8037 = vdwg.mxu0
  %v8038 = vadd.f32 %v7535, %v7957
  %v8039 = vadd.f32 %v7561, %v7983
  %v8040 = vadd.f32 %v7587, %v8009
  %v8041 = vadd.f32 %v7613, %v8035
  %v8042 = vpack.c.bf16 %v6769, %v6769
  %v8043 = vpack.c.bf16 %v6770, %v6770
  %s8044 = scalar_lea.vmem %s5, 1200
  %v8045 = vld [vmem:[%s8044] sm:$0xff]
  %v8046 = vld [vmem:[%s8044 + $0x8] sm:$0xff]
  %v8047 = vld [vmem:[%s8044 + $0x10] sm:$0xff]
  %v8048 = vld [vmem:[%s8044 + $0x18] sm:$0xff]
  %v8049 = vld [vmem:[%s8044 + $0x20] sm:$0xff]
  %v8050 = vld [vmem:[%s8044 + $0x28] sm:$0xff]
  %v8051 = vld [vmem:[%s8044 + $0x30] sm:$0xff]
  %v8052 = vld [vmem:[%s8044 + $0x38] sm:$0xff]
  %v8053 = vld [vmem:[%s8044 + $0x40] sm:$0xff]
  %v8054 = vld [vmem:[%s8044 + $0x48] sm:$0xff]
  %v8055 = vld [vmem:[%s8044 + $0x50] sm:$0xff]
  %v8056 = vld [vmem:[%s8044 + $0x58] sm:$0xff]
  %v8057 = vld [vmem:[%s8044 + $0x60] sm:$0xff]
  %v8058 = vld [vmem:[%s8044 + $0x68] sm:$0xff]
  %v8059 = vld [vmem:[%s8044 + $0x70] sm:$0xff]
  %v8060 = vld [vmem:[%s8044 + $0x78] sm:$0xff]
  %v8061 = vld [vmem:[%s8044 + $0x80] sm:$0xff]
  %v8062 = vld [vmem:[%s8044 + $0x88] sm:$0xff]
  %v8063 = vld [vmem:[%s8044 + $0x90] sm:$0xff]
  %v8064 = vld [vmem:[%s8044 + $0x98] sm:$0xff]
  %v8065 = vld [vmem:[%s8044 + $0xa0] sm:$0xff]
  %v8066 = vld [vmem:[%s8044 + $0xa8] sm:$0xff]
  %v8067 = vld [vmem:[%s8044 + $0xb0] sm:$0xff]
  %v8068 = vld [vmem:[%s8044 + $0xb8] sm:$0xff]
  %v8069 = vld [vmem:[%s8044 + $0xc0] sm:$0xff]
  %v8070 = vld [vmem:[%s8044 + $0xc8] sm:$0xff]
  %v8071 = vld [vmem:[%s8044 + $0xd0] sm:$0xff]
  %v8072 = vld [vmem:[%s8044 + $0xd8] sm:$0xff]
  %v8073 = vld [vmem:[%s8044 + $0xe0] sm:$0xff]
  %v8074 = vld [vmem:[%s8044 + $0xe8] sm:$0xff]
  %v8075 = vld [vmem:[%s8044 + $0xf0] sm:$0xff]
  %v8076 = vld [vmem:[%s8044 + $0xf8] sm:$0xff]
  %v8077 = vld [vmem:[%s8044 + $0x100] sm:$0xff]
  %v8078 = vld [vmem:[%s8044 + $0x108] sm:$0xff]
  %v8079 = vld [vmem:[%s8044 + $0x110] sm:$0xff]
  %v8080 = vld [vmem:[%s8044 + $0x118] sm:$0xff]
  %v8081 = vld [vmem:[%s8044 + $0x120] sm:$0xff]
  %v8082 = vld [vmem:[%s8044 + $0x128] sm:$0xff]
  %v8083 = vld [vmem:[%s8044 + $0x130] sm:$0xff]
  %v8084 = vld [vmem:[%s8044 + $0x138] sm:$0xff]
  %v8085 = vld [vmem:[%s8044 + $0x140] sm:$0xff]
  %v8086 = vld [vmem:[%s8044 + $0x148] sm:$0xff]
  %v8087 = vld [vmem:[%s8044 + $0x150] sm:$0xff]
  %v8088 = vld [vmem:[%s8044 + $0x158] sm:$0xff]
  %v8089 = vld [vmem:[%s8044 + $0x160] sm:$0xff]
  %v8090 = vld [vmem:[%s8044 + $0x168] sm:$0xff]
  %v8091 = vld [vmem:[%s8044 + $0x170] sm:$0xff]
  %v8092 = vld [vmem:[%s8044 + $0x178] sm:$0xff]
  %v8093 = vld [vmem:[%s8044 + $0x180] sm:$0xff]
  %v8094 = vld [vmem:[%s8044 + $0x188] sm:$0xff]
  %v8145 = vunpack.c.l.b16 %v8045
  %v8146 = vunpack.c.h.b16 %v8045
  %v8147 = vunpack.c.l.b16 %v8046
  %v8148 = vunpack.c.h.b16 %v8046
  %v8149 = vunpack.c.l.b16 %v8047
  %v8150 = vunpack.c.h.b16 %v8047
  %v8151 = vunpack.c.l.b16 %v8048
  %v8152 = vunpack.c.h.b16 %v8048
  %v8153 = vunpack.c.l.b16 %v8049
  %v8154 = vunpack.c.h.b16 %v8049
  %v8155 = vunpack.c.l.b16 %v8050
  %v8156 = vunpack.c.h.b16 %v8050
  %v8157 = vunpack.c.l.b16 %v8051
  %v8158 = vunpack.c.h.b16 %v8051
  %v8159 = vunpack.c.l.b16 %v8052
  %v8160 = vunpack.c.h.b16 %v8052
  %v8161 = vunpack.c.l.b16 %v8053
  %v8162 = vunpack.c.h.b16 %v8053
  %v8163 = vunpack.c.l.b16 %v8054
  %v8164 = vunpack.c.h.b16 %v8054
  %v8165 = vunpack.c.l.b16 %v8055
  %v8166 = vunpack.c.h.b16 %v8055
  %v8167 = vunpack.c.l.b16 %v8056
  %v8168 = vunpack.c.h.b16 %v8056
  %v8169 = vunpack.c.l.b16 %v8057
  %v8170 = vunpack.c.h.b16 %v8057
  %v8171 = vunpack.c.l.b16 %v8058
  %v8172 = vunpack.c.h.b16 %v8058
  %v8173 = vunpack.c.l.b16 %v8059
  %v8174 = vunpack.c.h.b16 %v8059
  %v8175 = vunpack.c.l.b16 %v8060
  %v8176 = vunpack.c.h.b16 %v8060
  %v8177 = vunpack.c.l.b16 %v8061
  %v8178 = vunpack.c.h.b16 %v8061
  %v8179 = vunpack.c.l.b16 %v8062
  %v8180 = vunpack.c.h.b16 %v8062
  %v8181 = vunpack.c.l.b16 %v8063
  %v8182 = vunpack.c.h.b16 %v8063
  %v8183 = vunpack.c.l.b16 %v8064
  %v8184 = vunpack.c.h.b16 %v8064
  %v8185 = vunpack.c.l.b16 %v8065
  %v8186 = vunpack.c.h.b16 %v8065
  %v8187 = vunpack.c.l.b16 %v8066
  %v8188 = vunpack.c.h.b16 %v8066
  %v8189 = vunpack.c.l.b16 %v8067
  %v8190 = vunpack.c.h.b16 %v8067
  %v8191 = vunpack.c.l.b16 %v8068
  %v8192 = vunpack.c.h.b16 %v8068
  %v8193 = vunpack.c.l.b16 %v8069
  %v8194 = vunpack.c.h.b16 %v8069
  %v8195 = vunpack.c.l.b16 %v8070
  %v8196 = vunpack.c.h.b16 %v8070
  %v8197 = vunpack.c.l.b16 %v8071
  %v8198 = vunpack.c.h.b16 %v8071
  %v8199 = vunpack.c.l.b16 %v8072
  %v8200 = vunpack.c.h.b16 %v8072
  %v8201 = vunpack.c.l.b16 %v8073
  %v8202 = vunpack.c.h.b16 %v8073
  %v8203 = vunpack.c.l.b16 %v8074
  %v8204 = vunpack.c.h.b16 %v8074
  %v8205 = vunpack.c.l.b16 %v8075
  %v8206 = vunpack.c.h.b16 %v8075
  %v8207 = vunpack.c.l.b16 %v8076
  %v8208 = vunpack.c.h.b16 %v8076
  %v8209 = vunpack.c.l.b16 %v8077
  %v8210 = vunpack.c.h.b16 %v8077
  %v8211 = vunpack.c.l.b16 %v8078
  %v8212 = vunpack.c.h.b16 %v8078
  %v8213 = vunpack.c.l.b16 %v8079
  %v8214 = vunpack.c.h.b16 %v8079
  %v8215 = vunpack.c.l.b16 %v8080
  %v8216 = vunpack.c.h.b16 %v8080
  %v8217 = vunpack.c.l.b16 %v8081
  %v8218 = vunpack.c.h.b16 %v8081
  %v8219 = vunpack.c.l.b16 %v8082
  %v8220 = vunpack.c.h.b16 %v8082
  %v8221 = vunpack.c.l.b16 %v8083
  %v8222 = vunpack.c.h.b16 %v8083
  %v8223 = vunpack.c.l.b16 %v8084
  %v8224 = vunpack.c.h.b16 %v8084
  %v8225 = vunpack.c.l.b16 %v8085
  %v8226 = vunpack.c.h.b16 %v8085
  %v8227 = vunpack.c.l.b16 %v8086
  %v8228 = vunpack.c.h.b16 %v8086
  %v8229 = vunpack.c.l.b16 %v8087
  %v8230 = vunpack.c.h.b16 %v8087
  %v8231 = vunpack.c.l.b16 %v8088
  %v8232 = vunpack.c.h.b16 %v8088
  %v8233 = vunpack.c.l.b16 %v8089
  %v8234 = vunpack.c.h.b16 %v8089
  %v8235 = vunpack.c.l.b16 %v8090
  %v8236 = vunpack.c.h.b16 %v8090
  %v8237 = vunpack.c.l.b16 %v8091
  %v8238 = vunpack.c.h.b16 %v8091
  %v8239 = vunpack.c.l.b16 %v8092
  %v8240 = vunpack.c.h.b16 %v8092
  %v8241 = vunpack.c.l.b16 %v8093
  %v8242 = vunpack.c.h.b16 %v8093
  %v8243 = vunpack.c.l.b16 %v8094
  %v8244 = vunpack.c.h.b16 %v8094
  %v8245 = vpack.c.b16 %v8149, %v8145
  %v8246 = vpack.c.b16 %v8150, %v8146
  %v8247 = vpack.c.b16 %v8151, %v8147
  %v8248 = vpack.c.b16 %v8152, %v8148
  %v8249 = vpack.c.b16 %v8157, %v8153
  %v8250 = vpack.c.b16 %v8158, %v8154
  %v8251 = vpack.c.b16 %v8159, %v8155
  %v8252 = vpack.c.b16 %v8160, %v8156
  %v8253 = vpack.c.b16 %v8165, %v8161
  %v8254 = vpack.c.b16 %v8166, %v8162
  %v8255 = vpack.c.b16 %v8167, %v8163
  %v8256 = vpack.c.b16 %v8168, %v8164
  %v8257 = vpack.c.b16 %v8173, %v8169
  %v8258 = vpack.c.b16 %v8174, %v8170
  %v8259 = vpack.c.b16 %v8175, %v8171
  %v8260 = vpack.c.b16 %v8176, %v8172
  %v8261 = vpack.c.b16 %v8181, %v8177
  %v8262 = vpack.c.b16 %v8182, %v8178
  %v8263 = vpack.c.b16 %v8183, %v8179
  %v8264 = vpack.c.b16 %v8184, %v8180
  %v8265 = vpack.c.b16 %v8189, %v8185
  %v8266 = vpack.c.b16 %v8190, %v8186
  %v8267 = vpack.c.b16 %v8191, %v8187
  %v8268 = vpack.c.b16 %v8192, %v8188
  %v8269 = vpack.c.b16 %v8197, %v8193
  %v8270 = vpack.c.b16 %v8198, %v8194
  %v8271 = vpack.c.b16 %v8199, %v8195
  %v8272 = vpack.c.b16 %v8200, %v8196
  %v8273 = vpack.c.b16 %v8205, %v8201
  %v8274 = vpack.c.b16 %v8206, %v8202
  %v8275 = vpack.c.b16 %v8207, %v8203
  %v8276 = vpack.c.b16 %v8208, %v8204
  %v8277 = vpack.c.b16 %v8213, %v8209
  %v8278 = vpack.c.b16 %v8214, %v8210
  %v8279 = vpack.c.b16 %v8215, %v8211
  %v8280 = vpack.c.b16 %v8216, %v8212
  %v8281 = vpack.c.b16 %v8221, %v8217
  %v8282 = vpack.c.b16 %v8222, %v8218
  %v8283 = vpack.c.b16 %v8223, %v8219
  %v8284 = vpack.c.b16 %v8224, %v8220
  %v8285 = vpack.c.b16 %v8229, %v8225
  %v8286 = vpack.c.b16 %v8230, %v8226
  %v8287 = vpack.c.b16 %v8231, %v8227
  %v8288 = vpack.c.b16 %v8232, %v8228
  %v8289 = vpack.c.b16 %v8237, %v8233
  %v8290 = vpack.c.b16 %v8238, %v8234
  %v8291 = vpack.c.b16 %v8239, %v8235
  %v8292 = vpack.c.b16 %v8240, %v8236
  %v8293 = vpack.c.b16 %v8241, %v8241
  %v8294 = vpack.c.b16 %v8242, %v8242
  %v8295 = vpack.c.b16 %v8243, %v8243
  %v8296 = vpack.c.b16 %v8244, %v8244
  %v8346 = vsel %vm7126, %v8043, 0
  %v8349 = vsel %vm7130, %v8293, 0
  %v8352 = vsel %vm7130, %v8294, 0
  %v8355 = vsel %vm7130, %v8295, 0
  %v8358 = vsel %vm7130, %v8296, 0
  %8360 = vmatpush.bf16.msra.mxu0 %v8273
  %8361 = vmatpush.bf16.msra.mxu0 %v8269
  %8362 = vmatpush.bf16.msra.mxu0 %v8265
  %8363 = vmatpush.bf16.msra.mxu0 %v8261
  %8364 = vmatpush.bf16.msra.mxu0 %v8257
  %8365 = vmatpush.bf16.msra.mxu0 %v8253
  %8366 = vmatpush.bf16.msra.mxu0 %v8249
  %8367 = vmatpush.bf16.msra.mxu0 %v8245
  %8368 = vmatmul.bf16.gmra.mxu0 %v8042
  %v8369 = vpop.f32.mrf.mxu0
  %v8370 = vadd.f32 0.0, %v8369
  %v8371 = vpop.f32.mrf.mxu0
  %8372 = vdwg.mxu0
  %8373 = vmatpush.bf16.msra.mxu0 0
  %8374 = vmatpush.bf16.msra.mxu0 0
  %8375 = vmatpush.bf16.msra.mxu0 0
  %8376 = vmatpush.bf16.msra.mxu0 %v8349
  %8377 = vmatpush.bf16.msra.mxu0 %v8289
  %8378 = vmatpush.bf16.msra.mxu0 %v8285
  %8379 = vmatpush.bf16.msra.mxu0 %v8281
  %8380 = vmatpush.bf16.msra.mxu0 %v8277
  %8381 = vmatmul.bf16.gmra.mxu0 %v8346
  %v8382 = vpop.f32.mrf.mxu0
  %v8383 = vadd.f32 %v8370, %v8382
  %v8384 = vpop.f32.mrf.mxu0
  %8385 = vdwg.mxu0
  %8386 = vmatpush.bf16.msra.mxu0 %v8274
  %8387 = vmatpush.bf16.msra.mxu0 %v8270
  %8388 = vmatpush.bf16.msra.mxu0 %v8266
  %8389 = vmatpush.bf16.msra.mxu0 %v8262
  %8390 = vmatpush.bf16.msra.mxu0 %v8258
  %8391 = vmatpush.bf16.msra.mxu0 %v8254
  %8392 = vmatpush.bf16.msra.mxu0 %v8250
  %8393 = vmatpush.bf16.msra.mxu0 %v8246
  %8394 = vmatmul.bf16.gmra.mxu0 %v8042
  %v8395 = vpop.f32.mrf.mxu0
  %v8396 = vadd.f32 0.0, %v8395
  %v8397 = vpop.f32.mrf.mxu0
  %8398 = vdwg.mxu0
  %8399 = vmatpush.bf16.msra.mxu0 0
  %8400 = vmatpush.bf16.msra.mxu0 0
  %8401 = vmatpush.bf16.msra.mxu0 0
  %8402 = vmatpush.bf16.msra.mxu0 %v8352
  %8403 = vmatpush.bf16.msra.mxu0 %v8290
  %8404 = vmatpush.bf16.msra.mxu0 %v8286
  %8405 = vmatpush.bf16.msra.mxu0 %v8282
  %8406 = vmatpush.bf16.msra.mxu0 %v8278
  %8407 = vmatmul.bf16.gmra.mxu0 %v8346
  %v8408 = vpop.f32.mrf.mxu0
  %v8409 = vadd.f32 %v8396, %v8408
  %v8410 = vpop.f32.mrf.mxu0
  %8411 = vdwg.mxu0
  %8412 = vmatpush.bf16.msra.mxu0 %v8275
  %8413 = vmatpush.bf16.msra.mxu0 %v8271
  %8414 = vmatpush.bf16.msra.mxu0 %v8267
  %8415 = vmatpush.bf16.msra.mxu0 %v8263
  %8416 = vmatpush.bf16.msra.mxu0 %v8259
  %8417 = vmatpush.bf16.msra.mxu0 %v8255
  %8418 = vmatpush.bf16.msra.mxu0 %v8251
  %8419 = vmatpush.bf16.msra.mxu0 %v8247
  %8420 = vmatmul.bf16.gmra.mxu0 %v8042
  %v8421 = vpop.f32.mrf.mxu0
  %v8422 = vadd.f32 0.0, %v8421
  %v8423 = vpop.f32.mrf.mxu0
  %8424 = vdwg.mxu0
  %8425 = vmatpush.bf16.msra.mxu0 0
  %8426 = vmatpush.bf16.msra.mxu0 0
  %8427 = vmatpush.bf16.msra.mxu0 0
  %8428 = vmatpush.bf16.msra.mxu0 %v8355
  %8429 = vmatpush.bf16.msra.mxu0 %v8291
  %8430 = vmatpush.bf16.msra.mxu0 %v8287
  %8431 = vmatpush.bf16.msra.mxu0 %v8283
  %8432 = vmatpush.bf16.msra.mxu0 %v8279
  %8433 = vmatmul.bf16.gmra.mxu0 %v8346
  %v8434 = vpop.f32.mrf.mxu0
  %v8435 = vadd.f32 %v8422, %v8434
  %v8436 = vpop.f32.mrf.mxu0
  %8437 = vdwg.mxu0
  %8438 = vmatpush.bf16.msra.mxu0 %v8276
  %8439 = vmatpush.bf16.msra.mxu0 %v8272
  %8440 = vmatpush.bf16.msra.mxu0 %v8268
  %8441 = vmatpush.bf16.msra.mxu0 %v8264
  %8442 = vmatpush.bf16.msra.mxu0 %v8260
  %8443 = vmatpush.bf16.msra.mxu0 %v8256
  %8444 = vmatpush.bf16.msra.mxu0 %v8252
  %8445 = vmatpush.bf16.msra.mxu0 %v8248
  %8446 = vmatmul.bf16.gmra.mxu0 %v8042
  %v8447 = vpop.f32.mrf.mxu0
  %v8448 = vadd.f32 0.0, %v8447
  %v8449 = vpop.f32.mrf.mxu0
  %8450 = vdwg.mxu0
  %8451 = vmatpush.bf16.msra.mxu0 0
  %8452 = vmatpush.bf16.msra.mxu0 0
  %8453 = vmatpush.bf16.msra.mxu0 0
  %8454 = vmatpush.bf16.msra.mxu0 %v8358
  %8455 = vmatpush.bf16.msra.mxu0 %v8292
  %8456 = vmatpush.bf16.msra.mxu0 %v8288
  %8457 = vmatpush.bf16.msra.mxu0 %v8284
  %8458 = vmatpush.bf16.msra.mxu0 %v8280
  %8459 = vmatmul.bf16.gmra.mxu0 %v8346
  %v8460 = vpop.f32.mrf.mxu0
  %v8461 = vadd.f32 %v8448, %v8460
  %v8462 = vpop.f32.mrf.mxu0
  %8463 = vdwg.mxu0
  %v8464 = vadd.f32 %v8038, %v8383
  %v8465 = vadd.f32 %v8039, %v8409
  %v8466 = vadd.f32 %v8040, %v8435
  %v8467 = vadd.f32 %v8041, %v8461
  %v8468 = vld [vmem:[%s6] sm:$0xf]
  %v8470 = vperm.slane %v8468, 0
  %v8471 = vperm.slane %v8468, 1
  %v8472 = vperm.slane %v8468, 2
  %v8473 = vperm.slane %v8468, 3
  %v8478 = vadd.f32 %v8464, %v8470
  %v8479 = vadd.f32 %v8465, %v8471
  %v8480 = vadd.f32 %v8466, %v8472
  %v8481 = vadd.f32 %v8467, %v8473
  %v8482 = vmax.f32 %v8478, 0.0
  %v8483 = vmax.f32 %v8479, 0.0
  %v8484 = vmax.f32 %v8480, 0.0
  %v8485 = vmax.f32 %v8481, 0.0
  %v8486 = vpack.c.bf16 %v8482, %v8482
  %v8487 = vpack.c.bf16 %v8483, %v8483
  %v8488 = vpack.c.bf16 %v8484, %v8484
  %v8489 = vpack.c.bf16 %v8485, %v8485
  %v8490 = vld [vmem:[%s7] sm:$0xf]
  %v8491 = vld [vmem:[%s7 + $0x4] sm:$0xf]
  %v8492 = vld [vmem:[%s7 + $0x8] sm:$0xf]
  %v8493 = vld [vmem:[%s7 + $0xc] sm:$0xf]
  %v8494 = vld [vmem:[%s7 + $0x10] sm:$0xf]
  %v8495 = vld [vmem:[%s7 + $0x14] sm:$0xf]
  %v8496 = vld [vmem:[%s7 + $0x18] sm:$0xf]
  %v8497 = vld [vmem:[%s7 + $0x1c] sm:$0xf]
  %v8498 = vld [vmem:[%s7 + $0x20] sm:$0xf]
  %v8499 = vld [vmem:[%s7 + $0x24] sm:$0xf]
  %v8500 = vld [vmem:[%s7 + $0x28] sm:$0xf]
  %v8501 = vld [vmem:[%s7 + $0x2c] sm:$0xf]
  %v8502 = vld [vmem:[%s7 + $0x30] sm:$0xf]
  %v8503 = vld [vmem:[%s7 + $0x34] sm:$0xf]
  %v8504 = vld [vmem:[%s7 + $0x38] sm:$0xf]
  %v8505 = vld [vmem:[%s7 + $0x3c] sm:$0xf]
  %v8506 = vld [vmem:[%s7 + $0x40] sm:$0xf]
  %v8507 = vld [vmem:[%s7 + $0x44] sm:$0xf]
  %v8508 = vld [vmem:[%s7 + $0x48] sm:$0xf]
  %v8509 = vld [vmem:[%s7 + $0x4c] sm:$0xf]
  %v8510 = vld [vmem:[%s7 + $0x50] sm:$0xf]
  %v8511 = vld [vmem:[%s7 + $0x54] sm:$0xf]
  %v8512 = vld [vmem:[%s7 + $0x58] sm:$0xf]
  %v8513 = vld [vmem:[%s7 + $0x5c] sm:$0xf]
  %v8514 = vld [vmem:[%s7 + $0x60] sm:$0xf]
  %v8515 = vld [vmem:[%s7 + $0x64] sm:$0xf]
  %v8516 = vld [vmem:[%s7 + $0x68] sm:$0xf]
  %v8517 = vld [vmem:[%s7 + $0x6c] sm:$0xf]
  %v8518 = vld [vmem:[%s7 + $0x70] sm:$0xf]
  %v8519 = vld [vmem:[%s7 + $0x74] sm:$0xf]
  %v8520 = vld [vmem:[%s7 + $0x78] sm:$0xf]
  %v8521 = vld [vmem:[%s7 + $0x7c] sm:$0xf]
  %v8522 = vld [vmem:[%s7 + $0x80] sm:$0xf]
  %v8523 = vld [vmem:[%s7 + $0x84] sm:$0xf]
  %v8524 = vld [vmem:[%s7 + $0x88] sm:$0xf]
  %v8525 = vld [vmem:[%s7 + $0x8c] sm:$0xf]
  %v8526 = vld [vmem:[%s7 + $0x90] sm:$0xf]
  %v8527 = vld [vmem:[%s7 + $0x94] sm:$0xf]
  %v8528 = vld [vmem:[%s7 + $0x98] sm:$0xf]
  %v8529 = vld [vmem:[%s7 + $0x9c] sm:$0xf]
  %v8530 = vld [vmem:[%s7 + $0xa0] sm:$0xf]
  %v8531 = vld [vmem:[%s7 + $0xa4] sm:$0xf]
  %v8532 = vld [vmem:[%s7 + $0xa8] sm:$0xf]
  %v8533 = vld [vmem:[%s7 + $0xac] sm:$0xf]
  %v8534 = vld [vmem:[%s7 + $0xb0] sm:$0xf]
  %v8535 = vld [vmem:[%s7 + $0xb4] sm:$0xf]
  %v8536 = vld [vmem:[%s7 + $0xb8] sm:$0xf]
  %v8537 = vld [vmem:[%s7 + $0xbc] sm:$0xf]
  %v8538 = vld [vmem:[%s7 + $0xc0] sm:$0xf]
  %v8539 = vld [vmem:[%s7 + $0xc4] sm:$0xf]
  %v8540 = vld [vmem:[%s7 + $0xc8] sm:$0xf]
  %v8541 = vld [vmem:[%s7 + $0xcc] sm:$0xf]
  %v8542 = vld [vmem:[%s7 + $0xd0] sm:$0xf]
  %v8543 = vld [vmem:[%s7 + $0xd4] sm:$0xf]
  %v8544 = vld [vmem:[%s7 + $0xd8] sm:$0xf]
  %v8545 = vld [vmem:[%s7 + $0xdc] sm:$0xf]
  %v8546 = vld [vmem:[%s7 + $0xe0] sm:$0xf]
  %v8547 = vld [vmem:[%s7 + $0xe4] sm:$0xf]
  %v8548 = vld [vmem:[%s7 + $0xe8] sm:$0xf]
  %v8549 = vld [vmem:[%s7 + $0xec] sm:$0xf]
  %v8550 = vld [vmem:[%s7 + $0xf0] sm:$0xf]
  %v8551 = vld [vmem:[%s7 + $0xf4] sm:$0xf]
  %v8552 = vld [vmem:[%s7 + $0xf8] sm:$0x3]
  %v8553 = vld [vmem:[%s8] sm:$0x1]
  %v8555 = vperm.slane %v8553, 0
  %v8620 = vunpack.c.l.b16 %v8490
  %v8621 = vunpack.c.l.b16 %v8491
  %v8622 = vunpack.c.l.b16 %v8492
  %v8623 = vunpack.c.l.b16 %v8493
  %v8624 = vunpack.c.l.b16 %v8494
  %v8625 = vunpack.c.l.b16 %v8495
  %v8626 = vunpack.c.l.b16 %v8496
  %v8627 = vunpack.c.l.b16 %v8497
  %v8628 = vunpack.c.l.b16 %v8498
  %v8629 = vunpack.c.l.b16 %v8499
  %v8630 = vunpack.c.l.b16 %v8500
  %v8631 = vunpack.c.l.b16 %v8501
  %v8632 = vunpack.c.l.b16 %v8502
  %v8633 = vunpack.c.l.b16 %v8503
  %v8634 = vunpack.c.l.b16 %v8504
  %v8635 = vunpack.c.l.b16 %v8505
  %v8636 = vunpack.c.l.b16 %v8506
  %v8637 = vunpack.c.l.b16 %v8507
  %v8638 = vunpack.c.l.b16 %v8508
  %v8639 = vunpack.c.l.b16 %v8509
  %v8640 = vunpack.c.l.b16 %v8510
  %v8641 = vunpack.c.l.b16 %v8511
  %v8642 = vunpack.c.l.b16 %v8512
  %v8643 = vunpack.c.l.b16 %v8513
  %v8644 = vunpack.c.l.b16 %v8514
  %v8645 = vunpack.c.l.b16 %v8515
  %v8646 = vunpack.c.l.b16 %v8516
  %v8647 = vunpack.c.l.b16 %v8517
  %v8648 = vunpack.c.l.b16 %v8518
  %v8649 = vunpack.c.l.b16 %v8519
  %v8650 = vunpack.c.l.b16 %v8520
  %v8651 = vunpack.c.l.b16 %v8521
  %v8652 = vunpack.c.l.b16 %v8522
  %v8653 = vunpack.c.l.b16 %v8523
  %v8654 = vunpack.c.l.b16 %v8524
  %v8655 = vunpack.c.l.b16 %v8525
  %v8656 = vunpack.c.l.b16 %v8526
  %v8657 = vunpack.c.l.b16 %v8527
  %v8658 = vunpack.c.l.b16 %v8528
  %v8659 = vunpack.c.l.b16 %v8529
  %v8660 = vunpack.c.l.b16 %v8530
  %v8661 = vunpack.c.l.b16 %v8531
  %v8662 = vunpack.c.l.b16 %v8532
  %v8663 = vunpack.c.l.b16 %v8533
  %v8664 = vunpack.c.l.b16 %v8534
  %v8665 = vunpack.c.l.b16 %v8535
  %v8666 = vunpack.c.l.b16 %v8536
  %v8667 = vunpack.c.l.b16 %v8537
  %v8668 = vunpack.c.l.b16 %v8538
  %v8669 = vunpack.c.l.b16 %v8539
  %v8670 = vunpack.c.l.b16 %v8540
  %v8671 = vunpack.c.l.b16 %v8541
  %v8672 = vunpack.c.l.b16 %v8542
  %v8673 = vunpack.c.l.b16 %v8543
  %v8674 = vunpack.c.l.b16 %v8544
  %v8675 = vunpack.c.l.b16 %v8545
  %v8676 = vunpack.c.l.b16 %v8546
  %v8677 = vunpack.c.l.b16 %v8547
  %v8678 = vunpack.c.l.b16 %v8548
  %v8679 = vunpack.c.l.b16 %v8549
  %v8680 = vunpack.c.l.b16 %v8550
  %v8681 = vunpack.c.l.b16 %v8551
  %v8682 = vunpack.c.l.b16 %v8552
  %v8683 = vpack.c.b16 %v8621, %v8620
  %v8684 = vpack.c.b16 %v8623, %v8622
  %v8685 = vpack.c.b16 %v8625, %v8624
  %v8686 = vpack.c.b16 %v8627, %v8626
  %v8687 = vpack.c.b16 %v8629, %v8628
  %v8688 = vpack.c.b16 %v8631, %v8630
  %v8689 = vpack.c.b16 %v8633, %v8632
  %v8690 = vpack.c.b16 %v8635, %v8634
  %v8691 = vpack.c.b16 %v8637, %v8636
  %v8692 = vpack.c.b16 %v8639, %v8638
  %v8693 = vpack.c.b16 %v8641, %v8640
  %v8694 = vpack.c.b16 %v8643, %v8642
  %v8695 = vpack.c.b16 %v8645, %v8644
  %v8696 = vpack.c.b16 %v8647, %v8646
  %v8697 = vpack.c.b16 %v8649, %v8648
  %v8698 = vpack.c.b16 %v8651, %v8650
  %v8699 = vpack.c.b16 %v8653, %v8652
  %v8700 = vpack.c.b16 %v8655, %v8654
  %v8701 = vpack.c.b16 %v8657, %v8656
  %v8702 = vpack.c.b16 %v8659, %v8658
  %v8703 = vpack.c.b16 %v8661, %v8660
  %v8704 = vpack.c.b16 %v8663, %v8662
  %v8705 = vpack.c.b16 %v8665, %v8664
  %v8706 = vpack.c.b16 %v8667, %v8666
  %v8707 = vpack.c.b16 %v8669, %v8668
  %v8708 = vpack.c.b16 %v8671, %v8670
  %v8709 = vpack.c.b16 %v8673, %v8672
  %v8710 = vpack.c.b16 %v8675, %v8674
  %v8711 = vpack.c.b16 %v8677, %v8676
  %v8712 = vpack.c.b16 %v8679, %v8678
  %v8713 = vpack.c.b16 %v8681, %v8680
  %v8714 = vpack.c.b16 %v8682, %v8682
  %vm8746 = vcmask 949248
  %v8748 = vsel %vm8746, %v8489, 0
  %vm8750 = vcmask 1041408
  %v8752 = vsel %vm8750, %v8714, 0
  %8754 = vmatpush.bf16.msra.mxu0 %v8690
  %8755 = vmatpush.bf16.msra.mxu0 %v8689
  %8756 = vmatpush.bf16.msra.mxu0 %v8688
  %8757 = vmatpush.bf16.msra.mxu0 %v8687
  %8758 = vmatpush.bf16.msra.mxu0 %v8686
  %8759 = vmatpush.bf16.msra.mxu0 %v8685
  %8760 = vmatpush.bf16.msra.mxu0 %v8684
  %8761 = vmatpush.bf16.msra.mxu0 %v8683
  %8762 = vmatmul.bf16.gmra.mxu0 %v8486
  %v8763 = vpop.f32.mrf.mxu0
  %v8764 = vadd.f32 %v8555, %v8763
  %v8765 = vpop.f32.mrf.mxu0
  %8766 = vdwg.mxu0
  %8767 = vmatpush.bf16.msra.mxu0 %v8698
  %8768 = vmatpush.bf16.msra.mxu0 %v8697
  %8769 = vmatpush.bf16.msra.mxu0 %v8696
  %8770 = vmatpush.bf16.msra.mxu0 %v8695
  %8771 = vmatpush.bf16.msra.mxu0 %v8694
  %8772 = vmatpush.bf16.msra.mxu0 %v8693
  %8773 = vmatpush.bf16.msra.mxu0 %v8692
  %8774 = vmatpush.bf16.msra.mxu0 %v8691
  %8775 = vmatmul.bf16.gmra.mxu0 %v8487
  %v8776 = vpop.f32.mrf.mxu0
  %v8777 = vadd.f32 %v8764, %v8776
  %v8778 = vpop.f32.mrf.mxu0
  %8779 = vdwg.mxu0
  %8780 = vmatpush.bf16.msra.mxu0 %v8706
  %8781 = vmatpush.bf16.msra.mxu0 %v8705
  %8782 = vmatpush.bf16.msra.mxu0 %v8704
  %8783 = vmatpush.bf16.msra.mxu0 %v8703
  %8784 = vmatpush.bf16.msra.mxu0 %v8702
  %8785 = vmatpush.bf16.msra.mxu0 %v8701
  %8786 = vmatpush.bf16.msra.mxu0 %v8700
  %8787 = vmatpush.bf16.msra.mxu0 %v8699
  %8788 = vmatmul.bf16.gmra.mxu0 %v8488
  %v8789 = vpop.f32.mrf.mxu0
  %v8790 = vadd.f32 %v8777, %v8789
  %v8791 = vpop.f32.mrf.mxu0
  %8792 = vdwg.mxu0
  %8793 = vmatpush.bf16.msra.mxu0 %v8752
  %8794 = vmatpush.bf16.msra.mxu0 %v8713
  %8795 = vmatpush.bf16.msra.mxu0 %v8712
  %8796 = vmatpush.bf16.msra.mxu0 %v8711
  %8797 = vmatpush.bf16.msra.mxu0 %v8710
  %8798 = vmatpush.bf16.msra.mxu0 %v8709
  %8799 = vmatpush.bf16.msra.mxu0 %v8708
  %8800 = vmatpush.bf16.msra.mxu0 %v8707
  %8801 = vmatmul.bf16.gmra.mxu0 %v8748
  %v8802 = vpop.f32.mrf.mxu0
  %v8803 = vadd.f32 %v8790, %v8802
  %v8804 = vpop.f32.mrf.mxu0
  %8805 = vdwg.mxu0
  %v8806 = vlaneseq
  %v8807 = vand.u32 %v8806, 127
  %vm8808 = vcmp.lt.s32.totalorder %v8807, 10
  %v8809 = vsel %vm8808, %v8803, -1e+30
  %8810 = vmax.xlane.f32.xlu0 %v8809
  %v8811 = vpop.xlane.xlu0 %8810
  %v8812 = vsub.f32 %v8809, %v8811
  %v8813 = vmul.f32 %v8812, 1.442695
  %v8814 = vpow.pop %v8813
  %8815 = vadd.xlane.f32.xlu0 %v8814
  %v8816 = vpop.xlane.xlu0 %8815
  %v8817 = vlog2.pop %v8816
  %v8818 = vmul.f32 %v8817, 0.6931472
  %v8819 = vsub.f32 %v8812, %v8818
  %8820 = vst [vmem:[%s9] sm:$0xff] %v8819
  // Predicated region
  $region38: #{net_forward.1} parent=0 // pred_check
    _
  $region39: #{net_forward.1} parent=0 // pred_check_branch
    %8822 = sbr.rel (0) target = $region41
  $region40: #{net_forward.1} parent=0 // pred_region
    _
  $region41: #{net_forward.1} parent=0 // pred_fallthru
    _
  // Predicated region
  $region42: #{net_forward.1} parent=0 // pred_check
    _
  $region43: #{net_forward.1} parent=0 // pred_check_branch
    %8824 = sbr.rel (0) target = $region45
  $region44: #{net_forward.1} parent=0 // pred_region
    _
  $region45: #{net_forward.1} parent=0 // pred_fallthru
    _

</llo_original>
